<compile_context>
chip_gen: v5e
topology: v5e:2x2
jax: 0.10.0
libtpu: 0.0.40
codegen_flags: <defaults>
</compile_context>

<pallas_src>
import functools

import numpy as np

import jax
import jax.numpy as jnp
from jax.experimental import pallas as pl
from jax.experimental.pallas import tpu as pltpu


# ---------------------------------------------------------------------------
# Kernel
# ---------------------------------------------------------------------------
def _pyconv2_kernel(x_ref, w_ref, o_ref, xpad_ref, col_ref, *, H, W, K, B):
    """Fused PyConv2 for a block of B images.

    x_ref    : (B, Cin, H, W)        input block (NCHW)
    w_ref    : (Cout, K*K*Cin)       fused, im2col-flattened tap weights
    o_ref    : (B, Cout, H*W)        output block, lane-dense last dim
    xpad_ref : (Cin, H+K-1, W+K-1)   VMEM scratch: zero-padded image
    col_ref  : (K*K*Cin, B*H*W)      VMEM scratch: im2col matrix
    """
    Cin = x_ref.shape[1]
    pad = K // 2
    Hp, Wp = H + K - 1, W + K - 1
    HW = H * W
    dt = xpad_ref.dtype

    # Zero ONLY the halo strips, every step.  The interior is fully
    # overwritten per image, and a pl.when(program_id==0) guard would be
    # wrong under megacore "parallel" sharding (per-core scratch).
    xpad_ref[:, :pad, :] = jnp.zeros((Cin, pad, Wp), dt)
    xpad_ref[:, pad + H:, :] = jnp.zeros((Cin, pad, Wp), dt)
    xpad_ref[:, pad:pad + H, :pad] = jnp.zeros((Cin, H, pad), dt)
    xpad_ref[:, pad:pad + H, pad + W:] = jnp.zeros((Cin, H, pad), dt)

    # im2col fill -- decoupled from the MXU/accumulate chain.
    for b in range(B):
        # TODO(synk): at production sizes, DMA x straight into the scratch
        # interior (memory_space=pl.ANY + pltpu.make_async_copy) instead of
        # this masked VMEM->VMEM interior store.
        xpad_ref[:, pad:pad + H, pad:pad + W] = x_ref[b]
        for kh in range(K):
            for kw in range(K):
                t = kh * K + kw
                col_ref[t * Cin:(t + 1) * Cin, b * HW:(b + 1) * HW] = (
                    xpad_ref[:, kh:kh + H, kw:kw + W].reshape(Cin, HW))

    # ONE MXU matmul with full K*K*Cin contraction depth, f32 accumulation.
    out = jnp.dot(w_ref[...], col_ref[...],
                  preferred_element_type=jnp.float32)

    # Lane-dense per-image stores; slices are at multiples of HW lanes.
    for b in range(B):
        o_ref[b] = out[:, b * HW:(b + 1) * HW].astype(o_ref.dtype)


# ---------------------------------------------------------------------------
# Trace-time weight fusion (built once, constant-folded under jit)
# ---------------------------------------------------------------------------
def _fuse_pyconv_weights(w1_oihw, w2_oihw, k1, k2, g1, g2, cin, dtype):
    """Build one lane-dense (Cout, K*K*Cin) im2col weight for both branches.

    * each branch's kxk kernel is embedded centred in the KxK grid
      (K = max(k1,k2)); the 'same' paddings (k//2) then line up exactly.
    * grouped branches are expanded block-diagonally over Cin (zeros in the
      cross-group blocks), so the kernel needs a single matmul.
    * flattening order matches the in-kernel im2col: row = (kh*K + kw)*Cin + c.
    """
    K = max(k1, k2)
    c1, c2 = w1_oihw.shape[0], w2_oihw.shape[0]
    cout = c1 + c2
    wf = jnp.zeros((K, K, cout, cin), jnp.float32)

    def embed(wf, w_oihw, k, groups, cout_off):
        co = w_oihw.shape[0]
        cin_g = cin // groups
        cout_g = co // groups
        off = (K - k) // 2
        w_t = jnp.transpose(w_oihw.astype(jnp.float32), (2, 3, 0, 1))
        for g in range(groups):
            wf = wf.at[off:off + k, off:off + k,
                       cout_off + g * cout_g:cout_off + (g + 1) * cout_g,
                       g * cin_g:(g + 1) * cin_g].set(
                           w_t[:, :, g * cout_g:(g + 1) * cout_g, :])
        return wf

    wf = embed(wf, w1_oihw, k1, g1, 0)
    wf = embed(wf, w2_oihw, k2, g2, c1)
    w_flat = jnp.transpose(wf, (2, 0, 1, 3)).reshape(cout, K * K * cin)
    return w_flat.astype(dtype)


def _imgs_per_block(N, HW, max_lanes=2048):
    """Widest image block that divides N, keeps >=2 grid steps (pipelining /
    core sharding) when possible, and caps the im2col lane width."""
    best = 1
    for b in range(1, N + 1):
        if N % b:
            continue
        if N > 1 and N // b < 2:
            continue
        if b * HW > max_lanes:
            continue
        best = b
    return best


# ---------------------------------------------------------------------------
# Forward
# ---------------------------------------------------------------------------
def pyconv2_forward(x_nchw, w1_oihw, w2_oihw,
                    pyconv_kernels=(3, 5), pyconv_groups=(1, 4),
                    compute_dtype=jnp.bfloat16):
    """PyConv2 forward (stride=1).  x: (N, Cin, H, W) -> (N, planes, H, W)."""
    N, Cin, H, W = x_nchw.shape
    k1, k2 = pyconv_kernels
    g1, g2 = pyconv_groups
    K = max(k1, k2)
    Cout = w1_oihw.shape[0] + w2_oihw.shape[0]
    HW = H * W
    KKC = K * K * Cin
    Hp, Wp = H + K - 1, W + K - 1
    out_dtype = x_nchw.dtype

    wf = _fuse_pyconv_weights(w1_oihw, w2_oihw, k1, k2, g1, g2, Cin,
                              compute_dtype)
    x_in = x_nchw.astype(compute_dtype)

    B = _imgs_per_block(N, HW)
    grid = (N // B,)

    kernel = functools.partial(_pyconv2_kernel, H=H, W=W, K=K, B=B)

    itm = np.dtype(compute_dtype).itemsize
    out_itm = np.dtype(out_dtype).itemsize
    # Real in-kernel MAC count (block-diagonal group expansion is dense).
    flops = 2 * N * HW * Cout * KKC
    bytes_accessed = (x_in.size * itm + wf.size * itm
                      + N * Cout * HW * out_itm)
    # VMEM: double-buffered in/out blocks + weight + scratch, 2x headroom.
    vmem_need = (2 * (B * Cin * H * W * itm + B * Cout * HW * out_itm)
                 + 2 * Cout * KKC * itm
                 + Cin * Hp * Wp * itm
                 + KKC * B * HW * itm)
    vmem_limit = int(min(100 * 1024 * 1024,
                         max(8 * 1024 * 1024, 2 * vmem_need)))

    out_flat = pl.pallas_call(
        kernel,
        out_shape=jax.ShapeDtypeStruct((N, Cout, HW), out_dtype),
        grid=grid,
        in_specs=[
            pl.BlockSpec((B, Cin, H, W), lambda n: (n, 0, 0, 0)),
            pl.BlockSpec((Cout, KKC), lambda n: (0, 0)),
        ],
        out_specs=pl.BlockSpec((B, Cout, HW), lambda n: (n, 0, 0)),
        scratch_shapes=[
            pltpu.VMEM((Cin, Hp, Wp), compute_dtype),
            pltpu.VMEM((KKC, B * HW), compute_dtype),
        ],
        compiler_params=pltpu.CompilerParams(
            dimension_semantics=("parallel",),
            vmem_limit_bytes=vmem_limit),
        cost_estimate=pl.CostEstimate(flops=flops, transcendentals=0,
                                      bytes_accessed=bytes_accessed),
    )(x_in, wf)

    # Contiguous reshape only -- no transpose, no extra HBM traffic.
    return out_flat.reshape(N, Cout, H, W)


if __name__ == "__main__":
    # Shapes consistent with the module: inplans=8, planes=8,
    # pyconv_kernels=[3,5], pyconv_groups=[1,4].
    N, Cin, H, W = 2, 8, 16, 16
    planes = 8

    key = jax.random.PRNGKey(0)
    kx, kw1, kw2 = jax.random.split(key, 3)

    x = jax.random.normal(kx, (N, Cin, H, W), dtype=jnp.float32)

    # PyTorch OIHW weights (kaiming-like scale):
    #   conv2_1: Conv2d(8 -> 4, k=3, groups=1) -> (4, 8, 3, 3)
    #   conv2_2: Conv2d(8 -> 4, k=5, groups=4) -> (4, 2, 5, 5)
    w1 = jax.random.normal(kw1, (planes // 2, Cin, 3, 3), jnp.float32)
    w1 = w1 * (2.0 / (Cin * 3 * 3)) ** 0.5
    w2 = jax.random.normal(kw2, (planes // 2, Cin // 4, 5, 5), jnp.float32)
    w2 = w2 * (2.0 / ((Cin // 4) * 5 * 5)) ** 0.5

    def ref(xv, w1v, w2v):
        r1 = jax.lax.conv_general_dilated(
            xv, w1v, window_strides=(1, 1), padding=[(1, 1), (1, 1)],
            dimension_numbers=("NCHW", "OIHW", "NCHW"), feature_group_count=1,
            preferred_element_type=jnp.float32)
        r2 = jax.lax.conv_general_dilated(
            xv, w2v, window_strides=(1, 1), padding=[(2, 2), (2, 2)],
            dimension_numbers=("NCHW", "OIHW", "NCHW"), feature_group_count=4,
            preferred_element_type=jnp.float32)
        return jnp.concatenate([r1, r2], axis=1)

    # f32 path: tight check against the XLA grouped-conv reference.
    fwd_f32 = jax.jit(functools.partial(pyconv2_forward,
                                        compute_dtype=jnp.float32))
    out_f32 = jax.block_until_ready(fwd_f32(x, w1, w2))
    assert out_f32.shape == (N, planes, H, W), out_f32.shape
    ref_f32 = ref(x, w1, w2)
    err = float(jnp.max(jnp.abs(out_f32 - ref_f32)))
    assert jnp.allclose(out_f32, ref_f32, atol=1e-3, rtol=1e-3), err

    # bf16 path (default, perf config): compare against a bf16-input,
    # f32-accumulation reference.
    fwd_bf16 = jax.jit(pyconv2_forward)
    out_bf16 = jax.block_until_ready(fwd_bf16(x, w1, w2))
    ref_bf16 = ref(x.astype(jnp.bfloat16), w1.astype(jnp.bfloat16),
                   w2.astype(jnp.bfloat16)).astype(jnp.float32)
    errb = float(jnp.max(jnp.abs(out_bf16.astype(jnp.float32) - ref_bf16)))
    assert jnp.allclose(out_bf16.astype(jnp.float32), ref_bf16,
                        atol=2e-2, rtol=2e-2), errb

    print("KERNEL_OK")
</pallas_src>

<mosaic_0001>
module attributes {stable_mosaic.version = 11 : i64} {
  func.func @_pyconv2_kernel(%arg0: i32, %arg1: memref<1x8x16x16xf32, #tpu.memory_space<vmem>>, %arg2: memref<8x200xf32, #tpu.memory_space<vmem>>, %arg3: memref<1x8x256xf32, #tpu.memory_space<vmem>>, %arg4: memref<8x20x20xf32, #tpu.memory_space<vmem>>, %arg5: memref<200x256xf32, #tpu.memory_space<vmem>>) attributes {dimension_semantics = [#tpu.dimension_semantics<parallel>], iteration_bounds = array<i64: 2>, scalar_prefetch = 0 : i64, scratch_operands = 2 : i64, tpu.core_type = #tpu.core_type<tc>, window_params = [{transform_indices = @transform_0, window_bounds = array<i64: 1, 8, 16, 16>}, {pipeline_mode = #tpu.pipeline_mode<synchronous>, transform_indices = @transform_1, window_bounds = array<i64: 8, 200>}, {transform_indices = @transform_2, window_bounds = array<i64: 1, 8, 256>}]} {
    %cst = arith.constant 0.000000e+00 : f32
    %0 = vector.broadcast %cst : f32 to vector<8x2x20xf32>
    %c0 = arith.constant 0 : index
    %c0_0 = arith.constant 0 : index
    %c0_1 = arith.constant 0 : index
    %1 = vector.load %arg4[%c0, %c0_0, %c0_1] : memref<8x20x20xf32, #tpu.memory_space<vmem>>, vector<8x2x20xf32>
    tpu.vector_store %arg4[%c0, %c0_0, %c0_1], %0 {strides = array<i32>} : memref<8x20x20xf32, #tpu.memory_space<vmem>>, vector<8x2x20xf32>,
    %cst_2 = arith.constant 0.000000e+00 : f32
    %2 = vector.broadcast %cst_2 : f32 to vector<8x2x20xf32>
    %c0_3 = arith.constant 0 : index
    %c18 = arith.constant 18 : index
    %c0_4 = arith.constant 0 : index
    %3 = vector.load %arg4[%c0_3, %c18, %c0_4] : memref<8x20x20xf32, #tpu.memory_space<vmem>>, vector<8x2x20xf32>
    tpu.vector_store %arg4[%c0_3, %c18, %c0_4], %2 {strides = array<i32>} : memref<8x20x20xf32, #tpu.memory_space<vmem>>, vector<8x2x20xf32>,
    %cst_5 = arith.constant 0.000000e+00 : f32
    %4 = vector.broadcast %cst_5 : f32 to vector<8x16x2xf32>
    %c0_6 = arith.constant 0 : index
    %c2 = arith.constant 2 : index
    %c0_7 = arith.constant 0 : index
    %5 = vector.load %arg4[%c0_6, %c2, %c0_7] : memref<8x20x20xf32, #tpu.memory_space<vmem>>, vector<8x16x2xf32>
    tpu.vector_store %arg4[%c0_6, %c2, %c0_7], %4 {strides = array<i32>} : memref<8x20x20xf32, #tpu.memory_space<vmem>>, vector<8x16x2xf32>,
    %cst_8 = arith.constant 0.000000e+00 : f32
    %6 = vector.broadcast %cst_8 : f32 to vector<8x16x2xf32>
    %c0_9 = arith.constant 0 : index
    %c2_10 = arith.constant 2 : index
    %c18_11 = arith.constant 18 : index
    %7 = vector.load %arg4[%c0_9, %c2_10, %c18_11] : memref<8x20x20xf32, #tpu.memory_space<vmem>>, vector<8x16x2xf32>
    tpu.vector_store %arg4[%c0_9, %c2_10, %c18_11], %6 {strides = array<i32>} : memref<8x20x20xf32, #tpu.memory_space<vmem>>, vector<8x16x2xf32>,
    %c0_12 = arith.constant 0 : index
    %c0_13 = arith.constant 0 : index
    %c0_14 = arith.constant 0 : index
    %c0_15 = arith.constant 0 : index
    %8 = vector.load %arg1[%c0_12, %c0_13, %c0_14, %c0_15] : memref<1x8x16x16xf32, #tpu.memory_space<vmem>>, vector<1x8x16x16xf32>
    %9 = vector.shape_cast %8 : vector<1x8x16x16xf32> to vector<8x16x16xf32>
    %c0_16 = arith.constant 0 : index
    %c2_17 = arith.constant 2 : index
    %c2_18 = arith.constant 2 : index
    %10 = vector.load %arg4[%c0_16, %c2_17, %c2_18] : memref<8x20x20xf32, #tpu.memory_space<vmem>>, vector<8x16x16xf32>
    tpu.vector_store %arg4[%c0_16, %c2_17, %c2_18], %9 {strides = array<i32>} : memref<8x20x20xf32, #tpu.memory_space<vmem>>, vector<8x16x16xf32>,
    %c0_19 = arith.constant 0 : index
    %c0_20 = arith.constant 0 : index
    %c0_21 = arith.constant 0 : index
    %11 = vector.load %arg4[%c0_19, %c0_20, %c0_21] : memref<8x20x20xf32, #tpu.memory_space<vmem>>, vector<8x16x16xf32>
    %12 = vector.shape_cast %11 : vector<8x16x16xf32> to vector<8x256xf32>
    %c0_22 = arith.constant 0 : index
    %c0_23 = arith.constant 0 : index
    %13 = vector.load %arg5[%c0_22, %c0_23] : memref<200x256xf32, #tpu.memory_space<vmem>>, vector<8x256xf32>
    tpu.vector_store %arg5[%c0_22, %c0_23], %12 {strides = array<i32>} : memref<200x256xf32, #tpu.memory_space<vmem>>, vector<8x256xf32>,
    %c0_24 = arith.constant 0 : index
    %c0_25 = arith.constant 0 : index
    %c1 = arith.constant 1 : index
    %14 = vector.load %arg4[%c0_24, %c0_25, %c1] : memref<8x20x20xf32, #tpu.memory_space<vmem>>, vector<8x16x16xf32>
    %15 = vector.shape_cast %14 : vector<8x16x16xf32> to vector<8x256xf32>
    %c8 = arith.constant 8 : index
    %c0_26 = arith.constant 0 : index
    %16 = vector.load %arg5[%c8, %c0_26] : memref<200x256xf32, #tpu.memory_space<vmem>>, vector<8x256xf32>
    tpu.vector_store %arg5[%c8, %c0_26], %15 {strides = array<i32>} : memref<200x256xf32, #tpu.memory_space<vmem>>, vector<8x256xf32>,
    %c0_27 = arith.constant 0 : index
    %c0_28 = arith.constant 0 : index
    %c2_29 = arith.constant 2 : index
    %17 = vector.load %arg4[%c0_27, %c0_28, %c2_29] : memref<8x20x20xf32, #tpu.memory_space<vmem>>, vector<8x16x16xf32>
    %18 = vector.shape_cast %17 : vector<8x16x16xf32> to vector<8x256xf32>
    %c16 = arith.constant 16 : index
    %c0_30 = arith.constant 0 : index
    %19 = vector.load %arg5[%c16, %c0_30] : memref<200x256xf32, #tpu.memory_space<vmem>>, vector<8x256xf32>
    tpu.vector_store %arg5[%c16, %c0_30], %18 {strides = array<i32>} : memref<200x256xf32, #tpu.memory_space<vmem>>, vector<8x256xf32>,
    %c0_31 = arith.constant 0 : index
    %c0_32 = arith.constant 0 : index
    %c3 = arith.constant 3 : index
    %20 = vector.load %arg4[%c0_31, %c0_32, %c3] : memref<8x20x20xf32, #tpu.memory_space<vmem>>, vector<8x16x16xf32>
    %21 = vector.shape_cast %20 : vector<8x16x16xf32> to vector<8x256xf32>
    %c24 = arith.constant 24 : index
    %c0_33 = arith.constant 0 : index
    %22 = vector.load %arg5[%c24, %c0_33] : memref<200x256xf32, #tpu.memory_space<vmem>>, vector<8x256xf32>
    tpu.vector_store %arg5[%c24, %c0_33], %21 {strides = array<i32>} : memref<200x256xf32, #tpu.memory_space<vmem>>, vector<8x256xf32>,
    %c0_34 = arith.constant 0 : index
    %c0_35 = arith.constant 0 : index
    %c4 = arith.constant 4 : index
    %23 = vector.load %arg4[%c0_34, %c0_35, %c4] : memref<8x20x20xf32, #tpu.memory_space<vmem>>, vector<8x16x16xf32>
    %24 = vector.shape_cast %23 : vector<8x16x16xf32> to vector<8x256xf32>
    %c32 = arith.constant 32 : index
    %c0_36 = arith.constant 0 : index
    %25 = vector.load %arg5[%c32, %c0_36] : memref<200x256xf32, #tpu.memory_space<vmem>>, vector<8x256xf32>
    tpu.vector_store %arg5[%c32, %c0_36], %24 {strides = array<i32>} : memref<200x256xf32, #tpu.memory_space<vmem>>, vector<8x256xf32>,
    %c0_37 = arith.constant 0 : index
    %c1_38 = arith.constant 1 : index
    %c0_39 = arith.constant 0 : index
    %26 = vector.load %arg4[%c0_37, %c1_38, %c0_39] : memref<8x20x20xf32, #tpu.memory_space<vmem>>, vector<8x16x16xf32>
    %27 = vector.shape_cast %26 : vector<8x16x16xf32> to vector<8x256xf32>
    %c40 = arith.constant 40 : index
    %c0_40 = arith.constant 0 : index
    %28 = vector.load %arg5[%c40, %c0_40] : memref<200x256xf32, #tpu.memory_space<vmem>>, vector<8x256xf32>
    tpu.vector_store %arg5[%c40, %c0_40], %27 {strides = array<i32>} : memref<200x256xf32, #tpu.memory_space<vmem>>, vector<8x256xf32>,
    %c0_41 = arith.constant 0 : index
    %c1_42 = arith.constant 1 : index
    %c1_43 = arith.constant 1 : index
    %29 = vector.load %arg4[%c0_41, %c1_42, %c1_43] : memref<8x20x20xf32, #tpu.memory_space<vmem>>, vector<8x16x16xf32>
    %30 = vector.shape_cast %29 : vector<8x16x16xf32> to vector<8x256xf32>
    %c48 = arith.constant 48 : index
    %c0_44 = arith.constant 0 : index
    %31 = vector.load %arg5[%c48, %c0_44] : memref<200x256xf32, #tpu.memory_space<vmem>>, vector<8x256xf32>
    tpu.vector_store %arg5[%c48, %c0_44], %30 {strides = array<i32>} : memref<200x256xf32, #tpu.memory_space<vmem>>, vector<8x256xf32>,
    %c0_45 = arith.constant 0 : index
    %c1_46 = arith.constant 1 : index
    %c2_47 = arith.constant 2 : index
    %32 = vector.load %arg4[%c0_45, %c1_46, %c2_47] : memref<8x20x20xf32, #tpu.memory_space<vmem>>, vector<8x16x16xf32>
    %33 = vector.shape_cast %32 : vector<8x16x16xf32> to vector<8x256xf32>
    %c56 = arith.constant 56 : index
    %c0_48 = arith.constant 0 : index
    %34 = vector.load %arg5[%c56, %c0_48] : memref<200x256xf32, #tpu.memory_space<vmem>>, vector<8x256xf32>
    tpu.vector_store %arg5[%c56, %c0_48], %33 {strides = array<i32>} : memref<200x256xf32, #tpu.memory_space<vmem>>, vector<8x256xf32>,
    %c0_49 = arith.constant 0 : index
    %c1_50 = arith.constant 1 : index
    %c3_51 = arith.constant 3 : index
    %35 = vector.load %arg4[%c0_49, %c1_50, %c3_51] : memref<8x20x20xf32, #tpu.memory_space<vmem>>, vector<8x16x16xf32>
    %36 = vector.shape_cast %35 : vector<8x16x16xf32> to vector<8x256xf32>
    %c64 = arith.constant 64 : index
    %c0_52 = arith.constant 0 : index
    %37 = vector.load %arg5[%c64, %c0_52] : memref<200x256xf32, #tpu.memory_space<vmem>>, vector<8x256xf32>
    tpu.vector_store %arg5[%c64, %c0_52], %36 {strides = array<i32>} : memref<200x256xf32, #tpu.memory_space<vmem>>, vector<8x256xf32>,
    %c0_53 = arith.constant 0 : index
    %c1_54 = arith.constant 1 : index
    %c4_55 = arith.constant 4 : index
    %38 = vector.load %arg4[%c0_53, %c1_54, %c4_55] : memref<8x20x20xf32, #tpu.memory_space<vmem>>, vector<8x16x16xf32>
    %39 = vector.shape_cast %38 : vector<8x16x16xf32> to vector<8x256xf32>
    %c72 = arith.constant 72 : index
    %c0_56 = arith.constant 0 : index
    %40 = vector.load %arg5[%c72, %c0_56] : memref<200x256xf32, #tpu.memory_space<vmem>>, vector<8x256xf32>
    tpu.vector_store %arg5[%c72, %c0_56], %39 {strides = array<i32>} : memref<200x256xf32, #tpu.memory_space<vmem>>, vector<8x256xf32>,
    %c0_57 = arith.constant 0 : index
    %c2_58 = arith.constant 2 : index
    %c0_59 = arith.constant 0 : index
    %41 = vector.load %arg4[%c0_57, %c2_58, %c0_59] : memref<8x20x20xf32, #tpu.memory_space<vmem>>, vector<8x16x16xf32>
    %42 = vector.shape_cast %41 : vector<8x16x16xf32> to vector<8x256xf32>
    %c80 = arith.constant 80 : index
    %c0_60 = arith.constant 0 : index
    %43 = vector.load %arg5[%c80, %c0_60] : memref<200x256xf32, #tpu.memory_space<vmem>>, vector<8x256xf32>
    tpu.vector_store %arg5[%c80, %c0_60], %42 {strides = array<i32>} : memref<200x256xf32, #tpu.memory_space<vmem>>, vector<8x256xf32>,
    %c0_61 = arith.constant 0 : index
    %c2_62 = arith.constant 2 : index
    %c1_63 = arith.constant 1 : index
    %44 = vector.load %arg4[%c0_61, %c2_62, %c1_63] : memref<8x20x20xf32, #tpu.memory_space<vmem>>, vector<8x16x16xf32>
    %45 = vector.shape_cast %44 : vector<8x16x16xf32> to vector<8x256xf32>
    %c88 = arith.constant 88 : index
    %c0_64 = arith.constant 0 : index
    %46 = vector.load %arg5[%c88, %c0_64] : memref<200x256xf32, #tpu.memory_space<vmem>>, vector<8x256xf32>
    tpu.vector_store %arg5[%c88, %c0_64], %45 {strides = array<i32>} : memref<200x256xf32, #tpu.memory_space<vmem>>, vector<8x256xf32>,
    %c0_65 = arith.constant 0 : index
    %c2_66 = arith.constant 2 : index
    %c2_67 = arith.constant 2 : index
    %47 = vector.load %arg4[%c0_65, %c2_66, %c2_67] : memref<8x20x20xf32, #tpu.memory_space<vmem>>, vector<8x16x16xf32>
    %48 = vector.shape_cast %47 : vector<8x16x16xf32> to vector<8x256xf32>
    %c96 = arith.constant 96 : index
    %c0_68 = arith.constant 0 : index
    %49 = vector.load %arg5[%c96, %c0_68] : memref<200x256xf32, #tpu.memory_space<vmem>>, vector<8x256xf32>
    tpu.vector_store %arg5[%c96, %c0_68], %48 {strides = array<i32>} : memref<200x256xf32, #tpu.memory_space<vmem>>, vector<8x256xf32>,
    %c0_69 = arith.constant 0 : index
    %c2_70 = arith.constant 2 : index
    %c3_71 = arith.constant 3 : index
    %50 = vector.load %arg4[%c0_69, %c2_70, %c3_71] : memref<8x20x20xf32, #tpu.memory_space<vmem>>, vector<8x16x16xf32>
    %51 = vector.shape_cast %50 : vector<8x16x16xf32> to vector<8x256xf32>
    %c104 = arith.constant 104 : index
    %c0_72 = arith.constant 0 : index
    %52 = vector.load %arg5[%c104, %c0_72] : memref<200x256xf32, #tpu.memory_space<vmem>>, vector<8x256xf32>
    tpu.vector_store %arg5[%c104, %c0_72], %51 {strides = array<i32>} : memref<200x256xf32, #tpu.memory_space<vmem>>, vector<8x256xf32>,
    %c0_73 = arith.constant 0 : index
    %c2_74 = arith.constant 2 : index
    %c4_75 = arith.constant 4 : index
    %53 = vector.load %arg4[%c0_73, %c2_74, %c4_75] : memref<8x20x20xf32, #tpu.memory_space<vmem>>, vector<8x16x16xf32>
    %54 = vector.shape_cast %53 : vector<8x16x16xf32> to vector<8x256xf32>
    %c112 = arith.constant 112 : index
    %c0_76 = arith.constant 0 : index
    %55 = vector.load %arg5[%c112, %c0_76] : memref<200x256xf32, #tpu.memory_space<vmem>>, vector<8x256xf32>
    tpu.vector_store %arg5[%c112, %c0_76], %54 {strides = array<i32>} : memref<200x256xf32, #tpu.memory_space<vmem>>, vector<8x256xf32>,
    %c0_77 = arith.constant 0 : index
    %c3_78 = arith.constant 3 : index
    %c0_79 = arith.constant 0 : index
    %56 = vector.load %arg4[%c0_77, %c3_78, %c0_79] : memref<8x20x20xf32, #tpu.memory_space<vmem>>, vector<8x16x16xf32>
    %57 = vector.shape_cast %56 : vector<8x16x16xf32> to vector<8x256xf32>
    %c120 = arith.constant 120 : index
    %c0_80 = arith.constant 0 : index
    %58 = vector.load %arg5[%c120, %c0_80] : memref<200x256xf32, #tpu.memory_space<vmem>>, vector<8x256xf32>
    tpu.vector_store %arg5[%c120, %c0_80], %57 {strides = array<i32>} : memref<200x256xf32, #tpu.memory_space<vmem>>, vector<8x256xf32>,
    %c0_81 = arith.constant 0 : index
    %c3_82 = arith.constant 3 : index
    %c1_83 = arith.constant 1 : index
    %59 = vector.load %arg4[%c0_81, %c3_82, %c1_83] : memref<8x20x20xf32, #tpu.memory_space<vmem>>, vector<8x16x16xf32>
    %60 = vector.shape_cast %59 : vector<8x16x16xf32> to vector<8x256xf32>
    %c128 = arith.constant 128 : index
    %c0_84 = arith.constant 0 : index
    %61 = vector.load %arg5[%c128, %c0_84] : memref<200x256xf32, #tpu.memory_space<vmem>>, vector<8x256xf32>
    tpu.vector_store %arg5[%c128, %c0_84], %60 {strides = array<i32>} : memref<200x256xf32, #tpu.memory_space<vmem>>, vector<8x256xf32>,
    %c0_85 = arith.constant 0 : index
    %c3_86 = arith.constant 3 : index
    %c2_87 = arith.constant 2 : index
    %62 = vector.load %arg4[%c0_85, %c3_86, %c2_87] : memref<8x20x20xf32, #tpu.memory_space<vmem>>, vector<8x16x16xf32>
    %63 = vector.shape_cast %62 : vector<8x16x16xf32> to vector<8x256xf32>
    %c136 = arith.constant 136 : index
    %c0_88 = arith.constant 0 : index
    %64 = vector.load %arg5[%c136, %c0_88] : memref<200x256xf32, #tpu.memory_space<vmem>>, vector<8x256xf32>
    tpu.vector_store %arg5[%c136, %c0_88], %63 {strides = array<i32>} : memref<200x256xf32, #tpu.memory_space<vmem>>, vector<8x256xf32>,
    %c0_89 = arith.constant 0 : index
    %c3_90 = arith.constant 3 : index
    %c3_91 = arith.constant 3 : index
    %65 = vector.load %arg4[%c0_89, %c3_90, %c3_91] : memref<8x20x20xf32, #tpu.memory_space<vmem>>, vector<8x16x16xf32>
    %66 = vector.shape_cast %65 : vector<8x16x16xf32> to vector<8x256xf32>
    %c144 = arith.constant 144 : index
    %c0_92 = arith.constant 0 : index
    %67 = vector.load %arg5[%c144, %c0_92] : memref<200x256xf32, #tpu.memory_space<vmem>>, vector<8x256xf32>
    tpu.vector_store %arg5[%c144, %c0_92], %66 {strides = array<i32>} : memref<200x256xf32, #tpu.memory_space<vmem>>, vector<8x256xf32>,
    %c0_93 = arith.constant 0 : index
    %c3_94 = arith.constant 3 : index
    %c4_95 = arith.constant 4 : index
    %68 = vector.load %arg4[%c0_93, %c3_94, %c4_95] : memref<8x20x20xf32, #tpu.memory_space<vmem>>, vector<8x16x16xf32>
    %69 = vector.shape_cast %68 : vector<8x16x16xf32> to vector<8x256xf32>
    %c152 = arith.constant 152 : index
    %c0_96 = arith.constant 0 : index
    %70 = vector.load %arg5[%c152, %c0_96] : memref<200x256xf32, #tpu.memory_space<vmem>>, vector<8x256xf32>
    tpu.vector_store %arg5[%c152, %c0_96], %69 {strides = array<i32>} : memref<200x256xf32, #tpu.memory_space<vmem>>, vector<8x256xf32>,
    %c0_97 = arith.constant 0 : index
    %c4_98 = arith.constant 4 : index
    %c0_99 = arith.constant 0 : index
    %71 = vector.load %arg4[%c0_97, %c4_98, %c0_99] : memref<8x20x20xf32, #tpu.memory_space<vmem>>, vector<8x16x16xf32>
    %72 = vector.shape_cast %71 : vector<8x16x16xf32> to vector<8x256xf32>
    %c160 = arith.constant 160 : index
    %c0_100 = arith.constant 0 : index
    %73 = vector.load %arg5[%c160, %c0_100] : memref<200x256xf32, #tpu.memory_space<vmem>>, vector<8x256xf32>
    tpu.vector_store %arg5[%c160, %c0_100], %72 {strides = array<i32>} : memref<200x256xf32, #tpu.memory_space<vmem>>, vector<8x256xf32>,
    %c0_101 = arith.constant 0 : index
    %c4_102 = arith.constant 4 : index
    %c1_103 = arith.constant 1 : index
    %74 = vector.load %arg4[%c0_101, %c4_102, %c1_103] : memref<8x20x20xf32, #tpu.memory_space<vmem>>, vector<8x16x16xf32>
    %75 = vector.shape_cast %74 : vector<8x16x16xf32> to vector<8x256xf32>
    %c168 = arith.constant 168 : index
    %c0_104 = arith.constant 0 : index
    %76 = vector.load %arg5[%c168, %c0_104] : memref<200x256xf32, #tpu.memory_space<vmem>>, vector<8x256xf32>
    tpu.vector_store %arg5[%c168, %c0_104], %75 {strides = array<i32>} : memref<200x256xf32, #tpu.memory_space<vmem>>, vector<8x256xf32>,
    %c0_105 = arith.constant 0 : index
    %c4_106 = arith.constant 4 : index
    %c2_107 = arith.constant 2 : index
    %77 = vector.load %arg4[%c0_105, %c4_106, %c2_107] : memref<8x20x20xf32, #tpu.memory_space<vmem>>, vector<8x16x16xf32>
    %78 = vector.shape_cast %77 : vector<8x16x16xf32> to vector<8x256xf32>
    %c176 = arith.constant 176 : index
    %c0_108 = arith.constant 0 : index
    %79 = vector.load %arg5[%c176, %c0_108] : memref<200x256xf32, #tpu.memory_space<vmem>>, vector<8x256xf32>
    tpu.vector_store %arg5[%c176, %c0_108], %78 {strides = array<i32>} : memref<200x256xf32, #tpu.memory_space<vmem>>, vector<8x256xf32>,
    %c0_109 = arith.constant 0 : index
    %c4_110 = arith.constant 4 : index
    %c3_111 = arith.constant 3 : index
    %80 = vector.load %arg4[%c0_109, %c4_110, %c3_111] : memref<8x20x20xf32, #tpu.memory_space<vmem>>, vector<8x16x16xf32>
    %81 = vector.shape_cast %80 : vector<8x16x16xf32> to vector<8x256xf32>
    %c184 = arith.constant 184 : index
    %c0_112 = arith.constant 0 : index
    %82 = vector.load %arg5[%c184, %c0_112] : memref<200x256xf32, #tpu.memory_space<vmem>>, vector<8x256xf32>
    tpu.vector_store %arg5[%c184, %c0_112], %81 {strides = array<i32>} : memref<200x256xf32, #tpu.memory_space<vmem>>, vector<8x256xf32>,
    %c0_113 = arith.constant 0 : index
    %c4_114 = arith.constant 4 : index
    %c4_115 = arith.constant 4 : index
    %83 = vector.load %arg4[%c0_113, %c4_114, %c4_115] : memref<8x20x20xf32, #tpu.memory_space<vmem>>, vector<8x16x16xf32>
    %84 = vector.shape_cast %83 : vector<8x16x16xf32> to vector<8x256xf32>
    %c192 = arith.constant 192 : index
    %c0_116 = arith.constant 0 : index
    %85 = vector.load %arg5[%c192, %c0_116] : memref<200x256xf32, #tpu.memory_space<vmem>>, vector<8x256xf32>
    tpu.vector_store %arg5[%c192, %c0_116], %84 {strides = array<i32>} : memref<200x256xf32, #tpu.memory_space<vmem>>, vector<8x256xf32>,
    %c0_117 = arith.constant 0 : index
    %c0_118 = arith.constant 0 : index
    %86 = vector.load %arg2[%c0_117, %c0_118] : memref<8x200xf32, #tpu.memory_space<vmem>>, vector<8x200xf32>
    %c0_119 = arith.constant 0 : index
    %c0_120 = arith.constant 0 : index
    %87 = vector.load %arg5[%c0_119, %c0_120] : memref<200x256xf32, #tpu.memory_space<vmem>>, vector<200x256xf32>
    %cst_121 = arith.constant dense<0.000000e+00> : vector<8x256xf32>
    %88 = tpu.matmul %86, %87, %cst_121 {dimension_numbers = #tpu.dot_dimension_numbers<[1], [0], [0], [1], [0, 0, 1, 1], [], []>} : vector<8x200xf32>, vector<200x256xf32>, vector<8x256xf32> -> vector<8x256xf32>
    %c0_122 = arith.constant 0 : index
    %c0_123 = arith.constant 0 : index
    %c0_124 = arith.constant 0 : index
    %89 = vector.load %arg3[%c0_122, %c0_123, %c0_124] : memref<1x8x256xf32, #tpu.memory_space<vmem>>, vector<1x8x256xf32>
    %90 = vector.shape_cast %89 : vector<1x8x256xf32> to vector<8x256xf32>
    %91 = vector.shape_cast %88 : vector<8x256xf32> to vector<1x8x256xf32>
    tpu.vector_store %arg3[%c0_122, %c0_123, %c0_124], %91 {strides = array<i32>} : memref<1x8x256xf32, #tpu.memory_space<vmem>>, vector<1x8x256xf32>,
    return
  }
  func.func @transform_0(%arg0: i32) -> (i32, i32, i32, i32) {
    %c0_i32 = arith.constant 0 : i32
    %c0_i32_0 = arith.constant 0 : i32
    %c0_i32_1 = arith.constant 0 : i32
    %c0_i32_2 = arith.constant 0 : i32
    return %arg0, %c0_i32, %c0_i32_0, %c0_i32_1 : i32, i32, i32, i32
  }
  func.func @transform_1(%arg0: i32) -> (i32, i32) {
    %c0_i32 = arith.constant 0 : i32
    %c0_i32_0 = arith.constant 0 : i32
    %c0_i32_1 = arith.constant 0 : i32
    return %c0_i32, %c0_i32_0 : i32, i32
  }
  func.func @transform_2(%arg0: i32) -> (i32, i32, i32) {
    %c0_i32 = arith.constant 0 : i32
    %c0_i32_0 = arith.constant 0 : i32
    %c0_i32_1 = arith.constant 0 : i32
    return %arg0, %c0_i32, %c0_i32_0 : i32, i32, i32
  }
}

</mosaic_0001>

<llo_original>
// kernel: pyconv2_forward.1
$region0: #{pyconv2_forward.1}
  #allocation0 [shape = 'u32[]', space=smem, size = 0x4, offset = 0x4, fixed_abs, tag = 'smem constant byte address 0x4 - core index']
  #allocation1 [shape = 'u32[72,128]{1,0:T(1,128)}', space=vmem, size = 0x9000, scoped, tag = 'internal scratch']
  #allocation2 [shape = 'f32[8,20,20]{2,1,0:T(8,128)}', space=vmem, size = 0x18000, scoped, tag = 'scratch operand']
  #allocation3 [shape = 'f32[200,256]{1,0:T(8,128)}', space=vmem, size = 0x32000, scoped, tag = 'scratch operand']
  %s0 = inlined_call_operand.vmem [shape: f32[2,8,16,16], index: 0, kind: input, shape index: {}]
  %s1 = inlined_call_operand.vmem [shape: f32[8,200], index: 1, kind: input, shape index: {}]
  %s2 = inlined_call_operand.vmem [shape: f32[2,8,256], index: 2, kind: output, shape index: {}]
  %s3 = sld [smem:[#allocation0]]
  $region41: #{pyconv2_forward.1} parent=0
    _
  %s5 = ssub.s32 1, %s3
  %s6 = scalar_select 0, %s5, %s3
  loop: start=0, step=1, limit=4
  $region2: #{pyconv2_forward.1} parent=0 // loop_pre_header
    _
  $region3: #{pyconv2_forward.1} parent=0 // loop_header
    %s8 = sphi 0, %s12
    %p9 = scmp.ge.s32.totalorder %s8, 4
    %s18 = sphi 0, %s20
    %s21 = sphi 0, %s18
    %s22 = sphi 0, %s21
    %s38 = sphi 0, %s22
    %s42 = sphi 0, %s42
    %s44 = sphi 0, %s42
    %s45 = sphi 0, %s44
    %s59 = sphi 0, %s45
    %s65 = sphi 0, %s67
    %s68 = sphi 0, %s65
    %s69 = sphi 0, %s68
    %s85 = sphi 0, %s69
  $region4: #{pyconv2_forward.1} parent=0 // loop_header_branch
    %11 = sbr.rel (%p9) target = $region8
  $region5: #{pyconv2_forward.1} parent=0 // loop_body
    %s13 = ssub.s32 %s8, 1
    %s14 = ssub.s32 %s8, 2
    %s15 = sadd.s32 %s8, 1
    %s16 = ssub.s32 %s8, %s15
    %p17 = scmp.eq.s32.totalorder %s16, 0
    %s19 = sadd.s32 %s18, 1
    %s20 = scalar_select %p17, %s18, %s19
    %p23 = pneg %p17
    %p24 = scmp.eq.s32.totalorder %s8, 1
    %p25 = por %p23, %p24
    %p26 = scmp.ne.s32.totalorder %s18, %s21
    %p27 = scmp.eq.s32.totalorder %s8, 0
    %p28 = por %p26, %p27
    %p29 = scmp.ne.s32.totalorder %s18, %s21
    %p30 = scmp.eq.s32.totalorder %s13, 1
    %p31 = por %p29, %p30
    %p32 = scmp.ne.s32.totalorder %s21, %s22
    %p33 = scmp.eq.s32.totalorder %s13, 0
    %p34 = por %p32, %p33
    %p35 = scmp.ne.s32.totalorder %s21, %s22
    %p36 = scmp.eq.s32.totalorder %s14, 1
    %p37 = por %p35, %p36
    %p39 = scmp.ne.s32.totalorder %s22, %s38
    %p40 = scmp.eq.s32.totalorder %s14, 0
    %p41 = por %p39, %p40
    %s43 = sadd.s32 %s42, 1
    %p46 = scmp.eq.s32.totalorder %s8, 1
    %p47 = scmp.ne.s32.totalorder %s42, %s44
    %p48 = scmp.eq.s32.totalorder %s8, 0
    %p49 = por %p47, %p48
    %p50 = scmp.ne.s32.totalorder %s42, %s44
    %p51 = scmp.eq.s32.totalorder %s13, 1
    %p52 = por %p50, %p51
    %p53 = scmp.ne.s32.totalorder %s44, %s45
    %p54 = scmp.eq.s32.totalorder %s13, 0
    %p55 = por %p53, %p54
    %p56 = scmp.ne.s32.totalorder %s44, %s45
    %p57 = scmp.eq.s32.totalorder %s14, 1
    %p58 = por %p56, %p57
    %p60 = scmp.ne.s32.totalorder %s45, %s59
    %p61 = scmp.eq.s32.totalorder %s14, 0
    %p62 = por %p60, %p61
    %s63 = ssub.s32 %s8, %s15
    %p64 = scmp.eq.s32.totalorder %s63, 0
    %s66 = sadd.s32 %s65, 1
    %s67 = scalar_select %p64, %s65, %s66
    %p70 = pneg %p64
    %p71 = scmp.eq.s32.totalorder %s8, 1
    %p72 = por %p70, %p71
    %p73 = scmp.ne.s32.totalorder %s65, %s68
    %p74 = scmp.eq.s32.totalorder %s8, 0
    %p75 = por %p73, %p74
    %p76 = scmp.ne.s32.totalorder %s65, %s68
    %p77 = scmp.eq.s32.totalorder %s13, 1
    %p78 = por %p76, %p77
    %p79 = scmp.ne.s32.totalorder %s68, %s69
    %p80 = scmp.eq.s32.totalorder %s13, 0
    %p81 = por %p79, %p80
    %p82 = scmp.ne.s32.totalorder %s68, %s69
    %p83 = scmp.eq.s32.totalorder %s14, 1
    %p84 = por %p82, %p83
    %p86 = scmp.ne.s32.totalorder %s69, %s85
    %p87 = scmp.eq.s32.totalorder %s14, 0
    %p88 = por %p86, %p87
    %p89 = scmp.le.s32.totalorder 1, %s8
    %p90 = scmp.lt.s32.totalorder %s8, 3
    %p91 = pnand %p89, %p90
    %p92 = pneg %p91
    // Predicated region
    $region9: #{pyconv2_forward.1} parent=5 // pred_check
      _
    $region10: #{pyconv2_forward.1} parent=5 // pred_check_branch
      %94 = sbr.rel (%p91) target = $region12
    $region11: #{pyconv2_forward.1} parent=5 // pred_region
      %s95 = ssub.s32 %s8, 1
      // Predicated region
      $region13: #{pyconv2_forward.1} parent=11 // pred_check
        %p96 = pneg %p55
      $region14: #{pyconv2_forward.1} parent=11 // pred_check_branch
        %98 = sbr.rel (%p96) target = $region16
      $region15: #{pyconv2_forward.1} parent=11 // pred_region
        _
      $region16: #{pyconv2_forward.1} parent=11 // pred_fallthru
        _
    $region12: #{pyconv2_forward.1} parent=5 // pred_fallthru
      _
    %p99 = scmp.lt.s32.totalorder %s8, 2
    // Predicated region
    $region17: #{pyconv2_forward.1} parent=5 // pred_check
      %p100 = pneg %p99
    $region18: #{pyconv2_forward.1} parent=5 // pred_check_branch
      %102 = sbr.rel (%p100) target = $region20
    $region19: #{pyconv2_forward.1} parent=5 // pred_region
      // Predicated region
      $region21: #{pyconv2_forward.1} parent=19 // pred_check
        %p103 = pneg %p28
      $region22: #{pyconv2_forward.1} parent=19 // pred_check_branch
        %105 = sbr.rel (%p103) target = $region24
      $region23: #{pyconv2_forward.1} parent=19 // pred_region
        %p106 = scmp.lt.s32.totalorder %s8, 1
        %s107 = scalar_select %p106, %s8, 1
        %s108 = smul.addr %s107, 16
        %s109 = smul.addr %s108, 8
        %s110 = scalar_lea.vmem %s0, %s109
      $region24: #{pyconv2_forward.1} parent=19 // pred_fallthru
        _
    $region20: #{pyconv2_forward.1} parent=5 // pred_fallthru
      _
    %p111 = scmp.le.s32.totalorder 1, %s8
    %p112 = scmp.lt.s32.totalorder %s8, 3
    %p113 = pnand %p111, %p112
    %p114 = pneg %p113
    // Predicated region
    $region25: #{pyconv2_forward.1} parent=5 // pred_check
      _
    $region26: #{pyconv2_forward.1} parent=5 // pred_check_branch
      %116 = sbr.rel (%p113) target = $region28
    $region27: #{pyconv2_forward.1} parent=5 // pred_region
      %s117 = ssub.s32 %s8, 1
      %p118 = scmp.lt.s32.totalorder %s13, 1
      %s119 = scalar_select %p118, %s13, 1
      %s120 = smul.addr %s119, 16
      %s121 = smul.addr %s120, 8
      %s122 = scalar_lea.vmem %s0, %s121
      %p123 = pneg %p34
      %p124 = pneg %p31
      %p125 = pneg %p55
      %p126 = pneg %p52
      %p127 = pneg %p81
      %p128 = pneg %p78
      %p129 = scmp.lt.s32.totalorder %s13, 1
      %s130 = scalar_select %p129, %s13, 1
      %s131 = smul.addr %s130, 2
      %s132 = smul.addr %s131, 8
      %s133 = scalar_lea.vmem %s2, %s132
      %p134 = scmp.lt.s32.totalorder %s13, 1
      %s135 = scalar_select %p134, %s13, 1
      %s136 = smul.addr %s135, 16
      %s137 = smul.addr %s136, 8
      %s138 = scalar_lea.vmem %s0, %s137
      %p139 = scmp.lt.s32.totalorder %s13, 1
      %s140 = scalar_select %p139, %s13, 1
      %s141 = smul.addr %s140, 2
      %s142 = smul.addr %s141, 8
      %s143 = scalar_lea.vmem %s2, %s142
      %vm144 = vcmask 156672
      %145 = vst.msk [vmem:[#allocation2] sm:$0x3] %vm144, 0.0
      %146 = vst.msk [vmem:[#allocation2 + $0x18] sm:$0x3] %vm144, 0.0
      %147 = vst.msk [vmem:[#allocation2 + $0x30] sm:$0x3] %vm144, 0.0
      %148 = vst.msk [vmem:[#allocation2 + $0x48] sm:$0x3] %vm144, 0.0
      %149 = vst.msk [vmem:[#allocation2 + $0x60] sm:$0x3] %vm144, 0.0
      %150 = vst.msk [vmem:[#allocation2 + $0x78] sm:$0x3] %vm144, 0.0
      %151 = vst.msk [vmem:[#allocation2 + $0x90] sm:$0x3] %vm144, 0.0
      %152 = vst.msk [vmem:[#allocation2 + $0xa8] sm:$0x3] %vm144, 0.0
      %153 = vst.msk [vmem:[#allocation2 + $0x12] sm:$0x3] %vm144, 0.0
      %154 = vst.msk [vmem:[#allocation2 + $0x2a] sm:$0x3] %vm144, 0.0
      %155 = vst.msk [vmem:[#allocation2 + $0x42] sm:$0x3] %vm144, 0.0
      %156 = vst.msk [vmem:[#allocation2 + $0x5a] sm:$0x3] %vm144, 0.0
      %157 = vst.msk [vmem:[#allocation2 + $0x72] sm:$0x3] %vm144, 0.0
      %158 = vst.msk [vmem:[#allocation2 + $0x8a] sm:$0x3] %vm144, 0.0
      %159 = vst.msk [vmem:[#allocation2 + $0xa2] sm:$0x3] %vm144, 0.0
      %160 = vst.msk [vmem:[#allocation2 + $0xba] sm:$0x3] %vm144, 0.0
      %vm161 = vcmask 15360
      %162 = vst.msk [vmem:[#allocation2 + $0x2] sm:$0xff] %vm161, 0.0
      %163 = vst.msk [vmem:[#allocation2 + $0xa] sm:$0xff] %vm161, 0.0
      %164 = vst.msk [vmem:[#allocation2 + $0x1a] sm:$0xff] %vm161, 0.0
      %165 = vst.msk [vmem:[#allocation2 + $0x22] sm:$0xff] %vm161, 0.0
      %166 = vst.msk [vmem:[#allocation2 + $0x32] sm:$0xff] %vm161, 0.0
      %167 = vst.msk [vmem:[#allocation2 + $0x3a] sm:$0xff] %vm161, 0.0
      %168 = vst.msk [vmem:[#allocation2 + $0x4a] sm:$0xff] %vm161, 0.0
      %169 = vst.msk [vmem:[#allocation2 + $0x52] sm:$0xff] %vm161, 0.0
      %170 = vst.msk [vmem:[#allocation2 + $0x62] sm:$0xff] %vm161, 0.0
      %171 = vst.msk [vmem:[#allocation2 + $0x6a] sm:$0xff] %vm161, 0.0
      %172 = vst.msk [vmem:[#allocation2 + $0x7a] sm:$0xff] %vm161, 0.0
      %173 = vst.msk [vmem:[#allocation2 + $0x82] sm:$0xff] %vm161, 0.0
      %174 = vst.msk [vmem:[#allocation2 + $0x92] sm:$0xff] %vm161, 0.0
      %175 = vst.msk [vmem:[#allocation2 + $0x9a] sm:$0xff] %vm161, 0.0
      %176 = vst.msk [vmem:[#allocation2 + $0xaa] sm:$0xff] %vm161, 0.0
      %177 = vst.msk [vmem:[#allocation2 + $0xb2] sm:$0xff] %vm161, 0.0
      %vm178 = vcmask 162960
      %179 = vst.msk [vmem:[#allocation2 + $0x2] sm:$0xff] %vm178, 0.0
      %180 = vst.msk [vmem:[#allocation2 + $0xa] sm:$0xff] %vm178, 0.0
      %181 = vst.msk [vmem:[#allocation2 + $0x1a] sm:$0xff] %vm178, 0.0
      %182 = vst.msk [vmem:[#allocation2 + $0x22] sm:$0xff] %vm178, 0.0
      %183 = vst.msk [vmem:[#allocation2 + $0x32] sm:$0xff] %vm178, 0.0
      %184 = vst.msk [vmem:[#allocation2 + $0x3a] sm:$0xff] %vm178, 0.0
      %185 = vst.msk [vmem:[#allocation2 + $0x4a] sm:$0xff] %vm178, 0.0
      %186 = vst.msk [vmem:[#allocation2 + $0x52] sm:$0xff] %vm178, 0.0
      %187 = vst.msk [vmem:[#allocation2 + $0x62] sm:$0xff] %vm178, 0.0
      %188 = vst.msk [vmem:[#allocation2 + $0x6a] sm:$0xff] %vm178, 0.0
      %189 = vst.msk [vmem:[#allocation2 + $0x7a] sm:$0xff] %vm178, 0.0
      %190 = vst.msk [vmem:[#allocation2 + $0x82] sm:$0xff] %vm178, 0.0
      %191 = vst.msk [vmem:[#allocation2 + $0x92] sm:$0xff] %vm178, 0.0
      %192 = vst.msk [vmem:[#allocation2 + $0x9a] sm:$0xff] %vm178, 0.0
      %193 = vst.msk [vmem:[#allocation2 + $0xaa] sm:$0xff] %vm178, 0.0
      %194 = vst.msk [vmem:[#allocation2 + $0xb2] sm:$0xff] %vm178, 0.0
      %v195 = vld [vmem:[%s138] sm:$0xff]
      %v196 = vld [vmem:[%s138 + $0x8] sm:$0xff]
      %v197 = vld [vmem:[%s138 + $0x10] sm:$0xff]
      %v198 = vld [vmem:[%s138 + $0x18] sm:$0xff]
      %v199 = vld [vmem:[%s138 + $0x20] sm:$0xff]
      %v200 = vld [vmem:[%s138 + $0x28] sm:$0xff]
      %v201 = vld [vmem:[%s138 + $0x30] sm:$0xff]
      %v202 = vld [vmem:[%s138 + $0x38] sm:$0xff]
      %v203 = vld [vmem:[%s138 + $0x40] sm:$0xff]
      %v204 = vld [vmem:[%s138 + $0x48] sm:$0xff]
      %v205 = vld [vmem:[%s138 + $0x50] sm:$0xff]
      %v206 = vld [vmem:[%s138 + $0x58] sm:$0xff]
      %v207 = vld [vmem:[%s138 + $0x60] sm:$0xff]
      %v208 = vld [vmem:[%s138 + $0x68] sm:$0xff]
      %v209 = vld [vmem:[%s138 + $0x70] sm:$0xff]
      %v210 = vld [vmem:[%s138 + $0x78] sm:$0xff]
      %227 = vrot.lane.b32.xlu0 %v195, 2
      %v228 = vpop.permute.xlu0 %227
      %229 = vrot.lane.b32.xlu0 %v196, 2
      %v230 = vpop.permute.xlu0 %229
      %231 = vrot.lane.b32.xlu0 %v197, 2
      %v232 = vpop.permute.xlu0 %231
      %233 = vrot.lane.b32.xlu0 %v198, 2
      %v234 = vpop.permute.xlu0 %233
      %235 = vrot.lane.b32.xlu0 %v199, 2
      %v236 = vpop.permute.xlu0 %235
      %237 = vrot.lane.b32.xlu0 %v200, 2
      %v238 = vpop.permute.xlu0 %237
      %239 = vrot.lane.b32.xlu0 %v201, 2
      %v240 = vpop.permute.xlu0 %239
      %241 = vrot.lane.b32.xlu0 %v202, 2
      %v242 = vpop.permute.xlu0 %241
      %243 = vrot.lane.b32.xlu0 %v203, 2
      %v244 = vpop.permute.xlu0 %243
      %245 = vrot.lane.b32.xlu0 %v204, 2
      %v246 = vpop.permute.xlu0 %245
      %247 = vrot.lane.b32.xlu0 %v205, 2
      %v248 = vpop.permute.xlu0 %247
      %249 = vrot.lane.b32.xlu0 %v206, 2
      %v250 = vpop.permute.xlu0 %249
      %251 = vrot.lane.b32.xlu0 %v207, 2
      %v252 = vpop.permute.xlu0 %251
      %253 = vrot.lane.b32.xlu0 %v208, 2
      %v254 = vpop.permute.xlu0 %253
      %255 = vrot.lane.b32.xlu0 %v209, 2
      %v256 = vpop.permute.xlu0 %255
      %257 = vrot.lane.b32.xlu0 %v210, 2
      %v258 = vpop.permute.xlu0 %257
      %vm275 = vcmask 146448
      %276 = vst.msk [vmem:[#allocation2 + $0x2] sm:$0xff] %vm275, %v228
      %277 = vst.msk [vmem:[#allocation2 + $0xa] sm:$0xff] %vm275, %v230
      %278 = vst.msk [vmem:[#allocation2 + $0x1a] sm:$0xff] %vm275, %v232
      %279 = vst.msk [vmem:[#allocation2 + $0x22] sm:$0xff] %vm275, %v234
      %280 = vst.msk [vmem:[#allocation2 + $0x32] sm:$0xff] %vm275, %v236
      %281 = vst.msk [vmem:[#allocation2 + $0x3a] sm:$0xff] %vm275, %v238
      %282 = vst.msk [vmem:[#allocation2 + $0x4a] sm:$0xff] %vm275, %v240
      %283 = vst.msk [vmem:[#allocation2 + $0x52] sm:$0xff] %vm275, %v242
      %284 = vst.msk [vmem:[#allocation2 + $0x62] sm:$0xff] %vm275, %v244
      %285 = vst.msk [vmem:[#allocation2 + $0x6a] sm:$0xff] %vm275, %v246
      %286 = vst.msk [vmem:[#allocation2 + $0x7a] sm:$0xff] %vm275, %v248
      %287 = vst.msk [vmem:[#allocation2 + $0x82] sm:$0xff] %vm275, %v250
      %288 = vst.msk [vmem:[#allocation2 + $0x92] sm:$0xff] %vm275, %v252
      %289 = vst.msk [vmem:[#allocation2 + $0x9a] sm:$0xff] %vm275, %v254
      %290 = vst.msk [vmem:[#allocation2 + $0xaa] sm:$0xff] %vm275, %v256
      %291 = vst.msk [vmem:[#allocation2 + $0xb2] sm:$0xff] %vm275, %v258
      %v292 = vld [vmem:[#allocation2] sm:$0xff]
      %v293 = vld [vmem:[#allocation2 + $0x8] sm:$0xff]
      %v294 = vld [vmem:[#allocation2 + $0x18] sm:$0xff]
      %v295 = vld [vmem:[#allocation2 + $0x20] sm:$0xff]
      %v296 = vld [vmem:[#allocation2 + $0x30] sm:$0xff]
      %v297 = vld [vmem:[#allocation2 + $0x38] sm:$0xff]
      %v298 = vld [vmem:[#allocation2 + $0x48] sm:$0xff]
      %v299 = vld [vmem:[#allocation2 + $0x50] sm:$0xff]
      %v300 = vld [vmem:[#allocation2 + $0x60] sm:$0xff]
      %v301 = vld [vmem:[#allocation2 + $0x68] sm:$0xff]
      %v302 = vld [vmem:[#allocation2 + $0x78] sm:$0xff]
      %v303 = vld [vmem:[#allocation2 + $0x80] sm:$0xff]
      %v304 = vld [vmem:[#allocation2 + $0x90] sm:$0xff]
      %v305 = vld [vmem:[#allocation2 + $0x98] sm:$0xff]
      %v306 = vld [vmem:[#allocation2 + $0xa8] sm:$0xff]
      %v307 = vld [vmem:[#allocation2 + $0xb0] sm:$0xff]
      %v308 = vrot.slane %v296, 4
      %vm309 = vcmask 1047556
      %v310 = vsel %vm309, %v308, %v292
      %v311 = vrot.slane %v292, 4
      %v312 = vsel %vm309, %v296, %v311
      %v314 = vunpack.c.l.s4 1983009808
      %v315 = vunpack.c.0.s8 %v314
      %v316 = vperm.slane %v310, %v315
      %v318 = vunpack.c.l.s4 1983009808
      %v319 = vunpack.c.0.s8 %v318
      %v320 = vperm.slane %v312, %v319
      %v321 = vrot.slane %v298, 4
      %v322 = vsel %vm309, %v321, %v294
      %v323 = vrot.slane %v294, 4
      %v324 = vsel %vm309, %v298, %v323
      %v326 = vunpack.c.l.s4 1983009808
      %v327 = vunpack.c.0.s8 %v326
      %v328 = vperm.slane %v322, %v327
      %v330 = vunpack.c.l.s4 1983009808
      %v331 = vunpack.c.0.s8 %v330
      %v332 = vperm.slane %v324, %v331
      %v333 = vrot.slane %v304, 4
      %v334 = vsel %vm309, %v333, %v300
      %v335 = vrot.slane %v300, 4
      %v336 = vsel %vm309, %v304, %v335
      %v338 = vunpack.c.l.s4 1983009808
      %v339 = vunpack.c.0.s8 %v338
      %v340 = vperm.slane %v334, %v339
      %v342 = vunpack.c.l.s4 1983009808
      %v343 = vunpack.c.0.s8 %v342
      %v344 = vperm.slane %v336, %v343
      %v345 = vrot.slane %v306, 4
      %v346 = vsel %vm309, %v345, %v302
      %v347 = vrot.slane %v302, 4
      %v348 = vsel %vm309, %v306, %v347
      %v350 = vunpack.c.l.s4 1983009808
      %v351 = vunpack.c.0.s8 %v350
      %v352 = vperm.slane %v346, %v351
      %v354 = vunpack.c.l.s4 1983009808
      %v355 = vunpack.c.0.s8 %v354
      %v356 = vperm.slane %v348, %v355
      %v357 = vrot.slane %v328, 4
      %v358 = vsel %vm309, %v357, %v316
      %v359 = vrot.slane %v316, 4
      %v360 = vsel %vm309, %v328, %v359
      %v362 = vunpack.c.l.s4 1934713408
      %v363 = vunpack.c.0.s8 %v362
      %v364 = vperm.slane %v358, %v363
      %v366 = vunpack.c.l.s4 1934713408
      %v367 = vunpack.c.0.s8 %v366
      %v368 = vperm.slane %v360, %v367
      %v369 = vrot.slane %v332, 4
      %v370 = vsel %vm309, %v369, %v320
      %v371 = vrot.slane %v320, 4
      %v372 = vsel %vm309, %v332, %v371
      %v374 = vunpack.c.l.s4 1934713408
      %v375 = vunpack.c.0.s8 %v374
      %v376 = vperm.slane %v370, %v375
      %v378 = vunpack.c.l.s4 1934713408
      %v379 = vunpack.c.0.s8 %v378
      %v380 = vperm.slane %v372, %v379
      %v381 = vrot.slane %v352, 4
      %v382 = vsel %vm309, %v381, %v340
      %v383 = vrot.slane %v340, 4
      %v384 = vsel %vm309, %v352, %v383
      %v386 = vunpack.c.l.s4 1934713408
      %v387 = vunpack.c.0.s8 %v386
      %v388 = vperm.slane %v382, %v387
      %v390 = vunpack.c.l.s4 1934713408
      %v391 = vunpack.c.0.s8 %v390
      %v392 = vperm.slane %v384, %v391
      %v393 = vrot.slane %v356, 4
      %v394 = vsel %vm309, %v393, %v344
      %v395 = vrot.slane %v344, 4
      %v396 = vsel %vm309, %v356, %v395
      %v398 = vunpack.c.l.s4 1934713408
      %v399 = vunpack.c.0.s8 %v398
      %v400 = vperm.slane %v394, %v399
      %v402 = vunpack.c.l.s4 1934713408
      %v403 = vunpack.c.0.s8 %v402
      %v404 = vperm.slane %v396, %v403
      %v405 = vrot.slane %v388, 4
      %v406 = vsel %vm309, %v405, %v364
      %v407 = vrot.slane %v364, 4
      %v408 = vsel %vm309, %v388, %v407
      %v409 = vrot.slane %v392, 4
      %v410 = vsel %vm309, %v409, %v368
      %v411 = vrot.slane %v368, 4
      %v412 = vsel %vm309, %v392, %v411
      %v413 = vrot.slane %v400, 4
      %v414 = vsel %vm309, %v413, %v376
      %v415 = vrot.slane %v376, 4
      %v416 = vsel %vm309, %v400, %v415
      %v417 = vrot.slane %v404, 4
      %v418 = vsel %vm309, %v417, %v380
      %v419 = vrot.slane %v380, 4
      %v420 = vsel %vm309, %v404, %v419
      %v421 = vrot.slane %v297, 4
      %v422 = vsel %vm309, %v421, %v293
      %v423 = vrot.slane %v293, 4
      %v424 = vsel %vm309, %v297, %v423
      %v426 = vunpack.c.l.s4 1983009808
      %v427 = vunpack.c.0.s8 %v426
      %v428 = vperm.slane %v422, %v427
      %v430 = vunpack.c.l.s4 1983009808
      %v431 = vunpack.c.0.s8 %v430
      %v432 = vperm.slane %v424, %v431
      %v433 = vrot.slane %v299, 4
      %v434 = vsel %vm309, %v433, %v295
      %v435 = vrot.slane %v295, 4
      %v436 = vsel %vm309, %v299, %v435
      %v438 = vunpack.c.l.s4 1983009808
      %v439 = vunpack.c.0.s8 %v438
      %v440 = vperm.slane %v434, %v439
      %v442 = vunpack.c.l.s4 1983009808
      %v443 = vunpack.c.0.s8 %v442
      %v444 = vperm.slane %v436, %v443
      %v445 = vrot.slane %v305, 4
      %v446 = vsel %vm309, %v445, %v301
      %v447 = vrot.slane %v301, 4
      %v448 = vsel %vm309, %v305, %v447
      %v450 = vunpack.c.l.s4 1983009808
      %v451 = vunpack.c.0.s8 %v450
      %v452 = vperm.slane %v446, %v451
      %v454 = vunpack.c.l.s4 1983009808
      %v455 = vunpack.c.0.s8 %v454
      %v456 = vperm.slane %v448, %v455
      %v457 = vrot.slane %v307, 4
      %v458 = vsel %vm309, %v457, %v303
      %v459 = vrot.slane %v303, 4
      %v460 = vsel %vm309, %v307, %v459
      %v462 = vunpack.c.l.s4 1983009808
      %v463 = vunpack.c.0.s8 %v462
      %v464 = vperm.slane %v458, %v463
      %v466 = vunpack.c.l.s4 1983009808
      %v467 = vunpack.c.0.s8 %v466
      %v468 = vperm.slane %v460, %v467
      %v469 = vrot.slane %v440, 4
      %v470 = vsel %vm309, %v469, %v428
      %v471 = vrot.slane %v428, 4
      %v472 = vsel %vm309, %v440, %v471
      %v474 = vunpack.c.l.s4 1934713408
      %v475 = vunpack.c.0.s8 %v474
      %v476 = vperm.slane %v470, %v475
      %v478 = vunpack.c.l.s4 1934713408
      %v479 = vunpack.c.0.s8 %v478
      %v480 = vperm.slane %v472, %v479
      %v481 = vrot.slane %v444, 4
      %v482 = vsel %vm309, %v481, %v432
      %v483 = vrot.slane %v432, 4
      %v484 = vsel %vm309, %v444, %v483
      %v486 = vunpack.c.l.s4 1934713408
      %v487 = vunpack.c.0.s8 %v486
      %v488 = vperm.slane %v482, %v487
      %v490 = vunpack.c.l.s4 1934713408
      %v491 = vunpack.c.0.s8 %v490
      %v492 = vperm.slane %v484, %v491
      %v493 = vrot.slane %v464, 4
      %v494 = vsel %vm309, %v493, %v452
      %v495 = vrot.slane %v452, 4
      %v496 = vsel %vm309, %v464, %v495
      %v498 = vunpack.c.l.s4 1934713408
      %v499 = vunpack.c.0.s8 %v498
      %v500 = vperm.slane %v494, %v499
      %v502 = vunpack.c.l.s4 1934713408
      %v503 = vunpack.c.0.s8 %v502
      %v504 = vperm.slane %v496, %v503
      %v505 = vrot.slane %v468, 4
      %v506 = vsel %vm309, %v505, %v456
      %v507 = vrot.slane %v456, 4
      %v508 = vsel %vm309, %v468, %v507
      %v510 = vunpack.c.l.s4 1934713408
      %v511 = vunpack.c.0.s8 %v510
      %v512 = vperm.slane %v506, %v511
      %v514 = vunpack.c.l.s4 1934713408
      %v515 = vunpack.c.0.s8 %v514
      %v516 = vperm.slane %v508, %v515
      %v517 = vrot.slane %v500, 4
      %v518 = vsel %vm309, %v517, %v476
      %v519 = vrot.slane %v476, 4
      %v520 = vsel %vm309, %v500, %v519
      %v521 = vrot.slane %v504, 4
      %v522 = vsel %vm309, %v521, %v480
      %v523 = vrot.slane %v480, 4
      %v524 = vsel %vm309, %v504, %v523
      %v525 = vrot.slane %v512, 4
      %v526 = vsel %vm309, %v525, %v488
      %v527 = vrot.slane %v488, 4
      %v528 = vsel %vm309, %v512, %v527
      %v529 = vrot.slane %v516, 4
      %v530 = vsel %vm309, %v529, %v492
      %v531 = vrot.slane %v492, 4
      %v532 = vsel %vm309, %v516, %v531
      %534 = vrot.lane.b32.xlu0 %v408, 16
      %v535 = vpop.permute.xlu0 %534
      %538 = vrot.lane.b32.xlu0 %v410, 32
      %v539 = vpop.permute.xlu0 %538
      %542 = vrot.lane.b32.xlu0 %v412, 48
      %v543 = vpop.permute.xlu0 %542
      %546 = vrot.lane.b32.xlu0 %v414, 64
      %v547 = vpop.permute.xlu0 %546
      %550 = vrot.lane.b32.xlu0 %v416, 80
      %v551 = vpop.permute.xlu0 %550
      %554 = vrot.lane.b32.xlu0 %v418, 96
      %v555 = vpop.permute.xlu0 %554
      %558 = vrot.lane.b32.xlu0 %v420, 112
      %v559 = vpop.permute.xlu0 %558
      %562 = vrot.lane.b32.xlu0 %v520, 16
      %v563 = vpop.permute.xlu0 %562
      %566 = vrot.lane.b32.xlu0 %v522, 32
      %v567 = vpop.permute.xlu0 %566
      %570 = vrot.lane.b32.xlu0 %v524, 48
      %v571 = vpop.permute.xlu0 %570
      %574 = vrot.lane.b32.xlu0 %v526, 64
      %v575 = vpop.permute.xlu0 %574
      %578 = vrot.lane.b32.xlu0 %v528, 80
      %v579 = vpop.permute.xlu0 %578
      %582 = vrot.lane.b32.xlu0 %v530, 96
      %v583 = vpop.permute.xlu0 %582
      %586 = vrot.lane.b32.xlu0 %v532, 112
      %v587 = vpop.permute.xlu0 %586
      %vm589 = vcmask 130048
      %v590 = vsel %vm589, %v406, %v535
      %vm591 = vcmask 261120
      %v592 = vsel %vm591, %v590, %v539
      %vm593 = vcmask 392192
      %v594 = vsel %vm593, %v592, %v543
      %vm595 = vcmask 523264
      %v596 = vsel %vm595, %v594, %v547
      %vm597 = vcmask 654336
      %v598 = vsel %vm597, %v596, %v551
      %vm599 = vcmask 785408
      %v600 = vsel %vm599, %v598, %v555
      %vm601 = vcmask 916480
      %v602 = vsel %vm601, %v600, %v559
      %v603 = vsel %vm589, %v518, %v563
      %v604 = vsel %vm591, %v603, %v567
      %v605 = vsel %vm593, %v604, %v571
      %v606 = vsel %vm595, %v605, %v575
      %v607 = vsel %vm597, %v606, %v579
      %v608 = vsel %vm599, %v607, %v583
      %v609 = vsel %vm601, %v608, %v587
      %610 = vst [vmem:[#allocation3] sm:$0xff] %v602
      %611 = vst [vmem:[#allocation3 + $0x8] sm:$0xff] %v609
      %v612 = vld [vmem:[#allocation2] sm:$0xff]
      %v613 = vld [vmem:[#allocation2 + $0x8] sm:$0xff]
      %v614 = vld [vmem:[#allocation2 + $0x18] sm:$0xff]
      %v615 = vld [vmem:[#allocation2 + $0x20] sm:$0xff]
      %v616 = vld [vmem:[#allocation2 + $0x30] sm:$0xff]
      %v617 = vld [vmem:[#allocation2 + $0x38] sm:$0xff]
      %v618 = vld [vmem:[#allocation2 + $0x48] sm:$0xff]
      %v619 = vld [vmem:[#allocation2 + $0x50] sm:$0xff]
      %v620 = vld [vmem:[#allocation2 + $0x60] sm:$0xff]
      %v621 = vld [vmem:[#allocation2 + $0x68] sm:$0xff]
      %v622 = vld [vmem:[#allocation2 + $0x78] sm:$0xff]
      %v623 = vld [vmem:[#allocation2 + $0x80] sm:$0xff]
      %v624 = vld [vmem:[#allocation2 + $0x90] sm:$0xff]
      %v625 = vld [vmem:[#allocation2 + $0x98] sm:$0xff]
      %v626 = vld [vmem:[#allocation2 + $0xa8] sm:$0xff]
      %v627 = vld [vmem:[#allocation2 + $0xb0] sm:$0xff]
      %644 = vrot.lane.b32.xlu0 %v612, 127
      %v645 = vpop.permute.xlu0 %644
      %646 = vrot.lane.b32.xlu0 %v613, 127
      %v647 = vpop.permute.xlu0 %646
      %648 = vrot.lane.b32.xlu0 %v614, 127
      %v649 = vpop.permute.xlu0 %648
      %650 = vrot.lane.b32.xlu0 %v615, 127
      %v651 = vpop.permute.xlu0 %650
      %652 = vrot.lane.b32.xlu0 %v616, 127
      %v653 = vpop.permute.xlu0 %652
      %654 = vrot.lane.b32.xlu0 %v617, 127
      %v655 = vpop.permute.xlu0 %654
      %656 = vrot.lane.b32.xlu0 %v618, 127
      %v657 = vpop.permute.xlu0 %656
      %658 = vrot.lane.b32.xlu0 %v619, 127
      %v659 = vpop.permute.xlu0 %658
      %660 = vrot.lane.b32.xlu0 %v620, 127
      %v661 = vpop.permute.xlu0 %660
      %662 = vrot.lane.b32.xlu0 %v621, 127
      %v663 = vpop.permute.xlu0 %662
      %664 = vrot.lane.b32.xlu0 %v622, 127
      %v665 = vpop.permute.xlu0 %664
      %666 = vrot.lane.b32.xlu0 %v623, 127
      %v667 = vpop.permute.xlu0 %666
      %668 = vrot.lane.b32.xlu0 %v624, 127
      %v669 = vpop.permute.xlu0 %668
      %670 = vrot.lane.b32.xlu0 %v625, 127
      %v671 = vpop.permute.xlu0 %670
      %672 = vrot.lane.b32.xlu0 %v626, 127
      %v673 = vpop.permute.xlu0 %672
      %674 = vrot.lane.b32.xlu0 %v627, 127
      %v675 = vpop.permute.xlu0 %674
      %v692 = vrot.slane %v653, 4
      %v693 = vsel %vm309, %v692, %v645
      %v694 = vrot.slane %v645, 4
      %v695 = vsel %vm309, %v653, %v694
      %v697 = vunpack.c.l.s4 1983009808
      %v698 = vunpack.c.0.s8 %v697
      %v699 = vperm.slane %v693, %v698
      %v701 = vunpack.c.l.s4 1983009808
      %v702 = vunpack.c.0.s8 %v701
      %v703 = vperm.slane %v695, %v702
      %v704 = vrot.slane %v657, 4
      %v705 = vsel %vm309, %v704, %v649
      %v706 = vrot.slane %v649, 4
      %v707 = vsel %vm309, %v657, %v706
      %v709 = vunpack.c.l.s4 1983009808
      %v710 = vunpack.c.0.s8 %v709
      %v711 = vperm.slane %v705, %v710
      %v713 = vunpack.c.l.s4 1983009808
      %v714 = vunpack.c.0.s8 %v713
      %v715 = vperm.slane %v707, %v714
      %v716 = vrot.slane %v669, 4
      %v717 = vsel %vm309, %v716, %v661
      %v718 = vrot.slane %v661, 4
      %v719 = vsel %vm309, %v669, %v718
      %v721 = vunpack.c.l.s4 1983009808
      %v722 = vunpack.c.0.s8 %v721
      %v723 = vperm.slane %v717, %v722
      %v725 = vunpack.c.l.s4 1983009808
      %v726 = vunpack.c.0.s8 %v725
      %v727 = vperm.slane %v719, %v726
      %v728 = vrot.slane %v673, 4
      %v729 = vsel %vm309, %v728, %v665
      %v730 = vrot.slane %v665, 4
      %v731 = vsel %vm309, %v673, %v730
      %v733 = vunpack.c.l.s4 1983009808
      %v734 = vunpack.c.0.s8 %v733
      %v735 = vperm.slane %v729, %v734
      %v737 = vunpack.c.l.s4 1983009808
      %v738 = vunpack.c.0.s8 %v737
      %v739 = vperm.slane %v731, %v738
      %v740 = vrot.slane %v711, 4
      %v741 = vsel %vm309, %v740, %v699
      %v742 = vrot.slane %v699, 4
      %v743 = vsel %vm309, %v711, %v742
      %v745 = vunpack.c.l.s4 1934713408
      %v746 = vunpack.c.0.s8 %v745
      %v747 = vperm.slane %v741, %v746
      %v749 = vunpack.c.l.s4 1934713408
      %v750 = vunpack.c.0.s8 %v749
      %v751 = vperm.slane %v743, %v750
      %v752 = vrot.slane %v715, 4
      %v753 = vsel %vm309, %v752, %v703
      %v754 = vrot.slane %v703, 4
      %v755 = vsel %vm309, %v715, %v754
      %v757 = vunpack.c.l.s4 1934713408
      %v758 = vunpack.c.0.s8 %v757
      %v759 = vperm.slane %v753, %v758
      %v761 = vunpack.c.l.s4 1934713408
      %v762 = vunpack.c.0.s8 %v761
      %v763 = vperm.slane %v755, %v762
      %v764 = vrot.slane %v735, 4
      %v765 = vsel %vm309, %v764, %v723
      %v766 = vrot.slane %v723, 4
      %v767 = vsel %vm309, %v735, %v766
      %v769 = vunpack.c.l.s4 1934713408
      %v770 = vunpack.c.0.s8 %v769
      %v771 = vperm.slane %v765, %v770
      %v773 = vunpack.c.l.s4 1934713408
      %v774 = vunpack.c.0.s8 %v773
      %v775 = vperm.slane %v767, %v774
      %v776 = vrot.slane %v739, 4
      %v777 = vsel %vm309, %v776, %v727
      %v778 = vrot.slane %v727, 4
      %v779 = vsel %vm309, %v739, %v778
      %v781 = vunpack.c.l.s4 1934713408
      %v782 = vunpack.c.0.s8 %v781
      %v783 = vperm.slane %v777, %v782
      %v785 = vunpack.c.l.s4 1934713408
      %v786 = vunpack.c.0.s8 %v785
      %v787 = vperm.slane %v779, %v786
      %v788 = vrot.slane %v771, 4
      %v789 = vsel %vm309, %v788, %v747
      %v790 = vrot.slane %v747, 4
      %v791 = vsel %vm309, %v771, %v790
      %v792 = vrot.slane %v775, 4
      %v793 = vsel %vm309, %v792, %v751
      %v794 = vrot.slane %v751, 4
      %v795 = vsel %vm309, %v775, %v794
      %v796 = vrot.slane %v783, 4
      %v797 = vsel %vm309, %v796, %v759
      %v798 = vrot.slane %v759, 4
      %v799 = vsel %vm309, %v783, %v798
      %v800 = vrot.slane %v787, 4
      %v801 = vsel %vm309, %v800, %v763
      %v802 = vrot.slane %v763, 4
      %v803 = vsel %vm309, %v787, %v802
      %v804 = vrot.slane %v655, 4
      %v805 = vsel %vm309, %v804, %v647
      %v806 = vrot.slane %v647, 4
      %v807 = vsel %vm309, %v655, %v806
      %v809 = vunpack.c.l.s4 1983009808
      %v810 = vunpack.c.0.s8 %v809
      %v811 = vperm.slane %v805, %v810
      %v813 = vunpack.c.l.s4 1983009808
      %v814 = vunpack.c.0.s8 %v813
      %v815 = vperm.slane %v807, %v814
      %v816 = vrot.slane %v659, 4
      %v817 = vsel %vm309, %v816, %v651
      %v818 = vrot.slane %v651, 4
      %v819 = vsel %vm309, %v659, %v818
      %v821 = vunpack.c.l.s4 1983009808
      %v822 = vunpack.c.0.s8 %v821
      %v823 = vperm.slane %v817, %v822
      %v825 = vunpack.c.l.s4 1983009808
      %v826 = vunpack.c.0.s8 %v825
      %v827 = vperm.slane %v819, %v826
      %v828 = vrot.slane %v671, 4
      %v829 = vsel %vm309, %v828, %v663
      %v830 = vrot.slane %v663, 4
      %v831 = vsel %vm309, %v671, %v830
      %v833 = vunpack.c.l.s4 1983009808
      %v834 = vunpack.c.0.s8 %v833
      %v835 = vperm.slane %v829, %v834
      %v837 = vunpack.c.l.s4 1983009808
      %v838 = vunpack.c.0.s8 %v837
      %v839 = vperm.slane %v831, %v838
      %v840 = vrot.slane %v675, 4
      %v841 = vsel %vm309, %v840, %v667
      %v842 = vrot.slane %v667, 4
      %v843 = vsel %vm309, %v675, %v842
      %v845 = vunpack.c.l.s4 1983009808
      %v846 = vunpack.c.0.s8 %v845
      %v847 = vperm.slane %v841, %v846
      %v849 = vunpack.c.l.s4 1983009808
      %v850 = vunpack.c.0.s8 %v849
      %v851 = vperm.slane %v843, %v850
      %v852 = vrot.slane %v823, 4
      %v853 = vsel %vm309, %v852, %v811
      %v854 = vrot.slane %v811, 4
      %v855 = vsel %vm309, %v823, %v854
      %v857 = vunpack.c.l.s4 1934713408
      %v858 = vunpack.c.0.s8 %v857
      %v859 = vperm.slane %v853, %v858
      %v861 = vunpack.c.l.s4 1934713408
      %v862 = vunpack.c.0.s8 %v861
      %v863 = vperm.slane %v855, %v862
      %v864 = vrot.slane %v827, 4
      %v865 = vsel %vm309, %v864, %v815
      %v866 = vrot.slane %v815, 4
      %v867 = vsel %vm309, %v827, %v866
      %v869 = vunpack.c.l.s4 1934713408
      %v870 = vunpack.c.0.s8 %v869
      %v871 = vperm.slane %v865, %v870
      %v873 = vunpack.c.l.s4 1934713408
      %v874 = vunpack.c.0.s8 %v873
      %v875 = vperm.slane %v867, %v874
      %v876 = vrot.slane %v847, 4
      %v877 = vsel %vm309, %v876, %v835
      %v878 = vrot.slane %v835, 4
      %v879 = vsel %vm309, %v847, %v878
      %v881 = vunpack.c.l.s4 1934713408
      %v882 = vunpack.c.0.s8 %v881
      %v883 = vperm.slane %v877, %v882
      %v885 = vunpack.c.l.s4 1934713408
      %v886 = vunpack.c.0.s8 %v885
      %v887 = vperm.slane %v879, %v886
      %v888 = vrot.slane %v851, 4
      %v889 = vsel %vm309, %v888, %v839
      %v890 = vrot.slane %v839, 4
      %v891 = vsel %vm309, %v851, %v890
      %v893 = vunpack.c.l.s4 1934713408
      %v894 = vunpack.c.0.s8 %v893
      %v895 = vperm.slane %v889, %v894
      %v897 = vunpack.c.l.s4 1934713408
      %v898 = vunpack.c.0.s8 %v897
      %v899 = vperm.slane %v891, %v898
      %v900 = vrot.slane %v883, 4
      %v901 = vsel %vm309, %v900, %v859
      %v902 = vrot.slane %v859, 4
      %v903 = vsel %vm309, %v883, %v902
      %v904 = vrot.slane %v887, 4
      %v905 = vsel %vm309, %v904, %v863
      %v906 = vrot.slane %v863, 4
      %v907 = vsel %vm309, %v887, %v906
      %v908 = vrot.slane %v895, 4
      %v909 = vsel %vm309, %v908, %v871
      %v910 = vrot.slane %v871, 4
      %v911 = vsel %vm309, %v895, %v910
      %v912 = vrot.slane %v899, 4
      %v913 = vsel %vm309, %v912, %v875
      %v914 = vrot.slane %v875, 4
      %v915 = vsel %vm309, %v899, %v914
      %917 = vrot.lane.b32.xlu0 %v791, 16
      %v918 = vpop.permute.xlu0 %917
      %921 = vrot.lane.b32.xlu0 %v793, 32
      %v922 = vpop.permute.xlu0 %921
      %925 = vrot.lane.b32.xlu0 %v795, 48
      %v926 = vpop.permute.xlu0 %925
      %929 = vrot.lane.b32.xlu0 %v797, 64
      %v930 = vpop.permute.xlu0 %929
      %933 = vrot.lane.b32.xlu0 %v799, 80
      %v934 = vpop.permute.xlu0 %933
      %937 = vrot.lane.b32.xlu0 %v801, 96
      %v938 = vpop.permute.xlu0 %937
      %941 = vrot.lane.b32.xlu0 %v803, 112
      %v942 = vpop.permute.xlu0 %941
      %945 = vrot.lane.b32.xlu0 %v903, 16
      %v946 = vpop.permute.xlu0 %945
      %949 = vrot.lane.b32.xlu0 %v905, 32
      %v950 = vpop.permute.xlu0 %949
      %953 = vrot.lane.b32.xlu0 %v907, 48
      %v954 = vpop.permute.xlu0 %953
      %957 = vrot.lane.b32.xlu0 %v909, 64
      %v958 = vpop.permute.xlu0 %957
      %961 = vrot.lane.b32.xlu0 %v911, 80
      %v962 = vpop.permute.xlu0 %961
      %965 = vrot.lane.b32.xlu0 %v913, 96
      %v966 = vpop.permute.xlu0 %965
      %969 = vrot.lane.b32.xlu0 %v915, 112
      %v970 = vpop.permute.xlu0 %969
      %v972 = vsel %vm589, %v789, %v918
      %v973 = vsel %vm591, %v972, %v922
      %v974 = vsel %vm593, %v973, %v926
      %v975 = vsel %vm595, %v974, %v930
      %v976 = vsel %vm597, %v975, %v934
      %v977 = vsel %vm599, %v976, %v938
      %v978 = vsel %vm601, %v977, %v942
      %v979 = vsel %vm589, %v901, %v946
      %v980 = vsel %vm591, %v979, %v950
      %v981 = vsel %vm593, %v980, %v954
      %v982 = vsel %vm595, %v981, %v958
      %v983 = vsel %vm597, %v982, %v962
      %v984 = vsel %vm599, %v983, %v966
      %v985 = vsel %vm601, %v984, %v970
      %986 = vst [vmem:[#allocation3 + $0x10] sm:$0xff] %v978
      %987 = vst [vmem:[#allocation3 + $0x18] sm:$0xff] %v985
      %v988 = vld [vmem:[#allocation2] sm:$0xff]
      %v989 = vld [vmem:[#allocation2 + $0x8] sm:$0xff]
      %v990 = vld [vmem:[#allocation2 + $0x18] sm:$0xff]
      %v991 = vld [vmem:[#allocation2 + $0x20] sm:$0xff]
      %v992 = vld [vmem:[#allocation2 + $0x30] sm:$0xff]
      %v993 = vld [vmem:[#allocation2 + $0x38] sm:$0xff]
      %v994 = vld [vmem:[#allocation2 + $0x48] sm:$0xff]
      %v995 = vld [vmem:[#allocation2 + $0x50] sm:$0xff]
      %v996 = vld [vmem:[#allocation2 + $0x60] sm:$0xff]
      %v997 = vld [vmem:[#allocation2 + $0x68] sm:$0xff]
      %v998 = vld [vmem:[#allocation2 + $0x78] sm:$0xff]
      %v999 = vld [vmem:[#allocation2 + $0x80] sm:$0xff]
      %v1000 = vld [vmem:[#allocation2 + $0x90] sm:$0xff]
      %v1001 = vld [vmem:[#allocation2 + $0x98] sm:$0xff]
      %v1002 = vld [vmem:[#allocation2 + $0xa8] sm:$0xff]
      %v1003 = vld [vmem:[#allocation2 + $0xb0] sm:$0xff]
      %1020 = vrot.lane.b32.xlu0 %v988, 126
      %v1021 = vpop.permute.xlu0 %1020
      %1022 = vrot.lane.b32.xlu0 %v989, 126
      %v1023 = vpop.permute.xlu0 %1022
      %1024 = vrot.lane.b32.xlu0 %v990, 126
      %v1025 = vpop.permute.xlu0 %1024
      %1026 = vrot.lane.b32.xlu0 %v991, 126
      %v1027 = vpop.permute.xlu0 %1026
      %1028 = vrot.lane.b32.xlu0 %v992, 126
      %v1029 = vpop.permute.xlu0 %1028
      %1030 = vrot.lane.b32.xlu0 %v993, 126
      %v1031 = vpop.permute.xlu0 %1030
      %1032 = vrot.lane.b32.xlu0 %v994, 126
      %v1033 = vpop.permute.xlu0 %1032
      %1034 = vrot.lane.b32.xlu0 %v995, 126
      %v1035 = vpop.permute.xlu0 %1034
      %1036 = vrot.lane.b32.xlu0 %v996, 126
      %v1037 = vpop.permute.xlu0 %1036
      %1038 = vrot.lane.b32.xlu0 %v997, 126
      %v1039 = vpop.permute.xlu0 %1038
      %1040 = vrot.lane.b32.xlu0 %v998, 126
      %v1041 = vpop.permute.xlu0 %1040
      %1042 = vrot.lane.b32.xlu0 %v999, 126
      %v1043 = vpop.permute.xlu0 %1042
      %1044 = vrot.lane.b32.xlu0 %v1000, 126
      %v1045 = vpop.permute.xlu0 %1044
      %1046 = vrot.lane.b32.xlu0 %v1001, 126
      %v1047 = vpop.permute.xlu0 %1046
      %1048 = vrot.lane.b32.xlu0 %v1002, 126
      %v1049 = vpop.permute.xlu0 %1048
      %1050 = vrot.lane.b32.xlu0 %v1003, 126
      %v1051 = vpop.permute.xlu0 %1050
      %v1068 = vrot.slane %v1029, 4
      %v1069 = vsel %vm309, %v1068, %v1021
      %v1070 = vrot.slane %v1021, 4
      %v1071 = vsel %vm309, %v1029, %v1070
      %v1073 = vunpack.c.l.s4 1983009808
      %v1074 = vunpack.c.0.s8 %v1073
      %v1075 = vperm.slane %v1069, %v1074
      %v1077 = vunpack.c.l.s4 1983009808
      %v1078 = vunpack.c.0.s8 %v1077
      %v1079 = vperm.slane %v1071, %v1078
      %v1080 = vrot.slane %v1033, 4
      %v1081 = vsel %vm309, %v1080, %v1025
      %v1082 = vrot.slane %v1025, 4
      %v1083 = vsel %vm309, %v1033, %v1082
      %v1085 = vunpack.c.l.s4 1983009808
      %v1086 = vunpack.c.0.s8 %v1085
      %v1087 = vperm.slane %v1081, %v1086
      %v1089 = vunpack.c.l.s4 1983009808
      %v1090 = vunpack.c.0.s8 %v1089
      %v1091 = vperm.slane %v1083, %v1090
      %v1092 = vrot.slane %v1045, 4
      %v1093 = vsel %vm309, %v1092, %v1037
      %v1094 = vrot.slane %v1037, 4
      %v1095 = vsel %vm309, %v1045, %v1094
      %v1097 = vunpack.c.l.s4 1983009808
      %v1098 = vunpack.c.0.s8 %v1097
      %v1099 = vperm.slane %v1093, %v1098
      %v1101 = vunpack.c.l.s4 1983009808
      %v1102 = vunpack.c.0.s8 %v1101
      %v1103 = vperm.slane %v1095, %v1102
      %v1104 = vrot.slane %v1049, 4
      %v1105 = vsel %vm309, %v1104, %v1041
      %v1106 = vrot.slane %v1041, 4
      %v1107 = vsel %vm309, %v1049, %v1106
      %v1109 = vunpack.c.l.s4 1983009808
      %v1110 = vunpack.c.0.s8 %v1109
      %v1111 = vperm.slane %v1105, %v1110
      %v1113 = vunpack.c.l.s4 1983009808
      %v1114 = vunpack.c.0.s8 %v1113
      %v1115 = vperm.slane %v1107, %v1114
      %v1116 = vrot.slane %v1087, 4
      %v1117 = vsel %vm309, %v1116, %v1075
      %v1118 = vrot.slane %v1075, 4
      %v1119 = vsel %vm309, %v1087, %v1118
      %v1121 = vunpack.c.l.s4 1934713408
      %v1122 = vunpack.c.0.s8 %v1121
      %v1123 = vperm.slane %v1117, %v1122
      %v1125 = vunpack.c.l.s4 1934713408
      %v1126 = vunpack.c.0.s8 %v1125
      %v1127 = vperm.slane %v1119, %v1126
      %v1128 = vrot.slane %v1091, 4
      %v1129 = vsel %vm309, %v1128, %v1079
      %v1130 = vrot.slane %v1079, 4
      %v1131 = vsel %vm309, %v1091, %v1130
      %v1133 = vunpack.c.l.s4 1934713408
      %v1134 = vunpack.c.0.s8 %v1133
      %v1135 = vperm.slane %v1129, %v1134
      %v1137 = vunpack.c.l.s4 1934713408
      %v1138 = vunpack.c.0.s8 %v1137
      %v1139 = vperm.slane %v1131, %v1138
      %v1140 = vrot.slane %v1111, 4
      %v1141 = vsel %vm309, %v1140, %v1099
      %v1142 = vrot.slane %v1099, 4
      %v1143 = vsel %vm309, %v1111, %v1142
      %v1145 = vunpack.c.l.s4 1934713408
      %v1146 = vunpack.c.0.s8 %v1145
      %v1147 = vperm.slane %v1141, %v1146
      %v1149 = vunpack.c.l.s4 1934713408
      %v1150 = vunpack.c.0.s8 %v1149
      %v1151 = vperm.slane %v1143, %v1150
      %v1152 = vrot.slane %v1115, 4
      %v1153 = vsel %vm309, %v1152, %v1103
      %v1154 = vrot.slane %v1103, 4
      %v1155 = vsel %vm309, %v1115, %v1154
      %v1157 = vunpack.c.l.s4 1934713408
      %v1158 = vunpack.c.0.s8 %v1157
      %v1159 = vperm.slane %v1153, %v1158
      %v1161 = vunpack.c.l.s4 1934713408
      %v1162 = vunpack.c.0.s8 %v1161
      %v1163 = vperm.slane %v1155, %v1162
      %v1164 = vrot.slane %v1147, 4
      %v1165 = vsel %vm309, %v1164, %v1123
      %v1166 = vrot.slane %v1123, 4
      %v1167 = vsel %vm309, %v1147, %v1166
      %v1168 = vrot.slane %v1151, 4
      %v1169 = vsel %vm309, %v1168, %v1127
      %v1170 = vrot.slane %v1127, 4
      %v1171 = vsel %vm309, %v1151, %v1170
      %v1172 = vrot.slane %v1159, 4
      %v1173 = vsel %vm309, %v1172, %v1135
      %v1174 = vrot.slane %v1135, 4
      %v1175 = vsel %vm309, %v1159, %v1174
      %v1176 = vrot.slane %v1163, 4
      %v1177 = vsel %vm309, %v1176, %v1139
      %v1178 = vrot.slane %v1139, 4
      %v1179 = vsel %vm309, %v1163, %v1178
      %v1180 = vrot.slane %v1031, 4
      %v1181 = vsel %vm309, %v1180, %v1023
      %v1182 = vrot.slane %v1023, 4
      %v1183 = vsel %vm309, %v1031, %v1182
      %v1185 = vunpack.c.l.s4 1983009808
      %v1186 = vunpack.c.0.s8 %v1185
      %v1187 = vperm.slane %v1181, %v1186
      %v1189 = vunpack.c.l.s4 1983009808
      %v1190 = vunpack.c.0.s8 %v1189
      %v1191 = vperm.slane %v1183, %v1190
      %v1192 = vrot.slane %v1035, 4
      %v1193 = vsel %vm309, %v1192, %v1027
      %v1194 = vrot.slane %v1027, 4
      %v1195 = vsel %vm309, %v1035, %v1194
      %v1197 = vunpack.c.l.s4 1983009808
      %v1198 = vunpack.c.0.s8 %v1197
      %v1199 = vperm.slane %v1193, %v1198
      %v1201 = vunpack.c.l.s4 1983009808
      %v1202 = vunpack.c.0.s8 %v1201
      %v1203 = vperm.slane %v1195, %v1202
      %v1204 = vrot.slane %v1047, 4
      %v1205 = vsel %vm309, %v1204, %v1039
      %v1206 = vrot.slane %v1039, 4
      %v1207 = vsel %vm309, %v1047, %v1206
      %v1209 = vunpack.c.l.s4 1983009808
      %v1210 = vunpack.c.0.s8 %v1209
      %v1211 = vperm.slane %v1205, %v1210
      %v1213 = vunpack.c.l.s4 1983009808
      %v1214 = vunpack.c.0.s8 %v1213
      %v1215 = vperm.slane %v1207, %v1214
      %v1216 = vrot.slane %v1051, 4
      %v1217 = vsel %vm309, %v1216, %v1043
      %v1218 = vrot.slane %v1043, 4
      %v1219 = vsel %vm309, %v1051, %v1218
      %v1221 = vunpack.c.l.s4 1983009808
      %v1222 = vunpack.c.0.s8 %v1221
      %v1223 = vperm.slane %v1217, %v1222
      %v1225 = vunpack.c.l.s4 1983009808
      %v1226 = vunpack.c.0.s8 %v1225
      %v1227 = vperm.slane %v1219, %v1226
      %v1228 = vrot.slane %v1199, 4
      %v1229 = vsel %vm309, %v1228, %v1187
      %v1230 = vrot.slane %v1187, 4
      %v1231 = vsel %vm309, %v1199, %v1230
      %v1233 = vunpack.c.l.s4 1934713408
      %v1234 = vunpack.c.0.s8 %v1233
      %v1235 = vperm.slane %v1229, %v1234
      %v1237 = vunpack.c.l.s4 1934713408
      %v1238 = vunpack.c.0.s8 %v1237
      %v1239 = vperm.slane %v1231, %v1238
      %v1240 = vrot.slane %v1203, 4
      %v1241 = vsel %vm309, %v1240, %v1191
      %v1242 = vrot.slane %v1191, 4
      %v1243 = vsel %vm309, %v1203, %v1242
      %v1245 = vunpack.c.l.s4 1934713408
      %v1246 = vunpack.c.0.s8 %v1245
      %v1247 = vperm.slane %v1241, %v1246
      %v1249 = vunpack.c.l.s4 1934713408
      %v1250 = vunpack.c.0.s8 %v1249
      %v1251 = vperm.slane %v1243, %v1250
      %v1252 = vrot.slane %v1223, 4
      %v1253 = vsel %vm309, %v1252, %v1211
      %v1254 = vrot.slane %v1211, 4
      %v1255 = vsel %vm309, %v1223, %v1254
      %v1257 = vunpack.c.l.s4 1934713408
      %v1258 = vunpack.c.0.s8 %v1257
      %v1259 = vperm.slane %v1253, %v1258
      %v1261 = vunpack.c.l.s4 1934713408
      %v1262 = vunpack.c.0.s8 %v1261
      %v1263 = vperm.slane %v1255, %v1262
      %v1264 = vrot.slane %v1227, 4
      %v1265 = vsel %vm309, %v1264, %v1215
      %v1266 = vrot.slane %v1215, 4
      %v1267 = vsel %vm309, %v1227, %v1266
      %v1269 = vunpack.c.l.s4 1934713408
      %v1270 = vunpack.c.0.s8 %v1269
      %v1271 = vperm.slane %v1265, %v1270
      %v1273 = vunpack.c.l.s4 1934713408
      %v1274 = vunpack.c.0.s8 %v1273
      %v1275 = vperm.slane %v1267, %v1274
      %v1276 = vrot.slane %v1259, 4
      %v1277 = vsel %vm309, %v1276, %v1235
      %v1278 = vrot.slane %v1235, 4
      %v1279 = vsel %vm309, %v1259, %v1278
      %v1280 = vrot.slane %v1263, 4
      %v1281 = vsel %vm309, %v1280, %v1239
      %v1282 = vrot.slane %v1239, 4
      %v1283 = vsel %vm309, %v1263, %v1282
      %v1284 = vrot.slane %v1271, 4
      %v1285 = vsel %vm309, %v1284, %v1247
      %v1286 = vrot.slane %v1247, 4
      %v1287 = vsel %vm309, %v1271, %v1286
      %v1288 = vrot.slane %v1275, 4
      %v1289 = vsel %vm309, %v1288, %v1251
      %v1290 = vrot.slane %v1251, 4
      %v1291 = vsel %vm309, %v1275, %v1290
      %1293 = vrot.lane.b32.xlu0 %v1167, 16
      %v1294 = vpop.permute.xlu0 %1293
      %1297 = vrot.lane.b32.xlu0 %v1169, 32
      %v1298 = vpop.permute.xlu0 %1297
      %1301 = vrot.lane.b32.xlu0 %v1171, 48
      %v1302 = vpop.permute.xlu0 %1301
      %1305 = vrot.lane.b32.xlu0 %v1173, 64
      %v1306 = vpop.permute.xlu0 %1305
      %1309 = vrot.lane.b32.xlu0 %v1175, 80
      %v1310 = vpop.permute.xlu0 %1309
      %1313 = vrot.lane.b32.xlu0 %v1177, 96
      %v1314 = vpop.permute.xlu0 %1313
      %1317 = vrot.lane.b32.xlu0 %v1179, 112
      %v1318 = vpop.permute.xlu0 %1317
      %1321 = vrot.lane.b32.xlu0 %v1279, 16
      %v1322 = vpop.permute.xlu0 %1321
      %1325 = vrot.lane.b32.xlu0 %v1281, 32
      %v1326 = vpop.permute.xlu0 %1325
      %1329 = vrot.lane.b32.xlu0 %v1283, 48
      %v1330 = vpop.permute.xlu0 %1329
      %1333 = vrot.lane.b32.xlu0 %v1285, 64
      %v1334 = vpop.permute.xlu0 %1333
      %1337 = vrot.lane.b32.xlu0 %v1287, 80
      %v1338 = vpop.permute.xlu0 %1337
      %1341 = vrot.lane.b32.xlu0 %v1289, 96
      %v1342 = vpop.permute.xlu0 %1341
      %1345 = vrot.lane.b32.xlu0 %v1291, 112
      %v1346 = vpop.permute.xlu0 %1345
      %v1348 = vsel %vm589, %v1165, %v1294
      %v1349 = vsel %vm591, %v1348, %v1298
      %v1350 = vsel %vm593, %v1349, %v1302
      %v1351 = vsel %vm595, %v1350, %v1306
      %v1352 = vsel %vm597, %v1351, %v1310
      %v1353 = vsel %vm599, %v1352, %v1314
      %v1354 = vsel %vm601, %v1353, %v1318
      %v1355 = vsel %vm589, %v1277, %v1322
      %v1356 = vsel %vm591, %v1355, %v1326
      %v1357 = vsel %vm593, %v1356, %v1330
      %v1358 = vsel %vm595, %v1357, %v1334
      %v1359 = vsel %vm597, %v1358, %v1338
      %v1360 = vsel %vm599, %v1359, %v1342
      %v1361 = vsel %vm601, %v1360, %v1346
      %1362 = vst [vmem:[#allocation3 + $0x20] sm:$0xff] %v1354
      %1363 = vst [vmem:[#allocation3 + $0x28] sm:$0xff] %v1361
      %v1364 = vld [vmem:[#allocation2] sm:$0xff]
      %v1365 = vld [vmem:[#allocation2 + $0x8] sm:$0xff]
      %v1366 = vld [vmem:[#allocation2 + $0x18] sm:$0xff]
      %v1367 = vld [vmem:[#allocation2 + $0x20] sm:$0xff]
      %v1368 = vld [vmem:[#allocation2 + $0x30] sm:$0xff]
      %v1369 = vld [vmem:[#allocation2 + $0x38] sm:$0xff]
      %v1370 = vld [vmem:[#allocation2 + $0x48] sm:$0xff]
      %v1371 = vld [vmem:[#allocation2 + $0x50] sm:$0xff]
      %v1372 = vld [vmem:[#allocation2 + $0x60] sm:$0xff]
      %v1373 = vld [vmem:[#allocation2 + $0x68] sm:$0xff]
      %v1374 = vld [vmem:[#allocation2 + $0x78] sm:$0xff]
      %v1375 = vld [vmem:[#allocation2 + $0x80] sm:$0xff]
      %v1376 = vld [vmem:[#allocation2 + $0x90] sm:$0xff]
      %v1377 = vld [vmem:[#allocation2 + $0x98] sm:$0xff]
      %v1378 = vld [vmem:[#allocation2 + $0xa8] sm:$0xff]
      %v1379 = vld [vmem:[#allocation2 + $0xb0] sm:$0xff]
      %1396 = vrot.lane.b32.xlu0 %v1364, 125
      %v1397 = vpop.permute.xlu0 %1396
      %1398 = vrot.lane.b32.xlu0 %v1365, 125
      %v1399 = vpop.permute.xlu0 %1398
      %1400 = vrot.lane.b32.xlu0 %v1366, 125
      %v1401 = vpop.permute.xlu0 %1400
      %1402 = vrot.lane.b32.xlu0 %v1367, 125
      %v1403 = vpop.permute.xlu0 %1402
      %1404 = vrot.lane.b32.xlu0 %v1368, 125
      %v1405 = vpop.permute.xlu0 %1404
      %1406 = vrot.lane.b32.xlu0 %v1369, 125
      %v1407 = vpop.permute.xlu0 %1406
      %1408 = vrot.lane.b32.xlu0 %v1370, 125
      %v1409 = vpop.permute.xlu0 %1408
      %1410 = vrot.lane.b32.xlu0 %v1371, 125
      %v1411 = vpop.permute.xlu0 %1410
      %1412 = vrot.lane.b32.xlu0 %v1372, 125
      %v1413 = vpop.permute.xlu0 %1412
      %1414 = vrot.lane.b32.xlu0 %v1373, 125
      %v1415 = vpop.permute.xlu0 %1414
      %1416 = vrot.lane.b32.xlu0 %v1374, 125
      %v1417 = vpop.permute.xlu0 %1416
      %1418 = vrot.lane.b32.xlu0 %v1375, 125
      %v1419 = vpop.permute.xlu0 %1418
      %1420 = vrot.lane.b32.xlu0 %v1376, 125
      %v1421 = vpop.permute.xlu0 %1420
      %1422 = vrot.lane.b32.xlu0 %v1377, 125
      %v1423 = vpop.permute.xlu0 %1422
      %1424 = vrot.lane.b32.xlu0 %v1378, 125
      %v1425 = vpop.permute.xlu0 %1424
      %1426 = vrot.lane.b32.xlu0 %v1379, 125
      %v1427 = vpop.permute.xlu0 %1426
      %v1444 = vrot.slane %v1405, 4
      %v1445 = vsel %vm309, %v1444, %v1397
      %v1446 = vrot.slane %v1397, 4
      %v1447 = vsel %vm309, %v1405, %v1446
      %v1449 = vunpack.c.l.s4 1983009808
      %v1450 = vunpack.c.0.s8 %v1449
      %v1451 = vperm.slane %v1445, %v1450
      %v1453 = vunpack.c.l.s4 1983009808
      %v1454 = vunpack.c.0.s8 %v1453
      %v1455 = vperm.slane %v1447, %v1454
      %v1456 = vrot.slane %v1409, 4
      %v1457 = vsel %vm309, %v1456, %v1401
      %v1458 = vrot.slane %v1401, 4
      %v1459 = vsel %vm309, %v1409, %v1458
      %v1461 = vunpack.c.l.s4 1983009808
      %v1462 = vunpack.c.0.s8 %v1461
      %v1463 = vperm.slane %v1457, %v1462
      %v1465 = vunpack.c.l.s4 1983009808
      %v1466 = vunpack.c.0.s8 %v1465
      %v1467 = vperm.slane %v1459, %v1466
      %v1468 = vrot.slane %v1421, 4
      %v1469 = vsel %vm309, %v1468, %v1413
      %v1470 = vrot.slane %v1413, 4
      %v1471 = vsel %vm309, %v1421, %v1470
      %v1473 = vunpack.c.l.s4 1983009808
      %v1474 = vunpack.c.0.s8 %v1473
      %v1475 = vperm.slane %v1469, %v1474
      %v1477 = vunpack.c.l.s4 1983009808
      %v1478 = vunpack.c.0.s8 %v1477
      %v1479 = vperm.slane %v1471, %v1478
      %v1480 = vrot.slane %v1425, 4
      %v1481 = vsel %vm309, %v1480, %v1417
      %v1482 = vrot.slane %v1417, 4
      %v1483 = vsel %vm309, %v1425, %v1482
      %v1485 = vunpack.c.l.s4 1983009808
      %v1486 = vunpack.c.0.s8 %v1485
      %v1487 = vperm.slane %v1481, %v1486
      %v1489 = vunpack.c.l.s4 1983009808
      %v1490 = vunpack.c.0.s8 %v1489
      %v1491 = vperm.slane %v1483, %v1490
      %v1492 = vrot.slane %v1463, 4
      %v1493 = vsel %vm309, %v1492, %v1451
      %v1494 = vrot.slane %v1451, 4
      %v1495 = vsel %vm309, %v1463, %v1494
      %v1497 = vunpack.c.l.s4 1934713408
      %v1498 = vunpack.c.0.s8 %v1497
      %v1499 = vperm.slane %v1493, %v1498
      %v1501 = vunpack.c.l.s4 1934713408
      %v1502 = vunpack.c.0.s8 %v1501
      %v1503 = vperm.slane %v1495, %v1502
      %v1504 = vrot.slane %v1467, 4
      %v1505 = vsel %vm309, %v1504, %v1455
      %v1506 = vrot.slane %v1455, 4
      %v1507 = vsel %vm309, %v1467, %v1506
      %v1509 = vunpack.c.l.s4 1934713408
      %v1510 = vunpack.c.0.s8 %v1509
      %v1511 = vperm.slane %v1505, %v1510
      %v1513 = vunpack.c.l.s4 1934713408
      %v1514 = vunpack.c.0.s8 %v1513
      %v1515 = vperm.slane %v1507, %v1514
      %v1516 = vrot.slane %v1487, 4
      %v1517 = vsel %vm309, %v1516, %v1475
      %v1518 = vrot.slane %v1475, 4
      %v1519 = vsel %vm309, %v1487, %v1518
      %v1521 = vunpack.c.l.s4 1934713408
      %v1522 = vunpack.c.0.s8 %v1521
      %v1523 = vperm.slane %v1517, %v1522
      %v1525 = vunpack.c.l.s4 1934713408
      %v1526 = vunpack.c.0.s8 %v1525
      %v1527 = vperm.slane %v1519, %v1526
      %v1528 = vrot.slane %v1491, 4
      %v1529 = vsel %vm309, %v1528, %v1479
      %v1530 = vrot.slane %v1479, 4
      %v1531 = vsel %vm309, %v1491, %v1530
      %v1533 = vunpack.c.l.s4 1934713408
      %v1534 = vunpack.c.0.s8 %v1533
      %v1535 = vperm.slane %v1529, %v1534
      %v1537 = vunpack.c.l.s4 1934713408
      %v1538 = vunpack.c.0.s8 %v1537
      %v1539 = vperm.slane %v1531, %v1538
      %v1540 = vrot.slane %v1523, 4
      %v1541 = vsel %vm309, %v1540, %v1499
      %v1542 = vrot.slane %v1499, 4
      %v1543 = vsel %vm309, %v1523, %v1542
      %v1544 = vrot.slane %v1527, 4
      %v1545 = vsel %vm309, %v1544, %v1503
      %v1546 = vrot.slane %v1503, 4
      %v1547 = vsel %vm309, %v1527, %v1546
      %v1548 = vrot.slane %v1535, 4
      %v1549 = vsel %vm309, %v1548, %v1511
      %v1550 = vrot.slane %v1511, 4
      %v1551 = vsel %vm309, %v1535, %v1550
      %v1552 = vrot.slane %v1539, 4
      %v1553 = vsel %vm309, %v1552, %v1515
      %v1554 = vrot.slane %v1515, 4
      %v1555 = vsel %vm309, %v1539, %v1554
      %v1556 = vrot.slane %v1407, 4
      %v1557 = vsel %vm309, %v1556, %v1399
      %v1558 = vrot.slane %v1399, 4
      %v1559 = vsel %vm309, %v1407, %v1558
      %v1561 = vunpack.c.l.s4 1983009808
      %v1562 = vunpack.c.0.s8 %v1561
      %v1563 = vperm.slane %v1557, %v1562
      %v1565 = vunpack.c.l.s4 1983009808
      %v1566 = vunpack.c.0.s8 %v1565
      %v1567 = vperm.slane %v1559, %v1566
      %v1568 = vrot.slane %v1411, 4
      %v1569 = vsel %vm309, %v1568, %v1403
      %v1570 = vrot.slane %v1403, 4
      %v1571 = vsel %vm309, %v1411, %v1570
      %v1573 = vunpack.c.l.s4 1983009808
      %v1574 = vunpack.c.0.s8 %v1573
      %v1575 = vperm.slane %v1569, %v1574
      %v1577 = vunpack.c.l.s4 1983009808
      %v1578 = vunpack.c.0.s8 %v1577
      %v1579 = vperm.slane %v1571, %v1578
      %v1580 = vrot.slane %v1423, 4
      %v1581 = vsel %vm309, %v1580, %v1415
      %v1582 = vrot.slane %v1415, 4
      %v1583 = vsel %vm309, %v1423, %v1582
      %v1585 = vunpack.c.l.s4 1983009808
      %v1586 = vunpack.c.0.s8 %v1585
      %v1587 = vperm.slane %v1581, %v1586
      %v1589 = vunpack.c.l.s4 1983009808
      %v1590 = vunpack.c.0.s8 %v1589
      %v1591 = vperm.slane %v1583, %v1590
      %v1592 = vrot.slane %v1427, 4
      %v1593 = vsel %vm309, %v1592, %v1419
      %v1594 = vrot.slane %v1419, 4
      %v1595 = vsel %vm309, %v1427, %v1594
      %v1597 = vunpack.c.l.s4 1983009808
      %v1598 = vunpack.c.0.s8 %v1597
      %v1599 = vperm.slane %v1593, %v1598
      %v1601 = vunpack.c.l.s4 1983009808
      %v1602 = vunpack.c.0.s8 %v1601
      %v1603 = vperm.slane %v1595, %v1602
      %v1604 = vrot.slane %v1575, 4
      %v1605 = vsel %vm309, %v1604, %v1563
      %v1606 = vrot.slane %v1563, 4
      %v1607 = vsel %vm309, %v1575, %v1606
      %v1609 = vunpack.c.l.s4 1934713408
      %v1610 = vunpack.c.0.s8 %v1609
      %v1611 = vperm.slane %v1605, %v1610
      %v1613 = vunpack.c.l.s4 1934713408
      %v1614 = vunpack.c.0.s8 %v1613
      %v1615 = vperm.slane %v1607, %v1614
      %v1616 = vrot.slane %v1579, 4
      %v1617 = vsel %vm309, %v1616, %v1567
      %v1618 = vrot.slane %v1567, 4
      %v1619 = vsel %vm309, %v1579, %v1618
      %v1621 = vunpack.c.l.s4 1934713408
      %v1622 = vunpack.c.0.s8 %v1621
      %v1623 = vperm.slane %v1617, %v1622
      %v1625 = vunpack.c.l.s4 1934713408
      %v1626 = vunpack.c.0.s8 %v1625
      %v1627 = vperm.slane %v1619, %v1626
      %v1628 = vrot.slane %v1599, 4
      %v1629 = vsel %vm309, %v1628, %v1587
      %v1630 = vrot.slane %v1587, 4
      %v1631 = vsel %vm309, %v1599, %v1630
      %v1633 = vunpack.c.l.s4 1934713408
      %v1634 = vunpack.c.0.s8 %v1633
      %v1635 = vperm.slane %v1629, %v1634
      %v1637 = vunpack.c.l.s4 1934713408
      %v1638 = vunpack.c.0.s8 %v1637
      %v1639 = vperm.slane %v1631, %v1638
      %v1640 = vrot.slane %v1603, 4
      %v1641 = vsel %vm309, %v1640, %v1591
      %v1642 = vrot.slane %v1591, 4
      %v1643 = vsel %vm309, %v1603, %v1642
      %v1645 = vunpack.c.l.s4 1934713408
      %v1646 = vunpack.c.0.s8 %v1645
      %v1647 = vperm.slane %v1641, %v1646
      %v1649 = vunpack.c.l.s4 1934713408
      %v1650 = vunpack.c.0.s8 %v1649
      %v1651 = vperm.slane %v1643, %v1650
      %v1652 = vrot.slane %v1635, 4
      %v1653 = vsel %vm309, %v1652, %v1611
      %v1654 = vrot.slane %v1611, 4
      %v1655 = vsel %vm309, %v1635, %v1654
      %v1656 = vrot.slane %v1639, 4
      %v1657 = vsel %vm309, %v1656, %v1615
      %v1658 = vrot.slane %v1615, 4
      %v1659 = vsel %vm309, %v1639, %v1658
      %v1660 = vrot.slane %v1647, 4
      %v1661 = vsel %vm309, %v1660, %v1623
      %v1662 = vrot.slane %v1623, 4
      %v1663 = vsel %vm309, %v1647, %v1662
      %v1664 = vrot.slane %v1651, 4
      %v1665 = vsel %vm309, %v1664, %v1627
      %v1666 = vrot.slane %v1627, 4
      %v1667 = vsel %vm309, %v1651, %v1666
      %1669 = vrot.lane.b32.xlu0 %v1543, 16
      %v1670 = vpop.permute.xlu0 %1669
      %1673 = vrot.lane.b32.xlu0 %v1545, 32
      %v1674 = vpop.permute.xlu0 %1673
      %1677 = vrot.lane.b32.xlu0 %v1547, 48
      %v1678 = vpop.permute.xlu0 %1677
      %1681 = vrot.lane.b32.xlu0 %v1549, 64
      %v1682 = vpop.permute.xlu0 %1681
      %1685 = vrot.lane.b32.xlu0 %v1551, 80
      %v1686 = vpop.permute.xlu0 %1685
      %1689 = vrot.lane.b32.xlu0 %v1553, 96
      %v1690 = vpop.permute.xlu0 %1689
      %1693 = vrot.lane.b32.xlu0 %v1555, 112
      %v1694 = vpop.permute.xlu0 %1693
      %1697 = vrot.lane.b32.xlu0 %v1655, 16
      %v1698 = vpop.permute.xlu0 %1697
      %1701 = vrot.lane.b32.xlu0 %v1657, 32
      %v1702 = vpop.permute.xlu0 %1701
      %1705 = vrot.lane.b32.xlu0 %v1659, 48
      %v1706 = vpop.permute.xlu0 %1705
      %1709 = vrot.lane.b32.xlu0 %v1661, 64
      %v1710 = vpop.permute.xlu0 %1709
      %1713 = vrot.lane.b32.xlu0 %v1663, 80
      %v1714 = vpop.permute.xlu0 %1713
      %1717 = vrot.lane.b32.xlu0 %v1665, 96
      %v1718 = vpop.permute.xlu0 %1717
      %1721 = vrot.lane.b32.xlu0 %v1667, 112
      %v1722 = vpop.permute.xlu0 %1721
      %v1724 = vsel %vm589, %v1541, %v1670
      %v1725 = vsel %vm591, %v1724, %v1674
      %v1726 = vsel %vm593, %v1725, %v1678
      %v1727 = vsel %vm595, %v1726, %v1682
      %v1728 = vsel %vm597, %v1727, %v1686
      %v1729 = vsel %vm599, %v1728, %v1690
      %v1730 = vsel %vm601, %v1729, %v1694
      %v1731 = vsel %vm589, %v1653, %v1698
      %v1732 = vsel %vm591, %v1731, %v1702
      %v1733 = vsel %vm593, %v1732, %v1706
      %v1734 = vsel %vm595, %v1733, %v1710
      %v1735 = vsel %vm597, %v1734, %v1714
      %v1736 = vsel %vm599, %v1735, %v1718
      %v1737 = vsel %vm601, %v1736, %v1722
      %1738 = vst [vmem:[#allocation3 + $0x30] sm:$0xff] %v1730
      %1739 = vst [vmem:[#allocation3 + $0x38] sm:$0xff] %v1737
      %v1740 = vld [vmem:[#allocation2] sm:$0xff]
      %v1741 = vld [vmem:[#allocation2 + $0x8] sm:$0xff]
      %v1742 = vld [vmem:[#allocation2 + $0x18] sm:$0xff]
      %v1743 = vld [vmem:[#allocation2 + $0x20] sm:$0xff]
      %v1744 = vld [vmem:[#allocation2 + $0x30] sm:$0xff]
      %v1745 = vld [vmem:[#allocation2 + $0x38] sm:$0xff]
      %v1746 = vld [vmem:[#allocation2 + $0x48] sm:$0xff]
      %v1747 = vld [vmem:[#allocation2 + $0x50] sm:$0xff]
      %v1748 = vld [vmem:[#allocation2 + $0x60] sm:$0xff]
      %v1749 = vld [vmem:[#allocation2 + $0x68] sm:$0xff]
      %v1750 = vld [vmem:[#allocation2 + $0x78] sm:$0xff]
      %v1751 = vld [vmem:[#allocation2 + $0x80] sm:$0xff]
      %v1752 = vld [vmem:[#allocation2 + $0x90] sm:$0xff]
      %v1753 = vld [vmem:[#allocation2 + $0x98] sm:$0xff]
      %v1754 = vld [vmem:[#allocation2 + $0xa8] sm:$0xff]
      %v1755 = vld [vmem:[#allocation2 + $0xb0] sm:$0xff]
      %1772 = vrot.lane.b32.xlu0 %v1740, 124
      %v1773 = vpop.permute.xlu0 %1772
      %1774 = vrot.lane.b32.xlu0 %v1741, 124
      %v1775 = vpop.permute.xlu0 %1774
      %1776 = vrot.lane.b32.xlu0 %v1742, 124
      %v1777 = vpop.permute.xlu0 %1776
      %1778 = vrot.lane.b32.xlu0 %v1743, 124
      %v1779 = vpop.permute.xlu0 %1778
      %1780 = vrot.lane.b32.xlu0 %v1744, 124
      %v1781 = vpop.permute.xlu0 %1780
      %1782 = vrot.lane.b32.xlu0 %v1745, 124
      %v1783 = vpop.permute.xlu0 %1782
      %1784 = vrot.lane.b32.xlu0 %v1746, 124
      %v1785 = vpop.permute.xlu0 %1784
      %1786 = vrot.lane.b32.xlu0 %v1747, 124
      %v1787 = vpop.permute.xlu0 %1786
      %1788 = vrot.lane.b32.xlu0 %v1748, 124
      %v1789 = vpop.permute.xlu0 %1788
      %1790 = vrot.lane.b32.xlu0 %v1749, 124
      %v1791 = vpop.permute.xlu0 %1790
      %1792 = vrot.lane.b32.xlu0 %v1750, 124
      %v1793 = vpop.permute.xlu0 %1792
      %1794 = vrot.lane.b32.xlu0 %v1751, 124
      %v1795 = vpop.permute.xlu0 %1794
      %1796 = vrot.lane.b32.xlu0 %v1752, 124
      %v1797 = vpop.permute.xlu0 %1796
      %1798 = vrot.lane.b32.xlu0 %v1753, 124
      %v1799 = vpop.permute.xlu0 %1798
      %1800 = vrot.lane.b32.xlu0 %v1754, 124
      %v1801 = vpop.permute.xlu0 %1800
      %1802 = vrot.lane.b32.xlu0 %v1755, 124
      %v1803 = vpop.permute.xlu0 %1802
      %v1820 = vrot.slane %v1781, 4
      %v1821 = vsel %vm309, %v1820, %v1773
      %v1822 = vrot.slane %v1773, 4
      %v1823 = vsel %vm309, %v1781, %v1822
      %v1825 = vunpack.c.l.s4 1983009808
      %v1826 = vunpack.c.0.s8 %v1825
      %v1827 = vperm.slane %v1821, %v1826
      %v1829 = vunpack.c.l.s4 1983009808
      %v1830 = vunpack.c.0.s8 %v1829
      %v1831 = vperm.slane %v1823, %v1830
      %v1832 = vrot.slane %v1785, 4
      %v1833 = vsel %vm309, %v1832, %v1777
      %v1834 = vrot.slane %v1777, 4
      %v1835 = vsel %vm309, %v1785, %v1834
      %v1837 = vunpack.c.l.s4 1983009808
      %v1838 = vunpack.c.0.s8 %v1837
      %v1839 = vperm.slane %v1833, %v1838
      %v1841 = vunpack.c.l.s4 1983009808
      %v1842 = vunpack.c.0.s8 %v1841
      %v1843 = vperm.slane %v1835, %v1842
      %v1844 = vrot.slane %v1797, 4
      %v1845 = vsel %vm309, %v1844, %v1789
      %v1846 = vrot.slane %v1789, 4
      %v1847 = vsel %vm309, %v1797, %v1846
      %v1849 = vunpack.c.l.s4 1983009808
      %v1850 = vunpack.c.0.s8 %v1849
      %v1851 = vperm.slane %v1845, %v1850
      %v1853 = vunpack.c.l.s4 1983009808
      %v1854 = vunpack.c.0.s8 %v1853
      %v1855 = vperm.slane %v1847, %v1854
      %v1856 = vrot.slane %v1801, 4
      %v1857 = vsel %vm309, %v1856, %v1793
      %v1858 = vrot.slane %v1793, 4
      %v1859 = vsel %vm309, %v1801, %v1858
      %v1861 = vunpack.c.l.s4 1983009808
      %v1862 = vunpack.c.0.s8 %v1861
      %v1863 = vperm.slane %v1857, %v1862
      %v1865 = vunpack.c.l.s4 1983009808
      %v1866 = vunpack.c.0.s8 %v1865
      %v1867 = vperm.slane %v1859, %v1866
      %v1868 = vrot.slane %v1839, 4
      %v1869 = vsel %vm309, %v1868, %v1827
      %v1870 = vrot.slane %v1827, 4
      %v1871 = vsel %vm309, %v1839, %v1870
      %v1873 = vunpack.c.l.s4 1934713408
      %v1874 = vunpack.c.0.s8 %v1873
      %v1875 = vperm.slane %v1869, %v1874
      %v1877 = vunpack.c.l.s4 1934713408
      %v1878 = vunpack.c.0.s8 %v1877
      %v1879 = vperm.slane %v1871, %v1878
      %v1880 = vrot.slane %v1843, 4
      %v1881 = vsel %vm309, %v1880, %v1831
      %v1882 = vrot.slane %v1831, 4
      %v1883 = vsel %vm309, %v1843, %v1882
      %v1885 = vunpack.c.l.s4 1934713408
      %v1886 = vunpack.c.0.s8 %v1885
      %v1887 = vperm.slane %v1881, %v1886
      %v1889 = vunpack.c.l.s4 1934713408
      %v1890 = vunpack.c.0.s8 %v1889
      %v1891 = vperm.slane %v1883, %v1890
      %v1892 = vrot.slane %v1863, 4
      %v1893 = vsel %vm309, %v1892, %v1851
      %v1894 = vrot.slane %v1851, 4
      %v1895 = vsel %vm309, %v1863, %v1894
      %v1897 = vunpack.c.l.s4 1934713408
      %v1898 = vunpack.c.0.s8 %v1897
      %v1899 = vperm.slane %v1893, %v1898
      %v1901 = vunpack.c.l.s4 1934713408
      %v1902 = vunpack.c.0.s8 %v1901
      %v1903 = vperm.slane %v1895, %v1902
      %v1904 = vrot.slane %v1867, 4
      %v1905 = vsel %vm309, %v1904, %v1855
      %v1906 = vrot.slane %v1855, 4
      %v1907 = vsel %vm309, %v1867, %v1906
      %v1909 = vunpack.c.l.s4 1934713408
      %v1910 = vunpack.c.0.s8 %v1909
      %v1911 = vperm.slane %v1905, %v1910
      %v1913 = vunpack.c.l.s4 1934713408
      %v1914 = vunpack.c.0.s8 %v1913
      %v1915 = vperm.slane %v1907, %v1914
      %v1916 = vrot.slane %v1899, 4
      %v1917 = vsel %vm309, %v1916, %v1875
      %v1918 = vrot.slane %v1875, 4
      %v1919 = vsel %vm309, %v1899, %v1918
      %v1920 = vrot.slane %v1903, 4
      %v1921 = vsel %vm309, %v1920, %v1879
      %v1922 = vrot.slane %v1879, 4
      %v1923 = vsel %vm309, %v1903, %v1922
      %v1924 = vrot.slane %v1911, 4
      %v1925 = vsel %vm309, %v1924, %v1887
      %v1926 = vrot.slane %v1887, 4
      %v1927 = vsel %vm309, %v1911, %v1926
      %v1928 = vrot.slane %v1915, 4
      %v1929 = vsel %vm309, %v1928, %v1891
      %v1930 = vrot.slane %v1891, 4
      %v1931 = vsel %vm309, %v1915, %v1930
      %v1932 = vrot.slane %v1783, 4
      %v1933 = vsel %vm309, %v1932, %v1775
      %v1934 = vrot.slane %v1775, 4
      %v1935 = vsel %vm309, %v1783, %v1934
      %v1937 = vunpack.c.l.s4 1983009808
      %v1938 = vunpack.c.0.s8 %v1937
      %v1939 = vperm.slane %v1933, %v1938
      %v1941 = vunpack.c.l.s4 1983009808
      %v1942 = vunpack.c.0.s8 %v1941
      %v1943 = vperm.slane %v1935, %v1942
      %v1944 = vrot.slane %v1787, 4
      %v1945 = vsel %vm309, %v1944, %v1779
      %v1946 = vrot.slane %v1779, 4
      %v1947 = vsel %vm309, %v1787, %v1946
      %v1949 = vunpack.c.l.s4 1983009808
      %v1950 = vunpack.c.0.s8 %v1949
      %v1951 = vperm.slane %v1945, %v1950
      %v1953 = vunpack.c.l.s4 1983009808
      %v1954 = vunpack.c.0.s8 %v1953
      %v1955 = vperm.slane %v1947, %v1954
      %v1956 = vrot.slane %v1799, 4
      %v1957 = vsel %vm309, %v1956, %v1791
      %v1958 = vrot.slane %v1791, 4
      %v1959 = vsel %vm309, %v1799, %v1958
      %v1961 = vunpack.c.l.s4 1983009808
      %v1962 = vunpack.c.0.s8 %v1961
      %v1963 = vperm.slane %v1957, %v1962
      %v1965 = vunpack.c.l.s4 1983009808
      %v1966 = vunpack.c.0.s8 %v1965
      %v1967 = vperm.slane %v1959, %v1966
      %v1968 = vrot.slane %v1803, 4
      %v1969 = vsel %vm309, %v1968, %v1795
      %v1970 = vrot.slane %v1795, 4
      %v1971 = vsel %vm309, %v1803, %v1970
      %v1973 = vunpack.c.l.s4 1983009808
      %v1974 = vunpack.c.0.s8 %v1973
      %v1975 = vperm.slane %v1969, %v1974
      %v1977 = vunpack.c.l.s4 1983009808
      %v1978 = vunpack.c.0.s8 %v1977
      %v1979 = vperm.slane %v1971, %v1978
      %v1980 = vrot.slane %v1951, 4
      %v1981 = vsel %vm309, %v1980, %v1939
      %v1982 = vrot.slane %v1939, 4
      %v1983 = vsel %vm309, %v1951, %v1982
      %v1985 = vunpack.c.l.s4 1934713408
      %v1986 = vunpack.c.0.s8 %v1985
      %v1987 = vperm.slane %v1981, %v1986
      %v1989 = vunpack.c.l.s4 1934713408
      %v1990 = vunpack.c.0.s8 %v1989
      %v1991 = vperm.slane %v1983, %v1990
      %v1992 = vrot.slane %v1955, 4
      %v1993 = vsel %vm309, %v1992, %v1943
      %v1994 = vrot.slane %v1943, 4
      %v1995 = vsel %vm309, %v1955, %v1994
      %v1997 = vunpack.c.l.s4 1934713408
      %v1998 = vunpack.c.0.s8 %v1997
      %v1999 = vperm.slane %v1993, %v1998
      %v2001 = vunpack.c.l.s4 1934713408
      %v2002 = vunpack.c.0.s8 %v2001
      %v2003 = vperm.slane %v1995, %v2002
      %v2004 = vrot.slane %v1975, 4
      %v2005 = vsel %vm309, %v2004, %v1963
      %v2006 = vrot.slane %v1963, 4
      %v2007 = vsel %vm309, %v1975, %v2006
      %v2009 = vunpack.c.l.s4 1934713408
      %v2010 = vunpack.c.0.s8 %v2009
      %v2011 = vperm.slane %v2005, %v2010
      %v2013 = vunpack.c.l.s4 1934713408
      %v2014 = vunpack.c.0.s8 %v2013
      %v2015 = vperm.slane %v2007, %v2014
      %v2016 = vrot.slane %v1979, 4
      %v2017 = vsel %vm309, %v2016, %v1967
      %v2018 = vrot.slane %v1967, 4
      %v2019 = vsel %vm309, %v1979, %v2018
      %v2021 = vunpack.c.l.s4 1934713408
      %v2022 = vunpack.c.0.s8 %v2021
      %v2023 = vperm.slane %v2017, %v2022
      %v2025 = vunpack.c.l.s4 1934713408
      %v2026 = vunpack.c.0.s8 %v2025
      %v2027 = vperm.slane %v2019, %v2026
      %v2028 = vrot.slane %v2011, 4
      %v2029 = vsel %vm309, %v2028, %v1987
      %v2030 = vrot.slane %v1987, 4
      %v2031 = vsel %vm309, %v2011, %v2030
      %v2032 = vrot.slane %v2015, 4
      %v2033 = vsel %vm309, %v2032, %v1991
      %v2034 = vrot.slane %v1991, 4
      %v2035 = vsel %vm309, %v2015, %v2034
      %v2036 = vrot.slane %v2023, 4
      %v2037 = vsel %vm309, %v2036, %v1999
      %v2038 = vrot.slane %v1999, 4
      %v2039 = vsel %vm309, %v2023, %v2038
      %v2040 = vrot.slane %v2027, 4
      %v2041 = vsel %vm309, %v2040, %v2003
      %v2042 = vrot.slane %v2003, 4
      %v2043 = vsel %vm309, %v2027, %v2042
      %2045 = vrot.lane.b32.xlu0 %v1919, 16
      %v2046 = vpop.permute.xlu0 %2045
      %2049 = vrot.lane.b32.xlu0 %v1921, 32
      %v2050 = vpop.permute.xlu0 %2049
      %2053 = vrot.lane.b32.xlu0 %v1923, 48
      %v2054 = vpop.permute.xlu0 %2053
      %2057 = vrot.lane.b32.xlu0 %v1925, 64
      %v2058 = vpop.permute.xlu0 %2057
      %2061 = vrot.lane.b32.xlu0 %v1927, 80
      %v2062 = vpop.permute.xlu0 %2061
      %2065 = vrot.lane.b32.xlu0 %v1929, 96
      %v2066 = vpop.permute.xlu0 %2065
      %2069 = vrot.lane.b32.xlu0 %v1931, 112
      %v2070 = vpop.permute.xlu0 %2069
      %2073 = vrot.lane.b32.xlu0 %v2031, 16
      %v2074 = vpop.permute.xlu0 %2073
      %2077 = vrot.lane.b32.xlu0 %v2033, 32
      %v2078 = vpop.permute.xlu0 %2077
      %2081 = vrot.lane.b32.xlu0 %v2035, 48
      %v2082 = vpop.permute.xlu0 %2081
      %2085 = vrot.lane.b32.xlu0 %v2037, 64
      %v2086 = vpop.permute.xlu0 %2085
      %2089 = vrot.lane.b32.xlu0 %v2039, 80
      %v2090 = vpop.permute.xlu0 %2089
      %2093 = vrot.lane.b32.xlu0 %v2041, 96
      %v2094 = vpop.permute.xlu0 %2093
      %2097 = vrot.lane.b32.xlu0 %v2043, 112
      %v2098 = vpop.permute.xlu0 %2097
      %v2100 = vsel %vm589, %v1917, %v2046
      %v2101 = vsel %vm591, %v2100, %v2050
      %v2102 = vsel %vm593, %v2101, %v2054
      %v2103 = vsel %vm595, %v2102, %v2058
      %v2104 = vsel %vm597, %v2103, %v2062
      %v2105 = vsel %vm599, %v2104, %v2066
      %v2106 = vsel %vm601, %v2105, %v2070
      %v2107 = vsel %vm589, %v2029, %v2074
      %v2108 = vsel %vm591, %v2107, %v2078
      %v2109 = vsel %vm593, %v2108, %v2082
      %v2110 = vsel %vm595, %v2109, %v2086
      %v2111 = vsel %vm597, %v2110, %v2090
      %v2112 = vsel %vm599, %v2111, %v2094
      %v2113 = vsel %vm601, %v2112, %v2098
      %2114 = vst [vmem:[#allocation3 + $0x40] sm:$0xff] %v2106
      %2115 = vst [vmem:[#allocation3 + $0x48] sm:$0xff] %v2113
      %v2116 = vld [vmem:[#allocation2 + $0x1] sm:$0xff]
      %v2117 = vld [vmem:[#allocation2 + $0x9] sm:$0xff]
      %v2118 = vld [vmem:[#allocation2 + $0x19] sm:$0xff]
      %v2119 = vld [vmem:[#allocation2 + $0x21] sm:$0xff]
      %v2120 = vld [vmem:[#allocation2 + $0x31] sm:$0xff]
      %v2121 = vld [vmem:[#allocation2 + $0x39] sm:$0xff]
      %v2122 = vld [vmem:[#allocation2 + $0x49] sm:$0xff]
      %v2123 = vld [vmem:[#allocation2 + $0x51] sm:$0xff]
      %v2124 = vld [vmem:[#allocation2 + $0x61] sm:$0xff]
      %v2125 = vld [vmem:[#allocation2 + $0x69] sm:$0xff]
      %v2126 = vld [vmem:[#allocation2 + $0x79] sm:$0xff]
      %v2127 = vld [vmem:[#allocation2 + $0x81] sm:$0xff]
      %v2128 = vld [vmem:[#allocation2 + $0x91] sm:$0xff]
      %v2129 = vld [vmem:[#allocation2 + $0x99] sm:$0xff]
      %v2130 = vld [vmem:[#allocation2 + $0xa9] sm:$0xff]
      %v2131 = vld [vmem:[#allocation2 + $0xb1] sm:$0xff]
      %v2132 = vrot.slane %v2120, 4
      %v2133 = vsel %vm309, %v2132, %v2116
      %v2134 = vrot.slane %v2116, 4
      %v2135 = vsel %vm309, %v2120, %v2134
      %v2137 = vunpack.c.l.s4 1983009808
      %v2138 = vunpack.c.0.s8 %v2137
      %v2139 = vperm.slane %v2133, %v2138
      %v2141 = vunpack.c.l.s4 1983009808
      %v2142 = vunpack.c.0.s8 %v2141
      %v2143 = vperm.slane %v2135, %v2142
      %v2144 = vrot.slane %v2122, 4
      %v2145 = vsel %vm309, %v2144, %v2118
      %v2146 = vrot.slane %v2118, 4
      %v2147 = vsel %vm309, %v2122, %v2146
      %v2149 = vunpack.c.l.s4 1983009808
      %v2150 = vunpack.c.0.s8 %v2149
      %v2151 = vperm.slane %v2145, %v2150
      %v2153 = vunpack.c.l.s4 1983009808
      %v2154 = vunpack.c.0.s8 %v2153
      %v2155 = vperm.slane %v2147, %v2154
      %v2156 = vrot.slane %v2128, 4
      %v2157 = vsel %vm309, %v2156, %v2124
      %v2158 = vrot.slane %v2124, 4
      %v2159 = vsel %vm309, %v2128, %v2158
      %v2161 = vunpack.c.l.s4 1983009808
      %v2162 = vunpack.c.0.s8 %v2161
      %v2163 = vperm.slane %v2157, %v2162
      %v2165 = vunpack.c.l.s4 1983009808
      %v2166 = vunpack.c.0.s8 %v2165
      %v2167 = vperm.slane %v2159, %v2166
      %v2168 = vrot.slane %v2130, 4
      %v2169 = vsel %vm309, %v2168, %v2126
      %v2170 = vrot.slane %v2126, 4
      %v2171 = vsel %vm309, %v2130, %v2170
      %v2173 = vunpack.c.l.s4 1983009808
      %v2174 = vunpack.c.0.s8 %v2173
      %v2175 = vperm.slane %v2169, %v2174
      %v2177 = vunpack.c.l.s4 1983009808
      %v2178 = vunpack.c.0.s8 %v2177
      %v2179 = vperm.slane %v2171, %v2178
      %v2180 = vrot.slane %v2151, 4
      %v2181 = vsel %vm309, %v2180, %v2139
      %v2182 = vrot.slane %v2139, 4
      %v2183 = vsel %vm309, %v2151, %v2182
      %v2185 = vunpack.c.l.s4 1934713408
      %v2186 = vunpack.c.0.s8 %v2185
      %v2187 = vperm.slane %v2181, %v2186
      %v2189 = vunpack.c.l.s4 1934713408
      %v2190 = vunpack.c.0.s8 %v2189
      %v2191 = vperm.slane %v2183, %v2190
      %v2192 = vrot.slane %v2155, 4
      %v2193 = vsel %vm309, %v2192, %v2143
      %v2194 = vrot.slane %v2143, 4
      %v2195 = vsel %vm309, %v2155, %v2194
      %v2197 = vunpack.c.l.s4 1934713408
      %v2198 = vunpack.c.0.s8 %v2197
      %v2199 = vperm.slane %v2193, %v2198
      %v2201 = vunpack.c.l.s4 1934713408
      %v2202 = vunpack.c.0.s8 %v2201
      %v2203 = vperm.slane %v2195, %v2202
      %v2204 = vrot.slane %v2175, 4
      %v2205 = vsel %vm309, %v2204, %v2163
      %v2206 = vrot.slane %v2163, 4
      %v2207 = vsel %vm309, %v2175, %v2206
      %v2209 = vunpack.c.l.s4 1934713408
      %v2210 = vunpack.c.0.s8 %v2209
      %v2211 = vperm.slane %v2205, %v2210
      %v2213 = vunpack.c.l.s4 1934713408
      %v2214 = vunpack.c.0.s8 %v2213
      %v2215 = vperm.slane %v2207, %v2214
      %v2216 = vrot.slane %v2179, 4
      %v2217 = vsel %vm309, %v2216, %v2167
      %v2218 = vrot.slane %v2167, 4
      %v2219 = vsel %vm309, %v2179, %v2218
      %v2221 = vunpack.c.l.s4 1934713408
      %v2222 = vunpack.c.0.s8 %v2221
      %v2223 = vperm.slane %v2217, %v2222
      %v2225 = vunpack.c.l.s4 1934713408
      %v2226 = vunpack.c.0.s8 %v2225
      %v2227 = vperm.slane %v2219, %v2226
      %v2228 = vrot.slane %v2211, 4
      %v2229 = vsel %vm309, %v2228, %v2187
      %v2230 = vrot.slane %v2187, 4
      %v2231 = vsel %vm309, %v2211, %v2230
      %v2232 = vrot.slane %v2215, 4
      %v2233 = vsel %vm309, %v2232, %v2191
      %v2234 = vrot.slane %v2191, 4
      %v2235 = vsel %vm309, %v2215, %v2234
      %v2236 = vrot.slane %v2223, 4
      %v2237 = vsel %vm309, %v2236, %v2199
      %v2238 = vrot.slane %v2199, 4
      %v2239 = vsel %vm309, %v2223, %v2238
      %v2240 = vrot.slane %v2227, 4
      %v2241 = vsel %vm309, %v2240, %v2203
      %v2242 = vrot.slane %v2203, 4
      %v2243 = vsel %vm309, %v2227, %v2242
      %v2244 = vrot.slane %v2121, 4
      %v2245 = vsel %vm309, %v2244, %v2117
      %v2246 = vrot.slane %v2117, 4
      %v2247 = vsel %vm309, %v2121, %v2246
      %v2249 = vunpack.c.l.s4 1983009808
      %v2250 = vunpack.c.0.s8 %v2249
      %v2251 = vperm.slane %v2245, %v2250
      %v2253 = vunpack.c.l.s4 1983009808
      %v2254 = vunpack.c.0.s8 %v2253
      %v2255 = vperm.slane %v2247, %v2254
      %v2256 = vrot.slane %v2123, 4
      %v2257 = vsel %vm309, %v2256, %v2119
      %v2258 = vrot.slane %v2119, 4
      %v2259 = vsel %vm309, %v2123, %v2258
      %v2261 = vunpack.c.l.s4 1983009808
      %v2262 = vunpack.c.0.s8 %v2261
      %v2263 = vperm.slane %v2257, %v2262
      %v2265 = vunpack.c.l.s4 1983009808
      %v2266 = vunpack.c.0.s8 %v2265
      %v2267 = vperm.slane %v2259, %v2266
      %v2268 = vrot.slane %v2129, 4
      %v2269 = vsel %vm309, %v2268, %v2125
      %v2270 = vrot.slane %v2125, 4
      %v2271 = vsel %vm309, %v2129, %v2270
      %v2273 = vunpack.c.l.s4 1983009808
      %v2274 = vunpack.c.0.s8 %v2273
      %v2275 = vperm.slane %v2269, %v2274
      %v2277 = vunpack.c.l.s4 1983009808
      %v2278 = vunpack.c.0.s8 %v2277
      %v2279 = vperm.slane %v2271, %v2278
      %v2280 = vrot.slane %v2131, 4
      %v2281 = vsel %vm309, %v2280, %v2127
      %v2282 = vrot.slane %v2127, 4
      %v2283 = vsel %vm309, %v2131, %v2282
      %v2285 = vunpack.c.l.s4 1983009808
      %v2286 = vunpack.c.0.s8 %v2285
      %v2287 = vperm.slane %v2281, %v2286
      %v2289 = vunpack.c.l.s4 1983009808
      %v2290 = vunpack.c.0.s8 %v2289
      %v2291 = vperm.slane %v2283, %v2290
      %v2292 = vrot.slane %v2263, 4
      %v2293 = vsel %vm309, %v2292, %v2251
      %v2294 = vrot.slane %v2251, 4
      %v2295 = vsel %vm309, %v2263, %v2294
      %v2297 = vunpack.c.l.s4 1934713408
      %v2298 = vunpack.c.0.s8 %v2297
      %v2299 = vperm.slane %v2293, %v2298
      %v2301 = vunpack.c.l.s4 1934713408
      %v2302 = vunpack.c.0.s8 %v2301
      %v2303 = vperm.slane %v2295, %v2302
      %v2304 = vrot.slane %v2267, 4
      %v2305 = vsel %vm309, %v2304, %v2255
      %v2306 = vrot.slane %v2255, 4
      %v2307 = vsel %vm309, %v2267, %v2306
      %v2309 = vunpack.c.l.s4 1934713408
      %v2310 = vunpack.c.0.s8 %v2309
      %v2311 = vperm.slane %v2305, %v2310
      %v2313 = vunpack.c.l.s4 1934713408
      %v2314 = vunpack.c.0.s8 %v2313
      %v2315 = vperm.slane %v2307, %v2314
      %v2316 = vrot.slane %v2287, 4
      %v2317 = vsel %vm309, %v2316, %v2275
      %v2318 = vrot.slane %v2275, 4
      %v2319 = vsel %vm309, %v2287, %v2318
      %v2321 = vunpack.c.l.s4 1934713408
      %v2322 = vunpack.c.0.s8 %v2321
      %v2323 = vperm.slane %v2317, %v2322
      %v2325 = vunpack.c.l.s4 1934713408
      %v2326 = vunpack.c.0.s8 %v2325
      %v2327 = vperm.slane %v2319, %v2326
      %v2328 = vrot.slane %v2291, 4
      %v2329 = vsel %vm309, %v2328, %v2279
      %v2330 = vrot.slane %v2279, 4
      %v2331 = vsel %vm309, %v2291, %v2330
      %v2333 = vunpack.c.l.s4 1934713408
      %v2334 = vunpack.c.0.s8 %v2333
      %v2335 = vperm.slane %v2329, %v2334
      %v2337 = vunpack.c.l.s4 1934713408
      %v2338 = vunpack.c.0.s8 %v2337
      %v2339 = vperm.slane %v2331, %v2338
      %v2340 = vrot.slane %v2323, 4
      %v2341 = vsel %vm309, %v2340, %v2299
      %v2342 = vrot.slane %v2299, 4
      %v2343 = vsel %vm309, %v2323, %v2342
      %v2344 = vrot.slane %v2327, 4
      %v2345 = vsel %vm309, %v2344, %v2303
      %v2346 = vrot.slane %v2303, 4
      %v2347 = vsel %vm309, %v2327, %v2346
      %v2348 = vrot.slane %v2335, 4
      %v2349 = vsel %vm309, %v2348, %v2311
      %v2350 = vrot.slane %v2311, 4
      %v2351 = vsel %vm309, %v2335, %v2350
      %v2352 = vrot.slane %v2339, 4
      %v2353 = vsel %vm309, %v2352, %v2315
      %v2354 = vrot.slane %v2315, 4
      %v2355 = vsel %vm309, %v2339, %v2354
      %2357 = vrot.lane.b32.xlu0 %v2231, 16
      %v2358 = vpop.permute.xlu0 %2357
      %2361 = vrot.lane.b32.xlu0 %v2233, 32
      %v2362 = vpop.permute.xlu0 %2361
      %2365 = vrot.lane.b32.xlu0 %v2235, 48
      %v2366 = vpop.permute.xlu0 %2365
      %2369 = vrot.lane.b32.xlu0 %v2237, 64
      %v2370 = vpop.permute.xlu0 %2369
      %2373 = vrot.lane.b32.xlu0 %v2239, 80
      %v2374 = vpop.permute.xlu0 %2373
      %2377 = vrot.lane.b32.xlu0 %v2241, 96
      %v2378 = vpop.permute.xlu0 %2377
      %2381 = vrot.lane.b32.xlu0 %v2243, 112
      %v2382 = vpop.permute.xlu0 %2381
      %2385 = vrot.lane.b32.xlu0 %v2343, 16
      %v2386 = vpop.permute.xlu0 %2385
      %2389 = vrot.lane.b32.xlu0 %v2345, 32
      %v2390 = vpop.permute.xlu0 %2389
      %2393 = vrot.lane.b32.xlu0 %v2347, 48
      %v2394 = vpop.permute.xlu0 %2393
      %2397 = vrot.lane.b32.xlu0 %v2349, 64
      %v2398 = vpop.permute.xlu0 %2397
      %2401 = vrot.lane.b32.xlu0 %v2351, 80
      %v2402 = vpop.permute.xlu0 %2401
      %2405 = vrot.lane.b32.xlu0 %v2353, 96
      %v2406 = vpop.permute.xlu0 %2405
      %2409 = vrot.lane.b32.xlu0 %v2355, 112
      %v2410 = vpop.permute.xlu0 %2409
      %v2412 = vsel %vm589, %v2229, %v2358
      %v2413 = vsel %vm591, %v2412, %v2362
      %v2414 = vsel %vm593, %v2413, %v2366
      %v2415 = vsel %vm595, %v2414, %v2370
      %v2416 = vsel %vm597, %v2415, %v2374
      %v2417 = vsel %vm599, %v2416, %v2378
      %v2418 = vsel %vm601, %v2417, %v2382
      %v2419 = vsel %vm589, %v2341, %v2386
      %v2420 = vsel %vm591, %v2419, %v2390
      %v2421 = vsel %vm593, %v2420, %v2394
      %v2422 = vsel %vm595, %v2421, %v2398
      %v2423 = vsel %vm597, %v2422, %v2402
      %v2424 = vsel %vm599, %v2423, %v2406
      %v2425 = vsel %vm601, %v2424, %v2410
      %2426 = vst [vmem:[#allocation3 + $0x50] sm:$0xff] %v2418
      %2427 = vst [vmem:[#allocation3 + $0x58] sm:$0xff] %v2425
      %v2428 = vld [vmem:[#allocation2 + $0x1] sm:$0xff]
      %v2429 = vld [vmem:[#allocation2 + $0x9] sm:$0xff]
      %v2430 = vld [vmem:[#allocation2 + $0x19] sm:$0xff]
      %v2431 = vld [vmem:[#allocation2 + $0x21] sm:$0xff]
      %v2432 = vld [vmem:[#allocation2 + $0x31] sm:$0xff]
      %v2433 = vld [vmem:[#allocation2 + $0x39] sm:$0xff]
      %v2434 = vld [vmem:[#allocation2 + $0x49] sm:$0xff]
      %v2435 = vld [vmem:[#allocation2 + $0x51] sm:$0xff]
      %v2436 = vld [vmem:[#allocation2 + $0x61] sm:$0xff]
      %v2437 = vld [vmem:[#allocation2 + $0x69] sm:$0xff]
      %v2438 = vld [vmem:[#allocation2 + $0x79] sm:$0xff]
      %v2439 = vld [vmem:[#allocation2 + $0x81] sm:$0xff]
      %v2440 = vld [vmem:[#allocation2 + $0x91] sm:$0xff]
      %v2441 = vld [vmem:[#allocation2 + $0x99] sm:$0xff]
      %v2442 = vld [vmem:[#allocation2 + $0xa9] sm:$0xff]
      %v2443 = vld [vmem:[#allocation2 + $0xb1] sm:$0xff]
      %2460 = vrot.lane.b32.xlu0 %v2428, 127
      %v2461 = vpop.permute.xlu0 %2460
      %2462 = vrot.lane.b32.xlu0 %v2429, 127
      %v2463 = vpop.permute.xlu0 %2462
      %2464 = vrot.lane.b32.xlu0 %v2430, 127
      %v2465 = vpop.permute.xlu0 %2464
      %2466 = vrot.lane.b32.xlu0 %v2431, 127
      %v2467 = vpop.permute.xlu0 %2466
      %2468 = vrot.lane.b32.xlu0 %v2432, 127
      %v2469 = vpop.permute.xlu0 %2468
      %2470 = vrot.lane.b32.xlu0 %v2433, 127
      %v2471 = vpop.permute.xlu0 %2470
      %2472 = vrot.lane.b32.xlu0 %v2434, 127
      %v2473 = vpop.permute.xlu0 %2472
      %2474 = vrot.lane.b32.xlu0 %v2435, 127
      %v2475 = vpop.permute.xlu0 %2474
      %2476 = vrot.lane.b32.xlu0 %v2436, 127
      %v2477 = vpop.permute.xlu0 %2476
      %2478 = vrot.lane.b32.xlu0 %v2437, 127
      %v2479 = vpop.permute.xlu0 %2478
      %2480 = vrot.lane.b32.xlu0 %v2438, 127
      %v2481 = vpop.permute.xlu0 %2480
      %2482 = vrot.lane.b32.xlu0 %v2439, 127
      %v2483 = vpop.permute.xlu0 %2482
      %2484 = vrot.lane.b32.xlu0 %v2440, 127
      %v2485 = vpop.permute.xlu0 %2484
      %2486 = vrot.lane.b32.xlu0 %v2441, 127
      %v2487 = vpop.permute.xlu0 %2486
      %2488 = vrot.lane.b32.xlu0 %v2442, 127
      %v2489 = vpop.permute.xlu0 %2488
      %2490 = vrot.lane.b32.xlu0 %v2443, 127
      %v2491 = vpop.permute.xlu0 %2490
      %v2508 = vrot.slane %v2469, 4
      %v2509 = vsel %vm309, %v2508, %v2461
      %v2510 = vrot.slane %v2461, 4
      %v2511 = vsel %vm309, %v2469, %v2510
      %v2513 = vunpack.c.l.s4 1983009808
      %v2514 = vunpack.c.0.s8 %v2513
      %v2515 = vperm.slane %v2509, %v2514
      %v2517 = vunpack.c.l.s4 1983009808
      %v2518 = vunpack.c.0.s8 %v2517
      %v2519 = vperm.slane %v2511, %v2518
      %v2520 = vrot.slane %v2473, 4
      %v2521 = vsel %vm309, %v2520, %v2465
      %v2522 = vrot.slane %v2465, 4
      %v2523 = vsel %vm309, %v2473, %v2522
      %v2525 = vunpack.c.l.s4 1983009808
      %v2526 = vunpack.c.0.s8 %v2525
      %v2527 = vperm.slane %v2521, %v2526
      %v2529 = vunpack.c.l.s4 1983009808
      %v2530 = vunpack.c.0.s8 %v2529
      %v2531 = vperm.slane %v2523, %v2530
      %v2532 = vrot.slane %v2485, 4
      %v2533 = vsel %vm309, %v2532, %v2477
      %v2534 = vrot.slane %v2477, 4
      %v2535 = vsel %vm309, %v2485, %v2534
      %v2537 = vunpack.c.l.s4 1983009808
      %v2538 = vunpack.c.0.s8 %v2537
      %v2539 = vperm.slane %v2533, %v2538
      %v2541 = vunpack.c.l.s4 1983009808
      %v2542 = vunpack.c.0.s8 %v2541
      %v2543 = vperm.slane %v2535, %v2542
      %v2544 = vrot.slane %v2489, 4
      %v2545 = vsel %vm309, %v2544, %v2481
      %v2546 = vrot.slane %v2481, 4
      %v2547 = vsel %vm309, %v2489, %v2546
      %v2549 = vunpack.c.l.s4 1983009808
      %v2550 = vunpack.c.0.s8 %v2549
      %v2551 = vperm.slane %v2545, %v2550
      %v2553 = vunpack.c.l.s4 1983009808
      %v2554 = vunpack.c.0.s8 %v2553
      %v2555 = vperm.slane %v2547, %v2554
      %v2556 = vrot.slane %v2527, 4
      %v2557 = vsel %vm309, %v2556, %v2515
      %v2558 = vrot.slane %v2515, 4
      %v2559 = vsel %vm309, %v2527, %v2558
      %v2561 = vunpack.c.l.s4 1934713408
      %v2562 = vunpack.c.0.s8 %v2561
      %v2563 = vperm.slane %v2557, %v2562
      %v2565 = vunpack.c.l.s4 1934713408
      %v2566 = vunpack.c.0.s8 %v2565
      %v2567 = vperm.slane %v2559, %v2566
      %v2568 = vrot.slane %v2531, 4
      %v2569 = vsel %vm309, %v2568, %v2519
      %v2570 = vrot.slane %v2519, 4
      %v2571 = vsel %vm309, %v2531, %v2570
      %v2573 = vunpack.c.l.s4 1934713408
      %v2574 = vunpack.c.0.s8 %v2573
      %v2575 = vperm.slane %v2569, %v2574
      %v2577 = vunpack.c.l.s4 1934713408
      %v2578 = vunpack.c.0.s8 %v2577
      %v2579 = vperm.slane %v2571, %v2578
      %v2580 = vrot.slane %v2551, 4
      %v2581 = vsel %vm309, %v2580, %v2539
      %v2582 = vrot.slane %v2539, 4
      %v2583 = vsel %vm309, %v2551, %v2582
      %v2585 = vunpack.c.l.s4 1934713408
      %v2586 = vunpack.c.0.s8 %v2585
      %v2587 = vperm.slane %v2581, %v2586
      %v2589 = vunpack.c.l.s4 1934713408
      %v2590 = vunpack.c.0.s8 %v2589
      %v2591 = vperm.slane %v2583, %v2590
      %v2592 = vrot.slane %v2555, 4
      %v2593 = vsel %vm309, %v2592, %v2543
      %v2594 = vrot.slane %v2543, 4
      %v2595 = vsel %vm309, %v2555, %v2594
      %v2597 = vunpack.c.l.s4 1934713408
      %v2598 = vunpack.c.0.s8 %v2597
      %v2599 = vperm.slane %v2593, %v2598
      %v2601 = vunpack.c.l.s4 1934713408
      %v2602 = vunpack.c.0.s8 %v2601
      %v2603 = vperm.slane %v2595, %v2602
      %v2604 = vrot.slane %v2587, 4
      %v2605 = vsel %vm309, %v2604, %v2563
      %v2606 = vrot.slane %v2563, 4
      %v2607 = vsel %vm309, %v2587, %v2606
      %v2608 = vrot.slane %v2591, 4
      %v2609 = vsel %vm309, %v2608, %v2567
      %v2610 = vrot.slane %v2567, 4
      %v2611 = vsel %vm309, %v2591, %v2610
      %v2612 = vrot.slane %v2599, 4
      %v2613 = vsel %vm309, %v2612, %v2575
      %v2614 = vrot.slane %v2575, 4
      %v2615 = vsel %vm309, %v2599, %v2614
      %v2616 = vrot.slane %v2603, 4
      %v2617 = vsel %vm309, %v2616, %v2579
      %v2618 = vrot.slane %v2579, 4
      %v2619 = vsel %vm309, %v2603, %v2618
      %v2620 = vrot.slane %v2471, 4
      %v2621 = vsel %vm309, %v2620, %v2463
      %v2622 = vrot.slane %v2463, 4
      %v2623 = vsel %vm309, %v2471, %v2622
      %v2625 = vunpack.c.l.s4 1983009808
      %v2626 = vunpack.c.0.s8 %v2625
      %v2627 = vperm.slane %v2621, %v2626
      %v2629 = vunpack.c.l.s4 1983009808
      %v2630 = vunpack.c.0.s8 %v2629
      %v2631 = vperm.slane %v2623, %v2630
      %v2632 = vrot.slane %v2475, 4
      %v2633 = vsel %vm309, %v2632, %v2467
      %v2634 = vrot.slane %v2467, 4
      %v2635 = vsel %vm309, %v2475, %v2634
      %v2637 = vunpack.c.l.s4 1983009808
      %v2638 = vunpack.c.0.s8 %v2637
      %v2639 = vperm.slane %v2633, %v2638
      %v2641 = vunpack.c.l.s4 1983009808
      %v2642 = vunpack.c.0.s8 %v2641
      %v2643 = vperm.slane %v2635, %v2642
      %v2644 = vrot.slane %v2487, 4
      %v2645 = vsel %vm309, %v2644, %v2479
      %v2646 = vrot.slane %v2479, 4
      %v2647 = vsel %vm309, %v2487, %v2646
      %v2649 = vunpack.c.l.s4 1983009808
      %v2650 = vunpack.c.0.s8 %v2649
      %v2651 = vperm.slane %v2645, %v2650
      %v2653 = vunpack.c.l.s4 1983009808
      %v2654 = vunpack.c.0.s8 %v2653
      %v2655 = vperm.slane %v2647, %v2654
      %v2656 = vrot.slane %v2491, 4
      %v2657 = vsel %vm309, %v2656, %v2483
      %v2658 = vrot.slane %v2483, 4
      %v2659 = vsel %vm309, %v2491, %v2658
      %v2661 = vunpack.c.l.s4 1983009808
      %v2662 = vunpack.c.0.s8 %v2661
      %v2663 = vperm.slane %v2657, %v2662
      %v2665 = vunpack.c.l.s4 1983009808
      %v2666 = vunpack.c.0.s8 %v2665
      %v2667 = vperm.slane %v2659, %v2666
      %v2668 = vrot.slane %v2639, 4
      %v2669 = vsel %vm309, %v2668, %v2627
      %v2670 = vrot.slane %v2627, 4
      %v2671 = vsel %vm309, %v2639, %v2670
      %v2673 = vunpack.c.l.s4 1934713408
      %v2674 = vunpack.c.0.s8 %v2673
      %v2675 = vperm.slane %v2669, %v2674
      %v2677 = vunpack.c.l.s4 1934713408
      %v2678 = vunpack.c.0.s8 %v2677
      %v2679 = vperm.slane %v2671, %v2678
      %v2680 = vrot.slane %v2643, 4
      %v2681 = vsel %vm309, %v2680, %v2631
      %v2682 = vrot.slane %v2631, 4
      %v2683 = vsel %vm309, %v2643, %v2682
      %v2685 = vunpack.c.l.s4 1934713408
      %v2686 = vunpack.c.0.s8 %v2685
      %v2687 = vperm.slane %v2681, %v2686
      %v2689 = vunpack.c.l.s4 1934713408
      %v2690 = vunpack.c.0.s8 %v2689
      %v2691 = vperm.slane %v2683, %v2690
      %v2692 = vrot.slane %v2663, 4
      %v2693 = vsel %vm309, %v2692, %v2651
      %v2694 = vrot.slane %v2651, 4
      %v2695 = vsel %vm309, %v2663, %v2694
      %v2697 = vunpack.c.l.s4 1934713408
      %v2698 = vunpack.c.0.s8 %v2697
      %v2699 = vperm.slane %v2693, %v2698
      %v2701 = vunpack.c.l.s4 1934713408
      %v2702 = vunpack.c.0.s8 %v2701
      %v2703 = vperm.slane %v2695, %v2702
      %v2704 = vrot.slane %v2667, 4
      %v2705 = vsel %vm309, %v2704, %v2655
      %v2706 = vrot.slane %v2655, 4
      %v2707 = vsel %vm309, %v2667, %v2706
      %v2709 = vunpack.c.l.s4 1934713408
      %v2710 = vunpack.c.0.s8 %v2709
      %v2711 = vperm.slane %v2705, %v2710
      %v2713 = vunpack.c.l.s4 1934713408
      %v2714 = vunpack.c.0.s8 %v2713
      %v2715 = vperm.slane %v2707, %v2714
      %v2716 = vrot.slane %v2699, 4
      %v2717 = vsel %vm309, %v2716, %v2675
      %v2718 = vrot.slane %v2675, 4
      %v2719 = vsel %vm309, %v2699, %v2718
      %v2720 = vrot.slane %v2703, 4
      %v2721 = vsel %vm309, %v2720, %v2679
      %v2722 = vrot.slane %v2679, 4
      %v2723 = vsel %vm309, %v2703, %v2722
      %v2724 = vrot.slane %v2711, 4
      %v2725 = vsel %vm309, %v2724, %v2687
      %v2726 = vrot.slane %v2687, 4
      %v2727 = vsel %vm309, %v2711, %v2726
      %v2728 = vrot.slane %v2715, 4
      %v2729 = vsel %vm309, %v2728, %v2691
      %v2730 = vrot.slane %v2691, 4
      %v2731 = vsel %vm309, %v2715, %v2730
      %2733 = vrot.lane.b32.xlu0 %v2607, 16
      %v2734 = vpop.permute.xlu0 %2733
      %2737 = vrot.lane.b32.xlu0 %v2609, 32
      %v2738 = vpop.permute.xlu0 %2737
      %2741 = vrot.lane.b32.xlu0 %v2611, 48
      %v2742 = vpop.permute.xlu0 %2741
      %2745 = vrot.lane.b32.xlu0 %v2613, 64
      %v2746 = vpop.permute.xlu0 %2745
      %2749 = vrot.lane.b32.xlu0 %v2615, 80
      %v2750 = vpop.permute.xlu0 %2749
      %2753 = vrot.lane.b32.xlu0 %v2617, 96
      %v2754 = vpop.permute.xlu0 %2753
      %2757 = vrot.lane.b32.xlu0 %v2619, 112
      %v2758 = vpop.permute.xlu0 %2757
      %2761 = vrot.lane.b32.xlu0 %v2719, 16
      %v2762 = vpop.permute.xlu0 %2761
      %2765 = vrot.lane.b32.xlu0 %v2721, 32
      %v2766 = vpop.permute.xlu0 %2765
      %2769 = vrot.lane.b32.xlu0 %v2723, 48
      %v2770 = vpop.permute.xlu0 %2769
      %2773 = vrot.lane.b32.xlu0 %v2725, 64
      %v2774 = vpop.permute.xlu0 %2773
      %2777 = vrot.lane.b32.xlu0 %v2727, 80
      %v2778 = vpop.permute.xlu0 %2777
      %2781 = vrot.lane.b32.xlu0 %v2729, 96
      %v2782 = vpop.permute.xlu0 %2781
      %2785 = vrot.lane.b32.xlu0 %v2731, 112
      %v2786 = vpop.permute.xlu0 %2785
      %v2788 = vsel %vm589, %v2605, %v2734
      %v2789 = vsel %vm591, %v2788, %v2738
      %v2790 = vsel %vm593, %v2789, %v2742
      %v2791 = vsel %vm595, %v2790, %v2746
      %v2792 = vsel %vm597, %v2791, %v2750
      %v2793 = vsel %vm599, %v2792, %v2754
      %v2794 = vsel %vm601, %v2793, %v2758
      %v2795 = vsel %vm589, %v2717, %v2762
      %v2796 = vsel %vm591, %v2795, %v2766
      %v2797 = vsel %vm593, %v2796, %v2770
      %v2798 = vsel %vm595, %v2797, %v2774
      %v2799 = vsel %vm597, %v2798, %v2778
      %v2800 = vsel %vm599, %v2799, %v2782
      %v2801 = vsel %vm601, %v2800, %v2786
      %2802 = vst [vmem:[#allocation3 + $0x60] sm:$0xff] %v2794
      %2803 = vst [vmem:[#allocation3 + $0x68] sm:$0xff] %v2801
      %v2804 = vld [vmem:[#allocation2 + $0x1] sm:$0xff]
      %v2805 = vld [vmem:[#allocation2 + $0x9] sm:$0xff]
      %v2806 = vld [vmem:[#allocation2 + $0x19] sm:$0xff]
      %v2807 = vld [vmem:[#allocation2 + $0x21] sm:$0xff]
      %v2808 = vld [vmem:[#allocation2 + $0x31] sm:$0xff]
      %v2809 = vld [vmem:[#allocation2 + $0x39] sm:$0xff]
      %v2810 = vld [vmem:[#allocation2 + $0x49] sm:$0xff]
      %v2811 = vld [vmem:[#allocation2 + $0x51] sm:$0xff]
      %v2812 = vld [vmem:[#allocation2 + $0x61] sm:$0xff]
      %v2813 = vld [vmem:[#allocation2 + $0x69] sm:$0xff]
      %v2814 = vld [vmem:[#allocation2 + $0x79] sm:$0xff]
      %v2815 = vld [vmem:[#allocation2 + $0x81] sm:$0xff]
      %v2816 = vld [vmem:[#allocation2 + $0x91] sm:$0xff]
      %v2817 = vld [vmem:[#allocation2 + $0x99] sm:$0xff]
      %v2818 = vld [vmem:[#allocation2 + $0xa9] sm:$0xff]
      %v2819 = vld [vmem:[#allocation2 + $0xb1] sm:$0xff]
      %2836 = vrot.lane.b32.xlu0 %v2804, 126
      %v2837 = vpop.permute.xlu0 %2836
      %2838 = vrot.lane.b32.xlu0 %v2805, 126
      %v2839 = vpop.permute.xlu0 %2838
      %2840 = vrot.lane.b32.xlu0 %v2806, 126
      %v2841 = vpop.permute.xlu0 %2840
      %2842 = vrot.lane.b32.xlu0 %v2807, 126
      %v2843 = vpop.permute.xlu0 %2842
      %2844 = vrot.lane.b32.xlu0 %v2808, 126
      %v2845 = vpop.permute.xlu0 %2844
      %2846 = vrot.lane.b32.xlu0 %v2809, 126
      %v2847 = vpop.permute.xlu0 %2846
      %2848 = vrot.lane.b32.xlu0 %v2810, 126
      %v2849 = vpop.permute.xlu0 %2848
      %2850 = vrot.lane.b32.xlu0 %v2811, 126
      %v2851 = vpop.permute.xlu0 %2850
      %2852 = vrot.lane.b32.xlu0 %v2812, 126
      %v2853 = vpop.permute.xlu0 %2852
      %2854 = vrot.lane.b32.xlu0 %v2813, 126
      %v2855 = vpop.permute.xlu0 %2854
      %2856 = vrot.lane.b32.xlu0 %v2814, 126
      %v2857 = vpop.permute.xlu0 %2856
      %2858 = vrot.lane.b32.xlu0 %v2815, 126
      %v2859 = vpop.permute.xlu0 %2858
      %2860 = vrot.lane.b32.xlu0 %v2816, 126
      %v2861 = vpop.permute.xlu0 %2860
      %2862 = vrot.lane.b32.xlu0 %v2817, 126
      %v2863 = vpop.permute.xlu0 %2862
      %2864 = vrot.lane.b32.xlu0 %v2818, 126
      %v2865 = vpop.permute.xlu0 %2864
      %2866 = vrot.lane.b32.xlu0 %v2819, 126
      %v2867 = vpop.permute.xlu0 %2866
      %v2884 = vrot.slane %v2845, 4
      %v2885 = vsel %vm309, %v2884, %v2837
      %v2886 = vrot.slane %v2837, 4
      %v2887 = vsel %vm309, %v2845, %v2886
      %v2889 = vunpack.c.l.s4 1983009808
      %v2890 = vunpack.c.0.s8 %v2889
      %v2891 = vperm.slane %v2885, %v2890
      %v2893 = vunpack.c.l.s4 1983009808
      %v2894 = vunpack.c.0.s8 %v2893
      %v2895 = vperm.slane %v2887, %v2894
      %v2896 = vrot.slane %v2849, 4
      %v2897 = vsel %vm309, %v2896, %v2841
      %v2898 = vrot.slane %v2841, 4
      %v2899 = vsel %vm309, %v2849, %v2898
      %v2901 = vunpack.c.l.s4 1983009808
      %v2902 = vunpack.c.0.s8 %v2901
      %v2903 = vperm.slane %v2897, %v2902
      %v2905 = vunpack.c.l.s4 1983009808
      %v2906 = vunpack.c.0.s8 %v2905
      %v2907 = vperm.slane %v2899, %v2906
      %v2908 = vrot.slane %v2861, 4
      %v2909 = vsel %vm309, %v2908, %v2853
      %v2910 = vrot.slane %v2853, 4
      %v2911 = vsel %vm309, %v2861, %v2910
      %v2913 = vunpack.c.l.s4 1983009808
      %v2914 = vunpack.c.0.s8 %v2913
      %v2915 = vperm.slane %v2909, %v2914
      %v2917 = vunpack.c.l.s4 1983009808
      %v2918 = vunpack.c.0.s8 %v2917
      %v2919 = vperm.slane %v2911, %v2918
      %v2920 = vrot.slane %v2865, 4
      %v2921 = vsel %vm309, %v2920, %v2857
      %v2922 = vrot.slane %v2857, 4
      %v2923 = vsel %vm309, %v2865, %v2922
      %v2925 = vunpack.c.l.s4 1983009808
      %v2926 = vunpack.c.0.s8 %v2925
      %v2927 = vperm.slane %v2921, %v2926
      %v2929 = vunpack.c.l.s4 1983009808
      %v2930 = vunpack.c.0.s8 %v2929
      %v2931 = vperm.slane %v2923, %v2930
      %v2932 = vrot.slane %v2903, 4
      %v2933 = vsel %vm309, %v2932, %v2891
      %v2934 = vrot.slane %v2891, 4
      %v2935 = vsel %vm309, %v2903, %v2934
      %v2937 = vunpack.c.l.s4 1934713408
      %v2938 = vunpack.c.0.s8 %v2937
      %v2939 = vperm.slane %v2933, %v2938
      %v2941 = vunpack.c.l.s4 1934713408
      %v2942 = vunpack.c.0.s8 %v2941
      %v2943 = vperm.slane %v2935, %v2942
      %v2944 = vrot.slane %v2907, 4
      %v2945 = vsel %vm309, %v2944, %v2895
      %v2946 = vrot.slane %v2895, 4
      %v2947 = vsel %vm309, %v2907, %v2946
      %v2949 = vunpack.c.l.s4 1934713408
      %v2950 = vunpack.c.0.s8 %v2949
      %v2951 = vperm.slane %v2945, %v2950
      %v2953 = vunpack.c.l.s4 1934713408
      %v2954 = vunpack.c.0.s8 %v2953
      %v2955 = vperm.slane %v2947, %v2954
      %v2956 = vrot.slane %v2927, 4
      %v2957 = vsel %vm309, %v2956, %v2915
      %v2958 = vrot.slane %v2915, 4
      %v2959 = vsel %vm309, %v2927, %v2958
      %v2961 = vunpack.c.l.s4 1934713408
      %v2962 = vunpack.c.0.s8 %v2961
      %v2963 = vperm.slane %v2957, %v2962
      %v2965 = vunpack.c.l.s4 1934713408
      %v2966 = vunpack.c.0.s8 %v2965
      %v2967 = vperm.slane %v2959, %v2966
      %v2968 = vrot.slane %v2931, 4
      %v2969 = vsel %vm309, %v2968, %v2919
      %v2970 = vrot.slane %v2919, 4
      %v2971 = vsel %vm309, %v2931, %v2970
      %v2973 = vunpack.c.l.s4 1934713408
      %v2974 = vunpack.c.0.s8 %v2973
      %v2975 = vperm.slane %v2969, %v2974
      %v2977 = vunpack.c.l.s4 1934713408
      %v2978 = vunpack.c.0.s8 %v2977
      %v2979 = vperm.slane %v2971, %v2978
      %v2980 = vrot.slane %v2963, 4
      %v2981 = vsel %vm309, %v2980, %v2939
      %v2982 = vrot.slane %v2939, 4
      %v2983 = vsel %vm309, %v2963, %v2982
      %v2984 = vrot.slane %v2967, 4
      %v2985 = vsel %vm309, %v2984, %v2943
      %v2986 = vrot.slane %v2943, 4
      %v2987 = vsel %vm309, %v2967, %v2986
      %v2988 = vrot.slane %v2975, 4
      %v2989 = vsel %vm309, %v2988, %v2951
      %v2990 = vrot.slane %v2951, 4
      %v2991 = vsel %vm309, %v2975, %v2990
      %v2992 = vrot.slane %v2979, 4
      %v2993 = vsel %vm309, %v2992, %v2955
      %v2994 = vrot.slane %v2955, 4
      %v2995 = vsel %vm309, %v2979, %v2994
      %v2996 = vrot.slane %v2847, 4
      %v2997 = vsel %vm309, %v2996, %v2839
      %v2998 = vrot.slane %v2839, 4
      %v2999 = vsel %vm309, %v2847, %v2998
      %v3001 = vunpack.c.l.s4 1983009808
      %v3002 = vunpack.c.0.s8 %v3001
      %v3003 = vperm.slane %v2997, %v3002
      %v3005 = vunpack.c.l.s4 1983009808
      %v3006 = vunpack.c.0.s8 %v3005
      %v3007 = vperm.slane %v2999, %v3006
      %v3008 = vrot.slane %v2851, 4
      %v3009 = vsel %vm309, %v3008, %v2843
      %v3010 = vrot.slane %v2843, 4
      %v3011 = vsel %vm309, %v2851, %v3010
      %v3013 = vunpack.c.l.s4 1983009808
      %v3014 = vunpack.c.0.s8 %v3013
      %v3015 = vperm.slane %v3009, %v3014
      %v3017 = vunpack.c.l.s4 1983009808
      %v3018 = vunpack.c.0.s8 %v3017
      %v3019 = vperm.slane %v3011, %v3018
      %v3020 = vrot.slane %v2863, 4
      %v3021 = vsel %vm309, %v3020, %v2855
      %v3022 = vrot.slane %v2855, 4
      %v3023 = vsel %vm309, %v2863, %v3022
      %v3025 = vunpack.c.l.s4 1983009808
      %v3026 = vunpack.c.0.s8 %v3025
      %v3027 = vperm.slane %v3021, %v3026
      %v3029 = vunpack.c.l.s4 1983009808
      %v3030 = vunpack.c.0.s8 %v3029
      %v3031 = vperm.slane %v3023, %v3030
      %v3032 = vrot.slane %v2867, 4
      %v3033 = vsel %vm309, %v3032, %v2859
      %v3034 = vrot.slane %v2859, 4
      %v3035 = vsel %vm309, %v2867, %v3034
      %v3037 = vunpack.c.l.s4 1983009808
      %v3038 = vunpack.c.0.s8 %v3037
      %v3039 = vperm.slane %v3033, %v3038
      %v3041 = vunpack.c.l.s4 1983009808
      %v3042 = vunpack.c.0.s8 %v3041
      %v3043 = vperm.slane %v3035, %v3042
      %v3044 = vrot.slane %v3015, 4
      %v3045 = vsel %vm309, %v3044, %v3003
      %v3046 = vrot.slane %v3003, 4
      %v3047 = vsel %vm309, %v3015, %v3046
      %v3049 = vunpack.c.l.s4 1934713408
      %v3050 = vunpack.c.0.s8 %v3049
      %v3051 = vperm.slane %v3045, %v3050
      %v3053 = vunpack.c.l.s4 1934713408
      %v3054 = vunpack.c.0.s8 %v3053
      %v3055 = vperm.slane %v3047, %v3054
      %v3056 = vrot.slane %v3019, 4
      %v3057 = vsel %vm309, %v3056, %v3007
      %v3058 = vrot.slane %v3007, 4
      %v3059 = vsel %vm309, %v3019, %v3058
      %v3061 = vunpack.c.l.s4 1934713408
      %v3062 = vunpack.c.0.s8 %v3061
      %v3063 = vperm.slane %v3057, %v3062
      %v3065 = vunpack.c.l.s4 1934713408
      %v3066 = vunpack.c.0.s8 %v3065
      %v3067 = vperm.slane %v3059, %v3066
      %v3068 = vrot.slane %v3039, 4
      %v3069 = vsel %vm309, %v3068, %v3027
      %v3070 = vrot.slane %v3027, 4
      %v3071 = vsel %vm309, %v3039, %v3070
      %v3073 = vunpack.c.l.s4 1934713408
      %v3074 = vunpack.c.0.s8 %v3073
      %v3075 = vperm.slane %v3069, %v3074
      %v3077 = vunpack.c.l.s4 1934713408
      %v3078 = vunpack.c.0.s8 %v3077
      %v3079 = vperm.slane %v3071, %v3078
      %v3080 = vrot.slane %v3043, 4
      %v3081 = vsel %vm309, %v3080, %v3031
      %v3082 = vrot.slane %v3031, 4
      %v3083 = vsel %vm309, %v3043, %v3082
      %v3085 = vunpack.c.l.s4 1934713408
      %v3086 = vunpack.c.0.s8 %v3085
      %v3087 = vperm.slane %v3081, %v3086
      %v3089 = vunpack.c.l.s4 1934713408
      %v3090 = vunpack.c.0.s8 %v3089
      %v3091 = vperm.slane %v3083, %v3090
      %v3092 = vrot.slane %v3075, 4
      %v3093 = vsel %vm309, %v3092, %v3051
      %v3094 = vrot.slane %v3051, 4
      %v3095 = vsel %vm309, %v3075, %v3094
      %v3096 = vrot.slane %v3079, 4
      %v3097 = vsel %vm309, %v3096, %v3055
      %v3098 = vrot.slane %v3055, 4
      %v3099 = vsel %vm309, %v3079, %v3098
      %v3100 = vrot.slane %v3087, 4
      %v3101 = vsel %vm309, %v3100, %v3063
      %v3102 = vrot.slane %v3063, 4
      %v3103 = vsel %vm309, %v3087, %v3102
      %v3104 = vrot.slane %v3091, 4
      %v3105 = vsel %vm309, %v3104, %v3067
      %v3106 = vrot.slane %v3067, 4
      %v3107 = vsel %vm309, %v3091, %v3106
      %3109 = vrot.lane.b32.xlu0 %v2983, 16
      %v3110 = vpop.permute.xlu0 %3109
      %3113 = vrot.lane.b32.xlu0 %v2985, 32
      %v3114 = vpop.permute.xlu0 %3113
      %3117 = vrot.lane.b32.xlu0 %v2987, 48
      %v3118 = vpop.permute.xlu0 %3117
      %3121 = vrot.lane.b32.xlu0 %v2989, 64
      %v3122 = vpop.permute.xlu0 %3121
      %3125 = vrot.lane.b32.xlu0 %v2991, 80
      %v3126 = vpop.permute.xlu0 %3125
      %3129 = vrot.lane.b32.xlu0 %v2993, 96
      %v3130 = vpop.permute.xlu0 %3129
      %3133 = vrot.lane.b32.xlu0 %v2995, 112
      %v3134 = vpop.permute.xlu0 %3133
      %3137 = vrot.lane.b32.xlu0 %v3095, 16
      %v3138 = vpop.permute.xlu0 %3137
      %3141 = vrot.lane.b32.xlu0 %v3097, 32
      %v3142 = vpop.permute.xlu0 %3141
      %3145 = vrot.lane.b32.xlu0 %v3099, 48
      %v3146 = vpop.permute.xlu0 %3145
      %3149 = vrot.lane.b32.xlu0 %v3101, 64
      %v3150 = vpop.permute.xlu0 %3149
      %3153 = vrot.lane.b32.xlu0 %v3103, 80
      %v3154 = vpop.permute.xlu0 %3153
      %3157 = vrot.lane.b32.xlu0 %v3105, 96
      %v3158 = vpop.permute.xlu0 %3157
      %3161 = vrot.lane.b32.xlu0 %v3107, 112
      %v3162 = vpop.permute.xlu0 %3161
      %v3164 = vsel %vm589, %v2981, %v3110
      %v3165 = vsel %vm591, %v3164, %v3114
      %v3166 = vsel %vm593, %v3165, %v3118
      %v3167 = vsel %vm595, %v3166, %v3122
      %v3168 = vsel %vm597, %v3167, %v3126
      %v3169 = vsel %vm599, %v3168, %v3130
      %v3170 = vsel %vm601, %v3169, %v3134
      %v3171 = vsel %vm589, %v3093, %v3138
      %v3172 = vsel %vm591, %v3171, %v3142
      %v3173 = vsel %vm593, %v3172, %v3146
      %v3174 = vsel %vm595, %v3173, %v3150
      %v3175 = vsel %vm597, %v3174, %v3154
      %v3176 = vsel %vm599, %v3175, %v3158
      %v3177 = vsel %vm601, %v3176, %v3162
      %3178 = vst [vmem:[#allocation3 + $0x70] sm:$0xff] %v3170
      %3179 = vst [vmem:[#allocation3 + $0x78] sm:$0xff] %v3177
      %v3180 = vld [vmem:[#allocation2 + $0x1] sm:$0xff]
      %v3181 = vld [vmem:[#allocation2 + $0x9] sm:$0xff]
      %v3182 = vld [vmem:[#allocation2 + $0x19] sm:$0xff]
      %v3183 = vld [vmem:[#allocation2 + $0x21] sm:$0xff]
      %v3184 = vld [vmem:[#allocation2 + $0x31] sm:$0xff]
      %v3185 = vld [vmem:[#allocation2 + $0x39] sm:$0xff]
      %v3186 = vld [vmem:[#allocation2 + $0x49] sm:$0xff]
      %v3187 = vld [vmem:[#allocation2 + $0x51] sm:$0xff]
      %v3188 = vld [vmem:[#allocation2 + $0x61] sm:$0xff]
      %v3189 = vld [vmem:[#allocation2 + $0x69] sm:$0xff]
      %v3190 = vld [vmem:[#allocation2 + $0x79] sm:$0xff]
      %v3191 = vld [vmem:[#allocation2 + $0x81] sm:$0xff]
      %v3192 = vld [vmem:[#allocation2 + $0x91] sm:$0xff]
      %v3193 = vld [vmem:[#allocation2 + $0x99] sm:$0xff]
      %v3194 = vld [vmem:[#allocation2 + $0xa9] sm:$0xff]
      %v3195 = vld [vmem:[#allocation2 + $0xb1] sm:$0xff]
      %3212 = vrot.lane.b32.xlu0 %v3180, 125
      %v3213 = vpop.permute.xlu0 %3212
      %3214 = vrot.lane.b32.xlu0 %v3181, 125
      %v3215 = vpop.permute.xlu0 %3214
      %3216 = vrot.lane.b32.xlu0 %v3182, 125
      %v3217 = vpop.permute.xlu0 %3216
      %3218 = vrot.lane.b32.xlu0 %v3183, 125
      %v3219 = vpop.permute.xlu0 %3218
      %3220 = vrot.lane.b32.xlu0 %v3184, 125
      %v3221 = vpop.permute.xlu0 %3220
      %3222 = vrot.lane.b32.xlu0 %v3185, 125
      %v3223 = vpop.permute.xlu0 %3222
      %3224 = vrot.lane.b32.xlu0 %v3186, 125
      %v3225 = vpop.permute.xlu0 %3224
      %3226 = vrot.lane.b32.xlu0 %v3187, 125
      %v3227 = vpop.permute.xlu0 %3226
      %3228 = vrot.lane.b32.xlu0 %v3188, 125
      %v3229 = vpop.permute.xlu0 %3228
      %3230 = vrot.lane.b32.xlu0 %v3189, 125
      %v3231 = vpop.permute.xlu0 %3230
      %3232 = vrot.lane.b32.xlu0 %v3190, 125
      %v3233 = vpop.permute.xlu0 %3232
      %3234 = vrot.lane.b32.xlu0 %v3191, 125
      %v3235 = vpop.permute.xlu0 %3234
      %3236 = vrot.lane.b32.xlu0 %v3192, 125
      %v3237 = vpop.permute.xlu0 %3236
      %3238 = vrot.lane.b32.xlu0 %v3193, 125
      %v3239 = vpop.permute.xlu0 %3238
      %3240 = vrot.lane.b32.xlu0 %v3194, 125
      %v3241 = vpop.permute.xlu0 %3240
      %3242 = vrot.lane.b32.xlu0 %v3195, 125
      %v3243 = vpop.permute.xlu0 %3242
      %v3260 = vrot.slane %v3221, 4
      %v3261 = vsel %vm309, %v3260, %v3213
      %v3262 = vrot.slane %v3213, 4
      %v3263 = vsel %vm309, %v3221, %v3262
      %v3265 = vunpack.c.l.s4 1983009808
      %v3266 = vunpack.c.0.s8 %v3265
      %v3267 = vperm.slane %v3261, %v3266
      %v3269 = vunpack.c.l.s4 1983009808
      %v3270 = vunpack.c.0.s8 %v3269
      %v3271 = vperm.slane %v3263, %v3270
      %v3272 = vrot.slane %v3225, 4
      %v3273 = vsel %vm309, %v3272, %v3217
      %v3274 = vrot.slane %v3217, 4
      %v3275 = vsel %vm309, %v3225, %v3274
      %v3277 = vunpack.c.l.s4 1983009808
      %v3278 = vunpack.c.0.s8 %v3277
      %v3279 = vperm.slane %v3273, %v3278
      %v3281 = vunpack.c.l.s4 1983009808
      %v3282 = vunpack.c.0.s8 %v3281
      %v3283 = vperm.slane %v3275, %v3282
      %v3284 = vrot.slane %v3237, 4
      %v3285 = vsel %vm309, %v3284, %v3229
      %v3286 = vrot.slane %v3229, 4
      %v3287 = vsel %vm309, %v3237, %v3286
      %v3289 = vunpack.c.l.s4 1983009808
      %v3290 = vunpack.c.0.s8 %v3289
      %v3291 = vperm.slane %v3285, %v3290
      %v3293 = vunpack.c.l.s4 1983009808
      %v3294 = vunpack.c.0.s8 %v3293
      %v3295 = vperm.slane %v3287, %v3294
      %v3296 = vrot.slane %v3241, 4
      %v3297 = vsel %vm309, %v3296, %v3233
      %v3298 = vrot.slane %v3233, 4
      %v3299 = vsel %vm309, %v3241, %v3298
      %v3301 = vunpack.c.l.s4 1983009808
      %v3302 = vunpack.c.0.s8 %v3301
      %v3303 = vperm.slane %v3297, %v3302
      %v3305 = vunpack.c.l.s4 1983009808
      %v3306 = vunpack.c.0.s8 %v3305
      %v3307 = vperm.slane %v3299, %v3306
      %v3308 = vrot.slane %v3279, 4
      %v3309 = vsel %vm309, %v3308, %v3267
      %v3310 = vrot.slane %v3267, 4
      %v3311 = vsel %vm309, %v3279, %v3310
      %v3313 = vunpack.c.l.s4 1934713408
      %v3314 = vunpack.c.0.s8 %v3313
      %v3315 = vperm.slane %v3309, %v3314
      %v3317 = vunpack.c.l.s4 1934713408
      %v3318 = vunpack.c.0.s8 %v3317
      %v3319 = vperm.slane %v3311, %v3318
      %v3320 = vrot.slane %v3283, 4
      %v3321 = vsel %vm309, %v3320, %v3271
      %v3322 = vrot.slane %v3271, 4
      %v3323 = vsel %vm309, %v3283, %v3322
      %v3325 = vunpack.c.l.s4 1934713408
      %v3326 = vunpack.c.0.s8 %v3325
      %v3327 = vperm.slane %v3321, %v3326
      %v3329 = vunpack.c.l.s4 1934713408
      %v3330 = vunpack.c.0.s8 %v3329
      %v3331 = vperm.slane %v3323, %v3330
      %v3332 = vrot.slane %v3303, 4
      %v3333 = vsel %vm309, %v3332, %v3291
      %v3334 = vrot.slane %v3291, 4
      %v3335 = vsel %vm309, %v3303, %v3334
      %v3337 = vunpack.c.l.s4 1934713408
      %v3338 = vunpack.c.0.s8 %v3337
      %v3339 = vperm.slane %v3333, %v3338
      %v3341 = vunpack.c.l.s4 1934713408
      %v3342 = vunpack.c.0.s8 %v3341
      %v3343 = vperm.slane %v3335, %v3342
      %v3344 = vrot.slane %v3307, 4
      %v3345 = vsel %vm309, %v3344, %v3295
      %v3346 = vrot.slane %v3295, 4
      %v3347 = vsel %vm309, %v3307, %v3346
      %v3349 = vunpack.c.l.s4 1934713408
      %v3350 = vunpack.c.0.s8 %v3349
      %v3351 = vperm.slane %v3345, %v3350
      %v3353 = vunpack.c.l.s4 1934713408
      %v3354 = vunpack.c.0.s8 %v3353
      %v3355 = vperm.slane %v3347, %v3354
      %v3356 = vrot.slane %v3339, 4
      %v3357 = vsel %vm309, %v3356, %v3315
      %v3358 = vrot.slane %v3315, 4
      %v3359 = vsel %vm309, %v3339, %v3358
      %v3360 = vrot.slane %v3343, 4
      %v3361 = vsel %vm309, %v3360, %v3319
      %v3362 = vrot.slane %v3319, 4
      %v3363 = vsel %vm309, %v3343, %v3362
      %v3364 = vrot.slane %v3351, 4
      %v3365 = vsel %vm309, %v3364, %v3327
      %v3366 = vrot.slane %v3327, 4
      %v3367 = vsel %vm309, %v3351, %v3366
      %v3368 = vrot.slane %v3355, 4
      %v3369 = vsel %vm309, %v3368, %v3331
      %v3370 = vrot.slane %v3331, 4
      %v3371 = vsel %vm309, %v3355, %v3370
      %v3372 = vrot.slane %v3223, 4
      %v3373 = vsel %vm309, %v3372, %v3215
      %v3374 = vrot.slane %v3215, 4
      %v3375 = vsel %vm309, %v3223, %v3374
      %v3377 = vunpack.c.l.s4 1983009808
      %v3378 = vunpack.c.0.s8 %v3377
      %v3379 = vperm.slane %v3373, %v3378
      %v3381 = vunpack.c.l.s4 1983009808
      %v3382 = vunpack.c.0.s8 %v3381
      %v3383 = vperm.slane %v3375, %v3382
      %v3384 = vrot.slane %v3227, 4
      %v3385 = vsel %vm309, %v3384, %v3219
      %v3386 = vrot.slane %v3219, 4
      %v3387 = vsel %vm309, %v3227, %v3386
      %v3389 = vunpack.c.l.s4 1983009808
      %v3390 = vunpack.c.0.s8 %v3389
      %v3391 = vperm.slane %v3385, %v3390
      %v3393 = vunpack.c.l.s4 1983009808
      %v3394 = vunpack.c.0.s8 %v3393
      %v3395 = vperm.slane %v3387, %v3394
      %v3396 = vrot.slane %v3239, 4
      %v3397 = vsel %vm309, %v3396, %v3231
      %v3398 = vrot.slane %v3231, 4
      %v3399 = vsel %vm309, %v3239, %v3398
      %v3401 = vunpack.c.l.s4 1983009808
      %v3402 = vunpack.c.0.s8 %v3401
      %v3403 = vperm.slane %v3397, %v3402
      %v3405 = vunpack.c.l.s4 1983009808
      %v3406 = vunpack.c.0.s8 %v3405
      %v3407 = vperm.slane %v3399, %v3406
      %v3408 = vrot.slane %v3243, 4
      %v3409 = vsel %vm309, %v3408, %v3235
      %v3410 = vrot.slane %v3235, 4
      %v3411 = vsel %vm309, %v3243, %v3410
      %v3413 = vunpack.c.l.s4 1983009808
      %v3414 = vunpack.c.0.s8 %v3413
      %v3415 = vperm.slane %v3409, %v3414
      %v3417 = vunpack.c.l.s4 1983009808
      %v3418 = vunpack.c.0.s8 %v3417
      %v3419 = vperm.slane %v3411, %v3418
      %v3420 = vrot.slane %v3391, 4
      %v3421 = vsel %vm309, %v3420, %v3379
      %v3422 = vrot.slane %v3379, 4
      %v3423 = vsel %vm309, %v3391, %v3422
      %v3425 = vunpack.c.l.s4 1934713408
      %v3426 = vunpack.c.0.s8 %v3425
      %v3427 = vperm.slane %v3421, %v3426
      %v3429 = vunpack.c.l.s4 1934713408
      %v3430 = vunpack.c.0.s8 %v3429
      %v3431 = vperm.slane %v3423, %v3430
      %v3432 = vrot.slane %v3395, 4
      %v3433 = vsel %vm309, %v3432, %v3383
      %v3434 = vrot.slane %v3383, 4
      %v3435 = vsel %vm309, %v3395, %v3434
      %v3437 = vunpack.c.l.s4 1934713408
      %v3438 = vunpack.c.0.s8 %v3437
      %v3439 = vperm.slane %v3433, %v3438
      %v3441 = vunpack.c.l.s4 1934713408
      %v3442 = vunpack.c.0.s8 %v3441
      %v3443 = vperm.slane %v3435, %v3442
      %v3444 = vrot.slane %v3415, 4
      %v3445 = vsel %vm309, %v3444, %v3403
      %v3446 = vrot.slane %v3403, 4
      %v3447 = vsel %vm309, %v3415, %v3446
      %v3449 = vunpack.c.l.s4 1934713408
      %v3450 = vunpack.c.0.s8 %v3449
      %v3451 = vperm.slane %v3445, %v3450
      %v3453 = vunpack.c.l.s4 1934713408
      %v3454 = vunpack.c.0.s8 %v3453
      %v3455 = vperm.slane %v3447, %v3454
      %v3456 = vrot.slane %v3419, 4
      %v3457 = vsel %vm309, %v3456, %v3407
      %v3458 = vrot.slane %v3407, 4
      %v3459 = vsel %vm309, %v3419, %v3458
      %v3461 = vunpack.c.l.s4 1934713408
      %v3462 = vunpack.c.0.s8 %v3461
      %v3463 = vperm.slane %v3457, %v3462
      %v3465 = vunpack.c.l.s4 1934713408
      %v3466 = vunpack.c.0.s8 %v3465
      %v3467 = vperm.slane %v3459, %v3466
      %v3468 = vrot.slane %v3451, 4
      %v3469 = vsel %vm309, %v3468, %v3427
      %v3470 = vrot.slane %v3427, 4
      %v3471 = vsel %vm309, %v3451, %v3470
      %v3472 = vrot.slane %v3455, 4
      %v3473 = vsel %vm309, %v3472, %v3431
      %v3474 = vrot.slane %v3431, 4
      %v3475 = vsel %vm309, %v3455, %v3474
      %v3476 = vrot.slane %v3463, 4
      %v3477 = vsel %vm309, %v3476, %v3439
      %v3478 = vrot.slane %v3439, 4
      %v3479 = vsel %vm309, %v3463, %v3478
      %v3480 = vrot.slane %v3467, 4
      %v3481 = vsel %vm309, %v3480, %v3443
      %v3482 = vrot.slane %v3443, 4
      %v3483 = vsel %vm309, %v3467, %v3482
      %3485 = vrot.lane.b32.xlu0 %v3359, 16
      %v3486 = vpop.permute.xlu0 %3485
      %3489 = vrot.lane.b32.xlu0 %v3361, 32
      %v3490 = vpop.permute.xlu0 %3489
      %3493 = vrot.lane.b32.xlu0 %v3363, 48
      %v3494 = vpop.permute.xlu0 %3493
      %3497 = vrot.lane.b32.xlu0 %v3365, 64
      %v3498 = vpop.permute.xlu0 %3497
      %3501 = vrot.lane.b32.xlu0 %v3367, 80
      %v3502 = vpop.permute.xlu0 %3501
      %3505 = vrot.lane.b32.xlu0 %v3369, 96
      %v3506 = vpop.permute.xlu0 %3505
      %3509 = vrot.lane.b32.xlu0 %v3371, 112
      %v3510 = vpop.permute.xlu0 %3509
      %3513 = vrot.lane.b32.xlu0 %v3471, 16
      %v3514 = vpop.permute.xlu0 %3513
      %3517 = vrot.lane.b32.xlu0 %v3473, 32
      %v3518 = vpop.permute.xlu0 %3517
      %3521 = vrot.lane.b32.xlu0 %v3475, 48
      %v3522 = vpop.permute.xlu0 %3521
      %3525 = vrot.lane.b32.xlu0 %v3477, 64
      %v3526 = vpop.permute.xlu0 %3525
      %3529 = vrot.lane.b32.xlu0 %v3479, 80
      %v3530 = vpop.permute.xlu0 %3529
      %3533 = vrot.lane.b32.xlu0 %v3481, 96
      %v3534 = vpop.permute.xlu0 %3533
      %3537 = vrot.lane.b32.xlu0 %v3483, 112
      %v3538 = vpop.permute.xlu0 %3537
      %v3540 = vsel %vm589, %v3357, %v3486
      %v3541 = vsel %vm591, %v3540, %v3490
      %v3542 = vsel %vm593, %v3541, %v3494
      %v3543 = vsel %vm595, %v3542, %v3498
      %v3544 = vsel %vm597, %v3543, %v3502
      %v3545 = vsel %vm599, %v3544, %v3506
      %v3546 = vsel %vm601, %v3545, %v3510
      %v3547 = vsel %vm589, %v3469, %v3514
      %v3548 = vsel %vm591, %v3547, %v3518
      %v3549 = vsel %vm593, %v3548, %v3522
      %v3550 = vsel %vm595, %v3549, %v3526
      %v3551 = vsel %vm597, %v3550, %v3530
      %v3552 = vsel %vm599, %v3551, %v3534
      %v3553 = vsel %vm601, %v3552, %v3538
      %3554 = vst [vmem:[#allocation3 + $0x80] sm:$0xff] %v3546
      %3555 = vst [vmem:[#allocation3 + $0x88] sm:$0xff] %v3553
      %v3556 = vld [vmem:[#allocation2 + $0x1] sm:$0xff]
      %v3557 = vld [vmem:[#allocation2 + $0x9] sm:$0xff]
      %v3558 = vld [vmem:[#allocation2 + $0x19] sm:$0xff]
      %v3559 = vld [vmem:[#allocation2 + $0x21] sm:$0xff]
      %v3560 = vld [vmem:[#allocation2 + $0x31] sm:$0xff]
      %v3561 = vld [vmem:[#allocation2 + $0x39] sm:$0xff]
      %v3562 = vld [vmem:[#allocation2 + $0x49] sm:$0xff]
      %v3563 = vld [vmem:[#allocation2 + $0x51] sm:$0xff]
      %v3564 = vld [vmem:[#allocation2 + $0x61] sm:$0xff]
      %v3565 = vld [vmem:[#allocation2 + $0x69] sm:$0xff]
      %v3566 = vld [vmem:[#allocation2 + $0x79] sm:$0xff]
      %v3567 = vld [vmem:[#allocation2 + $0x81] sm:$0xff]
      %v3568 = vld [vmem:[#allocation2 + $0x91] sm:$0xff]
      %v3569 = vld [vmem:[#allocation2 + $0x99] sm:$0xff]
      %v3570 = vld [vmem:[#allocation2 + $0xa9] sm:$0xff]
      %v3571 = vld [vmem:[#allocation2 + $0xb1] sm:$0xff]
      %3588 = vrot.lane.b32.xlu0 %v3556, 124
      %v3589 = vpop.permute.xlu0 %3588
      %3590 = vrot.lane.b32.xlu0 %v3557, 124
      %v3591 = vpop.permute.xlu0 %3590
      %3592 = vrot.lane.b32.xlu0 %v3558, 124
      %v3593 = vpop.permute.xlu0 %3592
      %3594 = vrot.lane.b32.xlu0 %v3559, 124
      %v3595 = vpop.permute.xlu0 %3594
      %3596 = vrot.lane.b32.xlu0 %v3560, 124
      %v3597 = vpop.permute.xlu0 %3596
      %3598 = vrot.lane.b32.xlu0 %v3561, 124
      %v3599 = vpop.permute.xlu0 %3598
      %3600 = vrot.lane.b32.xlu0 %v3562, 124
      %v3601 = vpop.permute.xlu0 %3600
      %3602 = vrot.lane.b32.xlu0 %v3563, 124
      %v3603 = vpop.permute.xlu0 %3602
      %3604 = vrot.lane.b32.xlu0 %v3564, 124
      %v3605 = vpop.permute.xlu0 %3604
      %3606 = vrot.lane.b32.xlu0 %v3565, 124
      %v3607 = vpop.permute.xlu0 %3606
      %3608 = vrot.lane.b32.xlu0 %v3566, 124
      %v3609 = vpop.permute.xlu0 %3608
      %3610 = vrot.lane.b32.xlu0 %v3567, 124
      %v3611 = vpop.permute.xlu0 %3610
      %3612 = vrot.lane.b32.xlu0 %v3568, 124
      %v3613 = vpop.permute.xlu0 %3612
      %3614 = vrot.lane.b32.xlu0 %v3569, 124
      %v3615 = vpop.permute.xlu0 %3614
      %3616 = vrot.lane.b32.xlu0 %v3570, 124
      %v3617 = vpop.permute.xlu0 %3616
      %3618 = vrot.lane.b32.xlu0 %v3571, 124
      %v3619 = vpop.permute.xlu0 %3618
      %v3636 = vrot.slane %v3597, 4
      %v3637 = vsel %vm309, %v3636, %v3589
      %v3638 = vrot.slane %v3589, 4
      %v3639 = vsel %vm309, %v3597, %v3638
      %v3641 = vunpack.c.l.s4 1983009808
      %v3642 = vunpack.c.0.s8 %v3641
      %v3643 = vperm.slane %v3637, %v3642
      %v3645 = vunpack.c.l.s4 1983009808
      %v3646 = vunpack.c.0.s8 %v3645
      %v3647 = vperm.slane %v3639, %v3646
      %v3648 = vrot.slane %v3601, 4
      %v3649 = vsel %vm309, %v3648, %v3593
      %v3650 = vrot.slane %v3593, 4
      %v3651 = vsel %vm309, %v3601, %v3650
      %v3653 = vunpack.c.l.s4 1983009808
      %v3654 = vunpack.c.0.s8 %v3653
      %v3655 = vperm.slane %v3649, %v3654
      %v3657 = vunpack.c.l.s4 1983009808
      %v3658 = vunpack.c.0.s8 %v3657
      %v3659 = vperm.slane %v3651, %v3658
      %v3660 = vrot.slane %v3613, 4
      %v3661 = vsel %vm309, %v3660, %v3605
      %v3662 = vrot.slane %v3605, 4
      %v3663 = vsel %vm309, %v3613, %v3662
      %v3665 = vunpack.c.l.s4 1983009808
      %v3666 = vunpack.c.0.s8 %v3665
      %v3667 = vperm.slane %v3661, %v3666
      %v3669 = vunpack.c.l.s4 1983009808
      %v3670 = vunpack.c.0.s8 %v3669
      %v3671 = vperm.slane %v3663, %v3670
      %v3672 = vrot.slane %v3617, 4
      %v3673 = vsel %vm309, %v3672, %v3609
      %v3674 = vrot.slane %v3609, 4
      %v3675 = vsel %vm309, %v3617, %v3674
      %v3677 = vunpack.c.l.s4 1983009808
      %v3678 = vunpack.c.0.s8 %v3677
      %v3679 = vperm.slane %v3673, %v3678
      %v3681 = vunpack.c.l.s4 1983009808
      %v3682 = vunpack.c.0.s8 %v3681
      %v3683 = vperm.slane %v3675, %v3682
      %v3684 = vrot.slane %v3655, 4
      %v3685 = vsel %vm309, %v3684, %v3643
      %v3686 = vrot.slane %v3643, 4
      %v3687 = vsel %vm309, %v3655, %v3686
      %v3689 = vunpack.c.l.s4 1934713408
      %v3690 = vunpack.c.0.s8 %v3689
      %v3691 = vperm.slane %v3685, %v3690
      %v3693 = vunpack.c.l.s4 1934713408
      %v3694 = vunpack.c.0.s8 %v3693
      %v3695 = vperm.slane %v3687, %v3694
      %v3696 = vrot.slane %v3659, 4
      %v3697 = vsel %vm309, %v3696, %v3647
      %v3698 = vrot.slane %v3647, 4
      %v3699 = vsel %vm309, %v3659, %v3698
      %v3701 = vunpack.c.l.s4 1934713408
      %v3702 = vunpack.c.0.s8 %v3701
      %v3703 = vperm.slane %v3697, %v3702
      %v3705 = vunpack.c.l.s4 1934713408
      %v3706 = vunpack.c.0.s8 %v3705
      %v3707 = vperm.slane %v3699, %v3706
      %v3708 = vrot.slane %v3679, 4
      %v3709 = vsel %vm309, %v3708, %v3667
      %v3710 = vrot.slane %v3667, 4
      %v3711 = vsel %vm309, %v3679, %v3710
      %v3713 = vunpack.c.l.s4 1934713408
      %v3714 = vunpack.c.0.s8 %v3713
      %v3715 = vperm.slane %v3709, %v3714
      %v3717 = vunpack.c.l.s4 1934713408
      %v3718 = vunpack.c.0.s8 %v3717
      %v3719 = vperm.slane %v3711, %v3718
      %v3720 = vrot.slane %v3683, 4
      %v3721 = vsel %vm309, %v3720, %v3671
      %v3722 = vrot.slane %v3671, 4
      %v3723 = vsel %vm309, %v3683, %v3722
      %v3725 = vunpack.c.l.s4 1934713408
      %v3726 = vunpack.c.0.s8 %v3725
      %v3727 = vperm.slane %v3721, %v3726
      %v3729 = vunpack.c.l.s4 1934713408
      %v3730 = vunpack.c.0.s8 %v3729
      %v3731 = vperm.slane %v3723, %v3730
      %v3732 = vrot.slane %v3715, 4
      %v3733 = vsel %vm309, %v3732, %v3691
      %v3734 = vrot.slane %v3691, 4
      %v3735 = vsel %vm309, %v3715, %v3734
      %v3736 = vrot.slane %v3719, 4
      %v3737 = vsel %vm309, %v3736, %v3695
      %v3738 = vrot.slane %v3695, 4
      %v3739 = vsel %vm309, %v3719, %v3738
      %v3740 = vrot.slane %v3727, 4
      %v3741 = vsel %vm309, %v3740, %v3703
      %v3742 = vrot.slane %v3703, 4
      %v3743 = vsel %vm309, %v3727, %v3742
      %v3744 = vrot.slane %v3731, 4
      %v3745 = vsel %vm309, %v3744, %v3707
      %v3746 = vrot.slane %v3707, 4
      %v3747 = vsel %vm309, %v3731, %v3746
      %v3748 = vrot.slane %v3599, 4
      %v3749 = vsel %vm309, %v3748, %v3591
      %v3750 = vrot.slane %v3591, 4
      %v3751 = vsel %vm309, %v3599, %v3750
      %v3753 = vunpack.c.l.s4 1983009808
      %v3754 = vunpack.c.0.s8 %v3753
      %v3755 = vperm.slane %v3749, %v3754
      %v3757 = vunpack.c.l.s4 1983009808
      %v3758 = vunpack.c.0.s8 %v3757
      %v3759 = vperm.slane %v3751, %v3758
      %v3760 = vrot.slane %v3603, 4
      %v3761 = vsel %vm309, %v3760, %v3595
      %v3762 = vrot.slane %v3595, 4
      %v3763 = vsel %vm309, %v3603, %v3762
      %v3765 = vunpack.c.l.s4 1983009808
      %v3766 = vunpack.c.0.s8 %v3765
      %v3767 = vperm.slane %v3761, %v3766
      %v3769 = vunpack.c.l.s4 1983009808
      %v3770 = vunpack.c.0.s8 %v3769
      %v3771 = vperm.slane %v3763, %v3770
      %v3772 = vrot.slane %v3615, 4
      %v3773 = vsel %vm309, %v3772, %v3607
      %v3774 = vrot.slane %v3607, 4
      %v3775 = vsel %vm309, %v3615, %v3774
      %v3777 = vunpack.c.l.s4 1983009808
      %v3778 = vunpack.c.0.s8 %v3777
      %v3779 = vperm.slane %v3773, %v3778
      %v3781 = vunpack.c.l.s4 1983009808
      %v3782 = vunpack.c.0.s8 %v3781
      %v3783 = vperm.slane %v3775, %v3782
      %v3784 = vrot.slane %v3619, 4
      %v3785 = vsel %vm309, %v3784, %v3611
      %v3786 = vrot.slane %v3611, 4
      %v3787 = vsel %vm309, %v3619, %v3786
      %v3789 = vunpack.c.l.s4 1983009808
      %v3790 = vunpack.c.0.s8 %v3789
      %v3791 = vperm.slane %v3785, %v3790
      %v3793 = vunpack.c.l.s4 1983009808
      %v3794 = vunpack.c.0.s8 %v3793
      %v3795 = vperm.slane %v3787, %v3794
      %v3796 = vrot.slane %v3767, 4
      %v3797 = vsel %vm309, %v3796, %v3755
      %v3798 = vrot.slane %v3755, 4
      %v3799 = vsel %vm309, %v3767, %v3798
      %v3801 = vunpack.c.l.s4 1934713408
      %v3802 = vunpack.c.0.s8 %v3801
      %v3803 = vperm.slane %v3797, %v3802
      %v3805 = vunpack.c.l.s4 1934713408
      %v3806 = vunpack.c.0.s8 %v3805
      %v3807 = vperm.slane %v3799, %v3806
      %v3808 = vrot.slane %v3771, 4
      %v3809 = vsel %vm309, %v3808, %v3759
      %v3810 = vrot.slane %v3759, 4
      %v3811 = vsel %vm309, %v3771, %v3810
      %v3813 = vunpack.c.l.s4 1934713408
      %v3814 = vunpack.c.0.s8 %v3813
      %v3815 = vperm.slane %v3809, %v3814
      %v3817 = vunpack.c.l.s4 1934713408
      %v3818 = vunpack.c.0.s8 %v3817
      %v3819 = vperm.slane %v3811, %v3818
      %v3820 = vrot.slane %v3791, 4
      %v3821 = vsel %vm309, %v3820, %v3779
      %v3822 = vrot.slane %v3779, 4
      %v3823 = vsel %vm309, %v3791, %v3822
      %v3825 = vunpack.c.l.s4 1934713408
      %v3826 = vunpack.c.0.s8 %v3825
      %v3827 = vperm.slane %v3821, %v3826
      %v3829 = vunpack.c.l.s4 1934713408
      %v3830 = vunpack.c.0.s8 %v3829
      %v3831 = vperm.slane %v3823, %v3830
      %v3832 = vrot.slane %v3795, 4
      %v3833 = vsel %vm309, %v3832, %v3783
      %v3834 = vrot.slane %v3783, 4
      %v3835 = vsel %vm309, %v3795, %v3834
      %v3837 = vunpack.c.l.s4 1934713408
      %v3838 = vunpack.c.0.s8 %v3837
      %v3839 = vperm.slane %v3833, %v3838
      %v3841 = vunpack.c.l.s4 1934713408
      %v3842 = vunpack.c.0.s8 %v3841
      %v3843 = vperm.slane %v3835, %v3842
      %v3844 = vrot.slane %v3827, 4
      %v3845 = vsel %vm309, %v3844, %v3803
      %v3846 = vrot.slane %v3803, 4
      %v3847 = vsel %vm309, %v3827, %v3846
      %v3848 = vrot.slane %v3831, 4
      %v3849 = vsel %vm309, %v3848, %v3807
      %v3850 = vrot.slane %v3807, 4
      %v3851 = vsel %vm309, %v3831, %v3850
      %v3852 = vrot.slane %v3839, 4
      %v3853 = vsel %vm309, %v3852, %v3815
      %v3854 = vrot.slane %v3815, 4
      %v3855 = vsel %vm309, %v3839, %v3854
      %v3856 = vrot.slane %v3843, 4
      %v3857 = vsel %vm309, %v3856, %v3819
      %v3858 = vrot.slane %v3819, 4
      %v3859 = vsel %vm309, %v3843, %v3858
      %3861 = vrot.lane.b32.xlu0 %v3735, 16
      %v3862 = vpop.permute.xlu0 %3861
      %3865 = vrot.lane.b32.xlu0 %v3737, 32
      %v3866 = vpop.permute.xlu0 %3865
      %3869 = vrot.lane.b32.xlu0 %v3739, 48
      %v3870 = vpop.permute.xlu0 %3869
      %3873 = vrot.lane.b32.xlu0 %v3741, 64
      %v3874 = vpop.permute.xlu0 %3873
      %3877 = vrot.lane.b32.xlu0 %v3743, 80
      %v3878 = vpop.permute.xlu0 %3877
      %3881 = vrot.lane.b32.xlu0 %v3745, 96
      %v3882 = vpop.permute.xlu0 %3881
      %3885 = vrot.lane.b32.xlu0 %v3747, 112
      %v3886 = vpop.permute.xlu0 %3885
      %3889 = vrot.lane.b32.xlu0 %v3847, 16
      %v3890 = vpop.permute.xlu0 %3889
      %3893 = vrot.lane.b32.xlu0 %v3849, 32
      %v3894 = vpop.permute.xlu0 %3893
      %3897 = vrot.lane.b32.xlu0 %v3851, 48
      %v3898 = vpop.permute.xlu0 %3897
      %3901 = vrot.lane.b32.xlu0 %v3853, 64
      %v3902 = vpop.permute.xlu0 %3901
      %3905 = vrot.lane.b32.xlu0 %v3855, 80
      %v3906 = vpop.permute.xlu0 %3905
      %3909 = vrot.lane.b32.xlu0 %v3857, 96
      %v3910 = vpop.permute.xlu0 %3909
      %3913 = vrot.lane.b32.xlu0 %v3859, 112
      %v3914 = vpop.permute.xlu0 %3913
      %v3916 = vsel %vm589, %v3733, %v3862
      %v3917 = vsel %vm591, %v3916, %v3866
      %v3918 = vsel %vm593, %v3917, %v3870
      %v3919 = vsel %vm595, %v3918, %v3874
      %v3920 = vsel %vm597, %v3919, %v3878
      %v3921 = vsel %vm599, %v3920, %v3882
      %v3922 = vsel %vm601, %v3921, %v3886
      %v3923 = vsel %vm589, %v3845, %v3890
      %v3924 = vsel %vm591, %v3923, %v3894
      %v3925 = vsel %vm593, %v3924, %v3898
      %v3926 = vsel %vm595, %v3925, %v3902
      %v3927 = vsel %vm597, %v3926, %v3906
      %v3928 = vsel %vm599, %v3927, %v3910
      %v3929 = vsel %vm601, %v3928, %v3914
      %3930 = vst [vmem:[#allocation3 + $0x90] sm:$0xff] %v3922
      %3931 = vst [vmem:[#allocation3 + $0x98] sm:$0xff] %v3929
      %v3932 = vld [vmem:[#allocation2 + $0x2] sm:$0xff]
      %v3933 = vld [vmem:[#allocation2 + $0xa] sm:$0xff]
      %v3934 = vld [vmem:[#allocation2 + $0x1a] sm:$0xff]
      %v3935 = vld [vmem:[#allocation2 + $0x22] sm:$0xff]
      %v3936 = vld [vmem:[#allocation2 + $0x32] sm:$0xff]
      %v3937 = vld [vmem:[#allocation2 + $0x3a] sm:$0xff]
      %v3938 = vld [vmem:[#allocation2 + $0x4a] sm:$0xff]
      %v3939 = vld [vmem:[#allocation2 + $0x52] sm:$0xff]
      %v3940 = vld [vmem:[#allocation2 + $0x62] sm:$0xff]
      %v3941 = vld [vmem:[#allocation2 + $0x6a] sm:$0xff]
      %v3942 = vld [vmem:[#allocation2 + $0x7a] sm:$0xff]
      %v3943 = vld [vmem:[#allocation2 + $0x82] sm:$0xff]
      %v3944 = vld [vmem:[#allocation2 + $0x92] sm:$0xff]
      %v3945 = vld [vmem:[#allocation2 + $0x9a] sm:$0xff]
      %v3946 = vld [vmem:[#allocation2 + $0xaa] sm:$0xff]
      %v3947 = vld [vmem:[#allocation2 + $0xb2] sm:$0xff]
      %v3948 = vrot.slane %v3936, 4
      %v3949 = vsel %vm309, %v3948, %v3932
      %v3950 = vrot.slane %v3932, 4
      %v3951 = vsel %vm309, %v3936, %v3950
      %v3953 = vunpack.c.l.s4 1983009808
      %v3954 = vunpack.c.0.s8 %v3953
      %v3955 = vperm.slane %v3949, %v3954
      %v3957 = vunpack.c.l.s4 1983009808
      %v3958 = vunpack.c.0.s8 %v3957
      %v3959 = vperm.slane %v3951, %v3958
      %v3960 = vrot.slane %v3938, 4
      %v3961 = vsel %vm309, %v3960, %v3934
      %v3962 = vrot.slane %v3934, 4
      %v3963 = vsel %vm309, %v3938, %v3962
      %v3965 = vunpack.c.l.s4 1983009808
      %v3966 = vunpack.c.0.s8 %v3965
      %v3967 = vperm.slane %v3961, %v3966
      %v3969 = vunpack.c.l.s4 1983009808
      %v3970 = vunpack.c.0.s8 %v3969
      %v3971 = vperm.slane %v3963, %v3970
      %v3972 = vrot.slane %v3944, 4
      %v3973 = vsel %vm309, %v3972, %v3940
      %v3974 = vrot.slane %v3940, 4
      %v3975 = vsel %vm309, %v3944, %v3974
      %v3977 = vunpack.c.l.s4 1983009808
      %v3978 = vunpack.c.0.s8 %v3977
      %v3979 = vperm.slane %v3973, %v3978
      %v3981 = vunpack.c.l.s4 1983009808
      %v3982 = vunpack.c.0.s8 %v3981
      %v3983 = vperm.slane %v3975, %v3982
      %v3984 = vrot.slane %v3946, 4
      %v3985 = vsel %vm309, %v3984, %v3942
      %v3986 = vrot.slane %v3942, 4
      %v3987 = vsel %vm309, %v3946, %v3986
      %v3989 = vunpack.c.l.s4 1983009808
      %v3990 = vunpack.c.0.s8 %v3989
      %v3991 = vperm.slane %v3985, %v3990
      %v3993 = vunpack.c.l.s4 1983009808
      %v3994 = vunpack.c.0.s8 %v3993
      %v3995 = vperm.slane %v3987, %v3994
      %v3996 = vrot.slane %v3967, 4
      %v3997 = vsel %vm309, %v3996, %v3955
      %v3998 = vrot.slane %v3955, 4
      %v3999 = vsel %vm309, %v3967, %v3998
      %v4001 = vunpack.c.l.s4 1934713408
      %v4002 = vunpack.c.0.s8 %v4001
      %v4003 = vperm.slane %v3997, %v4002
      %v4005 = vunpack.c.l.s4 1934713408
      %v4006 = vunpack.c.0.s8 %v4005
      %v4007 = vperm.slane %v3999, %v4006
      %v4008 = vrot.slane %v3971, 4
      %v4009 = vsel %vm309, %v4008, %v3959
      %v4010 = vrot.slane %v3959, 4
      %v4011 = vsel %vm309, %v3971, %v4010
      %v4013 = vunpack.c.l.s4 1934713408
      %v4014 = vunpack.c.0.s8 %v4013
      %v4015 = vperm.slane %v4009, %v4014
      %v4017 = vunpack.c.l.s4 1934713408
      %v4018 = vunpack.c.0.s8 %v4017
      %v4019 = vperm.slane %v4011, %v4018
      %v4020 = vrot.slane %v3991, 4
      %v4021 = vsel %vm309, %v4020, %v3979
      %v4022 = vrot.slane %v3979, 4
      %v4023 = vsel %vm309, %v3991, %v4022
      %v4025 = vunpack.c.l.s4 1934713408
      %v4026 = vunpack.c.0.s8 %v4025
      %v4027 = vperm.slane %v4021, %v4026
      %v4029 = vunpack.c.l.s4 1934713408
      %v4030 = vunpack.c.0.s8 %v4029
      %v4031 = vperm.slane %v4023, %v4030
      %v4032 = vrot.slane %v3995, 4
      %v4033 = vsel %vm309, %v4032, %v3983
      %v4034 = vrot.slane %v3983, 4
      %v4035 = vsel %vm309, %v3995, %v4034
      %v4037 = vunpack.c.l.s4 1934713408
      %v4038 = vunpack.c.0.s8 %v4037
      %v4039 = vperm.slane %v4033, %v4038
      %v4041 = vunpack.c.l.s4 1934713408
      %v4042 = vunpack.c.0.s8 %v4041
      %v4043 = vperm.slane %v4035, %v4042
      %v4044 = vrot.slane %v4027, 4
      %v4045 = vsel %vm309, %v4044, %v4003
      %v4046 = vrot.slane %v4003, 4
      %v4047 = vsel %vm309, %v4027, %v4046
      %v4048 = vrot.slane %v4031, 4
      %v4049 = vsel %vm309, %v4048, %v4007
      %v4050 = vrot.slane %v4007, 4
      %v4051 = vsel %vm309, %v4031, %v4050
      %v4052 = vrot.slane %v4039, 4
      %v4053 = vsel %vm309, %v4052, %v4015
      %v4054 = vrot.slane %v4015, 4
      %v4055 = vsel %vm309, %v4039, %v4054
      %v4056 = vrot.slane %v4043, 4
      %v4057 = vsel %vm309, %v4056, %v4019
      %v4058 = vrot.slane %v4019, 4
      %v4059 = vsel %vm309, %v4043, %v4058
      %v4060 = vrot.slane %v3937, 4
      %v4061 = vsel %vm309, %v4060, %v3933
      %v4062 = vrot.slane %v3933, 4
      %v4063 = vsel %vm309, %v3937, %v4062
      %v4065 = vunpack.c.l.s4 1983009808
      %v4066 = vunpack.c.0.s8 %v4065
      %v4067 = vperm.slane %v4061, %v4066
      %v4069 = vunpack.c.l.s4 1983009808
      %v4070 = vunpack.c.0.s8 %v4069
      %v4071 = vperm.slane %v4063, %v4070
      %v4072 = vrot.slane %v3939, 4
      %v4073 = vsel %vm309, %v4072, %v3935
      %v4074 = vrot.slane %v3935, 4
      %v4075 = vsel %vm309, %v3939, %v4074
      %v4077 = vunpack.c.l.s4 1983009808
      %v4078 = vunpack.c.0.s8 %v4077
      %v4079 = vperm.slane %v4073, %v4078
      %v4081 = vunpack.c.l.s4 1983009808
      %v4082 = vunpack.c.0.s8 %v4081
      %v4083 = vperm.slane %v4075, %v4082
      %v4084 = vrot.slane %v3945, 4
      %v4085 = vsel %vm309, %v4084, %v3941
      %v4086 = vrot.slane %v3941, 4
      %v4087 = vsel %vm309, %v3945, %v4086
      %v4089 = vunpack.c.l.s4 1983009808
      %v4090 = vunpack.c.0.s8 %v4089
      %v4091 = vperm.slane %v4085, %v4090
      %v4093 = vunpack.c.l.s4 1983009808
      %v4094 = vunpack.c.0.s8 %v4093
      %v4095 = vperm.slane %v4087, %v4094
      %v4096 = vrot.slane %v3947, 4
      %v4097 = vsel %vm309, %v4096, %v3943
      %v4098 = vrot.slane %v3943, 4
      %v4099 = vsel %vm309, %v3947, %v4098
      %v4101 = vunpack.c.l.s4 1983009808
      %v4102 = vunpack.c.0.s8 %v4101
      %v4103 = vperm.slane %v4097, %v4102
      %v4105 = vunpack.c.l.s4 1983009808
      %v4106 = vunpack.c.0.s8 %v4105
      %v4107 = vperm.slane %v4099, %v4106
      %v4108 = vrot.slane %v4079, 4
      %v4109 = vsel %vm309, %v4108, %v4067
      %v4110 = vrot.slane %v4067, 4
      %v4111 = vsel %vm309, %v4079, %v4110
      %v4113 = vunpack.c.l.s4 1934713408
      %v4114 = vunpack.c.0.s8 %v4113
      %v4115 = vperm.slane %v4109, %v4114
      %v4117 = vunpack.c.l.s4 1934713408
      %v4118 = vunpack.c.0.s8 %v4117
      %v4119 = vperm.slane %v4111, %v4118
      %v4120 = vrot.slane %v4083, 4
      %v4121 = vsel %vm309, %v4120, %v4071
      %v4122 = vrot.slane %v4071, 4
      %v4123 = vsel %vm309, %v4083, %v4122
      %v4125 = vunpack.c.l.s4 1934713408
      %v4126 = vunpack.c.0.s8 %v4125
      %v4127 = vperm.slane %v4121, %v4126
      %v4129 = vunpack.c.l.s4 1934713408
      %v4130 = vunpack.c.0.s8 %v4129
      %v4131 = vperm.slane %v4123, %v4130
      %v4132 = vrot.slane %v4103, 4
      %v4133 = vsel %vm309, %v4132, %v4091
      %v4134 = vrot.slane %v4091, 4
      %v4135 = vsel %vm309, %v4103, %v4134
      %v4137 = vunpack.c.l.s4 1934713408
      %v4138 = vunpack.c.0.s8 %v4137
      %v4139 = vperm.slane %v4133, %v4138
      %v4141 = vunpack.c.l.s4 1934713408
      %v4142 = vunpack.c.0.s8 %v4141
      %v4143 = vperm.slane %v4135, %v4142
      %v4144 = vrot.slane %v4107, 4
      %v4145 = vsel %vm309, %v4144, %v4095
      %v4146 = vrot.slane %v4095, 4
      %v4147 = vsel %vm309, %v4107, %v4146
      %v4149 = vunpack.c.l.s4 1934713408
      %v4150 = vunpack.c.0.s8 %v4149
      %v4151 = vperm.slane %v4145, %v4150
      %v4153 = vunpack.c.l.s4 1934713408
      %v4154 = vunpack.c.0.s8 %v4153
      %v4155 = vperm.slane %v4147, %v4154
      %v4156 = vrot.slane %v4139, 4
      %v4157 = vsel %vm309, %v4156, %v4115
      %v4158 = vrot.slane %v4115, 4
      %v4159 = vsel %vm309, %v4139, %v4158
      %v4160 = vrot.slane %v4143, 4
      %v4161 = vsel %vm309, %v4160, %v4119
      %v4162 = vrot.slane %v4119, 4
      %v4163 = vsel %vm309, %v4143, %v4162
      %v4164 = vrot.slane %v4151, 4
      %v4165 = vsel %vm309, %v4164, %v4127
      %v4166 = vrot.slane %v4127, 4
      %v4167 = vsel %vm309, %v4151, %v4166
      %v4168 = vrot.slane %v4155, 4
      %v4169 = vsel %vm309, %v4168, %v4131
      %v4170 = vrot.slane %v4131, 4
      %v4171 = vsel %vm309, %v4155, %v4170
      %4173 = vrot.lane.b32.xlu0 %v4047, 16
      %v4174 = vpop.permute.xlu0 %4173
      %4177 = vrot.lane.b32.xlu0 %v4049, 32
      %v4178 = vpop.permute.xlu0 %4177
      %4181 = vrot.lane.b32.xlu0 %v4051, 48
      %v4182 = vpop.permute.xlu0 %4181
      %4185 = vrot.lane.b32.xlu0 %v4053, 64
      %v4186 = vpop.permute.xlu0 %4185
      %4189 = vrot.lane.b32.xlu0 %v4055, 80
      %v4190 = vpop.permute.xlu0 %4189
      %4193 = vrot.lane.b32.xlu0 %v4057, 96
      %v4194 = vpop.permute.xlu0 %4193
      %4197 = vrot.lane.b32.xlu0 %v4059, 112
      %v4198 = vpop.permute.xlu0 %4197
      %4201 = vrot.lane.b32.xlu0 %v4159, 16
      %v4202 = vpop.permute.xlu0 %4201
      %4205 = vrot.lane.b32.xlu0 %v4161, 32
      %v4206 = vpop.permute.xlu0 %4205
      %4209 = vrot.lane.b32.xlu0 %v4163, 48
      %v4210 = vpop.permute.xlu0 %4209
      %4213 = vrot.lane.b32.xlu0 %v4165, 64
      %v4214 = vpop.permute.xlu0 %4213
      %4217 = vrot.lane.b32.xlu0 %v4167, 80
      %v4218 = vpop.permute.xlu0 %4217
      %4221 = vrot.lane.b32.xlu0 %v4169, 96
      %v4222 = vpop.permute.xlu0 %4221
      %4225 = vrot.lane.b32.xlu0 %v4171, 112
      %v4226 = vpop.permute.xlu0 %4225
      %v4228 = vsel %vm589, %v4045, %v4174
      %v4229 = vsel %vm591, %v4228, %v4178
      %v4230 = vsel %vm593, %v4229, %v4182
      %v4231 = vsel %vm595, %v4230, %v4186
      %v4232 = vsel %vm597, %v4231, %v4190
      %v4233 = vsel %vm599, %v4232, %v4194
      %v4234 = vsel %vm601, %v4233, %v4198
      %v4235 = vsel %vm589, %v4157, %v4202
      %v4236 = vsel %vm591, %v4235, %v4206
      %v4237 = vsel %vm593, %v4236, %v4210
      %v4238 = vsel %vm595, %v4237, %v4214
      %v4239 = vsel %vm597, %v4238, %v4218
      %v4240 = vsel %vm599, %v4239, %v4222
      %v4241 = vsel %vm601, %v4240, %v4226
      %4242 = vst [vmem:[#allocation3 + $0xa0] sm:$0xff] %v4234
      %4243 = vst [vmem:[#allocation3 + $0xa8] sm:$0xff] %v4241
      %v4244 = vld [vmem:[#allocation2 + $0x2] sm:$0xff]
      %v4245 = vld [vmem:[#allocation2 + $0xa] sm:$0xff]
      %v4246 = vld [vmem:[#allocation2 + $0x1a] sm:$0xff]
      %v4247 = vld [vmem:[#allocation2 + $0x22] sm:$0xff]
      %v4248 = vld [vmem:[#allocation2 + $0x32] sm:$0xff]
      %v4249 = vld [vmem:[#allocation2 + $0x3a] sm:$0xff]
      %v4250 = vld [vmem:[#allocation2 + $0x4a] sm:$0xff]
      %v4251 = vld [vmem:[#allocation2 + $0x52] sm:$0xff]
      %v4252 = vld [vmem:[#allocation2 + $0x62] sm:$0xff]
      %v4253 = vld [vmem:[#allocation2 + $0x6a] sm:$0xff]
      %v4254 = vld [vmem:[#allocation2 + $0x7a] sm:$0xff]
      %v4255 = vld [vmem:[#allocation2 + $0x82] sm:$0xff]
      %v4256 = vld [vmem:[#allocation2 + $0x92] sm:$0xff]
      %v4257 = vld [vmem:[#allocation2 + $0x9a] sm:$0xff]
      %v4258 = vld [vmem:[#allocation2 + $0xaa] sm:$0xff]
      %v4259 = vld [vmem:[#allocation2 + $0xb2] sm:$0xff]
      %4276 = vrot.lane.b32.xlu0 %v4244, 127
      %v4277 = vpop.permute.xlu0 %4276
      %4278 = vrot.lane.b32.xlu0 %v4245, 127
      %v4279 = vpop.permute.xlu0 %4278
      %4280 = vrot.lane.b32.xlu0 %v4246, 127
      %v4281 = vpop.permute.xlu0 %4280
      %4282 = vrot.lane.b32.xlu0 %v4247, 127
      %v4283 = vpop.permute.xlu0 %4282
      %4284 = vrot.lane.b32.xlu0 %v4248, 127
      %v4285 = vpop.permute.xlu0 %4284
      %4286 = vrot.lane.b32.xlu0 %v4249, 127
      %v4287 = vpop.permute.xlu0 %4286
      %4288 = vrot.lane.b32.xlu0 %v4250, 127
      %v4289 = vpop.permute.xlu0 %4288
      %4290 = vrot.lane.b32.xlu0 %v4251, 127
      %v4291 = vpop.permute.xlu0 %4290
      %4292 = vrot.lane.b32.xlu0 %v4252, 127
      %v4293 = vpop.permute.xlu0 %4292
      %4294 = vrot.lane.b32.xlu0 %v4253, 127
      %v4295 = vpop.permute.xlu0 %4294
      %4296 = vrot.lane.b32.xlu0 %v4254, 127
      %v4297 = vpop.permute.xlu0 %4296
      %4298 = vrot.lane.b32.xlu0 %v4255, 127
      %v4299 = vpop.permute.xlu0 %4298
      %4300 = vrot.lane.b32.xlu0 %v4256, 127
      %v4301 = vpop.permute.xlu0 %4300
      %4302 = vrot.lane.b32.xlu0 %v4257, 127
      %v4303 = vpop.permute.xlu0 %4302
      %4304 = vrot.lane.b32.xlu0 %v4258, 127
      %v4305 = vpop.permute.xlu0 %4304
      %4306 = vrot.lane.b32.xlu0 %v4259, 127
      %v4307 = vpop.permute.xlu0 %4306
      %v4324 = vrot.slane %v4285, 4
      %v4325 = vsel %vm309, %v4324, %v4277
      %v4326 = vrot.slane %v4277, 4
      %v4327 = vsel %vm309, %v4285, %v4326
      %v4329 = vunpack.c.l.s4 1983009808
      %v4330 = vunpack.c.0.s8 %v4329
      %v4331 = vperm.slane %v4325, %v4330
      %v4333 = vunpack.c.l.s4 1983009808
      %v4334 = vunpack.c.0.s8 %v4333
      %v4335 = vperm.slane %v4327, %v4334
      %v4336 = vrot.slane %v4289, 4
      %v4337 = vsel %vm309, %v4336, %v4281
      %v4338 = vrot.slane %v4281, 4
      %v4339 = vsel %vm309, %v4289, %v4338
      %v4341 = vunpack.c.l.s4 1983009808
      %v4342 = vunpack.c.0.s8 %v4341
      %v4343 = vperm.slane %v4337, %v4342
      %v4345 = vunpack.c.l.s4 1983009808
      %v4346 = vunpack.c.0.s8 %v4345
      %v4347 = vperm.slane %v4339, %v4346
      %v4348 = vrot.slane %v4301, 4
      %v4349 = vsel %vm309, %v4348, %v4293
      %v4350 = vrot.slane %v4293, 4
      %v4351 = vsel %vm309, %v4301, %v4350
      %v4353 = vunpack.c.l.s4 1983009808
      %v4354 = vunpack.c.0.s8 %v4353
      %v4355 = vperm.slane %v4349, %v4354
      %v4357 = vunpack.c.l.s4 1983009808
      %v4358 = vunpack.c.0.s8 %v4357
      %v4359 = vperm.slane %v4351, %v4358
      %v4360 = vrot.slane %v4305, 4
      %v4361 = vsel %vm309, %v4360, %v4297
      %v4362 = vrot.slane %v4297, 4
      %v4363 = vsel %vm309, %v4305, %v4362
      %v4365 = vunpack.c.l.s4 1983009808
      %v4366 = vunpack.c.0.s8 %v4365
      %v4367 = vperm.slane %v4361, %v4366
      %v4369 = vunpack.c.l.s4 1983009808
      %v4370 = vunpack.c.0.s8 %v4369
      %v4371 = vperm.slane %v4363, %v4370
      %v4372 = vrot.slane %v4343, 4
      %v4373 = vsel %vm309, %v4372, %v4331
      %v4374 = vrot.slane %v4331, 4
      %v4375 = vsel %vm309, %v4343, %v4374
      %v4377 = vunpack.c.l.s4 1934713408
      %v4378 = vunpack.c.0.s8 %v4377
      %v4379 = vperm.slane %v4373, %v4378
      %v4381 = vunpack.c.l.s4 1934713408
      %v4382 = vunpack.c.0.s8 %v4381
      %v4383 = vperm.slane %v4375, %v4382
      %v4384 = vrot.slane %v4347, 4
      %v4385 = vsel %vm309, %v4384, %v4335
      %v4386 = vrot.slane %v4335, 4
      %v4387 = vsel %vm309, %v4347, %v4386
      %v4389 = vunpack.c.l.s4 1934713408
      %v4390 = vunpack.c.0.s8 %v4389
      %v4391 = vperm.slane %v4385, %v4390
      %v4393 = vunpack.c.l.s4 1934713408
      %v4394 = vunpack.c.0.s8 %v4393
      %v4395 = vperm.slane %v4387, %v4394
      %v4396 = vrot.slane %v4367, 4
      %v4397 = vsel %vm309, %v4396, %v4355
      %v4398 = vrot.slane %v4355, 4
      %v4399 = vsel %vm309, %v4367, %v4398
      %v4401 = vunpack.c.l.s4 1934713408
      %v4402 = vunpack.c.0.s8 %v4401
      %v4403 = vperm.slane %v4397, %v4402
      %v4405 = vunpack.c.l.s4 1934713408
      %v4406 = vunpack.c.0.s8 %v4405
      %v4407 = vperm.slane %v4399, %v4406
      %v4408 = vrot.slane %v4371, 4
      %v4409 = vsel %vm309, %v4408, %v4359
      %v4410 = vrot.slane %v4359, 4
      %v4411 = vsel %vm309, %v4371, %v4410
      %v4413 = vunpack.c.l.s4 1934713408
      %v4414 = vunpack.c.0.s8 %v4413
      %v4415 = vperm.slane %v4409, %v4414
      %v4417 = vunpack.c.l.s4 1934713408
      %v4418 = vunpack.c.0.s8 %v4417
      %v4419 = vperm.slane %v4411, %v4418
      %v4420 = vrot.slane %v4403, 4
      %v4421 = vsel %vm309, %v4420, %v4379
      %v4422 = vrot.slane %v4379, 4
      %v4423 = vsel %vm309, %v4403, %v4422
      %v4424 = vrot.slane %v4407, 4
      %v4425 = vsel %vm309, %v4424, %v4383
      %v4426 = vrot.slane %v4383, 4
      %v4427 = vsel %vm309, %v4407, %v4426
      %v4428 = vrot.slane %v4415, 4
      %v4429 = vsel %vm309, %v4428, %v4391
      %v4430 = vrot.slane %v4391, 4
      %v4431 = vsel %vm309, %v4415, %v4430
      %v4432 = vrot.slane %v4419, 4
      %v4433 = vsel %vm309, %v4432, %v4395
      %v4434 = vrot.slane %v4395, 4
      %v4435 = vsel %vm309, %v4419, %v4434
      %v4436 = vrot.slane %v4287, 4
      %v4437 = vsel %vm309, %v4436, %v4279
      %v4438 = vrot.slane %v4279, 4
      %v4439 = vsel %vm309, %v4287, %v4438
      %v4441 = vunpack.c.l.s4 1983009808
      %v4442 = vunpack.c.0.s8 %v4441
      %v4443 = vperm.slane %v4437, %v4442
      %v4445 = vunpack.c.l.s4 1983009808
      %v4446 = vunpack.c.0.s8 %v4445
      %v4447 = vperm.slane %v4439, %v4446
      %v4448 = vrot.slane %v4291, 4
      %v4449 = vsel %vm309, %v4448, %v4283
      %v4450 = vrot.slane %v4283, 4
      %v4451 = vsel %vm309, %v4291, %v4450
      %v4453 = vunpack.c.l.s4 1983009808
      %v4454 = vunpack.c.0.s8 %v4453
      %v4455 = vperm.slane %v4449, %v4454
      %v4457 = vunpack.c.l.s4 1983009808
      %v4458 = vunpack.c.0.s8 %v4457
      %v4459 = vperm.slane %v4451, %v4458
      %v4460 = vrot.slane %v4303, 4
      %v4461 = vsel %vm309, %v4460, %v4295
      %v4462 = vrot.slane %v4295, 4
      %v4463 = vsel %vm309, %v4303, %v4462
      %v4465 = vunpack.c.l.s4 1983009808
      %v4466 = vunpack.c.0.s8 %v4465
      %v4467 = vperm.slane %v4461, %v4466
      %v4469 = vunpack.c.l.s4 1983009808
      %v4470 = vunpack.c.0.s8 %v4469
      %v4471 = vperm.slane %v4463, %v4470
      %v4472 = vrot.slane %v4307, 4
      %v4473 = vsel %vm309, %v4472, %v4299
      %v4474 = vrot.slane %v4299, 4
      %v4475 = vsel %vm309, %v4307, %v4474
      %v4477 = vunpack.c.l.s4 1983009808
      %v4478 = vunpack.c.0.s8 %v4477
      %v4479 = vperm.slane %v4473, %v4478
      %v4481 = vunpack.c.l.s4 1983009808
      %v4482 = vunpack.c.0.s8 %v4481
      %v4483 = vperm.slane %v4475, %v4482
      %v4484 = vrot.slane %v4455, 4
      %v4485 = vsel %vm309, %v4484, %v4443
      %v4486 = vrot.slane %v4443, 4
      %v4487 = vsel %vm309, %v4455, %v4486
      %v4489 = vunpack.c.l.s4 1934713408
      %v4490 = vunpack.c.0.s8 %v4489
      %v4491 = vperm.slane %v4485, %v4490
      %v4493 = vunpack.c.l.s4 1934713408
      %v4494 = vunpack.c.0.s8 %v4493
      %v4495 = vperm.slane %v4487, %v4494
      %v4496 = vrot.slane %v4459, 4
      %v4497 = vsel %vm309, %v4496, %v4447
      %v4498 = vrot.slane %v4447, 4
      %v4499 = vsel %vm309, %v4459, %v4498
      %v4501 = vunpack.c.l.s4 1934713408
      %v4502 = vunpack.c.0.s8 %v4501
      %v4503 = vperm.slane %v4497, %v4502
      %v4505 = vunpack.c.l.s4 1934713408
      %v4506 = vunpack.c.0.s8 %v4505
      %v4507 = vperm.slane %v4499, %v4506
      %v4508 = vrot.slane %v4479, 4
      %v4509 = vsel %vm309, %v4508, %v4467
      %v4510 = vrot.slane %v4467, 4
      %v4511 = vsel %vm309, %v4479, %v4510
      %v4513 = vunpack.c.l.s4 1934713408
      %v4514 = vunpack.c.0.s8 %v4513
      %v4515 = vperm.slane %v4509, %v4514
      %v4517 = vunpack.c.l.s4 1934713408
      %v4518 = vunpack.c.0.s8 %v4517
      %v4519 = vperm.slane %v4511, %v4518
      %v4520 = vrot.slane %v4483, 4
      %v4521 = vsel %vm309, %v4520, %v4471
      %v4522 = vrot.slane %v4471, 4
      %v4523 = vsel %vm309, %v4483, %v4522
      %v4525 = vunpack.c.l.s4 1934713408
      %v4526 = vunpack.c.0.s8 %v4525
      %v4527 = vperm.slane %v4521, %v4526
      %v4529 = vunpack.c.l.s4 1934713408
      %v4530 = vunpack.c.0.s8 %v4529
      %v4531 = vperm.slane %v4523, %v4530
      %v4532 = vrot.slane %v4515, 4
      %v4533 = vsel %vm309, %v4532, %v4491
      %v4534 = vrot.slane %v4491, 4
      %v4535 = vsel %vm309, %v4515, %v4534
      %v4536 = vrot.slane %v4519, 4
      %v4537 = vsel %vm309, %v4536, %v4495
      %v4538 = vrot.slane %v4495, 4
      %v4539 = vsel %vm309, %v4519, %v4538
      %v4540 = vrot.slane %v4527, 4
      %v4541 = vsel %vm309, %v4540, %v4503
      %v4542 = vrot.slane %v4503, 4
      %v4543 = vsel %vm309, %v4527, %v4542
      %v4544 = vrot.slane %v4531, 4
      %v4545 = vsel %vm309, %v4544, %v4507
      %v4546 = vrot.slane %v4507, 4
      %v4547 = vsel %vm309, %v4531, %v4546
      %4549 = vrot.lane.b32.xlu0 %v4423, 16
      %v4550 = vpop.permute.xlu0 %4549
      %4553 = vrot.lane.b32.xlu0 %v4425, 32
      %v4554 = vpop.permute.xlu0 %4553
      %4557 = vrot.lane.b32.xlu0 %v4427, 48
      %v4558 = vpop.permute.xlu0 %4557
      %4561 = vrot.lane.b32.xlu0 %v4429, 64
      %v4562 = vpop.permute.xlu0 %4561
      %4565 = vrot.lane.b32.xlu0 %v4431, 80
      %v4566 = vpop.permute.xlu0 %4565
      %4569 = vrot.lane.b32.xlu0 %v4433, 96
      %v4570 = vpop.permute.xlu0 %4569
      %4573 = vrot.lane.b32.xlu0 %v4435, 112
      %v4574 = vpop.permute.xlu0 %4573
      %4577 = vrot.lane.b32.xlu0 %v4535, 16
      %v4578 = vpop.permute.xlu0 %4577
      %4581 = vrot.lane.b32.xlu0 %v4537, 32
      %v4582 = vpop.permute.xlu0 %4581
      %4585 = vrot.lane.b32.xlu0 %v4539, 48
      %v4586 = vpop.permute.xlu0 %4585
      %4589 = vrot.lane.b32.xlu0 %v4541, 64
      %v4590 = vpop.permute.xlu0 %4589
      %4593 = vrot.lane.b32.xlu0 %v4543, 80
      %v4594 = vpop.permute.xlu0 %4593
      %4597 = vrot.lane.b32.xlu0 %v4545, 96
      %v4598 = vpop.permute.xlu0 %4597
      %4601 = vrot.lane.b32.xlu0 %v4547, 112
      %v4602 = vpop.permute.xlu0 %4601
      %v4604 = vsel %vm589, %v4421, %v4550
      %v4605 = vsel %vm591, %v4604, %v4554
      %v4606 = vsel %vm593, %v4605, %v4558
      %v4607 = vsel %vm595, %v4606, %v4562
      %v4608 = vsel %vm597, %v4607, %v4566
      %v4609 = vsel %vm599, %v4608, %v4570
      %v4610 = vsel %vm601, %v4609, %v4574
      %v4611 = vsel %vm589, %v4533, %v4578
      %v4612 = vsel %vm591, %v4611, %v4582
      %v4613 = vsel %vm593, %v4612, %v4586
      %v4614 = vsel %vm595, %v4613, %v4590
      %v4615 = vsel %vm597, %v4614, %v4594
      %v4616 = vsel %vm599, %v4615, %v4598
      %v4617 = vsel %vm601, %v4616, %v4602
      %4618 = vst [vmem:[#allocation3 + $0xb0] sm:$0xff] %v4610
      %4619 = vst [vmem:[#allocation3 + $0xb8] sm:$0xff] %v4617
      %v4620 = vld [vmem:[#allocation2 + $0x2] sm:$0xff]
      %v4621 = vld [vmem:[#allocation2 + $0xa] sm:$0xff]
      %v4622 = vld [vmem:[#allocation2 + $0x1a] sm:$0xff]
      %v4623 = vld [vmem:[#allocation2 + $0x22] sm:$0xff]
      %v4624 = vld [vmem:[#allocation2 + $0x32] sm:$0xff]
      %v4625 = vld [vmem:[#allocation2 + $0x3a] sm:$0xff]
      %v4626 = vld [vmem:[#allocation2 + $0x4a] sm:$0xff]
      %v4627 = vld [vmem:[#allocation2 + $0x52] sm:$0xff]
      %v4628 = vld [vmem:[#allocation2 + $0x62] sm:$0xff]
      %v4629 = vld [vmem:[#allocation2 + $0x6a] sm:$0xff]
      %v4630 = vld [vmem:[#allocation2 + $0x7a] sm:$0xff]
      %v4631 = vld [vmem:[#allocation2 + $0x82] sm:$0xff]
      %v4632 = vld [vmem:[#allocation2 + $0x92] sm:$0xff]
      %v4633 = vld [vmem:[#allocation2 + $0x9a] sm:$0xff]
      %v4634 = vld [vmem:[#allocation2 + $0xaa] sm:$0xff]
      %v4635 = vld [vmem:[#allocation2 + $0xb2] sm:$0xff]
      %4652 = vrot.lane.b32.xlu0 %v4620, 126
      %v4653 = vpop.permute.xlu0 %4652
      %4654 = vrot.lane.b32.xlu0 %v4621, 126
      %v4655 = vpop.permute.xlu0 %4654
      %4656 = vrot.lane.b32.xlu0 %v4622, 126
      %v4657 = vpop.permute.xlu0 %4656
      %4658 = vrot.lane.b32.xlu0 %v4623, 126
      %v4659 = vpop.permute.xlu0 %4658
      %4660 = vrot.lane.b32.xlu0 %v4624, 126
      %v4661 = vpop.permute.xlu0 %4660
      %4662 = vrot.lane.b32.xlu0 %v4625, 126
      %v4663 = vpop.permute.xlu0 %4662
      %4664 = vrot.lane.b32.xlu0 %v4626, 126
      %v4665 = vpop.permute.xlu0 %4664
      %4666 = vrot.lane.b32.xlu0 %v4627, 126
      %v4667 = vpop.permute.xlu0 %4666
      %4668 = vrot.lane.b32.xlu0 %v4628, 126
      %v4669 = vpop.permute.xlu0 %4668
      %4670 = vrot.lane.b32.xlu0 %v4629, 126
      %v4671 = vpop.permute.xlu0 %4670
      %4672 = vrot.lane.b32.xlu0 %v4630, 126
      %v4673 = vpop.permute.xlu0 %4672
      %4674 = vrot.lane.b32.xlu0 %v4631, 126
      %v4675 = vpop.permute.xlu0 %4674
      %4676 = vrot.lane.b32.xlu0 %v4632, 126
      %v4677 = vpop.permute.xlu0 %4676
      %4678 = vrot.lane.b32.xlu0 %v4633, 126
      %v4679 = vpop.permute.xlu0 %4678
      %4680 = vrot.lane.b32.xlu0 %v4634, 126
      %v4681 = vpop.permute.xlu0 %4680
      %4682 = vrot.lane.b32.xlu0 %v4635, 126
      %v4683 = vpop.permute.xlu0 %4682
      %v4700 = vrot.slane %v4661, 4
      %v4701 = vsel %vm309, %v4700, %v4653
      %v4702 = vrot.slane %v4653, 4
      %v4703 = vsel %vm309, %v4661, %v4702
      %v4705 = vunpack.c.l.s4 1983009808
      %v4706 = vunpack.c.0.s8 %v4705
      %v4707 = vperm.slane %v4701, %v4706
      %v4709 = vunpack.c.l.s4 1983009808
      %v4710 = vunpack.c.0.s8 %v4709
      %v4711 = vperm.slane %v4703, %v4710
      %v4712 = vrot.slane %v4665, 4
      %v4713 = vsel %vm309, %v4712, %v4657
      %v4714 = vrot.slane %v4657, 4
      %v4715 = vsel %vm309, %v4665, %v4714
      %v4717 = vunpack.c.l.s4 1983009808
      %v4718 = vunpack.c.0.s8 %v4717
      %v4719 = vperm.slane %v4713, %v4718
      %v4721 = vunpack.c.l.s4 1983009808
      %v4722 = vunpack.c.0.s8 %v4721
      %v4723 = vperm.slane %v4715, %v4722
      %v4724 = vrot.slane %v4677, 4
      %v4725 = vsel %vm309, %v4724, %v4669
      %v4726 = vrot.slane %v4669, 4
      %v4727 = vsel %vm309, %v4677, %v4726
      %v4729 = vunpack.c.l.s4 1983009808
      %v4730 = vunpack.c.0.s8 %v4729
      %v4731 = vperm.slane %v4725, %v4730
      %v4733 = vunpack.c.l.s4 1983009808
      %v4734 = vunpack.c.0.s8 %v4733
      %v4735 = vperm.slane %v4727, %v4734
      %v4736 = vrot.slane %v4681, 4
      %v4737 = vsel %vm309, %v4736, %v4673
      %v4738 = vrot.slane %v4673, 4
      %v4739 = vsel %vm309, %v4681, %v4738
      %v4741 = vunpack.c.l.s4 1983009808
      %v4742 = vunpack.c.0.s8 %v4741
      %v4743 = vperm.slane %v4737, %v4742
      %v4745 = vunpack.c.l.s4 1983009808
      %v4746 = vunpack.c.0.s8 %v4745
      %v4747 = vperm.slane %v4739, %v4746
      %v4748 = vrot.slane %v4719, 4
      %v4749 = vsel %vm309, %v4748, %v4707
      %v4750 = vrot.slane %v4707, 4
      %v4751 = vsel %vm309, %v4719, %v4750
      %v4753 = vunpack.c.l.s4 1934713408
      %v4754 = vunpack.c.0.s8 %v4753
      %v4755 = vperm.slane %v4749, %v4754
      %v4757 = vunpack.c.l.s4 1934713408
      %v4758 = vunpack.c.0.s8 %v4757
      %v4759 = vperm.slane %v4751, %v4758
      %v4760 = vrot.slane %v4723, 4
      %v4761 = vsel %vm309, %v4760, %v4711
      %v4762 = vrot.slane %v4711, 4
      %v4763 = vsel %vm309, %v4723, %v4762
      %v4765 = vunpack.c.l.s4 1934713408
      %v4766 = vunpack.c.0.s8 %v4765
      %v4767 = vperm.slane %v4761, %v4766
      %v4769 = vunpack.c.l.s4 1934713408
      %v4770 = vunpack.c.0.s8 %v4769
      %v4771 = vperm.slane %v4763, %v4770
      %v4772 = vrot.slane %v4743, 4
      %v4773 = vsel %vm309, %v4772, %v4731
      %v4774 = vrot.slane %v4731, 4
      %v4775 = vsel %vm309, %v4743, %v4774
      %v4777 = vunpack.c.l.s4 1934713408
      %v4778 = vunpack.c.0.s8 %v4777
      %v4779 = vperm.slane %v4773, %v4778
      %v4781 = vunpack.c.l.s4 1934713408
      %v4782 = vunpack.c.0.s8 %v4781
      %v4783 = vperm.slane %v4775, %v4782
      %v4784 = vrot.slane %v4747, 4
      %v4785 = vsel %vm309, %v4784, %v4735
      %v4786 = vrot.slane %v4735, 4
      %v4787 = vsel %vm309, %v4747, %v4786
      %v4789 = vunpack.c.l.s4 1934713408
      %v4790 = vunpack.c.0.s8 %v4789
      %v4791 = vperm.slane %v4785, %v4790
      %v4793 = vunpack.c.l.s4 1934713408
      %v4794 = vunpack.c.0.s8 %v4793
      %v4795 = vperm.slane %v4787, %v4794
      %v4796 = vrot.slane %v4779, 4
      %v4797 = vsel %vm309, %v4796, %v4755
      %v4798 = vrot.slane %v4755, 4
      %v4799 = vsel %vm309, %v4779, %v4798
      %v4800 = vrot.slane %v4783, 4
      %v4801 = vsel %vm309, %v4800, %v4759
      %v4802 = vrot.slane %v4759, 4
      %v4803 = vsel %vm309, %v4783, %v4802
      %v4804 = vrot.slane %v4791, 4
      %v4805 = vsel %vm309, %v4804, %v4767
      %v4806 = vrot.slane %v4767, 4
      %v4807 = vsel %vm309, %v4791, %v4806
      %v4808 = vrot.slane %v4795, 4
      %v4809 = vsel %vm309, %v4808, %v4771
      %v4810 = vrot.slane %v4771, 4
      %v4811 = vsel %vm309, %v4795, %v4810
      %v4812 = vrot.slane %v4663, 4
      %v4813 = vsel %vm309, %v4812, %v4655
      %v4814 = vrot.slane %v4655, 4
      %v4815 = vsel %vm309, %v4663, %v4814
      %v4817 = vunpack.c.l.s4 1983009808
      %v4818 = vunpack.c.0.s8 %v4817
      %v4819 = vperm.slane %v4813, %v4818
      %v4821 = vunpack.c.l.s4 1983009808
      %v4822 = vunpack.c.0.s8 %v4821
      %v4823 = vperm.slane %v4815, %v4822
      %v4824 = vrot.slane %v4667, 4
      %v4825 = vsel %vm309, %v4824, %v4659
      %v4826 = vrot.slane %v4659, 4
      %v4827 = vsel %vm309, %v4667, %v4826
      %v4829 = vunpack.c.l.s4 1983009808
      %v4830 = vunpack.c.0.s8 %v4829
      %v4831 = vperm.slane %v4825, %v4830
      %v4833 = vunpack.c.l.s4 1983009808
      %v4834 = vunpack.c.0.s8 %v4833
      %v4835 = vperm.slane %v4827, %v4834
      %v4836 = vrot.slane %v4679, 4
      %v4837 = vsel %vm309, %v4836, %v4671
      %v4838 = vrot.slane %v4671, 4
      %v4839 = vsel %vm309, %v4679, %v4838
      %v4841 = vunpack.c.l.s4 1983009808
      %v4842 = vunpack.c.0.s8 %v4841
      %v4843 = vperm.slane %v4837, %v4842
      %v4845 = vunpack.c.l.s4 1983009808
      %v4846 = vunpack.c.0.s8 %v4845
      %v4847 = vperm.slane %v4839, %v4846
      %v4848 = vrot.slane %v4683, 4
      %v4849 = vsel %vm309, %v4848, %v4675
      %v4850 = vrot.slane %v4675, 4
      %v4851 = vsel %vm309, %v4683, %v4850
      %v4853 = vunpack.c.l.s4 1983009808
      %v4854 = vunpack.c.0.s8 %v4853
      %v4855 = vperm.slane %v4849, %v4854
      %v4857 = vunpack.c.l.s4 1983009808
      %v4858 = vunpack.c.0.s8 %v4857
      %v4859 = vperm.slane %v4851, %v4858
      %v4860 = vrot.slane %v4831, 4
      %v4861 = vsel %vm309, %v4860, %v4819
      %v4862 = vrot.slane %v4819, 4
      %v4863 = vsel %vm309, %v4831, %v4862
      %v4865 = vunpack.c.l.s4 1934713408
      %v4866 = vunpack.c.0.s8 %v4865
      %v4867 = vperm.slane %v4861, %v4866
      %v4869 = vunpack.c.l.s4 1934713408
      %v4870 = vunpack.c.0.s8 %v4869
      %v4871 = vperm.slane %v4863, %v4870
      %v4872 = vrot.slane %v4835, 4
      %v4873 = vsel %vm309, %v4872, %v4823
      %v4874 = vrot.slane %v4823, 4
      %v4875 = vsel %vm309, %v4835, %v4874
      %v4877 = vunpack.c.l.s4 1934713408
      %v4878 = vunpack.c.0.s8 %v4877
      %v4879 = vperm.slane %v4873, %v4878
      %v4881 = vunpack.c.l.s4 1934713408
      %v4882 = vunpack.c.0.s8 %v4881
      %v4883 = vperm.slane %v4875, %v4882
      %v4884 = vrot.slane %v4855, 4
      %v4885 = vsel %vm309, %v4884, %v4843
      %v4886 = vrot.slane %v4843, 4
      %v4887 = vsel %vm309, %v4855, %v4886
      %v4889 = vunpack.c.l.s4 1934713408
      %v4890 = vunpack.c.0.s8 %v4889
      %v4891 = vperm.slane %v4885, %v4890
      %v4893 = vunpack.c.l.s4 1934713408
      %v4894 = vunpack.c.0.s8 %v4893
      %v4895 = vperm.slane %v4887, %v4894
      %v4896 = vrot.slane %v4859, 4
      %v4897 = vsel %vm309, %v4896, %v4847
      %v4898 = vrot.slane %v4847, 4
      %v4899 = vsel %vm309, %v4859, %v4898
      %v4901 = vunpack.c.l.s4 1934713408
      %v4902 = vunpack.c.0.s8 %v4901
      %v4903 = vperm.slane %v4897, %v4902
      %v4905 = vunpack.c.l.s4 1934713408
      %v4906 = vunpack.c.0.s8 %v4905
      %v4907 = vperm.slane %v4899, %v4906
      %v4908 = vrot.slane %v4891, 4
      %v4909 = vsel %vm309, %v4908, %v4867
      %v4910 = vrot.slane %v4867, 4
      %v4911 = vsel %vm309, %v4891, %v4910
      %v4912 = vrot.slane %v4895, 4
      %v4913 = vsel %vm309, %v4912, %v4871
      %v4914 = vrot.slane %v4871, 4
      %v4915 = vsel %vm309, %v4895, %v4914
      %v4916 = vrot.slane %v4903, 4
      %v4917 = vsel %vm309, %v4916, %v4879
      %v4918 = vrot.slane %v4879, 4
      %v4919 = vsel %vm309, %v4903, %v4918
      %v4920 = vrot.slane %v4907, 4
      %v4921 = vsel %vm309, %v4920, %v4883
      %v4922 = vrot.slane %v4883, 4
      %v4923 = vsel %vm309, %v4907, %v4922
      %4925 = vrot.lane.b32.xlu0 %v4799, 16
      %v4926 = vpop.permute.xlu0 %4925
      %4929 = vrot.lane.b32.xlu0 %v4801, 32
      %v4930 = vpop.permute.xlu0 %4929
      %4933 = vrot.lane.b32.xlu0 %v4803, 48
      %v4934 = vpop.permute.xlu0 %4933
      %4937 = vrot.lane.b32.xlu0 %v4805, 64
      %v4938 = vpop.permute.xlu0 %4937
      %4941 = vrot.lane.b32.xlu0 %v4807, 80
      %v4942 = vpop.permute.xlu0 %4941
      %4945 = vrot.lane.b32.xlu0 %v4809, 96
      %v4946 = vpop.permute.xlu0 %4945
      %4949 = vrot.lane.b32.xlu0 %v4811, 112
      %v4950 = vpop.permute.xlu0 %4949
      %4953 = vrot.lane.b32.xlu0 %v4911, 16
      %v4954 = vpop.permute.xlu0 %4953
      %4957 = vrot.lane.b32.xlu0 %v4913, 32
      %v4958 = vpop.permute.xlu0 %4957
      %4961 = vrot.lane.b32.xlu0 %v4915, 48
      %v4962 = vpop.permute.xlu0 %4961
      %4965 = vrot.lane.b32.xlu0 %v4917, 64
      %v4966 = vpop.permute.xlu0 %4965
      %4969 = vrot.lane.b32.xlu0 %v4919, 80
      %v4970 = vpop.permute.xlu0 %4969
      %4973 = vrot.lane.b32.xlu0 %v4921, 96
      %v4974 = vpop.permute.xlu0 %4973
      %4977 = vrot.lane.b32.xlu0 %v4923, 112
      %v4978 = vpop.permute.xlu0 %4977
      %v4980 = vsel %vm589, %v4797, %v4926
      %v4981 = vsel %vm591, %v4980, %v4930
      %v4982 = vsel %vm593, %v4981, %v4934
      %v4983 = vsel %vm595, %v4982, %v4938
      %v4984 = vsel %vm597, %v4983, %v4942
      %v4985 = vsel %vm599, %v4984, %v4946
      %v4986 = vsel %vm601, %v4985, %v4950
      %v4987 = vsel %vm589, %v4909, %v4954
      %v4988 = vsel %vm591, %v4987, %v4958
      %v4989 = vsel %vm593, %v4988, %v4962
      %v4990 = vsel %vm595, %v4989, %v4966
      %v4991 = vsel %vm597, %v4990, %v4970
      %v4992 = vsel %vm599, %v4991, %v4974
      %v4993 = vsel %vm601, %v4992, %v4978
      %4994 = vst [vmem:[#allocation3 + $0xc0] sm:$0xff] %v4986
      %4995 = vst [vmem:[#allocation3 + $0xc8] sm:$0xff] %v4993
      %v4996 = vld [vmem:[#allocation2 + $0x2] sm:$0xff]
      %v4997 = vld [vmem:[#allocation2 + $0xa] sm:$0xff]
      %v4998 = vld [vmem:[#allocation2 + $0x1a] sm:$0xff]
      %v4999 = vld [vmem:[#allocation2 + $0x22] sm:$0xff]
      %v5000 = vld [vmem:[#allocation2 + $0x32] sm:$0xff]
      %v5001 = vld [vmem:[#allocation2 + $0x3a] sm:$0xff]
      %v5002 = vld [vmem:[#allocation2 + $0x4a] sm:$0xff]
      %v5003 = vld [vmem:[#allocation2 + $0x52] sm:$0xff]
      %v5004 = vld [vmem:[#allocation2 + $0x62] sm:$0xff]
      %v5005 = vld [vmem:[#allocation2 + $0x6a] sm:$0xff]
      %v5006 = vld [vmem:[#allocation2 + $0x7a] sm:$0xff]
      %v5007 = vld [vmem:[#allocation2 + $0x82] sm:$0xff]
      %v5008 = vld [vmem:[#allocation2 + $0x92] sm:$0xff]
      %v5009 = vld [vmem:[#allocation2 + $0x9a] sm:$0xff]
      %v5010 = vld [vmem:[#allocation2 + $0xaa] sm:$0xff]
      %v5011 = vld [vmem:[#allocation2 + $0xb2] sm:$0xff]
      %5028 = vrot.lane.b32.xlu0 %v4996, 125
      %v5029 = vpop.permute.xlu0 %5028
      %5030 = vrot.lane.b32.xlu0 %v4997, 125
      %v5031 = vpop.permute.xlu0 %5030
      %5032 = vrot.lane.b32.xlu0 %v4998, 125
      %v5033 = vpop.permute.xlu0 %5032
      %5034 = vrot.lane.b32.xlu0 %v4999, 125
      %v5035 = vpop.permute.xlu0 %5034
      %5036 = vrot.lane.b32.xlu0 %v5000, 125
      %v5037 = vpop.permute.xlu0 %5036
      %5038 = vrot.lane.b32.xlu0 %v5001, 125
      %v5039 = vpop.permute.xlu0 %5038
      %5040 = vrot.lane.b32.xlu0 %v5002, 125
      %v5041 = vpop.permute.xlu0 %5040
      %5042 = vrot.lane.b32.xlu0 %v5003, 125
      %v5043 = vpop.permute.xlu0 %5042
      %5044 = vrot.lane.b32.xlu0 %v5004, 125
      %v5045 = vpop.permute.xlu0 %5044
      %5046 = vrot.lane.b32.xlu0 %v5005, 125
      %v5047 = vpop.permute.xlu0 %5046
      %5048 = vrot.lane.b32.xlu0 %v5006, 125
      %v5049 = vpop.permute.xlu0 %5048
      %5050 = vrot.lane.b32.xlu0 %v5007, 125
      %v5051 = vpop.permute.xlu0 %5050
      %5052 = vrot.lane.b32.xlu0 %v5008, 125
      %v5053 = vpop.permute.xlu0 %5052
      %5054 = vrot.lane.b32.xlu0 %v5009, 125
      %v5055 = vpop.permute.xlu0 %5054
      %5056 = vrot.lane.b32.xlu0 %v5010, 125
      %v5057 = vpop.permute.xlu0 %5056
      %5058 = vrot.lane.b32.xlu0 %v5011, 125
      %v5059 = vpop.permute.xlu0 %5058
      %v5076 = vrot.slane %v5037, 4
      %v5077 = vsel %vm309, %v5076, %v5029
      %v5078 = vrot.slane %v5029, 4
      %v5079 = vsel %vm309, %v5037, %v5078
      %v5081 = vunpack.c.l.s4 1983009808
      %v5082 = vunpack.c.0.s8 %v5081
      %v5083 = vperm.slane %v5077, %v5082
      %v5085 = vunpack.c.l.s4 1983009808
      %v5086 = vunpack.c.0.s8 %v5085
      %v5087 = vperm.slane %v5079, %v5086
      %v5088 = vrot.slane %v5041, 4
      %v5089 = vsel %vm309, %v5088, %v5033
      %v5090 = vrot.slane %v5033, 4
      %v5091 = vsel %vm309, %v5041, %v5090
      %v5093 = vunpack.c.l.s4 1983009808
      %v5094 = vunpack.c.0.s8 %v5093
      %v5095 = vperm.slane %v5089, %v5094
      %v5097 = vunpack.c.l.s4 1983009808
      %v5098 = vunpack.c.0.s8 %v5097
      %v5099 = vperm.slane %v5091, %v5098
      %v5100 = vrot.slane %v5053, 4
      %v5101 = vsel %vm309, %v5100, %v5045
      %v5102 = vrot.slane %v5045, 4
      %v5103 = vsel %vm309, %v5053, %v5102
      %v5105 = vunpack.c.l.s4 1983009808
      %v5106 = vunpack.c.0.s8 %v5105
      %v5107 = vperm.slane %v5101, %v5106
      %v5109 = vunpack.c.l.s4 1983009808
      %v5110 = vunpack.c.0.s8 %v5109
      %v5111 = vperm.slane %v5103, %v5110
      %v5112 = vrot.slane %v5057, 4
      %v5113 = vsel %vm309, %v5112, %v5049
      %v5114 = vrot.slane %v5049, 4
      %v5115 = vsel %vm309, %v5057, %v5114
      %v5117 = vunpack.c.l.s4 1983009808
      %v5118 = vunpack.c.0.s8 %v5117
      %v5119 = vperm.slane %v5113, %v5118
      %v5121 = vunpack.c.l.s4 1983009808
      %v5122 = vunpack.c.0.s8 %v5121
      %v5123 = vperm.slane %v5115, %v5122
      %v5124 = vrot.slane %v5095, 4
      %v5125 = vsel %vm309, %v5124, %v5083
      %v5126 = vrot.slane %v5083, 4
      %v5127 = vsel %vm309, %v5095, %v5126
      %v5129 = vunpack.c.l.s4 1934713408
      %v5130 = vunpack.c.0.s8 %v5129
      %v5131 = vperm.slane %v5125, %v5130
      %v5133 = vunpack.c.l.s4 1934713408
      %v5134 = vunpack.c.0.s8 %v5133
      %v5135 = vperm.slane %v5127, %v5134
      %v5136 = vrot.slane %v5099, 4
      %v5137 = vsel %vm309, %v5136, %v5087
      %v5138 = vrot.slane %v5087, 4
      %v5139 = vsel %vm309, %v5099, %v5138
      %v5141 = vunpack.c.l.s4 1934713408
      %v5142 = vunpack.c.0.s8 %v5141
      %v5143 = vperm.slane %v5137, %v5142
      %v5145 = vunpack.c.l.s4 1934713408
      %v5146 = vunpack.c.0.s8 %v5145
      %v5147 = vperm.slane %v5139, %v5146
      %v5148 = vrot.slane %v5119, 4
      %v5149 = vsel %vm309, %v5148, %v5107
      %v5150 = vrot.slane %v5107, 4
      %v5151 = vsel %vm309, %v5119, %v5150
      %v5153 = vunpack.c.l.s4 1934713408
      %v5154 = vunpack.c.0.s8 %v5153
      %v5155 = vperm.slane %v5149, %v5154
      %v5157 = vunpack.c.l.s4 1934713408
      %v5158 = vunpack.c.0.s8 %v5157
      %v5159 = vperm.slane %v5151, %v5158
      %v5160 = vrot.slane %v5123, 4
      %v5161 = vsel %vm309, %v5160, %v5111
      %v5162 = vrot.slane %v5111, 4
      %v5163 = vsel %vm309, %v5123, %v5162
      %v5165 = vunpack.c.l.s4 1934713408
      %v5166 = vunpack.c.0.s8 %v5165
      %v5167 = vperm.slane %v5161, %v5166
      %v5169 = vunpack.c.l.s4 1934713408
      %v5170 = vunpack.c.0.s8 %v5169
      %v5171 = vperm.slane %v5163, %v5170
      %v5172 = vrot.slane %v5155, 4
      %v5173 = vsel %vm309, %v5172, %v5131
      %v5174 = vrot.slane %v5131, 4
      %v5175 = vsel %vm309, %v5155, %v5174
      %v5176 = vrot.slane %v5159, 4
      %v5177 = vsel %vm309, %v5176, %v5135
      %v5178 = vrot.slane %v5135, 4
      %v5179 = vsel %vm309, %v5159, %v5178
      %v5180 = vrot.slane %v5167, 4
      %v5181 = vsel %vm309, %v5180, %v5143
      %v5182 = vrot.slane %v5143, 4
      %v5183 = vsel %vm309, %v5167, %v5182
      %v5184 = vrot.slane %v5171, 4
      %v5185 = vsel %vm309, %v5184, %v5147
      %v5186 = vrot.slane %v5147, 4
      %v5187 = vsel %vm309, %v5171, %v5186
      %v5188 = vrot.slane %v5039, 4
      %v5189 = vsel %vm309, %v5188, %v5031
      %v5190 = vrot.slane %v5031, 4
      %v5191 = vsel %vm309, %v5039, %v5190
      %v5193 = vunpack.c.l.s4 1983009808
      %v5194 = vunpack.c.0.s8 %v5193
      %v5195 = vperm.slane %v5189, %v5194
      %v5197 = vunpack.c.l.s4 1983009808
      %v5198 = vunpack.c.0.s8 %v5197
      %v5199 = vperm.slane %v5191, %v5198
      %v5200 = vrot.slane %v5043, 4
      %v5201 = vsel %vm309, %v5200, %v5035
      %v5202 = vrot.slane %v5035, 4
      %v5203 = vsel %vm309, %v5043, %v5202
      %v5205 = vunpack.c.l.s4 1983009808
      %v5206 = vunpack.c.0.s8 %v5205
      %v5207 = vperm.slane %v5201, %v5206
      %v5209 = vunpack.c.l.s4 1983009808
      %v5210 = vunpack.c.0.s8 %v5209
      %v5211 = vperm.slane %v5203, %v5210
      %v5212 = vrot.slane %v5055, 4
      %v5213 = vsel %vm309, %v5212, %v5047
      %v5214 = vrot.slane %v5047, 4
      %v5215 = vsel %vm309, %v5055, %v5214
      %v5217 = vunpack.c.l.s4 1983009808
      %v5218 = vunpack.c.0.s8 %v5217
      %v5219 = vperm.slane %v5213, %v5218
      %v5221 = vunpack.c.l.s4 1983009808
      %v5222 = vunpack.c.0.s8 %v5221
      %v5223 = vperm.slane %v5215, %v5222
      %v5224 = vrot.slane %v5059, 4
      %v5225 = vsel %vm309, %v5224, %v5051
      %v5226 = vrot.slane %v5051, 4
      %v5227 = vsel %vm309, %v5059, %v5226
      %v5229 = vunpack.c.l.s4 1983009808
      %v5230 = vunpack.c.0.s8 %v5229
      %v5231 = vperm.slane %v5225, %v5230
      %v5233 = vunpack.c.l.s4 1983009808
      %v5234 = vunpack.c.0.s8 %v5233
      %v5235 = vperm.slane %v5227, %v5234
      %v5236 = vrot.slane %v5207, 4
      %v5237 = vsel %vm309, %v5236, %v5195
      %v5238 = vrot.slane %v5195, 4
      %v5239 = vsel %vm309, %v5207, %v5238
      %v5241 = vunpack.c.l.s4 1934713408
      %v5242 = vunpack.c.0.s8 %v5241
      %v5243 = vperm.slane %v5237, %v5242
      %v5245 = vunpack.c.l.s4 1934713408
      %v5246 = vunpack.c.0.s8 %v5245
      %v5247 = vperm.slane %v5239, %v5246
      %v5248 = vrot.slane %v5211, 4
      %v5249 = vsel %vm309, %v5248, %v5199
      %v5250 = vrot.slane %v5199, 4
      %v5251 = vsel %vm309, %v5211, %v5250
      %v5253 = vunpack.c.l.s4 1934713408
      %v5254 = vunpack.c.0.s8 %v5253
      %v5255 = vperm.slane %v5249, %v5254
      %v5257 = vunpack.c.l.s4 1934713408
      %v5258 = vunpack.c.0.s8 %v5257
      %v5259 = vperm.slane %v5251, %v5258
      %v5260 = vrot.slane %v5231, 4
      %v5261 = vsel %vm309, %v5260, %v5219
      %v5262 = vrot.slane %v5219, 4
      %v5263 = vsel %vm309, %v5231, %v5262
      %v5265 = vunpack.c.l.s4 1934713408
      %v5266 = vunpack.c.0.s8 %v5265
      %v5267 = vperm.slane %v5261, %v5266
      %v5269 = vunpack.c.l.s4 1934713408
      %v5270 = vunpack.c.0.s8 %v5269
      %v5271 = vperm.slane %v5263, %v5270
      %v5272 = vrot.slane %v5235, 4
      %v5273 = vsel %vm309, %v5272, %v5223
      %v5274 = vrot.slane %v5223, 4
      %v5275 = vsel %vm309, %v5235, %v5274
      %v5277 = vunpack.c.l.s4 1934713408
      %v5278 = vunpack.c.0.s8 %v5277
      %v5279 = vperm.slane %v5273, %v5278
      %v5281 = vunpack.c.l.s4 1934713408
      %v5282 = vunpack.c.0.s8 %v5281
      %v5283 = vperm.slane %v5275, %v5282
      %v5284 = vrot.slane %v5267, 4
      %v5285 = vsel %vm309, %v5284, %v5243
      %v5286 = vrot.slane %v5243, 4
      %v5287 = vsel %vm309, %v5267, %v5286
      %v5288 = vrot.slane %v5271, 4
      %v5289 = vsel %vm309, %v5288, %v5247
      %v5290 = vrot.slane %v5247, 4
      %v5291 = vsel %vm309, %v5271, %v5290
      %v5292 = vrot.slane %v5279, 4
      %v5293 = vsel %vm309, %v5292, %v5255
      %v5294 = vrot.slane %v5255, 4
      %v5295 = vsel %vm309, %v5279, %v5294
      %v5296 = vrot.slane %v5283, 4
      %v5297 = vsel %vm309, %v5296, %v5259
      %v5298 = vrot.slane %v5259, 4
      %v5299 = vsel %vm309, %v5283, %v5298
      %5301 = vrot.lane.b32.xlu0 %v5175, 16
      %v5302 = vpop.permute.xlu0 %5301
      %5305 = vrot.lane.b32.xlu0 %v5177, 32
      %v5306 = vpop.permute.xlu0 %5305
      %5309 = vrot.lane.b32.xlu0 %v5179, 48
      %v5310 = vpop.permute.xlu0 %5309
      %5313 = vrot.lane.b32.xlu0 %v5181, 64
      %v5314 = vpop.permute.xlu0 %5313
      %5317 = vrot.lane.b32.xlu0 %v5183, 80
      %v5318 = vpop.permute.xlu0 %5317
      %5321 = vrot.lane.b32.xlu0 %v5185, 96
      %v5322 = vpop.permute.xlu0 %5321
      %5325 = vrot.lane.b32.xlu0 %v5187, 112
      %v5326 = vpop.permute.xlu0 %5325
      %5329 = vrot.lane.b32.xlu0 %v5287, 16
      %v5330 = vpop.permute.xlu0 %5329
      %5333 = vrot.lane.b32.xlu0 %v5289, 32
      %v5334 = vpop.permute.xlu0 %5333
      %5337 = vrot.lane.b32.xlu0 %v5291, 48
      %v5338 = vpop.permute.xlu0 %5337
      %5341 = vrot.lane.b32.xlu0 %v5293, 64
      %v5342 = vpop.permute.xlu0 %5341
      %5345 = vrot.lane.b32.xlu0 %v5295, 80
      %v5346 = vpop.permute.xlu0 %5345
      %5349 = vrot.lane.b32.xlu0 %v5297, 96
      %v5350 = vpop.permute.xlu0 %5349
      %5353 = vrot.lane.b32.xlu0 %v5299, 112
      %v5354 = vpop.permute.xlu0 %5353
      %v5356 = vsel %vm589, %v5173, %v5302
      %v5357 = vsel %vm591, %v5356, %v5306
      %v5358 = vsel %vm593, %v5357, %v5310
      %v5359 = vsel %vm595, %v5358, %v5314
      %v5360 = vsel %vm597, %v5359, %v5318
      %v5361 = vsel %vm599, %v5360, %v5322
      %v5362 = vsel %vm601, %v5361, %v5326
      %v5363 = vsel %vm589, %v5285, %v5330
      %v5364 = vsel %vm591, %v5363, %v5334
      %v5365 = vsel %vm593, %v5364, %v5338
      %v5366 = vsel %vm595, %v5365, %v5342
      %v5367 = vsel %vm597, %v5366, %v5346
      %v5368 = vsel %vm599, %v5367, %v5350
      %v5369 = vsel %vm601, %v5368, %v5354
      %5370 = vst [vmem:[#allocation3 + $0xd0] sm:$0xff] %v5362
      %5371 = vst [vmem:[#allocation3 + $0xd8] sm:$0xff] %v5369
      %v5372 = vld [vmem:[#allocation2 + $0x2] sm:$0xff]
      %v5373 = vld [vmem:[#allocation2 + $0xa] sm:$0xff]
      %v5374 = vld [vmem:[#allocation2 + $0x1a] sm:$0xff]
      %v5375 = vld [vmem:[#allocation2 + $0x22] sm:$0xff]
      %v5376 = vld [vmem:[#allocation2 + $0x32] sm:$0xff]
      %v5377 = vld [vmem:[#allocation2 + $0x3a] sm:$0xff]
      %v5378 = vld [vmem:[#allocation2 + $0x4a] sm:$0xff]
      %v5379 = vld [vmem:[#allocation2 + $0x52] sm:$0xff]
      %v5380 = vld [vmem:[#allocation2 + $0x62] sm:$0xff]
      %v5381 = vld [vmem:[#allocation2 + $0x6a] sm:$0xff]
      %v5382 = vld [vmem:[#allocation2 + $0x7a] sm:$0xff]
      %v5383 = vld [vmem:[#allocation2 + $0x82] sm:$0xff]
      %v5384 = vld [vmem:[#allocation2 + $0x92] sm:$0xff]
      %v5385 = vld [vmem:[#allocation2 + $0x9a] sm:$0xff]
      %v5386 = vld [vmem:[#allocation2 + $0xaa] sm:$0xff]
      %v5387 = vld [vmem:[#allocation2 + $0xb2] sm:$0xff]
      %5404 = vrot.lane.b32.xlu0 %v5372, 124
      %v5405 = vpop.permute.xlu0 %5404
      %5406 = vrot.lane.b32.xlu0 %v5373, 124
      %v5407 = vpop.permute.xlu0 %5406
      %5408 = vrot.lane.b32.xlu0 %v5374, 124
      %v5409 = vpop.permute.xlu0 %5408
      %5410 = vrot.lane.b32.xlu0 %v5375, 124
      %v5411 = vpop.permute.xlu0 %5410
      %5412 = vrot.lane.b32.xlu0 %v5376, 124
      %v5413 = vpop.permute.xlu0 %5412
      %5414 = vrot.lane.b32.xlu0 %v5377, 124
      %v5415 = vpop.permute.xlu0 %5414
      %5416 = vrot.lane.b32.xlu0 %v5378, 124
      %v5417 = vpop.permute.xlu0 %5416
      %5418 = vrot.lane.b32.xlu0 %v5379, 124
      %v5419 = vpop.permute.xlu0 %5418
      %5420 = vrot.lane.b32.xlu0 %v5380, 124
      %v5421 = vpop.permute.xlu0 %5420
      %5422 = vrot.lane.b32.xlu0 %v5381, 124
      %v5423 = vpop.permute.xlu0 %5422
      %5424 = vrot.lane.b32.xlu0 %v5382, 124
      %v5425 = vpop.permute.xlu0 %5424
      %5426 = vrot.lane.b32.xlu0 %v5383, 124
      %v5427 = vpop.permute.xlu0 %5426
      %5428 = vrot.lane.b32.xlu0 %v5384, 124
      %v5429 = vpop.permute.xlu0 %5428
      %5430 = vrot.lane.b32.xlu0 %v5385, 124
      %v5431 = vpop.permute.xlu0 %5430
      %5432 = vrot.lane.b32.xlu0 %v5386, 124
      %v5433 = vpop.permute.xlu0 %5432
      %5434 = vrot.lane.b32.xlu0 %v5387, 124
      %v5435 = vpop.permute.xlu0 %5434
      %v5452 = vrot.slane %v5413, 4
      %v5453 = vsel %vm309, %v5452, %v5405
      %v5454 = vrot.slane %v5405, 4
      %v5455 = vsel %vm309, %v5413, %v5454
      %v5457 = vunpack.c.l.s4 1983009808
      %v5458 = vunpack.c.0.s8 %v5457
      %v5459 = vperm.slane %v5453, %v5458
      %v5461 = vunpack.c.l.s4 1983009808
      %v5462 = vunpack.c.0.s8 %v5461
      %v5463 = vperm.slane %v5455, %v5462
      %v5464 = vrot.slane %v5417, 4
      %v5465 = vsel %vm309, %v5464, %v5409
      %v5466 = vrot.slane %v5409, 4
      %v5467 = vsel %vm309, %v5417, %v5466
      %v5469 = vunpack.c.l.s4 1983009808
      %v5470 = vunpack.c.0.s8 %v5469
      %v5471 = vperm.slane %v5465, %v5470
      %v5473 = vunpack.c.l.s4 1983009808
      %v5474 = vunpack.c.0.s8 %v5473
      %v5475 = vperm.slane %v5467, %v5474
      %v5476 = vrot.slane %v5429, 4
      %v5477 = vsel %vm309, %v5476, %v5421
      %v5478 = vrot.slane %v5421, 4
      %v5479 = vsel %vm309, %v5429, %v5478
      %v5481 = vunpack.c.l.s4 1983009808
      %v5482 = vunpack.c.0.s8 %v5481
      %v5483 = vperm.slane %v5477, %v5482
      %v5485 = vunpack.c.l.s4 1983009808
      %v5486 = vunpack.c.0.s8 %v5485
      %v5487 = vperm.slane %v5479, %v5486
      %v5488 = vrot.slane %v5433, 4
      %v5489 = vsel %vm309, %v5488, %v5425
      %v5490 = vrot.slane %v5425, 4
      %v5491 = vsel %vm309, %v5433, %v5490
      %v5493 = vunpack.c.l.s4 1983009808
      %v5494 = vunpack.c.0.s8 %v5493
      %v5495 = vperm.slane %v5489, %v5494
      %v5497 = vunpack.c.l.s4 1983009808
      %v5498 = vunpack.c.0.s8 %v5497
      %v5499 = vperm.slane %v5491, %v5498
      %v5500 = vrot.slane %v5471, 4
      %v5501 = vsel %vm309, %v5500, %v5459
      %v5502 = vrot.slane %v5459, 4
      %v5503 = vsel %vm309, %v5471, %v5502
      %v5505 = vunpack.c.l.s4 1934713408
      %v5506 = vunpack.c.0.s8 %v5505
      %v5507 = vperm.slane %v5501, %v5506
      %v5509 = vunpack.c.l.s4 1934713408
      %v5510 = vunpack.c.0.s8 %v5509
      %v5511 = vperm.slane %v5503, %v5510
      %v5512 = vrot.slane %v5475, 4
      %v5513 = vsel %vm309, %v5512, %v5463
      %v5514 = vrot.slane %v5463, 4
      %v5515 = vsel %vm309, %v5475, %v5514
      %v5517 = vunpack.c.l.s4 1934713408
      %v5518 = vunpack.c.0.s8 %v5517
      %v5519 = vperm.slane %v5513, %v5518
      %v5521 = vunpack.c.l.s4 1934713408
      %v5522 = vunpack.c.0.s8 %v5521
      %v5523 = vperm.slane %v5515, %v5522
      %v5524 = vrot.slane %v5495, 4
      %v5525 = vsel %vm309, %v5524, %v5483
      %v5526 = vrot.slane %v5483, 4
      %v5527 = vsel %vm309, %v5495, %v5526
      %v5529 = vunpack.c.l.s4 1934713408
      %v5530 = vunpack.c.0.s8 %v5529
      %v5531 = vperm.slane %v5525, %v5530
      %v5533 = vunpack.c.l.s4 1934713408
      %v5534 = vunpack.c.0.s8 %v5533
      %v5535 = vperm.slane %v5527, %v5534
      %v5536 = vrot.slane %v5499, 4
      %v5537 = vsel %vm309, %v5536, %v5487
      %v5538 = vrot.slane %v5487, 4
      %v5539 = vsel %vm309, %v5499, %v5538
      %v5541 = vunpack.c.l.s4 1934713408
      %v5542 = vunpack.c.0.s8 %v5541
      %v5543 = vperm.slane %v5537, %v5542
      %v5545 = vunpack.c.l.s4 1934713408
      %v5546 = vunpack.c.0.s8 %v5545
      %v5547 = vperm.slane %v5539, %v5546
      %v5548 = vrot.slane %v5531, 4
      %v5549 = vsel %vm309, %v5548, %v5507
      %v5550 = vrot.slane %v5507, 4
      %v5551 = vsel %vm309, %v5531, %v5550
      %v5552 = vrot.slane %v5535, 4
      %v5553 = vsel %vm309, %v5552, %v5511
      %v5554 = vrot.slane %v5511, 4
      %v5555 = vsel %vm309, %v5535, %v5554
      %v5556 = vrot.slane %v5543, 4
      %v5557 = vsel %vm309, %v5556, %v5519
      %v5558 = vrot.slane %v5519, 4
      %v5559 = vsel %vm309, %v5543, %v5558
      %v5560 = vrot.slane %v5547, 4
      %v5561 = vsel %vm309, %v5560, %v5523
      %v5562 = vrot.slane %v5523, 4
      %v5563 = vsel %vm309, %v5547, %v5562
      %v5564 = vrot.slane %v5415, 4
      %v5565 = vsel %vm309, %v5564, %v5407
      %v5566 = vrot.slane %v5407, 4
      %v5567 = vsel %vm309, %v5415, %v5566
      %v5569 = vunpack.c.l.s4 1983009808
      %v5570 = vunpack.c.0.s8 %v5569
      %v5571 = vperm.slane %v5565, %v5570
      %v5573 = vunpack.c.l.s4 1983009808
      %v5574 = vunpack.c.0.s8 %v5573
      %v5575 = vperm.slane %v5567, %v5574
      %v5576 = vrot.slane %v5419, 4
      %v5577 = vsel %vm309, %v5576, %v5411
      %v5578 = vrot.slane %v5411, 4
      %v5579 = vsel %vm309, %v5419, %v5578
      %v5581 = vunpack.c.l.s4 1983009808
      %v5582 = vunpack.c.0.s8 %v5581
      %v5583 = vperm.slane %v5577, %v5582
      %v5585 = vunpack.c.l.s4 1983009808
      %v5586 = vunpack.c.0.s8 %v5585
      %v5587 = vperm.slane %v5579, %v5586
      %v5588 = vrot.slane %v5431, 4
      %v5589 = vsel %vm309, %v5588, %v5423
      %v5590 = vrot.slane %v5423, 4
      %v5591 = vsel %vm309, %v5431, %v5590
      %v5593 = vunpack.c.l.s4 1983009808
      %v5594 = vunpack.c.0.s8 %v5593
      %v5595 = vperm.slane %v5589, %v5594
      %v5597 = vunpack.c.l.s4 1983009808
      %v5598 = vunpack.c.0.s8 %v5597
      %v5599 = vperm.slane %v5591, %v5598
      %v5600 = vrot.slane %v5435, 4
      %v5601 = vsel %vm309, %v5600, %v5427
      %v5602 = vrot.slane %v5427, 4
      %v5603 = vsel %vm309, %v5435, %v5602
      %v5605 = vunpack.c.l.s4 1983009808
      %v5606 = vunpack.c.0.s8 %v5605
      %v5607 = vperm.slane %v5601, %v5606
      %v5609 = vunpack.c.l.s4 1983009808
      %v5610 = vunpack.c.0.s8 %v5609
      %v5611 = vperm.slane %v5603, %v5610
      %v5612 = vrot.slane %v5583, 4
      %v5613 = vsel %vm309, %v5612, %v5571
      %v5614 = vrot.slane %v5571, 4
      %v5615 = vsel %vm309, %v5583, %v5614
      %v5617 = vunpack.c.l.s4 1934713408
      %v5618 = vunpack.c.0.s8 %v5617
      %v5619 = vperm.slane %v5613, %v5618
      %v5621 = vunpack.c.l.s4 1934713408
      %v5622 = vunpack.c.0.s8 %v5621
      %v5623 = vperm.slane %v5615, %v5622
      %v5624 = vrot.slane %v5587, 4
      %v5625 = vsel %vm309, %v5624, %v5575
      %v5626 = vrot.slane %v5575, 4
      %v5627 = vsel %vm309, %v5587, %v5626
      %v5629 = vunpack.c.l.s4 1934713408
      %v5630 = vunpack.c.0.s8 %v5629
      %v5631 = vperm.slane %v5625, %v5630
      %v5633 = vunpack.c.l.s4 1934713408
      %v5634 = vunpack.c.0.s8 %v5633
      %v5635 = vperm.slane %v5627, %v5634
      %v5636 = vrot.slane %v5607, 4
      %v5637 = vsel %vm309, %v5636, %v5595
      %v5638 = vrot.slane %v5595, 4
      %v5639 = vsel %vm309, %v5607, %v5638
      %v5641 = vunpack.c.l.s4 1934713408
      %v5642 = vunpack.c.0.s8 %v5641
      %v5643 = vperm.slane %v5637, %v5642
      %v5645 = vunpack.c.l.s4 1934713408
      %v5646 = vunpack.c.0.s8 %v5645
      %v5647 = vperm.slane %v5639, %v5646
      %v5648 = vrot.slane %v5611, 4
      %v5649 = vsel %vm309, %v5648, %v5599
      %v5650 = vrot.slane %v5599, 4
      %v5651 = vsel %vm309, %v5611, %v5650
      %v5653 = vunpack.c.l.s4 1934713408
      %v5654 = vunpack.c.0.s8 %v5653
      %v5655 = vperm.slane %v5649, %v5654
      %v5657 = vunpack.c.l.s4 1934713408
      %v5658 = vunpack.c.0.s8 %v5657
      %v5659 = vperm.slane %v5651, %v5658
      %v5660 = vrot.slane %v5643, 4
      %v5661 = vsel %vm309, %v5660, %v5619
      %v5662 = vrot.slane %v5619, 4
      %v5663 = vsel %vm309, %v5643, %v5662
      %v5664 = vrot.slane %v5647, 4
      %v5665 = vsel %vm309, %v5664, %v5623
      %v5666 = vrot.slane %v5623, 4
      %v5667 = vsel %vm309, %v5647, %v5666
      %v5668 = vrot.slane %v5655, 4
      %v5669 = vsel %vm309, %v5668, %v5631
      %v5670 = vrot.slane %v5631, 4
      %v5671 = vsel %vm309, %v5655, %v5670
      %v5672 = vrot.slane %v5659, 4
      %v5673 = vsel %vm309, %v5672, %v5635
      %v5674 = vrot.slane %v5635, 4
      %v5675 = vsel %vm309, %v5659, %v5674
      %5677 = vrot.lane.b32.xlu0 %v5551, 16
      %v5678 = vpop.permute.xlu0 %5677
      %5681 = vrot.lane.b32.xlu0 %v5553, 32
      %v5682 = vpop.permute.xlu0 %5681
      %5685 = vrot.lane.b32.xlu0 %v5555, 48
      %v5686 = vpop.permute.xlu0 %5685
      %5689 = vrot.lane.b32.xlu0 %v5557, 64
      %v5690 = vpop.permute.xlu0 %5689
      %5693 = vrot.lane.b32.xlu0 %v5559, 80
      %v5694 = vpop.permute.xlu0 %5693
      %5697 = vrot.lane.b32.xlu0 %v5561, 96
      %v5698 = vpop.permute.xlu0 %5697
      %5701 = vrot.lane.b32.xlu0 %v5563, 112
      %v5702 = vpop.permute.xlu0 %5701
      %5705 = vrot.lane.b32.xlu0 %v5663, 16
      %v5706 = vpop.permute.xlu0 %5705
      %5709 = vrot.lane.b32.xlu0 %v5665, 32
      %v5710 = vpop.permute.xlu0 %5709
      %5713 = vrot.lane.b32.xlu0 %v5667, 48
      %v5714 = vpop.permute.xlu0 %5713
      %5717 = vrot.lane.b32.xlu0 %v5669, 64
      %v5718 = vpop.permute.xlu0 %5717
      %5721 = vrot.lane.b32.xlu0 %v5671, 80
      %v5722 = vpop.permute.xlu0 %5721
      %5725 = vrot.lane.b32.xlu0 %v5673, 96
      %v5726 = vpop.permute.xlu0 %5725
      %5729 = vrot.lane.b32.xlu0 %v5675, 112
      %v5730 = vpop.permute.xlu0 %5729
      %v5732 = vsel %vm589, %v5549, %v5678
      %v5733 = vsel %vm591, %v5732, %v5682
      %v5734 = vsel %vm593, %v5733, %v5686
      %v5735 = vsel %vm595, %v5734, %v5690
      %v5736 = vsel %vm597, %v5735, %v5694
      %v5737 = vsel %vm599, %v5736, %v5698
      %v5738 = vsel %vm601, %v5737, %v5702
      %v5739 = vsel %vm589, %v5661, %v5706
      %v5740 = vsel %vm591, %v5739, %v5710
      %v5741 = vsel %vm593, %v5740, %v5714
      %v5742 = vsel %vm595, %v5741, %v5718
      %v5743 = vsel %vm597, %v5742, %v5722
      %v5744 = vsel %vm599, %v5743, %v5726
      %v5745 = vsel %vm601, %v5744, %v5730
      %5746 = vst [vmem:[#allocation3 + $0xe0] sm:$0xff] %v5738
      %5747 = vst [vmem:[#allocation3 + $0xe8] sm:$0xff] %v5745
      %v5748 = vld [vmem:[#allocation2 + $0x3] sm:$0xff]
      %v5749 = vld [vmem:[#allocation2 + $0xb] sm:$0xff]
      %v5750 = vld [vmem:[#allocation2 + $0x1b] sm:$0xff]
      %v5751 = vld [vmem:[#allocation2 + $0x23] sm:$0xff]
      %v5752 = vld [vmem:[#allocation2 + $0x33] sm:$0xff]
      %v5753 = vld [vmem:[#allocation2 + $0x3b] sm:$0xff]
      %v5754 = vld [vmem:[#allocation2 + $0x4b] sm:$0xff]
      %v5755 = vld [vmem:[#allocation2 + $0x53] sm:$0xff]
      %v5756 = vld [vmem:[#allocation2 + $0x63] sm:$0xff]
      %v5757 = vld [vmem:[#allocation2 + $0x6b] sm:$0xff]
      %v5758 = vld [vmem:[#allocation2 + $0x7b] sm:$0xff]
      %v5759 = vld [vmem:[#allocation2 + $0x83] sm:$0xff]
      %v5760 = vld [vmem:[#allocation2 + $0x93] sm:$0xff]
      %v5761 = vld [vmem:[#allocation2 + $0x9b] sm:$0xff]
      %v5762 = vld [vmem:[#allocation2 + $0xab] sm:$0xff]
      %v5763 = vld [vmem:[#allocation2 + $0xb3] sm:$0xff]
      %v5764 = vrot.slane %v5752, 4
      %v5765 = vsel %vm309, %v5764, %v5748
      %v5766 = vrot.slane %v5748, 4
      %v5767 = vsel %vm309, %v5752, %v5766
      %v5769 = vunpack.c.l.s4 1983009808
      %v5770 = vunpack.c.0.s8 %v5769
      %v5771 = vperm.slane %v5765, %v5770
      %v5773 = vunpack.c.l.s4 1983009808
      %v5774 = vunpack.c.0.s8 %v5773
      %v5775 = vperm.slane %v5767, %v5774
      %v5776 = vrot.slane %v5754, 4
      %v5777 = vsel %vm309, %v5776, %v5750
      %v5778 = vrot.slane %v5750, 4
      %v5779 = vsel %vm309, %v5754, %v5778
      %v5781 = vunpack.c.l.s4 1983009808
      %v5782 = vunpack.c.0.s8 %v5781
      %v5783 = vperm.slane %v5777, %v5782
      %v5785 = vunpack.c.l.s4 1983009808
      %v5786 = vunpack.c.0.s8 %v5785
      %v5787 = vperm.slane %v5779, %v5786
      %v5788 = vrot.slane %v5760, 4
      %v5789 = vsel %vm309, %v5788, %v5756
      %v5790 = vrot.slane %v5756, 4
      %v5791 = vsel %vm309, %v5760, %v5790
      %v5793 = vunpack.c.l.s4 1983009808
      %v5794 = vunpack.c.0.s8 %v5793
      %v5795 = vperm.slane %v5789, %v5794
      %v5797 = vunpack.c.l.s4 1983009808
      %v5798 = vunpack.c.0.s8 %v5797
      %v5799 = vperm.slane %v5791, %v5798
      %v5800 = vrot.slane %v5762, 4
      %v5801 = vsel %vm309, %v5800, %v5758
      %v5802 = vrot.slane %v5758, 4
      %v5803 = vsel %vm309, %v5762, %v5802
      %v5805 = vunpack.c.l.s4 1983009808
      %v5806 = vunpack.c.0.s8 %v5805
      %v5807 = vperm.slane %v5801, %v5806
      %v5809 = vunpack.c.l.s4 1983009808
      %v5810 = vunpack.c.0.s8 %v5809
      %v5811 = vperm.slane %v5803, %v5810
      %v5812 = vrot.slane %v5783, 4
      %v5813 = vsel %vm309, %v5812, %v5771
      %v5814 = vrot.slane %v5771, 4
      %v5815 = vsel %vm309, %v5783, %v5814
      %v5817 = vunpack.c.l.s4 1934713408
      %v5818 = vunpack.c.0.s8 %v5817
      %v5819 = vperm.slane %v5813, %v5818
      %v5821 = vunpack.c.l.s4 1934713408
      %v5822 = vunpack.c.0.s8 %v5821
      %v5823 = vperm.slane %v5815, %v5822
      %v5824 = vrot.slane %v5787, 4
      %v5825 = vsel %vm309, %v5824, %v5775
      %v5826 = vrot.slane %v5775, 4
      %v5827 = vsel %vm309, %v5787, %v5826
      %v5829 = vunpack.c.l.s4 1934713408
      %v5830 = vunpack.c.0.s8 %v5829
      %v5831 = vperm.slane %v5825, %v5830
      %v5833 = vunpack.c.l.s4 1934713408
      %v5834 = vunpack.c.0.s8 %v5833
      %v5835 = vperm.slane %v5827, %v5834
      %v5836 = vrot.slane %v5807, 4
      %v5837 = vsel %vm309, %v5836, %v5795
      %v5838 = vrot.slane %v5795, 4
      %v5839 = vsel %vm309, %v5807, %v5838
      %v5841 = vunpack.c.l.s4 1934713408
      %v5842 = vunpack.c.0.s8 %v5841
      %v5843 = vperm.slane %v5837, %v5842
      %v5845 = vunpack.c.l.s4 1934713408
      %v5846 = vunpack.c.0.s8 %v5845
      %v5847 = vperm.slane %v5839, %v5846
      %v5848 = vrot.slane %v5811, 4
      %v5849 = vsel %vm309, %v5848, %v5799
      %v5850 = vrot.slane %v5799, 4
      %v5851 = vsel %vm309, %v5811, %v5850
      %v5853 = vunpack.c.l.s4 1934713408
      %v5854 = vunpack.c.0.s8 %v5853
      %v5855 = vperm.slane %v5849, %v5854
      %v5857 = vunpack.c.l.s4 1934713408
      %v5858 = vunpack.c.0.s8 %v5857
      %v5859 = vperm.slane %v5851, %v5858
      %v5860 = vrot.slane %v5843, 4
      %v5861 = vsel %vm309, %v5860, %v5819
      %v5862 = vrot.slane %v5819, 4
      %v5863 = vsel %vm309, %v5843, %v5862
      %v5864 = vrot.slane %v5847, 4
      %v5865 = vsel %vm309, %v5864, %v5823
      %v5866 = vrot.slane %v5823, 4
      %v5867 = vsel %vm309, %v5847, %v5866
      %v5868 = vrot.slane %v5855, 4
      %v5869 = vsel %vm309, %v5868, %v5831
      %v5870 = vrot.slane %v5831, 4
      %v5871 = vsel %vm309, %v5855, %v5870
      %v5872 = vrot.slane %v5859, 4
      %v5873 = vsel %vm309, %v5872, %v5835
      %v5874 = vrot.slane %v5835, 4
      %v5875 = vsel %vm309, %v5859, %v5874
      %v5876 = vrot.slane %v5753, 4
      %v5877 = vsel %vm309, %v5876, %v5749
      %v5878 = vrot.slane %v5749, 4
      %v5879 = vsel %vm309, %v5753, %v5878
      %v5881 = vunpack.c.l.s4 1983009808
      %v5882 = vunpack.c.0.s8 %v5881
      %v5883 = vperm.slane %v5877, %v5882
      %v5885 = vunpack.c.l.s4 1983009808
      %v5886 = vunpack.c.0.s8 %v5885
      %v5887 = vperm.slane %v5879, %v5886
      %v5888 = vrot.slane %v5755, 4
      %v5889 = vsel %vm309, %v5888, %v5751
      %v5890 = vrot.slane %v5751, 4
      %v5891 = vsel %vm309, %v5755, %v5890
      %v5893 = vunpack.c.l.s4 1983009808
      %v5894 = vunpack.c.0.s8 %v5893
      %v5895 = vperm.slane %v5889, %v5894
      %v5897 = vunpack.c.l.s4 1983009808
      %v5898 = vunpack.c.0.s8 %v5897
      %v5899 = vperm.slane %v5891, %v5898
      %v5900 = vrot.slane %v5761, 4
      %v5901 = vsel %vm309, %v5900, %v5757
      %v5902 = vrot.slane %v5757, 4
      %v5903 = vsel %vm309, %v5761, %v5902
      %v5905 = vunpack.c.l.s4 1983009808
      %v5906 = vunpack.c.0.s8 %v5905
      %v5907 = vperm.slane %v5901, %v5906
      %v5909 = vunpack.c.l.s4 1983009808
      %v5910 = vunpack.c.0.s8 %v5909
      %v5911 = vperm.slane %v5903, %v5910
      %v5912 = vrot.slane %v5763, 4
      %v5913 = vsel %vm309, %v5912, %v5759
      %v5914 = vrot.slane %v5759, 4
      %v5915 = vsel %vm309, %v5763, %v5914
      %v5917 = vunpack.c.l.s4 1983009808
      %v5918 = vunpack.c.0.s8 %v5917
      %v5919 = vperm.slane %v5913, %v5918
      %v5921 = vunpack.c.l.s4 1983009808
      %v5922 = vunpack.c.0.s8 %v5921
      %v5923 = vperm.slane %v5915, %v5922
      %v5924 = vrot.slane %v5895, 4
      %v5925 = vsel %vm309, %v5924, %v5883
      %v5926 = vrot.slane %v5883, 4
      %v5927 = vsel %vm309, %v5895, %v5926
      %v5929 = vunpack.c.l.s4 1934713408
      %v5930 = vunpack.c.0.s8 %v5929
      %v5931 = vperm.slane %v5925, %v5930
      %v5933 = vunpack.c.l.s4 1934713408
      %v5934 = vunpack.c.0.s8 %v5933
      %v5935 = vperm.slane %v5927, %v5934
      %v5936 = vrot.slane %v5899, 4
      %v5937 = vsel %vm309, %v5936, %v5887
      %v5938 = vrot.slane %v5887, 4
      %v5939 = vsel %vm309, %v5899, %v5938
      %v5941 = vunpack.c.l.s4 1934713408
      %v5942 = vunpack.c.0.s8 %v5941
      %v5943 = vperm.slane %v5937, %v5942
      %v5945 = vunpack.c.l.s4 1934713408
      %v5946 = vunpack.c.0.s8 %v5945
      %v5947 = vperm.slane %v5939, %v5946
      %v5948 = vrot.slane %v5919, 4
      %v5949 = vsel %vm309, %v5948, %v5907
      %v5950 = vrot.slane %v5907, 4
      %v5951 = vsel %vm309, %v5919, %v5950
      %v5953 = vunpack.c.l.s4 1934713408
      %v5954 = vunpack.c.0.s8 %v5953
      %v5955 = vperm.slane %v5949, %v5954
      %v5957 = vunpack.c.l.s4 1934713408
      %v5958 = vunpack.c.0.s8 %v5957
      %v5959 = vperm.slane %v5951, %v5958
      %v5960 = vrot.slane %v5923, 4
      %v5961 = vsel %vm309, %v5960, %v5911
      %v5962 = vrot.slane %v5911, 4
      %v5963 = vsel %vm309, %v5923, %v5962
      %v5965 = vunpack.c.l.s4 1934713408
      %v5966 = vunpack.c.0.s8 %v5965
      %v5967 = vperm.slane %v5961, %v5966
      %v5969 = vunpack.c.l.s4 1934713408
      %v5970 = vunpack.c.0.s8 %v5969
      %v5971 = vperm.slane %v5963, %v5970
      %v5972 = vrot.slane %v5955, 4
      %v5973 = vsel %vm309, %v5972, %v5931
      %v5974 = vrot.slane %v5931, 4
      %v5975 = vsel %vm309, %v5955, %v5974
      %v5976 = vrot.slane %v5959, 4
      %v5977 = vsel %vm309, %v5976, %v5935
      %v5978 = vrot.slane %v5935, 4
      %v5979 = vsel %vm309, %v5959, %v5978
      %v5980 = vrot.slane %v5967, 4
      %v5981 = vsel %vm309, %v5980, %v5943
      %v5982 = vrot.slane %v5943, 4
      %v5983 = vsel %vm309, %v5967, %v5982
      %v5984 = vrot.slane %v5971, 4
      %v5985 = vsel %vm309, %v5984, %v5947
      %v5986 = vrot.slane %v5947, 4
      %v5987 = vsel %vm309, %v5971, %v5986
      %5989 = vrot.lane.b32.xlu0 %v5863, 16
      %v5990 = vpop.permute.xlu0 %5989
      %5993 = vrot.lane.b32.xlu0 %v5865, 32
      %v5994 = vpop.permute.xlu0 %5993
      %5997 = vrot.lane.b32.xlu0 %v5867, 48
      %v5998 = vpop.permute.xlu0 %5997
      %6001 = vrot.lane.b32.xlu0 %v5869, 64
      %v6002 = vpop.permute.xlu0 %6001
      %6005 = vrot.lane.b32.xlu0 %v5871, 80
      %v6006 = vpop.permute.xlu0 %6005
      %6009 = vrot.lane.b32.xlu0 %v5873, 96
      %v6010 = vpop.permute.xlu0 %6009
      %6013 = vrot.lane.b32.xlu0 %v5875, 112
      %v6014 = vpop.permute.xlu0 %6013
      %6017 = vrot.lane.b32.xlu0 %v5975, 16
      %v6018 = vpop.permute.xlu0 %6017
      %6021 = vrot.lane.b32.xlu0 %v5977, 32
      %v6022 = vpop.permute.xlu0 %6021
      %6025 = vrot.lane.b32.xlu0 %v5979, 48
      %v6026 = vpop.permute.xlu0 %6025
      %6029 = vrot.lane.b32.xlu0 %v5981, 64
      %v6030 = vpop.permute.xlu0 %6029
      %6033 = vrot.lane.b32.xlu0 %v5983, 80
      %v6034 = vpop.permute.xlu0 %6033
      %6037 = vrot.lane.b32.xlu0 %v5985, 96
      %v6038 = vpop.permute.xlu0 %6037
      %6041 = vrot.lane.b32.xlu0 %v5987, 112
      %v6042 = vpop.permute.xlu0 %6041
      %v6044 = vsel %vm589, %v5861, %v5990
      %v6045 = vsel %vm591, %v6044, %v5994
      %v6046 = vsel %vm593, %v6045, %v5998
      %v6047 = vsel %vm595, %v6046, %v6002
      %v6048 = vsel %vm597, %v6047, %v6006
      %v6049 = vsel %vm599, %v6048, %v6010
      %v6050 = vsel %vm601, %v6049, %v6014
      %v6051 = vsel %vm589, %v5973, %v6018
      %v6052 = vsel %vm591, %v6051, %v6022
      %v6053 = vsel %vm593, %v6052, %v6026
      %v6054 = vsel %vm595, %v6053, %v6030
      %v6055 = vsel %vm597, %v6054, %v6034
      %v6056 = vsel %vm599, %v6055, %v6038
      %v6057 = vsel %vm601, %v6056, %v6042
      %6058 = vst [vmem:[#allocation3 + $0xf0] sm:$0xff] %v6050
      %6059 = vst [vmem:[#allocation3 + $0xf8] sm:$0xff] %v6057
      %v6060 = vld [vmem:[#allocation2 + $0x3] sm:$0xff]
      %v6061 = vld [vmem:[#allocation2 + $0xb] sm:$0xff]
      %v6062 = vld [vmem:[#allocation2 + $0x1b] sm:$0xff]
      %v6063 = vld [vmem:[#allocation2 + $0x23] sm:$0xff]
      %v6064 = vld [vmem:[#allocation2 + $0x33] sm:$0xff]
      %v6065 = vld [vmem:[#allocation2 + $0x3b] sm:$0xff]
      %v6066 = vld [vmem:[#allocation2 + $0x4b] sm:$0xff]
      %v6067 = vld [vmem:[#allocation2 + $0x53] sm:$0xff]
      %v6068 = vld [vmem:[#allocation2 + $0x63] sm:$0xff]
      %v6069 = vld [vmem:[#allocation2 + $0x6b] sm:$0xff]
      %v6070 = vld [vmem:[#allocation2 + $0x7b] sm:$0xff]
      %v6071 = vld [vmem:[#allocation2 + $0x83] sm:$0xff]
      %v6072 = vld [vmem:[#allocation2 + $0x93] sm:$0xff]
      %v6073 = vld [vmem:[#allocation2 + $0x9b] sm:$0xff]
      %v6074 = vld [vmem:[#allocation2 + $0xab] sm:$0xff]
      %v6075 = vld [vmem:[#allocation2 + $0xb3] sm:$0xff]
      %6092 = vrot.lane.b32.xlu0 %v6060, 127
      %v6093 = vpop.permute.xlu0 %6092
      %6094 = vrot.lane.b32.xlu0 %v6061, 127
      %v6095 = vpop.permute.xlu0 %6094
      %6096 = vrot.lane.b32.xlu0 %v6062, 127
      %v6097 = vpop.permute.xlu0 %6096
      %6098 = vrot.lane.b32.xlu0 %v6063, 127
      %v6099 = vpop.permute.xlu0 %6098
      %6100 = vrot.lane.b32.xlu0 %v6064, 127
      %v6101 = vpop.permute.xlu0 %6100
      %6102 = vrot.lane.b32.xlu0 %v6065, 127
      %v6103 = vpop.permute.xlu0 %6102
      %6104 = vrot.lane.b32.xlu0 %v6066, 127
      %v6105 = vpop.permute.xlu0 %6104
      %6106 = vrot.lane.b32.xlu0 %v6067, 127
      %v6107 = vpop.permute.xlu0 %6106
      %6108 = vrot.lane.b32.xlu0 %v6068, 127
      %v6109 = vpop.permute.xlu0 %6108
      %6110 = vrot.lane.b32.xlu0 %v6069, 127
      %v6111 = vpop.permute.xlu0 %6110
      %6112 = vrot.lane.b32.xlu0 %v6070, 127
      %v6113 = vpop.permute.xlu0 %6112
      %6114 = vrot.lane.b32.xlu0 %v6071, 127
      %v6115 = vpop.permute.xlu0 %6114
      %6116 = vrot.lane.b32.xlu0 %v6072, 127
      %v6117 = vpop.permute.xlu0 %6116
      %6118 = vrot.lane.b32.xlu0 %v6073, 127
      %v6119 = vpop.permute.xlu0 %6118
      %6120 = vrot.lane.b32.xlu0 %v6074, 127
      %v6121 = vpop.permute.xlu0 %6120
      %6122 = vrot.lane.b32.xlu0 %v6075, 127
      %v6123 = vpop.permute.xlu0 %6122
      %v6140 = vrot.slane %v6101, 4
      %v6141 = vsel %vm309, %v6140, %v6093
      %v6142 = vrot.slane %v6093, 4
      %v6143 = vsel %vm309, %v6101, %v6142
      %v6145 = vunpack.c.l.s4 1983009808
      %v6146 = vunpack.c.0.s8 %v6145
      %v6147 = vperm.slane %v6141, %v6146
      %v6149 = vunpack.c.l.s4 1983009808
      %v6150 = vunpack.c.0.s8 %v6149
      %v6151 = vperm.slane %v6143, %v6150
      %v6152 = vrot.slane %v6105, 4
      %v6153 = vsel %vm309, %v6152, %v6097
      %v6154 = vrot.slane %v6097, 4
      %v6155 = vsel %vm309, %v6105, %v6154
      %v6157 = vunpack.c.l.s4 1983009808
      %v6158 = vunpack.c.0.s8 %v6157
      %v6159 = vperm.slane %v6153, %v6158
      %v6161 = vunpack.c.l.s4 1983009808
      %v6162 = vunpack.c.0.s8 %v6161
      %v6163 = vperm.slane %v6155, %v6162
      %v6164 = vrot.slane %v6117, 4
      %v6165 = vsel %vm309, %v6164, %v6109
      %v6166 = vrot.slane %v6109, 4
      %v6167 = vsel %vm309, %v6117, %v6166
      %v6169 = vunpack.c.l.s4 1983009808
      %v6170 = vunpack.c.0.s8 %v6169
      %v6171 = vperm.slane %v6165, %v6170
      %v6173 = vunpack.c.l.s4 1983009808
      %v6174 = vunpack.c.0.s8 %v6173
      %v6175 = vperm.slane %v6167, %v6174
      %v6176 = vrot.slane %v6121, 4
      %v6177 = vsel %vm309, %v6176, %v6113
      %v6178 = vrot.slane %v6113, 4
      %v6179 = vsel %vm309, %v6121, %v6178
      %v6181 = vunpack.c.l.s4 1983009808
      %v6182 = vunpack.c.0.s8 %v6181
      %v6183 = vperm.slane %v6177, %v6182
      %v6185 = vunpack.c.l.s4 1983009808
      %v6186 = vunpack.c.0.s8 %v6185
      %v6187 = vperm.slane %v6179, %v6186
      %v6188 = vrot.slane %v6159, 4
      %v6189 = vsel %vm309, %v6188, %v6147
      %v6190 = vrot.slane %v6147, 4
      %v6191 = vsel %vm309, %v6159, %v6190
      %v6193 = vunpack.c.l.s4 1934713408
      %v6194 = vunpack.c.0.s8 %v6193
      %v6195 = vperm.slane %v6189, %v6194
      %v6197 = vunpack.c.l.s4 1934713408
      %v6198 = vunpack.c.0.s8 %v6197
      %v6199 = vperm.slane %v6191, %v6198
      %v6200 = vrot.slane %v6163, 4
      %v6201 = vsel %vm309, %v6200, %v6151
      %v6202 = vrot.slane %v6151, 4
      %v6203 = vsel %vm309, %v6163, %v6202
      %v6205 = vunpack.c.l.s4 1934713408
      %v6206 = vunpack.c.0.s8 %v6205
      %v6207 = vperm.slane %v6201, %v6206
      %v6209 = vunpack.c.l.s4 1934713408
      %v6210 = vunpack.c.0.s8 %v6209
      %v6211 = vperm.slane %v6203, %v6210
      %v6212 = vrot.slane %v6183, 4
      %v6213 = vsel %vm309, %v6212, %v6171
      %v6214 = vrot.slane %v6171, 4
      %v6215 = vsel %vm309, %v6183, %v6214
      %v6217 = vunpack.c.l.s4 1934713408
      %v6218 = vunpack.c.0.s8 %v6217
      %v6219 = vperm.slane %v6213, %v6218
      %v6221 = vunpack.c.l.s4 1934713408
      %v6222 = vunpack.c.0.s8 %v6221
      %v6223 = vperm.slane %v6215, %v6222
      %v6224 = vrot.slane %v6187, 4
      %v6225 = vsel %vm309, %v6224, %v6175
      %v6226 = vrot.slane %v6175, 4
      %v6227 = vsel %vm309, %v6187, %v6226
      %v6229 = vunpack.c.l.s4 1934713408
      %v6230 = vunpack.c.0.s8 %v6229
      %v6231 = vperm.slane %v6225, %v6230
      %v6233 = vunpack.c.l.s4 1934713408
      %v6234 = vunpack.c.0.s8 %v6233
      %v6235 = vperm.slane %v6227, %v6234
      %v6236 = vrot.slane %v6219, 4
      %v6237 = vsel %vm309, %v6236, %v6195
      %v6238 = vrot.slane %v6195, 4
      %v6239 = vsel %vm309, %v6219, %v6238
      %v6240 = vrot.slane %v6223, 4
      %v6241 = vsel %vm309, %v6240, %v6199
      %v6242 = vrot.slane %v6199, 4
      %v6243 = vsel %vm309, %v6223, %v6242
      %v6244 = vrot.slane %v6231, 4
      %v6245 = vsel %vm309, %v6244, %v6207
      %v6246 = vrot.slane %v6207, 4
      %v6247 = vsel %vm309, %v6231, %v6246
      %v6248 = vrot.slane %v6235, 4
      %v6249 = vsel %vm309, %v6248, %v6211
      %v6250 = vrot.slane %v6211, 4
      %v6251 = vsel %vm309, %v6235, %v6250
      %v6252 = vrot.slane %v6103, 4
      %v6253 = vsel %vm309, %v6252, %v6095
      %v6254 = vrot.slane %v6095, 4
      %v6255 = vsel %vm309, %v6103, %v6254
      %v6257 = vunpack.c.l.s4 1983009808
      %v6258 = vunpack.c.0.s8 %v6257
      %v6259 = vperm.slane %v6253, %v6258
      %v6261 = vunpack.c.l.s4 1983009808
      %v6262 = vunpack.c.0.s8 %v6261
      %v6263 = vperm.slane %v6255, %v6262
      %v6264 = vrot.slane %v6107, 4
      %v6265 = vsel %vm309, %v6264, %v6099
      %v6266 = vrot.slane %v6099, 4
      %v6267 = vsel %vm309, %v6107, %v6266
      %v6269 = vunpack.c.l.s4 1983009808
      %v6270 = vunpack.c.0.s8 %v6269
      %v6271 = vperm.slane %v6265, %v6270
      %v6273 = vunpack.c.l.s4 1983009808
      %v6274 = vunpack.c.0.s8 %v6273
      %v6275 = vperm.slane %v6267, %v6274
      %v6276 = vrot.slane %v6119, 4
      %v6277 = vsel %vm309, %v6276, %v6111
      %v6278 = vrot.slane %v6111, 4
      %v6279 = vsel %vm309, %v6119, %v6278
      %v6281 = vunpack.c.l.s4 1983009808
      %v6282 = vunpack.c.0.s8 %v6281
      %v6283 = vperm.slane %v6277, %v6282
      %v6285 = vunpack.c.l.s4 1983009808
      %v6286 = vunpack.c.0.s8 %v6285
      %v6287 = vperm.slane %v6279, %v6286
      %v6288 = vrot.slane %v6123, 4
      %v6289 = vsel %vm309, %v6288, %v6115
      %v6290 = vrot.slane %v6115, 4
      %v6291 = vsel %vm309, %v6123, %v6290
      %v6293 = vunpack.c.l.s4 1983009808
      %v6294 = vunpack.c.0.s8 %v6293
      %v6295 = vperm.slane %v6289, %v6294
      %v6297 = vunpack.c.l.s4 1983009808
      %v6298 = vunpack.c.0.s8 %v6297
      %v6299 = vperm.slane %v6291, %v6298
      %v6300 = vrot.slane %v6271, 4
      %v6301 = vsel %vm309, %v6300, %v6259
      %v6302 = vrot.slane %v6259, 4
      %v6303 = vsel %vm309, %v6271, %v6302
      %v6305 = vunpack.c.l.s4 1934713408
      %v6306 = vunpack.c.0.s8 %v6305
      %v6307 = vperm.slane %v6301, %v6306
      %v6309 = vunpack.c.l.s4 1934713408
      %v6310 = vunpack.c.0.s8 %v6309
      %v6311 = vperm.slane %v6303, %v6310
      %v6312 = vrot.slane %v6275, 4
      %v6313 = vsel %vm309, %v6312, %v6263
      %v6314 = vrot.slane %v6263, 4
      %v6315 = vsel %vm309, %v6275, %v6314
      %v6317 = vunpack.c.l.s4 1934713408
      %v6318 = vunpack.c.0.s8 %v6317
      %v6319 = vperm.slane %v6313, %v6318
      %v6321 = vunpack.c.l.s4 1934713408
      %v6322 = vunpack.c.0.s8 %v6321
      %v6323 = vperm.slane %v6315, %v6322
      %v6324 = vrot.slane %v6295, 4
      %v6325 = vsel %vm309, %v6324, %v6283
      %v6326 = vrot.slane %v6283, 4
      %v6327 = vsel %vm309, %v6295, %v6326
      %v6329 = vunpack.c.l.s4 1934713408
      %v6330 = vunpack.c.0.s8 %v6329
      %v6331 = vperm.slane %v6325, %v6330
      %v6333 = vunpack.c.l.s4 1934713408
      %v6334 = vunpack.c.0.s8 %v6333
      %v6335 = vperm.slane %v6327, %v6334
      %v6336 = vrot.slane %v6299, 4
      %v6337 = vsel %vm309, %v6336, %v6287
      %v6338 = vrot.slane %v6287, 4
      %v6339 = vsel %vm309, %v6299, %v6338
      %v6341 = vunpack.c.l.s4 1934713408
      %v6342 = vunpack.c.0.s8 %v6341
      %v6343 = vperm.slane %v6337, %v6342
      %v6345 = vunpack.c.l.s4 1934713408
      %v6346 = vunpack.c.0.s8 %v6345
      %v6347 = vperm.slane %v6339, %v6346
      %v6348 = vrot.slane %v6331, 4
      %v6349 = vsel %vm309, %v6348, %v6307
      %v6350 = vrot.slane %v6307, 4
      %v6351 = vsel %vm309, %v6331, %v6350
      %v6352 = vrot.slane %v6335, 4
      %v6353 = vsel %vm309, %v6352, %v6311
      %v6354 = vrot.slane %v6311, 4
      %v6355 = vsel %vm309, %v6335, %v6354
      %v6356 = vrot.slane %v6343, 4
      %v6357 = vsel %vm309, %v6356, %v6319
      %v6358 = vrot.slane %v6319, 4
      %v6359 = vsel %vm309, %v6343, %v6358
      %v6360 = vrot.slane %v6347, 4
      %v6361 = vsel %vm309, %v6360, %v6323
      %v6362 = vrot.slane %v6323, 4
      %v6363 = vsel %vm309, %v6347, %v6362
      %6365 = vrot.lane.b32.xlu0 %v6239, 16
      %v6366 = vpop.permute.xlu0 %6365
      %6369 = vrot.lane.b32.xlu0 %v6241, 32
      %v6370 = vpop.permute.xlu0 %6369
      %6373 = vrot.lane.b32.xlu0 %v6243, 48
      %v6374 = vpop.permute.xlu0 %6373
      %6377 = vrot.lane.b32.xlu0 %v6245, 64
      %v6378 = vpop.permute.xlu0 %6377
      %6381 = vrot.lane.b32.xlu0 %v6247, 80
      %v6382 = vpop.permute.xlu0 %6381
      %6385 = vrot.lane.b32.xlu0 %v6249, 96
      %v6386 = vpop.permute.xlu0 %6385
      %6389 = vrot.lane.b32.xlu0 %v6251, 112
      %v6390 = vpop.permute.xlu0 %6389
      %6393 = vrot.lane.b32.xlu0 %v6351, 16
      %v6394 = vpop.permute.xlu0 %6393
      %6397 = vrot.lane.b32.xlu0 %v6353, 32
      %v6398 = vpop.permute.xlu0 %6397
      %6401 = vrot.lane.b32.xlu0 %v6355, 48
      %v6402 = vpop.permute.xlu0 %6401
      %6405 = vrot.lane.b32.xlu0 %v6357, 64
      %v6406 = vpop.permute.xlu0 %6405
      %6409 = vrot.lane.b32.xlu0 %v6359, 80
      %v6410 = vpop.permute.xlu0 %6409
      %6413 = vrot.lane.b32.xlu0 %v6361, 96
      %v6414 = vpop.permute.xlu0 %6413
      %6417 = vrot.lane.b32.xlu0 %v6363, 112
      %v6418 = vpop.permute.xlu0 %6417
      %v6420 = vsel %vm589, %v6237, %v6366
      %v6421 = vsel %vm591, %v6420, %v6370
      %v6422 = vsel %vm593, %v6421, %v6374
      %v6423 = vsel %vm595, %v6422, %v6378
      %v6424 = vsel %vm597, %v6423, %v6382
      %v6425 = vsel %vm599, %v6424, %v6386
      %v6426 = vsel %vm601, %v6425, %v6390
      %v6427 = vsel %vm589, %v6349, %v6394
      %v6428 = vsel %vm591, %v6427, %v6398
      %v6429 = vsel %vm593, %v6428, %v6402
      %v6430 = vsel %vm595, %v6429, %v6406
      %v6431 = vsel %vm597, %v6430, %v6410
      %v6432 = vsel %vm599, %v6431, %v6414
      %v6433 = vsel %vm601, %v6432, %v6418
      %6434 = vst [vmem:[#allocation3 + $0x100] sm:$0xff] %v6426
      %6435 = vst [vmem:[#allocation3 + $0x108] sm:$0xff] %v6433
      %v6436 = vld [vmem:[#allocation2 + $0x3] sm:$0xff]
      %v6437 = vld [vmem:[#allocation2 + $0xb] sm:$0xff]
      %v6438 = vld [vmem:[#allocation2 + $0x1b] sm:$0xff]
      %v6439 = vld [vmem:[#allocation2 + $0x23] sm:$0xff]
      %v6440 = vld [vmem:[#allocation2 + $0x33] sm:$0xff]
      %v6441 = vld [vmem:[#allocation2 + $0x3b] sm:$0xff]
      %v6442 = vld [vmem:[#allocation2 + $0x4b] sm:$0xff]
      %v6443 = vld [vmem:[#allocation2 + $0x53] sm:$0xff]
      %v6444 = vld [vmem:[#allocation2 + $0x63] sm:$0xff]
      %v6445 = vld [vmem:[#allocation2 + $0x6b] sm:$0xff]
      %v6446 = vld [vmem:[#allocation2 + $0x7b] sm:$0xff]
      %v6447 = vld [vmem:[#allocation2 + $0x83] sm:$0xff]
      %v6448 = vld [vmem:[#allocation2 + $0x93] sm:$0xff]
      %v6449 = vld [vmem:[#allocation2 + $0x9b] sm:$0xff]
      %v6450 = vld [vmem:[#allocation2 + $0xab] sm:$0xff]
      %v6451 = vld [vmem:[#allocation2 + $0xb3] sm:$0xff]
      %6468 = vrot.lane.b32.xlu0 %v6436, 126
      %v6469 = vpop.permute.xlu0 %6468
      %6470 = vrot.lane.b32.xlu0 %v6437, 126
      %v6471 = vpop.permute.xlu0 %6470
      %6472 = vrot.lane.b32.xlu0 %v6438, 126
      %v6473 = vpop.permute.xlu0 %6472
      %6474 = vrot.lane.b32.xlu0 %v6439, 126
      %v6475 = vpop.permute.xlu0 %6474
      %6476 = vrot.lane.b32.xlu0 %v6440, 126
      %v6477 = vpop.permute.xlu0 %6476
      %6478 = vrot.lane.b32.xlu0 %v6441, 126
      %v6479 = vpop.permute.xlu0 %6478
      %6480 = vrot.lane.b32.xlu0 %v6442, 126
      %v6481 = vpop.permute.xlu0 %6480
      %6482 = vrot.lane.b32.xlu0 %v6443, 126
      %v6483 = vpop.permute.xlu0 %6482
      %6484 = vrot.lane.b32.xlu0 %v6444, 126
      %v6485 = vpop.permute.xlu0 %6484
      %6486 = vrot.lane.b32.xlu0 %v6445, 126
      %v6487 = vpop.permute.xlu0 %6486
      %6488 = vrot.lane.b32.xlu0 %v6446, 126
      %v6489 = vpop.permute.xlu0 %6488
      %6490 = vrot.lane.b32.xlu0 %v6447, 126
      %v6491 = vpop.permute.xlu0 %6490
      %6492 = vrot.lane.b32.xlu0 %v6448, 126
      %v6493 = vpop.permute.xlu0 %6492
      %6494 = vrot.lane.b32.xlu0 %v6449, 126
      %v6495 = vpop.permute.xlu0 %6494
      %6496 = vrot.lane.b32.xlu0 %v6450, 126
      %v6497 = vpop.permute.xlu0 %6496
      %6498 = vrot.lane.b32.xlu0 %v6451, 126
      %v6499 = vpop.permute.xlu0 %6498
      %v6516 = vrot.slane %v6477, 4
      %v6517 = vsel %vm309, %v6516, %v6469
      %v6518 = vrot.slane %v6469, 4
      %v6519 = vsel %vm309, %v6477, %v6518
      %v6521 = vunpack.c.l.s4 1983009808
      %v6522 = vunpack.c.0.s8 %v6521
      %v6523 = vperm.slane %v6517, %v6522
      %v6525 = vunpack.c.l.s4 1983009808
      %v6526 = vunpack.c.0.s8 %v6525
      %v6527 = vperm.slane %v6519, %v6526
      %v6528 = vrot.slane %v6481, 4
      %v6529 = vsel %vm309, %v6528, %v6473
      %v6530 = vrot.slane %v6473, 4
      %v6531 = vsel %vm309, %v6481, %v6530
      %v6533 = vunpack.c.l.s4 1983009808
      %v6534 = vunpack.c.0.s8 %v6533
      %v6535 = vperm.slane %v6529, %v6534
      %v6537 = vunpack.c.l.s4 1983009808
      %v6538 = vunpack.c.0.s8 %v6537
      %v6539 = vperm.slane %v6531, %v6538
      %v6540 = vrot.slane %v6493, 4
      %v6541 = vsel %vm309, %v6540, %v6485
      %v6542 = vrot.slane %v6485, 4
      %v6543 = vsel %vm309, %v6493, %v6542
      %v6545 = vunpack.c.l.s4 1983009808
      %v6546 = vunpack.c.0.s8 %v6545
      %v6547 = vperm.slane %v6541, %v6546
      %v6549 = vunpack.c.l.s4 1983009808
      %v6550 = vunpack.c.0.s8 %v6549
      %v6551 = vperm.slane %v6543, %v6550
      %v6552 = vrot.slane %v6497, 4
      %v6553 = vsel %vm309, %v6552, %v6489
      %v6554 = vrot.slane %v6489, 4
      %v6555 = vsel %vm309, %v6497, %v6554
      %v6557 = vunpack.c.l.s4 1983009808
      %v6558 = vunpack.c.0.s8 %v6557
      %v6559 = vperm.slane %v6553, %v6558
      %v6561 = vunpack.c.l.s4 1983009808
      %v6562 = vunpack.c.0.s8 %v6561
      %v6563 = vperm.slane %v6555, %v6562
      %v6564 = vrot.slane %v6535, 4
      %v6565 = vsel %vm309, %v6564, %v6523
      %v6566 = vrot.slane %v6523, 4
      %v6567 = vsel %vm309, %v6535, %v6566
      %v6569 = vunpack.c.l.s4 1934713408
      %v6570 = vunpack.c.0.s8 %v6569
      %v6571 = vperm.slane %v6565, %v6570
      %v6573 = vunpack.c.l.s4 1934713408
      %v6574 = vunpack.c.0.s8 %v6573
      %v6575 = vperm.slane %v6567, %v6574
      %v6576 = vrot.slane %v6539, 4
      %v6577 = vsel %vm309, %v6576, %v6527
      %v6578 = vrot.slane %v6527, 4
      %v6579 = vsel %vm309, %v6539, %v6578
      %v6581 = vunpack.c.l.s4 1934713408
      %v6582 = vunpack.c.0.s8 %v6581
      %v6583 = vperm.slane %v6577, %v6582
      %v6585 = vunpack.c.l.s4 1934713408
      %v6586 = vunpack.c.0.s8 %v6585
      %v6587 = vperm.slane %v6579, %v6586
      %v6588 = vrot.slane %v6559, 4
      %v6589 = vsel %vm309, %v6588, %v6547
      %v6590 = vrot.slane %v6547, 4
      %v6591 = vsel %vm309, %v6559, %v6590
      %v6593 = vunpack.c.l.s4 1934713408
      %v6594 = vunpack.c.0.s8 %v6593
      %v6595 = vperm.slane %v6589, %v6594
      %v6597 = vunpack.c.l.s4 1934713408
      %v6598 = vunpack.c.0.s8 %v6597
      %v6599 = vperm.slane %v6591, %v6598
      %v6600 = vrot.slane %v6563, 4
      %v6601 = vsel %vm309, %v6600, %v6551
      %v6602 = vrot.slane %v6551, 4
      %v6603 = vsel %vm309, %v6563, %v6602
      %v6605 = vunpack.c.l.s4 1934713408
      %v6606 = vunpack.c.0.s8 %v6605
      %v6607 = vperm.slane %v6601, %v6606
      %v6609 = vunpack.c.l.s4 1934713408
      %v6610 = vunpack.c.0.s8 %v6609
      %v6611 = vperm.slane %v6603, %v6610
      %v6612 = vrot.slane %v6595, 4
      %v6613 = vsel %vm309, %v6612, %v6571
      %v6614 = vrot.slane %v6571, 4
      %v6615 = vsel %vm309, %v6595, %v6614
      %v6616 = vrot.slane %v6599, 4
      %v6617 = vsel %vm309, %v6616, %v6575
      %v6618 = vrot.slane %v6575, 4
      %v6619 = vsel %vm309, %v6599, %v6618
      %v6620 = vrot.slane %v6607, 4
      %v6621 = vsel %vm309, %v6620, %v6583
      %v6622 = vrot.slane %v6583, 4
      %v6623 = vsel %vm309, %v6607, %v6622
      %v6624 = vrot.slane %v6611, 4
      %v6625 = vsel %vm309, %v6624, %v6587
      %v6626 = vrot.slane %v6587, 4
      %v6627 = vsel %vm309, %v6611, %v6626
      %v6628 = vrot.slane %v6479, 4
      %v6629 = vsel %vm309, %v6628, %v6471
      %v6630 = vrot.slane %v6471, 4
      %v6631 = vsel %vm309, %v6479, %v6630
      %v6633 = vunpack.c.l.s4 1983009808
      %v6634 = vunpack.c.0.s8 %v6633
      %v6635 = vperm.slane %v6629, %v6634
      %v6637 = vunpack.c.l.s4 1983009808
      %v6638 = vunpack.c.0.s8 %v6637
      %v6639 = vperm.slane %v6631, %v6638
      %v6640 = vrot.slane %v6483, 4
      %v6641 = vsel %vm309, %v6640, %v6475
      %v6642 = vrot.slane %v6475, 4
      %v6643 = vsel %vm309, %v6483, %v6642
      %v6645 = vunpack.c.l.s4 1983009808
      %v6646 = vunpack.c.0.s8 %v6645
      %v6647 = vperm.slane %v6641, %v6646
      %v6649 = vunpack.c.l.s4 1983009808
      %v6650 = vunpack.c.0.s8 %v6649
      %v6651 = vperm.slane %v6643, %v6650
      %v6652 = vrot.slane %v6495, 4
      %v6653 = vsel %vm309, %v6652, %v6487
      %v6654 = vrot.slane %v6487, 4
      %v6655 = vsel %vm309, %v6495, %v6654
      %v6657 = vunpack.c.l.s4 1983009808
      %v6658 = vunpack.c.0.s8 %v6657
      %v6659 = vperm.slane %v6653, %v6658
      %v6661 = vunpack.c.l.s4 1983009808
      %v6662 = vunpack.c.0.s8 %v6661
      %v6663 = vperm.slane %v6655, %v6662
      %v6664 = vrot.slane %v6499, 4
      %v6665 = vsel %vm309, %v6664, %v6491
      %v6666 = vrot.slane %v6491, 4
      %v6667 = vsel %vm309, %v6499, %v6666
      %v6669 = vunpack.c.l.s4 1983009808
      %v6670 = vunpack.c.0.s8 %v6669
      %v6671 = vperm.slane %v6665, %v6670
      %v6673 = vunpack.c.l.s4 1983009808
      %v6674 = vunpack.c.0.s8 %v6673
      %v6675 = vperm.slane %v6667, %v6674
      %v6676 = vrot.slane %v6647, 4
      %v6677 = vsel %vm309, %v6676, %v6635
      %v6678 = vrot.slane %v6635, 4
      %v6679 = vsel %vm309, %v6647, %v6678
      %v6681 = vunpack.c.l.s4 1934713408
      %v6682 = vunpack.c.0.s8 %v6681
      %v6683 = vperm.slane %v6677, %v6682
      %v6685 = vunpack.c.l.s4 1934713408
      %v6686 = vunpack.c.0.s8 %v6685
      %v6687 = vperm.slane %v6679, %v6686
      %v6688 = vrot.slane %v6651, 4
      %v6689 = vsel %vm309, %v6688, %v6639
      %v6690 = vrot.slane %v6639, 4
      %v6691 = vsel %vm309, %v6651, %v6690
      %v6693 = vunpack.c.l.s4 1934713408
      %v6694 = vunpack.c.0.s8 %v6693
      %v6695 = vperm.slane %v6689, %v6694
      %v6697 = vunpack.c.l.s4 1934713408
      %v6698 = vunpack.c.0.s8 %v6697
      %v6699 = vperm.slane %v6691, %v6698
      %v6700 = vrot.slane %v6671, 4
      %v6701 = vsel %vm309, %v6700, %v6659
      %v6702 = vrot.slane %v6659, 4
      %v6703 = vsel %vm309, %v6671, %v6702
      %v6705 = vunpack.c.l.s4 1934713408
      %v6706 = vunpack.c.0.s8 %v6705
      %v6707 = vperm.slane %v6701, %v6706
      %v6709 = vunpack.c.l.s4 1934713408
      %v6710 = vunpack.c.0.s8 %v6709
      %v6711 = vperm.slane %v6703, %v6710
      %v6712 = vrot.slane %v6675, 4
      %v6713 = vsel %vm309, %v6712, %v6663
      %v6714 = vrot.slane %v6663, 4
      %v6715 = vsel %vm309, %v6675, %v6714
      %v6717 = vunpack.c.l.s4 1934713408
      %v6718 = vunpack.c.0.s8 %v6717
      %v6719 = vperm.slane %v6713, %v6718
      %v6721 = vunpack.c.l.s4 1934713408
      %v6722 = vunpack.c.0.s8 %v6721
      %v6723 = vperm.slane %v6715, %v6722
      %v6724 = vrot.slane %v6707, 4
      %v6725 = vsel %vm309, %v6724, %v6683
      %v6726 = vrot.slane %v6683, 4
      %v6727 = vsel %vm309, %v6707, %v6726
      %v6728 = vrot.slane %v6711, 4
      %v6729 = vsel %vm309, %v6728, %v6687
      %v6730 = vrot.slane %v6687, 4
      %v6731 = vsel %vm309, %v6711, %v6730
      %v6732 = vrot.slane %v6719, 4
      %v6733 = vsel %vm309, %v6732, %v6695
      %v6734 = vrot.slane %v6695, 4
      %v6735 = vsel %vm309, %v6719, %v6734
      %v6736 = vrot.slane %v6723, 4
      %v6737 = vsel %vm309, %v6736, %v6699
      %v6738 = vrot.slane %v6699, 4
      %v6739 = vsel %vm309, %v6723, %v6738
      %6741 = vrot.lane.b32.xlu0 %v6615, 16
      %v6742 = vpop.permute.xlu0 %6741
      %6745 = vrot.lane.b32.xlu0 %v6617, 32
      %v6746 = vpop.permute.xlu0 %6745
      %6749 = vrot.lane.b32.xlu0 %v6619, 48
      %v6750 = vpop.permute.xlu0 %6749
      %6753 = vrot.lane.b32.xlu0 %v6621, 64
      %v6754 = vpop.permute.xlu0 %6753
      %6757 = vrot.lane.b32.xlu0 %v6623, 80
      %v6758 = vpop.permute.xlu0 %6757
      %6761 = vrot.lane.b32.xlu0 %v6625, 96
      %v6762 = vpop.permute.xlu0 %6761
      %6765 = vrot.lane.b32.xlu0 %v6627, 112
      %v6766 = vpop.permute.xlu0 %6765
      %6769 = vrot.lane.b32.xlu0 %v6727, 16
      %v6770 = vpop.permute.xlu0 %6769
      %6773 = vrot.lane.b32.xlu0 %v6729, 32
      %v6774 = vpop.permute.xlu0 %6773
      %6777 = vrot.lane.b32.xlu0 %v6731, 48
      %v6778 = vpop.permute.xlu0 %6777
      %6781 = vrot.lane.b32.xlu0 %v6733, 64
      %v6782 = vpop.permute.xlu0 %6781
      %6785 = vrot.lane.b32.xlu0 %v6735, 80
      %v6786 = vpop.permute.xlu0 %6785
      %6789 = vrot.lane.b32.xlu0 %v6737, 96
      %v6790 = vpop.permute.xlu0 %6789
      %6793 = vrot.lane.b32.xlu0 %v6739, 112
      %v6794 = vpop.permute.xlu0 %6793
      %v6796 = vsel %vm589, %v6613, %v6742
      %v6797 = vsel %vm591, %v6796, %v6746
      %v6798 = vsel %vm593, %v6797, %v6750
      %v6799 = vsel %vm595, %v6798, %v6754
      %v6800 = vsel %vm597, %v6799, %v6758
      %v6801 = vsel %vm599, %v6800, %v6762
      %v6802 = vsel %vm601, %v6801, %v6766
      %v6803 = vsel %vm589, %v6725, %v6770
      %v6804 = vsel %vm591, %v6803, %v6774
      %v6805 = vsel %vm593, %v6804, %v6778
      %v6806 = vsel %vm595, %v6805, %v6782
      %v6807 = vsel %vm597, %v6806, %v6786
      %v6808 = vsel %vm599, %v6807, %v6790
      %v6809 = vsel %vm601, %v6808, %v6794
      %6810 = vst [vmem:[#allocation3 + $0x110] sm:$0xff] %v6802
      %6811 = vst [vmem:[#allocation3 + $0x118] sm:$0xff] %v6809
      %v6812 = vld [vmem:[#allocation2 + $0x3] sm:$0xff]
      %v6813 = vld [vmem:[#allocation2 + $0xb] sm:$0xff]
      %v6814 = vld [vmem:[#allocation2 + $0x1b] sm:$0xff]
      %v6815 = vld [vmem:[#allocation2 + $0x23] sm:$0xff]
      %v6816 = vld [vmem:[#allocation2 + $0x33] sm:$0xff]
      %v6817 = vld [vmem:[#allocation2 + $0x3b] sm:$0xff]
      %v6818 = vld [vmem:[#allocation2 + $0x4b] sm:$0xff]
      %v6819 = vld [vmem:[#allocation2 + $0x53] sm:$0xff]
      %v6820 = vld [vmem:[#allocation2 + $0x63] sm:$0xff]
      %v6821 = vld [vmem:[#allocation2 + $0x6b] sm:$0xff]
      %v6822 = vld [vmem:[#allocation2 + $0x7b] sm:$0xff]
      %v6823 = vld [vmem:[#allocation2 + $0x83] sm:$0xff]
      %v6824 = vld [vmem:[#allocation2 + $0x93] sm:$0xff]
      %v6825 = vld [vmem:[#allocation2 + $0x9b] sm:$0xff]
      %v6826 = vld [vmem:[#allocation2 + $0xab] sm:$0xff]
      %v6827 = vld [vmem:[#allocation2 + $0xb3] sm:$0xff]
      %6844 = vrot.lane.b32.xlu0 %v6812, 125
      %v6845 = vpop.permute.xlu0 %6844
      %6846 = vrot.lane.b32.xlu0 %v6813, 125
      %v6847 = vpop.permute.xlu0 %6846
      %6848 = vrot.lane.b32.xlu0 %v6814, 125
      %v6849 = vpop.permute.xlu0 %6848
      %6850 = vrot.lane.b32.xlu0 %v6815, 125
      %v6851 = vpop.permute.xlu0 %6850
      %6852 = vrot.lane.b32.xlu0 %v6816, 125
      %v6853 = vpop.permute.xlu0 %6852
      %6854 = vrot.lane.b32.xlu0 %v6817, 125
      %v6855 = vpop.permute.xlu0 %6854
      %6856 = vrot.lane.b32.xlu0 %v6818, 125
      %v6857 = vpop.permute.xlu0 %6856
      %6858 = vrot.lane.b32.xlu0 %v6819, 125
      %v6859 = vpop.permute.xlu0 %6858
      %6860 = vrot.lane.b32.xlu0 %v6820, 125
      %v6861 = vpop.permute.xlu0 %6860
      %6862 = vrot.lane.b32.xlu0 %v6821, 125
      %v6863 = vpop.permute.xlu0 %6862
      %6864 = vrot.lane.b32.xlu0 %v6822, 125
      %v6865 = vpop.permute.xlu0 %6864
      %6866 = vrot.lane.b32.xlu0 %v6823, 125
      %v6867 = vpop.permute.xlu0 %6866
      %6868 = vrot.lane.b32.xlu0 %v6824, 125
      %v6869 = vpop.permute.xlu0 %6868
      %6870 = vrot.lane.b32.xlu0 %v6825, 125
      %v6871 = vpop.permute.xlu0 %6870
      %6872 = vrot.lane.b32.xlu0 %v6826, 125
      %v6873 = vpop.permute.xlu0 %6872
      %6874 = vrot.lane.b32.xlu0 %v6827, 125
      %v6875 = vpop.permute.xlu0 %6874
      %v6892 = vrot.slane %v6853, 4
      %v6893 = vsel %vm309, %v6892, %v6845
      %v6894 = vrot.slane %v6845, 4
      %v6895 = vsel %vm309, %v6853, %v6894
      %v6897 = vunpack.c.l.s4 1983009808
      %v6898 = vunpack.c.0.s8 %v6897
      %v6899 = vperm.slane %v6893, %v6898
      %v6901 = vunpack.c.l.s4 1983009808
      %v6902 = vunpack.c.0.s8 %v6901
      %v6903 = vperm.slane %v6895, %v6902
      %v6904 = vrot.slane %v6857, 4
      %v6905 = vsel %vm309, %v6904, %v6849
      %v6906 = vrot.slane %v6849, 4
      %v6907 = vsel %vm309, %v6857, %v6906
      %v6909 = vunpack.c.l.s4 1983009808
      %v6910 = vunpack.c.0.s8 %v6909
      %v6911 = vperm.slane %v6905, %v6910
      %v6913 = vunpack.c.l.s4 1983009808
      %v6914 = vunpack.c.0.s8 %v6913
      %v6915 = vperm.slane %v6907, %v6914
      %v6916 = vrot.slane %v6869, 4
      %v6917 = vsel %vm309, %v6916, %v6861
      %v6918 = vrot.slane %v6861, 4
      %v6919 = vsel %vm309, %v6869, %v6918
      %v6921 = vunpack.c.l.s4 1983009808
      %v6922 = vunpack.c.0.s8 %v6921
      %v6923 = vperm.slane %v6917, %v6922
      %v6925 = vunpack.c.l.s4 1983009808
      %v6926 = vunpack.c.0.s8 %v6925
      %v6927 = vperm.slane %v6919, %v6926
      %v6928 = vrot.slane %v6873, 4
      %v6929 = vsel %vm309, %v6928, %v6865
      %v6930 = vrot.slane %v6865, 4
      %v6931 = vsel %vm309, %v6873, %v6930
      %v6933 = vunpack.c.l.s4 1983009808
      %v6934 = vunpack.c.0.s8 %v6933
      %v6935 = vperm.slane %v6929, %v6934
      %v6937 = vunpack.c.l.s4 1983009808
      %v6938 = vunpack.c.0.s8 %v6937
      %v6939 = vperm.slane %v6931, %v6938
      %v6940 = vrot.slane %v6911, 4
      %v6941 = vsel %vm309, %v6940, %v6899
      %v6942 = vrot.slane %v6899, 4
      %v6943 = vsel %vm309, %v6911, %v6942
      %v6945 = vunpack.c.l.s4 1934713408
      %v6946 = vunpack.c.0.s8 %v6945
      %v6947 = vperm.slane %v6941, %v6946
      %v6949 = vunpack.c.l.s4 1934713408
      %v6950 = vunpack.c.0.s8 %v6949
      %v6951 = vperm.slane %v6943, %v6950
      %v6952 = vrot.slane %v6915, 4
      %v6953 = vsel %vm309, %v6952, %v6903
      %v6954 = vrot.slane %v6903, 4
      %v6955 = vsel %vm309, %v6915, %v6954
      %v6957 = vunpack.c.l.s4 1934713408
      %v6958 = vunpack.c.0.s8 %v6957
      %v6959 = vperm.slane %v6953, %v6958
      %v6961 = vunpack.c.l.s4 1934713408
      %v6962 = vunpack.c.0.s8 %v6961
      %v6963 = vperm.slane %v6955, %v6962
      %v6964 = vrot.slane %v6935, 4
      %v6965 = vsel %vm309, %v6964, %v6923
      %v6966 = vrot.slane %v6923, 4
      %v6967 = vsel %vm309, %v6935, %v6966
      %v6969 = vunpack.c.l.s4 1934713408
      %v6970 = vunpack.c.0.s8 %v6969
      %v6971 = vperm.slane %v6965, %v6970
      %v6973 = vunpack.c.l.s4 1934713408
      %v6974 = vunpack.c.0.s8 %v6973
      %v6975 = vperm.slane %v6967, %v6974
      %v6976 = vrot.slane %v6939, 4
      %v6977 = vsel %vm309, %v6976, %v6927
      %v6978 = vrot.slane %v6927, 4
      %v6979 = vsel %vm309, %v6939, %v6978
      %v6981 = vunpack.c.l.s4 1934713408
      %v6982 = vunpack.c.0.s8 %v6981
      %v6983 = vperm.slane %v6977, %v6982
      %v6985 = vunpack.c.l.s4 1934713408
      %v6986 = vunpack.c.0.s8 %v6985
      %v6987 = vperm.slane %v6979, %v6986
      %v6988 = vrot.slane %v6971, 4
      %v6989 = vsel %vm309, %v6988, %v6947
      %v6990 = vrot.slane %v6947, 4
      %v6991 = vsel %vm309, %v6971, %v6990
      %v6992 = vrot.slane %v6975, 4
      %v6993 = vsel %vm309, %v6992, %v6951
      %v6994 = vrot.slane %v6951, 4
      %v6995 = vsel %vm309, %v6975, %v6994
      %v6996 = vrot.slane %v6983, 4
      %v6997 = vsel %vm309, %v6996, %v6959
      %v6998 = vrot.slane %v6959, 4
      %v6999 = vsel %vm309, %v6983, %v6998
      %v7000 = vrot.slane %v6987, 4
      %v7001 = vsel %vm309, %v7000, %v6963
      %v7002 = vrot.slane %v6963, 4
      %v7003 = vsel %vm309, %v6987, %v7002
      %v7004 = vrot.slane %v6855, 4
      %v7005 = vsel %vm309, %v7004, %v6847
      %v7006 = vrot.slane %v6847, 4
      %v7007 = vsel %vm309, %v6855, %v7006
      %v7009 = vunpack.c.l.s4 1983009808
      %v7010 = vunpack.c.0.s8 %v7009
      %v7011 = vperm.slane %v7005, %v7010
      %v7013 = vunpack.c.l.s4 1983009808
      %v7014 = vunpack.c.0.s8 %v7013
      %v7015 = vperm.slane %v7007, %v7014
      %v7016 = vrot.slane %v6859, 4
      %v7017 = vsel %vm309, %v7016, %v6851
      %v7018 = vrot.slane %v6851, 4
      %v7019 = vsel %vm309, %v6859, %v7018
      %v7021 = vunpack.c.l.s4 1983009808
      %v7022 = vunpack.c.0.s8 %v7021
      %v7023 = vperm.slane %v7017, %v7022
      %v7025 = vunpack.c.l.s4 1983009808
      %v7026 = vunpack.c.0.s8 %v7025
      %v7027 = vperm.slane %v7019, %v7026
      %v7028 = vrot.slane %v6871, 4
      %v7029 = vsel %vm309, %v7028, %v6863
      %v7030 = vrot.slane %v6863, 4
      %v7031 = vsel %vm309, %v6871, %v7030
      %v7033 = vunpack.c.l.s4 1983009808
      %v7034 = vunpack.c.0.s8 %v7033
      %v7035 = vperm.slane %v7029, %v7034
      %v7037 = vunpack.c.l.s4 1983009808
      %v7038 = vunpack.c.0.s8 %v7037
      %v7039 = vperm.slane %v7031, %v7038
      %v7040 = vrot.slane %v6875, 4
      %v7041 = vsel %vm309, %v7040, %v6867
      %v7042 = vrot.slane %v6867, 4
      %v7043 = vsel %vm309, %v6875, %v7042
      %v7045 = vunpack.c.l.s4 1983009808
      %v7046 = vunpack.c.0.s8 %v7045
      %v7047 = vperm.slane %v7041, %v7046
      %v7049 = vunpack.c.l.s4 1983009808
      %v7050 = vunpack.c.0.s8 %v7049
      %v7051 = vperm.slane %v7043, %v7050
      %v7052 = vrot.slane %v7023, 4
      %v7053 = vsel %vm309, %v7052, %v7011
      %v7054 = vrot.slane %v7011, 4
      %v7055 = vsel %vm309, %v7023, %v7054
      %v7057 = vunpack.c.l.s4 1934713408
      %v7058 = vunpack.c.0.s8 %v7057
      %v7059 = vperm.slane %v7053, %v7058
      %v7061 = vunpack.c.l.s4 1934713408
      %v7062 = vunpack.c.0.s8 %v7061
      %v7063 = vperm.slane %v7055, %v7062
      %v7064 = vrot.slane %v7027, 4
      %v7065 = vsel %vm309, %v7064, %v7015
      %v7066 = vrot.slane %v7015, 4
      %v7067 = vsel %vm309, %v7027, %v7066
      %v7069 = vunpack.c.l.s4 1934713408
      %v7070 = vunpack.c.0.s8 %v7069
      %v7071 = vperm.slane %v7065, %v7070
      %v7073 = vunpack.c.l.s4 1934713408
      %v7074 = vunpack.c.0.s8 %v7073
      %v7075 = vperm.slane %v7067, %v7074
      %v7076 = vrot.slane %v7047, 4
      %v7077 = vsel %vm309, %v7076, %v7035
      %v7078 = vrot.slane %v7035, 4
      %v7079 = vsel %vm309, %v7047, %v7078
      %v7081 = vunpack.c.l.s4 1934713408
      %v7082 = vunpack.c.0.s8 %v7081
      %v7083 = vperm.slane %v7077, %v7082
      %v7085 = vunpack.c.l.s4 1934713408
      %v7086 = vunpack.c.0.s8 %v7085
      %v7087 = vperm.slane %v7079, %v7086
      %v7088 = vrot.slane %v7051, 4
      %v7089 = vsel %vm309, %v7088, %v7039
      %v7090 = vrot.slane %v7039, 4
      %v7091 = vsel %vm309, %v7051, %v7090
      %v7093 = vunpack.c.l.s4 1934713408
      %v7094 = vunpack.c.0.s8 %v7093
      %v7095 = vperm.slane %v7089, %v7094
      %v7097 = vunpack.c.l.s4 1934713408
      %v7098 = vunpack.c.0.s8 %v7097
      %v7099 = vperm.slane %v7091, %v7098
      %v7100 = vrot.slane %v7083, 4
      %v7101 = vsel %vm309, %v7100, %v7059
      %v7102 = vrot.slane %v7059, 4
      %v7103 = vsel %vm309, %v7083, %v7102
      %v7104 = vrot.slane %v7087, 4
      %v7105 = vsel %vm309, %v7104, %v7063
      %v7106 = vrot.slane %v7063, 4
      %v7107 = vsel %vm309, %v7087, %v7106
      %v7108 = vrot.slane %v7095, 4
      %v7109 = vsel %vm309, %v7108, %v7071
      %v7110 = vrot.slane %v7071, 4
      %v7111 = vsel %vm309, %v7095, %v7110
      %v7112 = vrot.slane %v7099, 4
      %v7113 = vsel %vm309, %v7112, %v7075
      %v7114 = vrot.slane %v7075, 4
      %v7115 = vsel %vm309, %v7099, %v7114
      %7117 = vrot.lane.b32.xlu0 %v6991, 16
      %v7118 = vpop.permute.xlu0 %7117
      %7121 = vrot.lane.b32.xlu0 %v6993, 32
      %v7122 = vpop.permute.xlu0 %7121
      %7125 = vrot.lane.b32.xlu0 %v6995, 48
      %v7126 = vpop.permute.xlu0 %7125
      %7129 = vrot.lane.b32.xlu0 %v6997, 64
      %v7130 = vpop.permute.xlu0 %7129
      %7133 = vrot.lane.b32.xlu0 %v6999, 80
      %v7134 = vpop.permute.xlu0 %7133
      %7137 = vrot.lane.b32.xlu0 %v7001, 96
      %v7138 = vpop.permute.xlu0 %7137
      %7141 = vrot.lane.b32.xlu0 %v7003, 112
      %v7142 = vpop.permute.xlu0 %7141
      %7145 = vrot.lane.b32.xlu0 %v7103, 16
      %v7146 = vpop.permute.xlu0 %7145
      %7149 = vrot.lane.b32.xlu0 %v7105, 32
      %v7150 = vpop.permute.xlu0 %7149
      %7153 = vrot.lane.b32.xlu0 %v7107, 48
      %v7154 = vpop.permute.xlu0 %7153
      %7157 = vrot.lane.b32.xlu0 %v7109, 64
      %v7158 = vpop.permute.xlu0 %7157
      %7161 = vrot.lane.b32.xlu0 %v7111, 80
      %v7162 = vpop.permute.xlu0 %7161
      %7165 = vrot.lane.b32.xlu0 %v7113, 96
      %v7166 = vpop.permute.xlu0 %7165
      %7169 = vrot.lane.b32.xlu0 %v7115, 112
      %v7170 = vpop.permute.xlu0 %7169
      %v7172 = vsel %vm589, %v6989, %v7118
      %v7173 = vsel %vm591, %v7172, %v7122
      %v7174 = vsel %vm593, %v7173, %v7126
      %v7175 = vsel %vm595, %v7174, %v7130
      %v7176 = vsel %vm597, %v7175, %v7134
      %v7177 = vsel %vm599, %v7176, %v7138
      %v7178 = vsel %vm601, %v7177, %v7142
      %v7179 = vsel %vm589, %v7101, %v7146
      %v7180 = vsel %vm591, %v7179, %v7150
      %v7181 = vsel %vm593, %v7180, %v7154
      %v7182 = vsel %vm595, %v7181, %v7158
      %v7183 = vsel %vm597, %v7182, %v7162
      %v7184 = vsel %vm599, %v7183, %v7166
      %v7185 = vsel %vm601, %v7184, %v7170
      %7186 = vst [vmem:[#allocation3 + $0x120] sm:$0xff] %v7178
      %7187 = vst [vmem:[#allocation3 + $0x128] sm:$0xff] %v7185
      %v7188 = vld [vmem:[#allocation2 + $0x3] sm:$0xff]
      %v7189 = vld [vmem:[#allocation2 + $0xb] sm:$0xff]
      %v7190 = vld [vmem:[#allocation2 + $0x1b] sm:$0xff]
      %v7191 = vld [vmem:[#allocation2 + $0x23] sm:$0xff]
      %v7192 = vld [vmem:[#allocation2 + $0x33] sm:$0xff]
      %v7193 = vld [vmem:[#allocation2 + $0x3b] sm:$0xff]
      %v7194 = vld [vmem:[#allocation2 + $0x4b] sm:$0xff]
      %v7195 = vld [vmem:[#allocation2 + $0x53] sm:$0xff]
      %v7196 = vld [vmem:[#allocation2 + $0x63] sm:$0xff]
      %v7197 = vld [vmem:[#allocation2 + $0x6b] sm:$0xff]
      %v7198 = vld [vmem:[#allocation2 + $0x7b] sm:$0xff]
      %v7199 = vld [vmem:[#allocation2 + $0x83] sm:$0xff]
      %v7200 = vld [vmem:[#allocation2 + $0x93] sm:$0xff]
      %v7201 = vld [vmem:[#allocation2 + $0x9b] sm:$0xff]
      %v7202 = vld [vmem:[#allocation2 + $0xab] sm:$0xff]
      %v7203 = vld [vmem:[#allocation2 + $0xb3] sm:$0xff]
      %7220 = vrot.lane.b32.xlu0 %v7188, 124
      %v7221 = vpop.permute.xlu0 %7220
      %7222 = vrot.lane.b32.xlu0 %v7189, 124
      %v7223 = vpop.permute.xlu0 %7222
      %7224 = vrot.lane.b32.xlu0 %v7190, 124
      %v7225 = vpop.permute.xlu0 %7224
      %7226 = vrot.lane.b32.xlu0 %v7191, 124
      %v7227 = vpop.permute.xlu0 %7226
      %7228 = vrot.lane.b32.xlu0 %v7192, 124
      %v7229 = vpop.permute.xlu0 %7228
      %7230 = vrot.lane.b32.xlu0 %v7193, 124
      %v7231 = vpop.permute.xlu0 %7230
      %7232 = vrot.lane.b32.xlu0 %v7194, 124
      %v7233 = vpop.permute.xlu0 %7232
      %7234 = vrot.lane.b32.xlu0 %v7195, 124
      %v7235 = vpop.permute.xlu0 %7234
      %7236 = vrot.lane.b32.xlu0 %v7196, 124
      %v7237 = vpop.permute.xlu0 %7236
      %7238 = vrot.lane.b32.xlu0 %v7197, 124
      %v7239 = vpop.permute.xlu0 %7238
      %7240 = vrot.lane.b32.xlu0 %v7198, 124
      %v7241 = vpop.permute.xlu0 %7240
      %7242 = vrot.lane.b32.xlu0 %v7199, 124
      %v7243 = vpop.permute.xlu0 %7242
      %7244 = vrot.lane.b32.xlu0 %v7200, 124
      %v7245 = vpop.permute.xlu0 %7244
      %7246 = vrot.lane.b32.xlu0 %v7201, 124
      %v7247 = vpop.permute.xlu0 %7246
      %7248 = vrot.lane.b32.xlu0 %v7202, 124
      %v7249 = vpop.permute.xlu0 %7248
      %7250 = vrot.lane.b32.xlu0 %v7203, 124
      %v7251 = vpop.permute.xlu0 %7250
      %v7268 = vrot.slane %v7229, 4
      %v7269 = vsel %vm309, %v7268, %v7221
      %v7270 = vrot.slane %v7221, 4
      %v7271 = vsel %vm309, %v7229, %v7270
      %v7273 = vunpack.c.l.s4 1983009808
      %v7274 = vunpack.c.0.s8 %v7273
      %v7275 = vperm.slane %v7269, %v7274
      %v7277 = vunpack.c.l.s4 1983009808
      %v7278 = vunpack.c.0.s8 %v7277
      %v7279 = vperm.slane %v7271, %v7278
      %v7280 = vrot.slane %v7233, 4
      %v7281 = vsel %vm309, %v7280, %v7225
      %v7282 = vrot.slane %v7225, 4
      %v7283 = vsel %vm309, %v7233, %v7282
      %v7285 = vunpack.c.l.s4 1983009808
      %v7286 = vunpack.c.0.s8 %v7285
      %v7287 = vperm.slane %v7281, %v7286
      %v7289 = vunpack.c.l.s4 1983009808
      %v7290 = vunpack.c.0.s8 %v7289
      %v7291 = vperm.slane %v7283, %v7290
      %v7292 = vrot.slane %v7245, 4
      %v7293 = vsel %vm309, %v7292, %v7237
      %v7294 = vrot.slane %v7237, 4
      %v7295 = vsel %vm309, %v7245, %v7294
      %v7297 = vunpack.c.l.s4 1983009808
      %v7298 = vunpack.c.0.s8 %v7297
      %v7299 = vperm.slane %v7293, %v7298
      %v7301 = vunpack.c.l.s4 1983009808
      %v7302 = vunpack.c.0.s8 %v7301
      %v7303 = vperm.slane %v7295, %v7302
      %v7304 = vrot.slane %v7249, 4
      %v7305 = vsel %vm309, %v7304, %v7241
      %v7306 = vrot.slane %v7241, 4
      %v7307 = vsel %vm309, %v7249, %v7306
      %v7309 = vunpack.c.l.s4 1983009808
      %v7310 = vunpack.c.0.s8 %v7309
      %v7311 = vperm.slane %v7305, %v7310
      %v7313 = vunpack.c.l.s4 1983009808
      %v7314 = vunpack.c.0.s8 %v7313
      %v7315 = vperm.slane %v7307, %v7314
      %v7316 = vrot.slane %v7287, 4
      %v7317 = vsel %vm309, %v7316, %v7275
      %v7318 = vrot.slane %v7275, 4
      %v7319 = vsel %vm309, %v7287, %v7318
      %v7321 = vunpack.c.l.s4 1934713408
      %v7322 = vunpack.c.0.s8 %v7321
      %v7323 = vperm.slane %v7317, %v7322
      %v7325 = vunpack.c.l.s4 1934713408
      %v7326 = vunpack.c.0.s8 %v7325
      %v7327 = vperm.slane %v7319, %v7326
      %v7328 = vrot.slane %v7291, 4
      %v7329 = vsel %vm309, %v7328, %v7279
      %v7330 = vrot.slane %v7279, 4
      %v7331 = vsel %vm309, %v7291, %v7330
      %v7333 = vunpack.c.l.s4 1934713408
      %v7334 = vunpack.c.0.s8 %v7333
      %v7335 = vperm.slane %v7329, %v7334
      %v7337 = vunpack.c.l.s4 1934713408
      %v7338 = vunpack.c.0.s8 %v7337
      %v7339 = vperm.slane %v7331, %v7338
      %v7340 = vrot.slane %v7311, 4
      %v7341 = vsel %vm309, %v7340, %v7299
      %v7342 = vrot.slane %v7299, 4
      %v7343 = vsel %vm309, %v7311, %v7342
      %v7345 = vunpack.c.l.s4 1934713408
      %v7346 = vunpack.c.0.s8 %v7345
      %v7347 = vperm.slane %v7341, %v7346
      %v7349 = vunpack.c.l.s4 1934713408
      %v7350 = vunpack.c.0.s8 %v7349
      %v7351 = vperm.slane %v7343, %v7350
      %v7352 = vrot.slane %v7315, 4
      %v7353 = vsel %vm309, %v7352, %v7303
      %v7354 = vrot.slane %v7303, 4
      %v7355 = vsel %vm309, %v7315, %v7354
      %v7357 = vunpack.c.l.s4 1934713408
      %v7358 = vunpack.c.0.s8 %v7357
      %v7359 = vperm.slane %v7353, %v7358
      %v7361 = vunpack.c.l.s4 1934713408
      %v7362 = vunpack.c.0.s8 %v7361
      %v7363 = vperm.slane %v7355, %v7362
      %v7364 = vrot.slane %v7347, 4
      %v7365 = vsel %vm309, %v7364, %v7323
      %v7366 = vrot.slane %v7323, 4
      %v7367 = vsel %vm309, %v7347, %v7366
      %v7368 = vrot.slane %v7351, 4
      %v7369 = vsel %vm309, %v7368, %v7327
      %v7370 = vrot.slane %v7327, 4
      %v7371 = vsel %vm309, %v7351, %v7370
      %v7372 = vrot.slane %v7359, 4
      %v7373 = vsel %vm309, %v7372, %v7335
      %v7374 = vrot.slane %v7335, 4
      %v7375 = vsel %vm309, %v7359, %v7374
      %v7376 = vrot.slane %v7363, 4
      %v7377 = vsel %vm309, %v7376, %v7339
      %v7378 = vrot.slane %v7339, 4
      %v7379 = vsel %vm309, %v7363, %v7378
      %v7380 = vrot.slane %v7231, 4
      %v7381 = vsel %vm309, %v7380, %v7223
      %v7382 = vrot.slane %v7223, 4
      %v7383 = vsel %vm309, %v7231, %v7382
      %v7385 = vunpack.c.l.s4 1983009808
      %v7386 = vunpack.c.0.s8 %v7385
      %v7387 = vperm.slane %v7381, %v7386
      %v7389 = vunpack.c.l.s4 1983009808
      %v7390 = vunpack.c.0.s8 %v7389
      %v7391 = vperm.slane %v7383, %v7390
      %v7392 = vrot.slane %v7235, 4
      %v7393 = vsel %vm309, %v7392, %v7227
      %v7394 = vrot.slane %v7227, 4
      %v7395 = vsel %vm309, %v7235, %v7394
      %v7397 = vunpack.c.l.s4 1983009808
      %v7398 = vunpack.c.0.s8 %v7397
      %v7399 = vperm.slane %v7393, %v7398
      %v7401 = vunpack.c.l.s4 1983009808
      %v7402 = vunpack.c.0.s8 %v7401
      %v7403 = vperm.slane %v7395, %v7402
      %v7404 = vrot.slane %v7247, 4
      %v7405 = vsel %vm309, %v7404, %v7239
      %v7406 = vrot.slane %v7239, 4
      %v7407 = vsel %vm309, %v7247, %v7406
      %v7409 = vunpack.c.l.s4 1983009808
      %v7410 = vunpack.c.0.s8 %v7409
      %v7411 = vperm.slane %v7405, %v7410
      %v7413 = vunpack.c.l.s4 1983009808
      %v7414 = vunpack.c.0.s8 %v7413
      %v7415 = vperm.slane %v7407, %v7414
      %v7416 = vrot.slane %v7251, 4
      %v7417 = vsel %vm309, %v7416, %v7243
      %v7418 = vrot.slane %v7243, 4
      %v7419 = vsel %vm309, %v7251, %v7418
      %v7421 = vunpack.c.l.s4 1983009808
      %v7422 = vunpack.c.0.s8 %v7421
      %v7423 = vperm.slane %v7417, %v7422
      %v7425 = vunpack.c.l.s4 1983009808
      %v7426 = vunpack.c.0.s8 %v7425
      %v7427 = vperm.slane %v7419, %v7426
      %v7428 = vrot.slane %v7399, 4
      %v7429 = vsel %vm309, %v7428, %v7387
      %v7430 = vrot.slane %v7387, 4
      %v7431 = vsel %vm309, %v7399, %v7430
      %v7433 = vunpack.c.l.s4 1934713408
      %v7434 = vunpack.c.0.s8 %v7433
      %v7435 = vperm.slane %v7429, %v7434
      %v7437 = vunpack.c.l.s4 1934713408
      %v7438 = vunpack.c.0.s8 %v7437
      %v7439 = vperm.slane %v7431, %v7438
      %v7440 = vrot.slane %v7403, 4
      %v7441 = vsel %vm309, %v7440, %v7391
      %v7442 = vrot.slane %v7391, 4
      %v7443 = vsel %vm309, %v7403, %v7442
      %v7445 = vunpack.c.l.s4 1934713408
      %v7446 = vunpack.c.0.s8 %v7445
      %v7447 = vperm.slane %v7441, %v7446
      %v7449 = vunpack.c.l.s4 1934713408
      %v7450 = vunpack.c.0.s8 %v7449
      %v7451 = vperm.slane %v7443, %v7450
      %v7452 = vrot.slane %v7423, 4
      %v7453 = vsel %vm309, %v7452, %v7411
      %v7454 = vrot.slane %v7411, 4
      %v7455 = vsel %vm309, %v7423, %v7454
      %v7457 = vunpack.c.l.s4 1934713408
      %v7458 = vunpack.c.0.s8 %v7457
      %v7459 = vperm.slane %v7453, %v7458
      %v7461 = vunpack.c.l.s4 1934713408
      %v7462 = vunpack.c.0.s8 %v7461
      %v7463 = vperm.slane %v7455, %v7462
      %v7464 = vrot.slane %v7427, 4
      %v7465 = vsel %vm309, %v7464, %v7415
      %v7466 = vrot.slane %v7415, 4
      %v7467 = vsel %vm309, %v7427, %v7466
      %v7469 = vunpack.c.l.s4 1934713408
      %v7470 = vunpack.c.0.s8 %v7469
      %v7471 = vperm.slane %v7465, %v7470
      %v7473 = vunpack.c.l.s4 1934713408
      %v7474 = vunpack.c.0.s8 %v7473
      %v7475 = vperm.slane %v7467, %v7474
      %v7476 = vrot.slane %v7459, 4
      %v7477 = vsel %vm309, %v7476, %v7435
      %v7478 = vrot.slane %v7435, 4
      %v7479 = vsel %vm309, %v7459, %v7478
      %v7480 = vrot.slane %v7463, 4
      %v7481 = vsel %vm309, %v7480, %v7439
      %v7482 = vrot.slane %v7439, 4
      %v7483 = vsel %vm309, %v7463, %v7482
      %v7484 = vrot.slane %v7471, 4
      %v7485 = vsel %vm309, %v7484, %v7447
      %v7486 = vrot.slane %v7447, 4
      %v7487 = vsel %vm309, %v7471, %v7486
      %v7488 = vrot.slane %v7475, 4
      %v7489 = vsel %vm309, %v7488, %v7451
      %v7490 = vrot.slane %v7451, 4
      %v7491 = vsel %vm309, %v7475, %v7490
      %7493 = vrot.lane.b32.xlu0 %v7367, 16
      %v7494 = vpop.permute.xlu0 %7493
      %7497 = vrot.lane.b32.xlu0 %v7369, 32
      %v7498 = vpop.permute.xlu0 %7497
      %7501 = vrot.lane.b32.xlu0 %v7371, 48
      %v7502 = vpop.permute.xlu0 %7501
      %7505 = vrot.lane.b32.xlu0 %v7373, 64
      %v7506 = vpop.permute.xlu0 %7505
      %7509 = vrot.lane.b32.xlu0 %v7375, 80
      %v7510 = vpop.permute.xlu0 %7509
      %7513 = vrot.lane.b32.xlu0 %v7377, 96
      %v7514 = vpop.permute.xlu0 %7513
      %7517 = vrot.lane.b32.xlu0 %v7379, 112
      %v7518 = vpop.permute.xlu0 %7517
      %7521 = vrot.lane.b32.xlu0 %v7479, 16
      %v7522 = vpop.permute.xlu0 %7521
      %7525 = vrot.lane.b32.xlu0 %v7481, 32
      %v7526 = vpop.permute.xlu0 %7525
      %7529 = vrot.lane.b32.xlu0 %v7483, 48
      %v7530 = vpop.permute.xlu0 %7529
      %7533 = vrot.lane.b32.xlu0 %v7485, 64
      %v7534 = vpop.permute.xlu0 %7533
      %7537 = vrot.lane.b32.xlu0 %v7487, 80
      %v7538 = vpop.permute.xlu0 %7537
      %7541 = vrot.lane.b32.xlu0 %v7489, 96
      %v7542 = vpop.permute.xlu0 %7541
      %7545 = vrot.lane.b32.xlu0 %v7491, 112
      %v7546 = vpop.permute.xlu0 %7545
      %v7548 = vsel %vm589, %v7365, %v7494
      %v7549 = vsel %vm591, %v7548, %v7498
      %v7550 = vsel %vm593, %v7549, %v7502
      %v7551 = vsel %vm595, %v7550, %v7506
      %v7552 = vsel %vm597, %v7551, %v7510
      %v7553 = vsel %vm599, %v7552, %v7514
      %v7554 = vsel %vm601, %v7553, %v7518
      %v7555 = vsel %vm589, %v7477, %v7522
      %v7556 = vsel %vm591, %v7555, %v7526
      %v7557 = vsel %vm593, %v7556, %v7530
      %v7558 = vsel %vm595, %v7557, %v7534
      %v7559 = vsel %vm597, %v7558, %v7538
      %v7560 = vsel %vm599, %v7559, %v7542
      %v7561 = vsel %vm601, %v7560, %v7546
      %7562 = vst [vmem:[#allocation3 + $0x130] sm:$0xff] %v7554
      %7563 = vst [vmem:[#allocation3 + $0x138] sm:$0xff] %v7561
      %v7564 = vld [vmem:[#allocation2 + $0x4] sm:$0xff]
      %v7565 = vld [vmem:[#allocation2 + $0xc] sm:$0xff]
      %v7566 = vld [vmem:[#allocation2 + $0x1c] sm:$0xff]
      %v7567 = vld [vmem:[#allocation2 + $0x24] sm:$0xff]
      %v7568 = vld [vmem:[#allocation2 + $0x34] sm:$0xff]
      %v7569 = vld [vmem:[#allocation2 + $0x3c] sm:$0xff]
      %v7570 = vld [vmem:[#allocation2 + $0x4c] sm:$0xff]
      %v7571 = vld [vmem:[#allocation2 + $0x54] sm:$0xff]
      %v7572 = vld [vmem:[#allocation2 + $0x64] sm:$0xff]
      %v7573 = vld [vmem:[#allocation2 + $0x6c] sm:$0xff]
      %v7574 = vld [vmem:[#allocation2 + $0x7c] sm:$0xff]
      %v7575 = vld [vmem:[#allocation2 + $0x84] sm:$0xff]
      %v7576 = vld [vmem:[#allocation2 + $0x94] sm:$0xff]
      %v7577 = vld [vmem:[#allocation2 + $0x9c] sm:$0xff]
      %v7578 = vld [vmem:[#allocation2 + $0xac] sm:$0xff]
      %v7579 = vld [vmem:[#allocation2 + $0xb4] sm:$0xff]
      %v7580 = vrot.slane %v7568, 4
      %v7581 = vsel %vm309, %v7580, %v7564
      %v7582 = vrot.slane %v7564, 4
      %v7583 = vsel %vm309, %v7568, %v7582
      %v7585 = vunpack.c.l.s4 1983009808
      %v7586 = vunpack.c.0.s8 %v7585
      %v7587 = vperm.slane %v7581, %v7586
      %v7589 = vunpack.c.l.s4 1983009808
      %v7590 = vunpack.c.0.s8 %v7589
      %v7591 = vperm.slane %v7583, %v7590
      %v7592 = vrot.slane %v7570, 4
      %v7593 = vsel %vm309, %v7592, %v7566
      %v7594 = vrot.slane %v7566, 4
      %v7595 = vsel %vm309, %v7570, %v7594
      %v7597 = vunpack.c.l.s4 1983009808
      %v7598 = vunpack.c.0.s8 %v7597
      %v7599 = vperm.slane %v7593, %v7598
      %v7601 = vunpack.c.l.s4 1983009808
      %v7602 = vunpack.c.0.s8 %v7601
      %v7603 = vperm.slane %v7595, %v7602
      %v7604 = vrot.slane %v7576, 4
      %v7605 = vsel %vm309, %v7604, %v7572
      %v7606 = vrot.slane %v7572, 4
      %v7607 = vsel %vm309, %v7576, %v7606
      %v7609 = vunpack.c.l.s4 1983009808
      %v7610 = vunpack.c.0.s8 %v7609
      %v7611 = vperm.slane %v7605, %v7610
      %v7613 = vunpack.c.l.s4 1983009808
      %v7614 = vunpack.c.0.s8 %v7613
      %v7615 = vperm.slane %v7607, %v7614
      %v7616 = vrot.slane %v7578, 4
      %v7617 = vsel %vm309, %v7616, %v7574
      %v7618 = vrot.slane %v7574, 4
      %v7619 = vsel %vm309, %v7578, %v7618
      %v7621 = vunpack.c.l.s4 1983009808
      %v7622 = vunpack.c.0.s8 %v7621
      %v7623 = vperm.slane %v7617, %v7622
      %v7625 = vunpack.c.l.s4 1983009808
      %v7626 = vunpack.c.0.s8 %v7625
      %v7627 = vperm.slane %v7619, %v7626
      %v7628 = vrot.slane %v7599, 4
      %v7629 = vsel %vm309, %v7628, %v7587
      %v7630 = vrot.slane %v7587, 4
      %v7631 = vsel %vm309, %v7599, %v7630
      %v7633 = vunpack.c.l.s4 1934713408
      %v7634 = vunpack.c.0.s8 %v7633
      %v7635 = vperm.slane %v7629, %v7634
      %v7637 = vunpack.c.l.s4 1934713408
      %v7638 = vunpack.c.0.s8 %v7637
      %v7639 = vperm.slane %v7631, %v7638
      %v7640 = vrot.slane %v7603, 4
      %v7641 = vsel %vm309, %v7640, %v7591
      %v7642 = vrot.slane %v7591, 4
      %v7643 = vsel %vm309, %v7603, %v7642
      %v7645 = vunpack.c.l.s4 1934713408
      %v7646 = vunpack.c.0.s8 %v7645
      %v7647 = vperm.slane %v7641, %v7646
      %v7649 = vunpack.c.l.s4 1934713408
      %v7650 = vunpack.c.0.s8 %v7649
      %v7651 = vperm.slane %v7643, %v7650
      %v7652 = vrot.slane %v7623, 4
      %v7653 = vsel %vm309, %v7652, %v7611
      %v7654 = vrot.slane %v7611, 4
      %v7655 = vsel %vm309, %v7623, %v7654
      %v7657 = vunpack.c.l.s4 1934713408
      %v7658 = vunpack.c.0.s8 %v7657
      %v7659 = vperm.slane %v7653, %v7658
      %v7661 = vunpack.c.l.s4 1934713408
      %v7662 = vunpack.c.0.s8 %v7661
      %v7663 = vperm.slane %v7655, %v7662
      %v7664 = vrot.slane %v7627, 4
      %v7665 = vsel %vm309, %v7664, %v7615
      %v7666 = vrot.slane %v7615, 4
      %v7667 = vsel %vm309, %v7627, %v7666
      %v7669 = vunpack.c.l.s4 1934713408
      %v7670 = vunpack.c.0.s8 %v7669
      %v7671 = vperm.slane %v7665, %v7670
      %v7673 = vunpack.c.l.s4 1934713408
      %v7674 = vunpack.c.0.s8 %v7673
      %v7675 = vperm.slane %v7667, %v7674
      %v7676 = vrot.slane %v7659, 4
      %v7677 = vsel %vm309, %v7676, %v7635
      %v7678 = vrot.slane %v7635, 4
      %v7679 = vsel %vm309, %v7659, %v7678
      %v7680 = vrot.slane %v7663, 4
      %v7681 = vsel %vm309, %v7680, %v7639
      %v7682 = vrot.slane %v7639, 4
      %v7683 = vsel %vm309, %v7663, %v7682
      %v7684 = vrot.slane %v7671, 4
      %v7685 = vsel %vm309, %v7684, %v7647
      %v7686 = vrot.slane %v7647, 4
      %v7687 = vsel %vm309, %v7671, %v7686
      %v7688 = vrot.slane %v7675, 4
      %v7689 = vsel %vm309, %v7688, %v7651
      %v7690 = vrot.slane %v7651, 4
      %v7691 = vsel %vm309, %v7675, %v7690
      %v7692 = vrot.slane %v7569, 4
      %v7693 = vsel %vm309, %v7692, %v7565
      %v7694 = vrot.slane %v7565, 4
      %v7695 = vsel %vm309, %v7569, %v7694
      %v7697 = vunpack.c.l.s4 1983009808
      %v7698 = vunpack.c.0.s8 %v7697
      %v7699 = vperm.slane %v7693, %v7698
      %v7701 = vunpack.c.l.s4 1983009808
      %v7702 = vunpack.c.0.s8 %v7701
      %v7703 = vperm.slane %v7695, %v7702
      %v7704 = vrot.slane %v7571, 4
      %v7705 = vsel %vm309, %v7704, %v7567
      %v7706 = vrot.slane %v7567, 4
      %v7707 = vsel %vm309, %v7571, %v7706
      %v7709 = vunpack.c.l.s4 1983009808
      %v7710 = vunpack.c.0.s8 %v7709
      %v7711 = vperm.slane %v7705, %v7710
      %v7713 = vunpack.c.l.s4 1983009808
      %v7714 = vunpack.c.0.s8 %v7713
      %v7715 = vperm.slane %v7707, %v7714
      %v7716 = vrot.slane %v7577, 4
      %v7717 = vsel %vm309, %v7716, %v7573
      %v7718 = vrot.slane %v7573, 4
      %v7719 = vsel %vm309, %v7577, %v7718
      %v7721 = vunpack.c.l.s4 1983009808
      %v7722 = vunpack.c.0.s8 %v7721
      %v7723 = vperm.slane %v7717, %v7722
      %v7725 = vunpack.c.l.s4 1983009808
      %v7726 = vunpack.c.0.s8 %v7725
      %v7727 = vperm.slane %v7719, %v7726
      %v7728 = vrot.slane %v7579, 4
      %v7729 = vsel %vm309, %v7728, %v7575
      %v7730 = vrot.slane %v7575, 4
      %v7731 = vsel %vm309, %v7579, %v7730
      %v7733 = vunpack.c.l.s4 1983009808
      %v7734 = vunpack.c.0.s8 %v7733
      %v7735 = vperm.slane %v7729, %v7734
      %v7737 = vunpack.c.l.s4 1983009808
      %v7738 = vunpack.c.0.s8 %v7737
      %v7739 = vperm.slane %v7731, %v7738
      %v7740 = vrot.slane %v7711, 4
      %v7741 = vsel %vm309, %v7740, %v7699
      %v7742 = vrot.slane %v7699, 4
      %v7743 = vsel %vm309, %v7711, %v7742
      %v7745 = vunpack.c.l.s4 1934713408
      %v7746 = vunpack.c.0.s8 %v7745
      %v7747 = vperm.slane %v7741, %v7746
      %v7749 = vunpack.c.l.s4 1934713408
      %v7750 = vunpack.c.0.s8 %v7749
      %v7751 = vperm.slane %v7743, %v7750
      %v7752 = vrot.slane %v7715, 4
      %v7753 = vsel %vm309, %v7752, %v7703
      %v7754 = vrot.slane %v7703, 4
      %v7755 = vsel %vm309, %v7715, %v7754
      %v7757 = vunpack.c.l.s4 1934713408
      %v7758 = vunpack.c.0.s8 %v7757
      %v7759 = vperm.slane %v7753, %v7758
      %v7761 = vunpack.c.l.s4 1934713408
      %v7762 = vunpack.c.0.s8 %v7761
      %v7763 = vperm.slane %v7755, %v7762
      %v7764 = vrot.slane %v7735, 4
      %v7765 = vsel %vm309, %v7764, %v7723
      %v7766 = vrot.slane %v7723, 4
      %v7767 = vsel %vm309, %v7735, %v7766
      %v7769 = vunpack.c.l.s4 1934713408
      %v7770 = vunpack.c.0.s8 %v7769
      %v7771 = vperm.slane %v7765, %v7770
      %v7773 = vunpack.c.l.s4 1934713408
      %v7774 = vunpack.c.0.s8 %v7773
      %v7775 = vperm.slane %v7767, %v7774
      %v7776 = vrot.slane %v7739, 4
      %v7777 = vsel %vm309, %v7776, %v7727
      %v7778 = vrot.slane %v7727, 4
      %v7779 = vsel %vm309, %v7739, %v7778
      %v7781 = vunpack.c.l.s4 1934713408
      %v7782 = vunpack.c.0.s8 %v7781
      %v7783 = vperm.slane %v7777, %v7782
      %v7785 = vunpack.c.l.s4 1934713408
      %v7786 = vunpack.c.0.s8 %v7785
      %v7787 = vperm.slane %v7779, %v7786
      %v7788 = vrot.slane %v7771, 4
      %v7789 = vsel %vm309, %v7788, %v7747
      %v7790 = vrot.slane %v7747, 4
      %v7791 = vsel %vm309, %v7771, %v7790
      %v7792 = vrot.slane %v7775, 4
      %v7793 = vsel %vm309, %v7792, %v7751
      %v7794 = vrot.slane %v7751, 4
      %v7795 = vsel %vm309, %v7775, %v7794
      %v7796 = vrot.slane %v7783, 4
      %v7797 = vsel %vm309, %v7796, %v7759
      %v7798 = vrot.slane %v7759, 4
      %v7799 = vsel %vm309, %v7783, %v7798
      %v7800 = vrot.slane %v7787, 4
      %v7801 = vsel %vm309, %v7800, %v7763
      %v7802 = vrot.slane %v7763, 4
      %v7803 = vsel %vm309, %v7787, %v7802
      %7805 = vrot.lane.b32.xlu0 %v7679, 16
      %v7806 = vpop.permute.xlu0 %7805
      %7809 = vrot.lane.b32.xlu0 %v7681, 32
      %v7810 = vpop.permute.xlu0 %7809
      %7813 = vrot.lane.b32.xlu0 %v7683, 48
      %v7814 = vpop.permute.xlu0 %7813
      %7817 = vrot.lane.b32.xlu0 %v7685, 64
      %v7818 = vpop.permute.xlu0 %7817
      %7821 = vrot.lane.b32.xlu0 %v7687, 80
      %v7822 = vpop.permute.xlu0 %7821
      %7825 = vrot.lane.b32.xlu0 %v7689, 96
      %v7826 = vpop.permute.xlu0 %7825
      %7829 = vrot.lane.b32.xlu0 %v7691, 112
      %v7830 = vpop.permute.xlu0 %7829
      %7833 = vrot.lane.b32.xlu0 %v7791, 16
      %v7834 = vpop.permute.xlu0 %7833
      %7837 = vrot.lane.b32.xlu0 %v7793, 32
      %v7838 = vpop.permute.xlu0 %7837
      %7841 = vrot.lane.b32.xlu0 %v7795, 48
      %v7842 = vpop.permute.xlu0 %7841
      %7845 = vrot.lane.b32.xlu0 %v7797, 64
      %v7846 = vpop.permute.xlu0 %7845
      %7849 = vrot.lane.b32.xlu0 %v7799, 80
      %v7850 = vpop.permute.xlu0 %7849
      %7853 = vrot.lane.b32.xlu0 %v7801, 96
      %v7854 = vpop.permute.xlu0 %7853
      %7857 = vrot.lane.b32.xlu0 %v7803, 112
      %v7858 = vpop.permute.xlu0 %7857
      %v7860 = vsel %vm589, %v7677, %v7806
      %v7861 = vsel %vm591, %v7860, %v7810
      %v7862 = vsel %vm593, %v7861, %v7814
      %v7863 = vsel %vm595, %v7862, %v7818
      %v7864 = vsel %vm597, %v7863, %v7822
      %v7865 = vsel %vm599, %v7864, %v7826
      %v7866 = vsel %vm601, %v7865, %v7830
      %v7867 = vsel %vm589, %v7789, %v7834
      %v7868 = vsel %vm591, %v7867, %v7838
      %v7869 = vsel %vm593, %v7868, %v7842
      %v7870 = vsel %vm595, %v7869, %v7846
      %v7871 = vsel %vm597, %v7870, %v7850
      %v7872 = vsel %vm599, %v7871, %v7854
      %v7873 = vsel %vm601, %v7872, %v7858
      %7874 = vst [vmem:[#allocation3 + $0x140] sm:$0xff] %v7866
      %7875 = vst [vmem:[#allocation3 + $0x148] sm:$0xff] %v7873
      %v7876 = vld [vmem:[#allocation2 + $0x4] sm:$0xff]
      %v7877 = vld [vmem:[#allocation2 + $0xc] sm:$0xff]
      %v7878 = vld [vmem:[#allocation2 + $0x1c] sm:$0xff]
      %v7879 = vld [vmem:[#allocation2 + $0x24] sm:$0xff]
      %v7880 = vld [vmem:[#allocation2 + $0x34] sm:$0xff]
      %v7881 = vld [vmem:[#allocation2 + $0x3c] sm:$0xff]
      %v7882 = vld [vmem:[#allocation2 + $0x4c] sm:$0xff]
      %v7883 = vld [vmem:[#allocation2 + $0x54] sm:$0xff]
      %v7884 = vld [vmem:[#allocation2 + $0x64] sm:$0xff]
      %v7885 = vld [vmem:[#allocation2 + $0x6c] sm:$0xff]
      %v7886 = vld [vmem:[#allocation2 + $0x7c] sm:$0xff]
      %v7887 = vld [vmem:[#allocation2 + $0x84] sm:$0xff]
      %v7888 = vld [vmem:[#allocation2 + $0x94] sm:$0xff]
      %v7889 = vld [vmem:[#allocation2 + $0x9c] sm:$0xff]
      %v7890 = vld [vmem:[#allocation2 + $0xac] sm:$0xff]
      %v7891 = vld [vmem:[#allocation2 + $0xb4] sm:$0xff]
      %7908 = vrot.lane.b32.xlu0 %v7876, 127
      %v7909 = vpop.permute.xlu0 %7908
      %7910 = vrot.lane.b32.xlu0 %v7877, 127
      %v7911 = vpop.permute.xlu0 %7910
      %7912 = vrot.lane.b32.xlu0 %v7878, 127
      %v7913 = vpop.permute.xlu0 %7912
      %7914 = vrot.lane.b32.xlu0 %v7879, 127
      %v7915 = vpop.permute.xlu0 %7914
      %7916 = vrot.lane.b32.xlu0 %v7880, 127
      %v7917 = vpop.permute.xlu0 %7916
      %7918 = vrot.lane.b32.xlu0 %v7881, 127
      %v7919 = vpop.permute.xlu0 %7918
      %7920 = vrot.lane.b32.xlu0 %v7882, 127
      %v7921 = vpop.permute.xlu0 %7920
      %7922 = vrot.lane.b32.xlu0 %v7883, 127
      %v7923 = vpop.permute.xlu0 %7922
      %7924 = vrot.lane.b32.xlu0 %v7884, 127
      %v7925 = vpop.permute.xlu0 %7924
      %7926 = vrot.lane.b32.xlu0 %v7885, 127
      %v7927 = vpop.permute.xlu0 %7926
      %7928 = vrot.lane.b32.xlu0 %v7886, 127
      %v7929 = vpop.permute.xlu0 %7928
      %7930 = vrot.lane.b32.xlu0 %v7887, 127
      %v7931 = vpop.permute.xlu0 %7930
      %7932 = vrot.lane.b32.xlu0 %v7888, 127
      %v7933 = vpop.permute.xlu0 %7932
      %7934 = vrot.lane.b32.xlu0 %v7889, 127
      %v7935 = vpop.permute.xlu0 %7934
      %7936 = vrot.lane.b32.xlu0 %v7890, 127
      %v7937 = vpop.permute.xlu0 %7936
      %7938 = vrot.lane.b32.xlu0 %v7891, 127
      %v7939 = vpop.permute.xlu0 %7938
      %v7956 = vrot.slane %v7917, 4
      %v7957 = vsel %vm309, %v7956, %v7909
      %v7958 = vrot.slane %v7909, 4
      %v7959 = vsel %vm309, %v7917, %v7958
      %v7961 = vunpack.c.l.s4 1983009808
      %v7962 = vunpack.c.0.s8 %v7961
      %v7963 = vperm.slane %v7957, %v7962
      %v7965 = vunpack.c.l.s4 1983009808
      %v7966 = vunpack.c.0.s8 %v7965
      %v7967 = vperm.slane %v7959, %v7966
      %v7968 = vrot.slane %v7921, 4
      %v7969 = vsel %vm309, %v7968, %v7913
      %v7970 = vrot.slane %v7913, 4
      %v7971 = vsel %vm309, %v7921, %v7970
      %v7973 = vunpack.c.l.s4 1983009808
      %v7974 = vunpack.c.0.s8 %v7973
      %v7975 = vperm.slane %v7969, %v7974
      %v7977 = vunpack.c.l.s4 1983009808
      %v7978 = vunpack.c.0.s8 %v7977
      %v7979 = vperm.slane %v7971, %v7978
      %v7980 = vrot.slane %v7933, 4
      %v7981 = vsel %vm309, %v7980, %v7925
      %v7982 = vrot.slane %v7925, 4
      %v7983 = vsel %vm309, %v7933, %v7982
      %v7985 = vunpack.c.l.s4 1983009808
      %v7986 = vunpack.c.0.s8 %v7985
      %v7987 = vperm.slane %v7981, %v7986
      %v7989 = vunpack.c.l.s4 1983009808
      %v7990 = vunpack.c.0.s8 %v7989
      %v7991 = vperm.slane %v7983, %v7990
      %v7992 = vrot.slane %v7937, 4
      %v7993 = vsel %vm309, %v7992, %v7929
      %v7994 = vrot.slane %v7929, 4
      %v7995 = vsel %vm309, %v7937, %v7994
      %v7997 = vunpack.c.l.s4 1983009808
      %v7998 = vunpack.c.0.s8 %v7997
      %v7999 = vperm.slane %v7993, %v7998
      %v8001 = vunpack.c.l.s4 1983009808
      %v8002 = vunpack.c.0.s8 %v8001
      %v8003 = vperm.slane %v7995, %v8002
      %v8004 = vrot.slane %v7975, 4
      %v8005 = vsel %vm309, %v8004, %v7963
      %v8006 = vrot.slane %v7963, 4
      %v8007 = vsel %vm309, %v7975, %v8006
      %v8009 = vunpack.c.l.s4 1934713408
      %v8010 = vunpack.c.0.s8 %v8009
      %v8011 = vperm.slane %v8005, %v8010
      %v8013 = vunpack.c.l.s4 1934713408
      %v8014 = vunpack.c.0.s8 %v8013
      %v8015 = vperm.slane %v8007, %v8014
      %v8016 = vrot.slane %v7979, 4
      %v8017 = vsel %vm309, %v8016, %v7967
      %v8018 = vrot.slane %v7967, 4
      %v8019 = vsel %vm309, %v7979, %v8018
      %v8021 = vunpack.c.l.s4 1934713408
      %v8022 = vunpack.c.0.s8 %v8021
      %v8023 = vperm.slane %v8017, %v8022
      %v8025 = vunpack.c.l.s4 1934713408
      %v8026 = vunpack.c.0.s8 %v8025
      %v8027 = vperm.slane %v8019, %v8026
      %v8028 = vrot.slane %v7999, 4
      %v8029 = vsel %vm309, %v8028, %v7987
      %v8030 = vrot.slane %v7987, 4
      %v8031 = vsel %vm309, %v7999, %v8030
      %v8033 = vunpack.c.l.s4 1934713408
      %v8034 = vunpack.c.0.s8 %v8033
      %v8035 = vperm.slane %v8029, %v8034
      %v8037 = vunpack.c.l.s4 1934713408
      %v8038 = vunpack.c.0.s8 %v8037
      %v8039 = vperm.slane %v8031, %v8038
      %v8040 = vrot.slane %v8003, 4
      %v8041 = vsel %vm309, %v8040, %v7991
      %v8042 = vrot.slane %v7991, 4
      %v8043 = vsel %vm309, %v8003, %v8042
      %v8045 = vunpack.c.l.s4 1934713408
      %v8046 = vunpack.c.0.s8 %v8045
      %v8047 = vperm.slane %v8041, %v8046
      %v8049 = vunpack.c.l.s4 1934713408
      %v8050 = vunpack.c.0.s8 %v8049
      %v8051 = vperm.slane %v8043, %v8050
      %v8052 = vrot.slane %v8035, 4
      %v8053 = vsel %vm309, %v8052, %v8011
      %v8054 = vrot.slane %v8011, 4
      %v8055 = vsel %vm309, %v8035, %v8054
      %v8056 = vrot.slane %v8039, 4
      %v8057 = vsel %vm309, %v8056, %v8015
      %v8058 = vrot.slane %v8015, 4
      %v8059 = vsel %vm309, %v8039, %v8058
      %v8060 = vrot.slane %v8047, 4
      %v8061 = vsel %vm309, %v8060, %v8023
      %v8062 = vrot.slane %v8023, 4
      %v8063 = vsel %vm309, %v8047, %v8062
      %v8064 = vrot.slane %v8051, 4
      %v8065 = vsel %vm309, %v8064, %v8027
      %v8066 = vrot.slane %v8027, 4
      %v8067 = vsel %vm309, %v8051, %v8066
      %v8068 = vrot.slane %v7919, 4
      %v8069 = vsel %vm309, %v8068, %v7911
      %v8070 = vrot.slane %v7911, 4
      %v8071 = vsel %vm309, %v7919, %v8070
      %v8073 = vunpack.c.l.s4 1983009808
      %v8074 = vunpack.c.0.s8 %v8073
      %v8075 = vperm.slane %v8069, %v8074
      %v8077 = vunpack.c.l.s4 1983009808
      %v8078 = vunpack.c.0.s8 %v8077
      %v8079 = vperm.slane %v8071, %v8078
      %v8080 = vrot.slane %v7923, 4
      %v8081 = vsel %vm309, %v8080, %v7915
      %v8082 = vrot.slane %v7915, 4
      %v8083 = vsel %vm309, %v7923, %v8082
      %v8085 = vunpack.c.l.s4 1983009808
      %v8086 = vunpack.c.0.s8 %v8085
      %v8087 = vperm.slane %v8081, %v8086
      %v8089 = vunpack.c.l.s4 1983009808
      %v8090 = vunpack.c.0.s8 %v8089
      %v8091 = vperm.slane %v8083, %v8090
      %v8092 = vrot.slane %v7935, 4
      %v8093 = vsel %vm309, %v8092, %v7927
      %v8094 = vrot.slane %v7927, 4
      %v8095 = vsel %vm309, %v7935, %v8094
      %v8097 = vunpack.c.l.s4 1983009808
      %v8098 = vunpack.c.0.s8 %v8097
      %v8099 = vperm.slane %v8093, %v8098
      %v8101 = vunpack.c.l.s4 1983009808
      %v8102 = vunpack.c.0.s8 %v8101
      %v8103 = vperm.slane %v8095, %v8102
      %v8104 = vrot.slane %v7939, 4
      %v8105 = vsel %vm309, %v8104, %v7931
      %v8106 = vrot.slane %v7931, 4
      %v8107 = vsel %vm309, %v7939, %v8106
      %v8109 = vunpack.c.l.s4 1983009808
      %v8110 = vunpack.c.0.s8 %v8109
      %v8111 = vperm.slane %v8105, %v8110
      %v8113 = vunpack.c.l.s4 1983009808
      %v8114 = vunpack.c.0.s8 %v8113
      %v8115 = vperm.slane %v8107, %v8114
      %v8116 = vrot.slane %v8087, 4
      %v8117 = vsel %vm309, %v8116, %v8075
      %v8118 = vrot.slane %v8075, 4
      %v8119 = vsel %vm309, %v8087, %v8118
      %v8121 = vunpack.c.l.s4 1934713408
      %v8122 = vunpack.c.0.s8 %v8121
      %v8123 = vperm.slane %v8117, %v8122
      %v8125 = vunpack.c.l.s4 1934713408
      %v8126 = vunpack.c.0.s8 %v8125
      %v8127 = vperm.slane %v8119, %v8126
      %v8128 = vrot.slane %v8091, 4
      %v8129 = vsel %vm309, %v8128, %v8079
      %v8130 = vrot.slane %v8079, 4
      %v8131 = vsel %vm309, %v8091, %v8130
      %v8133 = vunpack.c.l.s4 1934713408
      %v8134 = vunpack.c.0.s8 %v8133
      %v8135 = vperm.slane %v8129, %v8134
      %v8137 = vunpack.c.l.s4 1934713408
      %v8138 = vunpack.c.0.s8 %v8137
      %v8139 = vperm.slane %v8131, %v8138
      %v8140 = vrot.slane %v8111, 4
      %v8141 = vsel %vm309, %v8140, %v8099
      %v8142 = vrot.slane %v8099, 4
      %v8143 = vsel %vm309, %v8111, %v8142
      %v8145 = vunpack.c.l.s4 1934713408
      %v8146 = vunpack.c.0.s8 %v8145
      %v8147 = vperm.slane %v8141, %v8146
      %v8149 = vunpack.c.l.s4 1934713408
      %v8150 = vunpack.c.0.s8 %v8149
      %v8151 = vperm.slane %v8143, %v8150
      %v8152 = vrot.slane %v8115, 4
      %v8153 = vsel %vm309, %v8152, %v8103
      %v8154 = vrot.slane %v8103, 4
      %v8155 = vsel %vm309, %v8115, %v8154
      %v8157 = vunpack.c.l.s4 1934713408
      %v8158 = vunpack.c.0.s8 %v8157
      %v8159 = vperm.slane %v8153, %v8158
      %v8161 = vunpack.c.l.s4 1934713408
      %v8162 = vunpack.c.0.s8 %v8161
      %v8163 = vperm.slane %v8155, %v8162
      %v8164 = vrot.slane %v8147, 4
      %v8165 = vsel %vm309, %v8164, %v8123
      %v8166 = vrot.slane %v8123, 4
      %v8167 = vsel %vm309, %v8147, %v8166
      %v8168 = vrot.slane %v8151, 4
      %v8169 = vsel %vm309, %v8168, %v8127
      %v8170 = vrot.slane %v8127, 4
      %v8171 = vsel %vm309, %v8151, %v8170
      %v8172 = vrot.slane %v8159, 4
      %v8173 = vsel %vm309, %v8172, %v8135
      %v8174 = vrot.slane %v8135, 4
      %v8175 = vsel %vm309, %v8159, %v8174
      %v8176 = vrot.slane %v8163, 4
      %v8177 = vsel %vm309, %v8176, %v8139
      %v8178 = vrot.slane %v8139, 4
      %v8179 = vsel %vm309, %v8163, %v8178
      %8181 = vrot.lane.b32.xlu0 %v8055, 16
      %v8182 = vpop.permute.xlu0 %8181
      %8185 = vrot.lane.b32.xlu0 %v8057, 32
      %v8186 = vpop.permute.xlu0 %8185
      %8189 = vrot.lane.b32.xlu0 %v8059, 48
      %v8190 = vpop.permute.xlu0 %8189
      %8193 = vrot.lane.b32.xlu0 %v8061, 64
      %v8194 = vpop.permute.xlu0 %8193
      %8197 = vrot.lane.b32.xlu0 %v8063, 80
      %v8198 = vpop.permute.xlu0 %8197
      %8201 = vrot.lane.b32.xlu0 %v8065, 96
      %v8202 = vpop.permute.xlu0 %8201
      %8205 = vrot.lane.b32.xlu0 %v8067, 112
      %v8206 = vpop.permute.xlu0 %8205
      %8209 = vrot.lane.b32.xlu0 %v8167, 16
      %v8210 = vpop.permute.xlu0 %8209
      %8213 = vrot.lane.b32.xlu0 %v8169, 32
      %v8214 = vpop.permute.xlu0 %8213
      %8217 = vrot.lane.b32.xlu0 %v8171, 48
      %v8218 = vpop.permute.xlu0 %8217
      %8221 = vrot.lane.b32.xlu0 %v8173, 64
      %v8222 = vpop.permute.xlu0 %8221
      %8225 = vrot.lane.b32.xlu0 %v8175, 80
      %v8226 = vpop.permute.xlu0 %8225
      %8229 = vrot.lane.b32.xlu0 %v8177, 96
      %v8230 = vpop.permute.xlu0 %8229
      %8233 = vrot.lane.b32.xlu0 %v8179, 112
      %v8234 = vpop.permute.xlu0 %8233
      %v8236 = vsel %vm589, %v8053, %v8182
      %v8237 = vsel %vm591, %v8236, %v8186
      %v8238 = vsel %vm593, %v8237, %v8190
      %v8239 = vsel %vm595, %v8238, %v8194
      %v8240 = vsel %vm597, %v8239, %v8198
      %v8241 = vsel %vm599, %v8240, %v8202
      %v8242 = vsel %vm601, %v8241, %v8206
      %v8243 = vsel %vm589, %v8165, %v8210
      %v8244 = vsel %vm591, %v8243, %v8214
      %v8245 = vsel %vm593, %v8244, %v8218
      %v8246 = vsel %vm595, %v8245, %v8222
      %v8247 = vsel %vm597, %v8246, %v8226
      %v8248 = vsel %vm599, %v8247, %v8230
      %v8249 = vsel %vm601, %v8248, %v8234
      %8250 = vst [vmem:[#allocation3 + $0x150] sm:$0xff] %v8242
      %8251 = vst [vmem:[#allocation3 + $0x158] sm:$0xff] %v8249
      %v8252 = vld [vmem:[#allocation2 + $0x4] sm:$0xff]
      %v8253 = vld [vmem:[#allocation2 + $0xc] sm:$0xff]
      %v8254 = vld [vmem:[#allocation2 + $0x1c] sm:$0xff]
      %v8255 = vld [vmem:[#allocation2 + $0x24] sm:$0xff]
      %v8256 = vld [vmem:[#allocation2 + $0x34] sm:$0xff]
      %v8257 = vld [vmem:[#allocation2 + $0x3c] sm:$0xff]
      %v8258 = vld [vmem:[#allocation2 + $0x4c] sm:$0xff]
      %v8259 = vld [vmem:[#allocation2 + $0x54] sm:$0xff]
      %v8260 = vld [vmem:[#allocation2 + $0x64] sm:$0xff]
      %v8261 = vld [vmem:[#allocation2 + $0x6c] sm:$0xff]
      %v8262 = vld [vmem:[#allocation2 + $0x7c] sm:$0xff]
      %v8263 = vld [vmem:[#allocation2 + $0x84] sm:$0xff]
      %v8264 = vld [vmem:[#allocation2 + $0x94] sm:$0xff]
      %v8265 = vld [vmem:[#allocation2 + $0x9c] sm:$0xff]
      %v8266 = vld [vmem:[#allocation2 + $0xac] sm:$0xff]
      %v8267 = vld [vmem:[#allocation2 + $0xb4] sm:$0xff]
      %8284 = vrot.lane.b32.xlu0 %v8252, 126
      %v8285 = vpop.permute.xlu0 %8284
      %8286 = vrot.lane.b32.xlu0 %v8253, 126
      %v8287 = vpop.permute.xlu0 %8286
      %8288 = vrot.lane.b32.xlu0 %v8254, 126
      %v8289 = vpop.permute.xlu0 %8288
      %8290 = vrot.lane.b32.xlu0 %v8255, 126
      %v8291 = vpop.permute.xlu0 %8290
      %8292 = vrot.lane.b32.xlu0 %v8256, 126
      %v8293 = vpop.permute.xlu0 %8292
      %8294 = vrot.lane.b32.xlu0 %v8257, 126
      %v8295 = vpop.permute.xlu0 %8294
      %8296 = vrot.lane.b32.xlu0 %v8258, 126
      %v8297 = vpop.permute.xlu0 %8296
      %8298 = vrot.lane.b32.xlu0 %v8259, 126
      %v8299 = vpop.permute.xlu0 %8298
      %8300 = vrot.lane.b32.xlu0 %v8260, 126
      %v8301 = vpop.permute.xlu0 %8300
      %8302 = vrot.lane.b32.xlu0 %v8261, 126
      %v8303 = vpop.permute.xlu0 %8302
      %8304 = vrot.lane.b32.xlu0 %v8262, 126
      %v8305 = vpop.permute.xlu0 %8304
      %8306 = vrot.lane.b32.xlu0 %v8263, 126
      %v8307 = vpop.permute.xlu0 %8306
      %8308 = vrot.lane.b32.xlu0 %v8264, 126
      %v8309 = vpop.permute.xlu0 %8308
      %8310 = vrot.lane.b32.xlu0 %v8265, 126
      %v8311 = vpop.permute.xlu0 %8310
      %8312 = vrot.lane.b32.xlu0 %v8266, 126
      %v8313 = vpop.permute.xlu0 %8312
      %8314 = vrot.lane.b32.xlu0 %v8267, 126
      %v8315 = vpop.permute.xlu0 %8314
      %v8332 = vrot.slane %v8293, 4
      %v8333 = vsel %vm309, %v8332, %v8285
      %v8334 = vrot.slane %v8285, 4
      %v8335 = vsel %vm309, %v8293, %v8334
      %v8337 = vunpack.c.l.s4 1983009808
      %v8338 = vunpack.c.0.s8 %v8337
      %v8339 = vperm.slane %v8333, %v8338
      %v8341 = vunpack.c.l.s4 1983009808
      %v8342 = vunpack.c.0.s8 %v8341
      %v8343 = vperm.slane %v8335, %v8342
      %v8344 = vrot.slane %v8297, 4
      %v8345 = vsel %vm309, %v8344, %v8289
      %v8346 = vrot.slane %v8289, 4
      %v8347 = vsel %vm309, %v8297, %v8346
      %v8349 = vunpack.c.l.s4 1983009808
      %v8350 = vunpack.c.0.s8 %v8349
      %v8351 = vperm.slane %v8345, %v8350
      %v8353 = vunpack.c.l.s4 1983009808
      %v8354 = vunpack.c.0.s8 %v8353
      %v8355 = vperm.slane %v8347, %v8354
      %v8356 = vrot.slane %v8309, 4
      %v8357 = vsel %vm309, %v8356, %v8301
      %v8358 = vrot.slane %v8301, 4
      %v8359 = vsel %vm309, %v8309, %v8358
      %v8361 = vunpack.c.l.s4 1983009808
      %v8362 = vunpack.c.0.s8 %v8361
      %v8363 = vperm.slane %v8357, %v8362
      %v8365 = vunpack.c.l.s4 1983009808
      %v8366 = vunpack.c.0.s8 %v8365
      %v8367 = vperm.slane %v8359, %v8366
      %v8368 = vrot.slane %v8313, 4
      %v8369 = vsel %vm309, %v8368, %v8305
      %v8370 = vrot.slane %v8305, 4
      %v8371 = vsel %vm309, %v8313, %v8370
      %v8373 = vunpack.c.l.s4 1983009808
      %v8374 = vunpack.c.0.s8 %v8373
      %v8375 = vperm.slane %v8369, %v8374
      %v8377 = vunpack.c.l.s4 1983009808
      %v8378 = vunpack.c.0.s8 %v8377
      %v8379 = vperm.slane %v8371, %v8378
      %v8380 = vrot.slane %v8351, 4
      %v8381 = vsel %vm309, %v8380, %v8339
      %v8382 = vrot.slane %v8339, 4
      %v8383 = vsel %vm309, %v8351, %v8382
      %v8385 = vunpack.c.l.s4 1934713408
      %v8386 = vunpack.c.0.s8 %v8385
      %v8387 = vperm.slane %v8381, %v8386
      %v8389 = vunpack.c.l.s4 1934713408
      %v8390 = vunpack.c.0.s8 %v8389
      %v8391 = vperm.slane %v8383, %v8390
      %v8392 = vrot.slane %v8355, 4
      %v8393 = vsel %vm309, %v8392, %v8343
      %v8394 = vrot.slane %v8343, 4
      %v8395 = vsel %vm309, %v8355, %v8394
      %v8397 = vunpack.c.l.s4 1934713408
      %v8398 = vunpack.c.0.s8 %v8397
      %v8399 = vperm.slane %v8393, %v8398
      %v8401 = vunpack.c.l.s4 1934713408
      %v8402 = vunpack.c.0.s8 %v8401
      %v8403 = vperm.slane %v8395, %v8402
      %v8404 = vrot.slane %v8375, 4
      %v8405 = vsel %vm309, %v8404, %v8363
      %v8406 = vrot.slane %v8363, 4
      %v8407 = vsel %vm309, %v8375, %v8406
      %v8409 = vunpack.c.l.s4 1934713408
      %v8410 = vunpack.c.0.s8 %v8409
      %v8411 = vperm.slane %v8405, %v8410
      %v8413 = vunpack.c.l.s4 1934713408
      %v8414 = vunpack.c.0.s8 %v8413
      %v8415 = vperm.slane %v8407, %v8414
      %v8416 = vrot.slane %v8379, 4
      %v8417 = vsel %vm309, %v8416, %v8367
      %v8418 = vrot.slane %v8367, 4
      %v8419 = vsel %vm309, %v8379, %v8418
      %v8421 = vunpack.c.l.s4 1934713408
      %v8422 = vunpack.c.0.s8 %v8421
      %v8423 = vperm.slane %v8417, %v8422
      %v8425 = vunpack.c.l.s4 1934713408
      %v8426 = vunpack.c.0.s8 %v8425
      %v8427 = vperm.slane %v8419, %v8426
      %v8428 = vrot.slane %v8411, 4
      %v8429 = vsel %vm309, %v8428, %v8387
      %v8430 = vrot.slane %v8387, 4
      %v8431 = vsel %vm309, %v8411, %v8430
      %v8432 = vrot.slane %v8415, 4
      %v8433 = vsel %vm309, %v8432, %v8391
      %v8434 = vrot.slane %v8391, 4
      %v8435 = vsel %vm309, %v8415, %v8434
      %v8436 = vrot.slane %v8423, 4
      %v8437 = vsel %vm309, %v8436, %v8399
      %v8438 = vrot.slane %v8399, 4
      %v8439 = vsel %vm309, %v8423, %v8438
      %v8440 = vrot.slane %v8427, 4
      %v8441 = vsel %vm309, %v8440, %v8403
      %v8442 = vrot.slane %v8403, 4
      %v8443 = vsel %vm309, %v8427, %v8442
      %v8444 = vrot.slane %v8295, 4
      %v8445 = vsel %vm309, %v8444, %v8287
      %v8446 = vrot.slane %v8287, 4
      %v8447 = vsel %vm309, %v8295, %v8446
      %v8449 = vunpack.c.l.s4 1983009808
      %v8450 = vunpack.c.0.s8 %v8449
      %v8451 = vperm.slane %v8445, %v8450
      %v8453 = vunpack.c.l.s4 1983009808
      %v8454 = vunpack.c.0.s8 %v8453
      %v8455 = vperm.slane %v8447, %v8454
      %v8456 = vrot.slane %v8299, 4
      %v8457 = vsel %vm309, %v8456, %v8291
      %v8458 = vrot.slane %v8291, 4
      %v8459 = vsel %vm309, %v8299, %v8458
      %v8461 = vunpack.c.l.s4 1983009808
      %v8462 = vunpack.c.0.s8 %v8461
      %v8463 = vperm.slane %v8457, %v8462
      %v8465 = vunpack.c.l.s4 1983009808
      %v8466 = vunpack.c.0.s8 %v8465
      %v8467 = vperm.slane %v8459, %v8466
      %v8468 = vrot.slane %v8311, 4
      %v8469 = vsel %vm309, %v8468, %v8303
      %v8470 = vrot.slane %v8303, 4
      %v8471 = vsel %vm309, %v8311, %v8470
      %v8473 = vunpack.c.l.s4 1983009808
      %v8474 = vunpack.c.0.s8 %v8473
      %v8475 = vperm.slane %v8469, %v8474
      %v8477 = vunpack.c.l.s4 1983009808
      %v8478 = vunpack.c.0.s8 %v8477
      %v8479 = vperm.slane %v8471, %v8478
      %v8480 = vrot.slane %v8315, 4
      %v8481 = vsel %vm309, %v8480, %v8307
      %v8482 = vrot.slane %v8307, 4
      %v8483 = vsel %vm309, %v8315, %v8482
      %v8485 = vunpack.c.l.s4 1983009808
      %v8486 = vunpack.c.0.s8 %v8485
      %v8487 = vperm.slane %v8481, %v8486
      %v8489 = vunpack.c.l.s4 1983009808
      %v8490 = vunpack.c.0.s8 %v8489
      %v8491 = vperm.slane %v8483, %v8490
      %v8492 = vrot.slane %v8463, 4
      %v8493 = vsel %vm309, %v8492, %v8451
      %v8494 = vrot.slane %v8451, 4
      %v8495 = vsel %vm309, %v8463, %v8494
      %v8497 = vunpack.c.l.s4 1934713408
      %v8498 = vunpack.c.0.s8 %v8497
      %v8499 = vperm.slane %v8493, %v8498
      %v8501 = vunpack.c.l.s4 1934713408
      %v8502 = vunpack.c.0.s8 %v8501
      %v8503 = vperm.slane %v8495, %v8502
      %v8504 = vrot.slane %v8467, 4
      %v8505 = vsel %vm309, %v8504, %v8455
      %v8506 = vrot.slane %v8455, 4
      %v8507 = vsel %vm309, %v8467, %v8506
      %v8509 = vunpack.c.l.s4 1934713408
      %v8510 = vunpack.c.0.s8 %v8509
      %v8511 = vperm.slane %v8505, %v8510
      %v8513 = vunpack.c.l.s4 1934713408
      %v8514 = vunpack.c.0.s8 %v8513
      %v8515 = vperm.slane %v8507, %v8514
      %v8516 = vrot.slane %v8487, 4
      %v8517 = vsel %vm309, %v8516, %v8475
      %v8518 = vrot.slane %v8475, 4
      %v8519 = vsel %vm309, %v8487, %v8518
      %v8521 = vunpack.c.l.s4 1934713408
      %v8522 = vunpack.c.0.s8 %v8521
      %v8523 = vperm.slane %v8517, %v8522
      %v8525 = vunpack.c.l.s4 1934713408
      %v8526 = vunpack.c.0.s8 %v8525
      %v8527 = vperm.slane %v8519, %v8526
      %v8528 = vrot.slane %v8491, 4
      %v8529 = vsel %vm309, %v8528, %v8479
      %v8530 = vrot.slane %v8479, 4
      %v8531 = vsel %vm309, %v8491, %v8530
      %v8533 = vunpack.c.l.s4 1934713408
      %v8534 = vunpack.c.0.s8 %v8533
      %v8535 = vperm.slane %v8529, %v8534
      %v8537 = vunpack.c.l.s4 1934713408
      %v8538 = vunpack.c.0.s8 %v8537
      %v8539 = vperm.slane %v8531, %v8538
      %v8540 = vrot.slane %v8523, 4
      %v8541 = vsel %vm309, %v8540, %v8499
      %v8542 = vrot.slane %v8499, 4
      %v8543 = vsel %vm309, %v8523, %v8542
      %v8544 = vrot.slane %v8527, 4
      %v8545 = vsel %vm309, %v8544, %v8503
      %v8546 = vrot.slane %v8503, 4
      %v8547 = vsel %vm309, %v8527, %v8546
      %v8548 = vrot.slane %v8535, 4
      %v8549 = vsel %vm309, %v8548, %v8511
      %v8550 = vrot.slane %v8511, 4
      %v8551 = vsel %vm309, %v8535, %v8550
      %v8552 = vrot.slane %v8539, 4
      %v8553 = vsel %vm309, %v8552, %v8515
      %v8554 = vrot.slane %v8515, 4
      %v8555 = vsel %vm309, %v8539, %v8554
      %8557 = vrot.lane.b32.xlu0 %v8431, 16
      %v8558 = vpop.permute.xlu0 %8557
      %8561 = vrot.lane.b32.xlu0 %v8433, 32
      %v8562 = vpop.permute.xlu0 %8561
      %8565 = vrot.lane.b32.xlu0 %v8435, 48
      %v8566 = vpop.permute.xlu0 %8565
      %8569 = vrot.lane.b32.xlu0 %v8437, 64
      %v8570 = vpop.permute.xlu0 %8569
      %8573 = vrot.lane.b32.xlu0 %v8439, 80
      %v8574 = vpop.permute.xlu0 %8573
      %8577 = vrot.lane.b32.xlu0 %v8441, 96
      %v8578 = vpop.permute.xlu0 %8577
      %8581 = vrot.lane.b32.xlu0 %v8443, 112
      %v8582 = vpop.permute.xlu0 %8581
      %8585 = vrot.lane.b32.xlu0 %v8543, 16
      %v8586 = vpop.permute.xlu0 %8585
      %8589 = vrot.lane.b32.xlu0 %v8545, 32
      %v8590 = vpop.permute.xlu0 %8589
      %8593 = vrot.lane.b32.xlu0 %v8547, 48
      %v8594 = vpop.permute.xlu0 %8593
      %8597 = vrot.lane.b32.xlu0 %v8549, 64
      %v8598 = vpop.permute.xlu0 %8597
      %8601 = vrot.lane.b32.xlu0 %v8551, 80
      %v8602 = vpop.permute.xlu0 %8601
      %8605 = vrot.lane.b32.xlu0 %v8553, 96
      %v8606 = vpop.permute.xlu0 %8605
      %8609 = vrot.lane.b32.xlu0 %v8555, 112
      %v8610 = vpop.permute.xlu0 %8609
      %v8612 = vsel %vm589, %v8429, %v8558
      %v8613 = vsel %vm591, %v8612, %v8562
      %v8614 = vsel %vm593, %v8613, %v8566
      %v8615 = vsel %vm595, %v8614, %v8570
      %v8616 = vsel %vm597, %v8615, %v8574
      %v8617 = vsel %vm599, %v8616, %v8578
      %v8618 = vsel %vm601, %v8617, %v8582
      %v8619 = vsel %vm589, %v8541, %v8586
      %v8620 = vsel %vm591, %v8619, %v8590
      %v8621 = vsel %vm593, %v8620, %v8594
      %v8622 = vsel %vm595, %v8621, %v8598
      %v8623 = vsel %vm597, %v8622, %v8602
      %v8624 = vsel %vm599, %v8623, %v8606
      %v8625 = vsel %vm601, %v8624, %v8610
      %8626 = vst [vmem:[#allocation3 + $0x160] sm:$0xff] %v8618
      %8627 = vst [vmem:[#allocation3 + $0x168] sm:$0xff] %v8625
      %v8628 = vld [vmem:[#allocation2 + $0x4] sm:$0xff]
      %v8629 = vld [vmem:[#allocation2 + $0xc] sm:$0xff]
      %v8630 = vld [vmem:[#allocation2 + $0x1c] sm:$0xff]
      %v8631 = vld [vmem:[#allocation2 + $0x24] sm:$0xff]
      %v8632 = vld [vmem:[#allocation2 + $0x34] sm:$0xff]
      %v8633 = vld [vmem:[#allocation2 + $0x3c] sm:$0xff]
      %v8634 = vld [vmem:[#allocation2 + $0x4c] sm:$0xff]
      %v8635 = vld [vmem:[#allocation2 + $0x54] sm:$0xff]
      %v8636 = vld [vmem:[#allocation2 + $0x64] sm:$0xff]
      %v8637 = vld [vmem:[#allocation2 + $0x6c] sm:$0xff]
      %v8638 = vld [vmem:[#allocation2 + $0x7c] sm:$0xff]
      %v8639 = vld [vmem:[#allocation2 + $0x84] sm:$0xff]
      %v8640 = vld [vmem:[#allocation2 + $0x94] sm:$0xff]
      %v8641 = vld [vmem:[#allocation2 + $0x9c] sm:$0xff]
      %v8642 = vld [vmem:[#allocation2 + $0xac] sm:$0xff]
      %v8643 = vld [vmem:[#allocation2 + $0xb4] sm:$0xff]
      %8660 = vrot.lane.b32.xlu0 %v8628, 125
      %v8661 = vpop.permute.xlu0 %8660
      %8662 = vrot.lane.b32.xlu0 %v8629, 125
      %v8663 = vpop.permute.xlu0 %8662
      %8664 = vrot.lane.b32.xlu0 %v8630, 125
      %v8665 = vpop.permute.xlu0 %8664
      %8666 = vrot.lane.b32.xlu0 %v8631, 125
      %v8667 = vpop.permute.xlu0 %8666
      %8668 = vrot.lane.b32.xlu0 %v8632, 125
      %v8669 = vpop.permute.xlu0 %8668
      %8670 = vrot.lane.b32.xlu0 %v8633, 125
      %v8671 = vpop.permute.xlu0 %8670
      %8672 = vrot.lane.b32.xlu0 %v8634, 125
      %v8673 = vpop.permute.xlu0 %8672
      %8674 = vrot.lane.b32.xlu0 %v8635, 125
      %v8675 = vpop.permute.xlu0 %8674
      %8676 = vrot.lane.b32.xlu0 %v8636, 125
      %v8677 = vpop.permute.xlu0 %8676
      %8678 = vrot.lane.b32.xlu0 %v8637, 125
      %v8679 = vpop.permute.xlu0 %8678
      %8680 = vrot.lane.b32.xlu0 %v8638, 125
      %v8681 = vpop.permute.xlu0 %8680
      %8682 = vrot.lane.b32.xlu0 %v8639, 125
      %v8683 = vpop.permute.xlu0 %8682
      %8684 = vrot.lane.b32.xlu0 %v8640, 125
      %v8685 = vpop.permute.xlu0 %8684
      %8686 = vrot.lane.b32.xlu0 %v8641, 125
      %v8687 = vpop.permute.xlu0 %8686
      %8688 = vrot.lane.b32.xlu0 %v8642, 125
      %v8689 = vpop.permute.xlu0 %8688
      %8690 = vrot.lane.b32.xlu0 %v8643, 125
      %v8691 = vpop.permute.xlu0 %8690
      %v8708 = vrot.slane %v8669, 4
      %v8709 = vsel %vm309, %v8708, %v8661
      %v8710 = vrot.slane %v8661, 4
      %v8711 = vsel %vm309, %v8669, %v8710
      %v8713 = vunpack.c.l.s4 1983009808
      %v8714 = vunpack.c.0.s8 %v8713
      %v8715 = vperm.slane %v8709, %v8714
      %v8717 = vunpack.c.l.s4 1983009808
      %v8718 = vunpack.c.0.s8 %v8717
      %v8719 = vperm.slane %v8711, %v8718
      %v8720 = vrot.slane %v8673, 4
      %v8721 = vsel %vm309, %v8720, %v8665
      %v8722 = vrot.slane %v8665, 4
      %v8723 = vsel %vm309, %v8673, %v8722
      %v8725 = vunpack.c.l.s4 1983009808
      %v8726 = vunpack.c.0.s8 %v8725
      %v8727 = vperm.slane %v8721, %v8726
      %v8729 = vunpack.c.l.s4 1983009808
      %v8730 = vunpack.c.0.s8 %v8729
      %v8731 = vperm.slane %v8723, %v8730
      %v8732 = vrot.slane %v8685, 4
      %v8733 = vsel %vm309, %v8732, %v8677
      %v8734 = vrot.slane %v8677, 4
      %v8735 = vsel %vm309, %v8685, %v8734
      %v8737 = vunpack.c.l.s4 1983009808
      %v8738 = vunpack.c.0.s8 %v8737
      %v8739 = vperm.slane %v8733, %v8738
      %v8741 = vunpack.c.l.s4 1983009808
      %v8742 = vunpack.c.0.s8 %v8741
      %v8743 = vperm.slane %v8735, %v8742
      %v8744 = vrot.slane %v8689, 4
      %v8745 = vsel %vm309, %v8744, %v8681
      %v8746 = vrot.slane %v8681, 4
      %v8747 = vsel %vm309, %v8689, %v8746
      %v8749 = vunpack.c.l.s4 1983009808
      %v8750 = vunpack.c.0.s8 %v8749
      %v8751 = vperm.slane %v8745, %v8750
      %v8753 = vunpack.c.l.s4 1983009808
      %v8754 = vunpack.c.0.s8 %v8753
      %v8755 = vperm.slane %v8747, %v8754
      %v8756 = vrot.slane %v8727, 4
      %v8757 = vsel %vm309, %v8756, %v8715
      %v8758 = vrot.slane %v8715, 4
      %v8759 = vsel %vm309, %v8727, %v8758
      %v8761 = vunpack.c.l.s4 1934713408
      %v8762 = vunpack.c.0.s8 %v8761
      %v8763 = vperm.slane %v8757, %v8762
      %v8765 = vunpack.c.l.s4 1934713408
      %v8766 = vunpack.c.0.s8 %v8765
      %v8767 = vperm.slane %v8759, %v8766
      %v8768 = vrot.slane %v8731, 4
      %v8769 = vsel %vm309, %v8768, %v8719
      %v8770 = vrot.slane %v8719, 4
      %v8771 = vsel %vm309, %v8731, %v8770
      %v8773 = vunpack.c.l.s4 1934713408
      %v8774 = vunpack.c.0.s8 %v8773
      %v8775 = vperm.slane %v8769, %v8774
      %v8777 = vunpack.c.l.s4 1934713408
      %v8778 = vunpack.c.0.s8 %v8777
      %v8779 = vperm.slane %v8771, %v8778
      %v8780 = vrot.slane %v8751, 4
      %v8781 = vsel %vm309, %v8780, %v8739
      %v8782 = vrot.slane %v8739, 4
      %v8783 = vsel %vm309, %v8751, %v8782
      %v8785 = vunpack.c.l.s4 1934713408
      %v8786 = vunpack.c.0.s8 %v8785
      %v8787 = vperm.slane %v8781, %v8786
      %v8789 = vunpack.c.l.s4 1934713408
      %v8790 = vunpack.c.0.s8 %v8789
      %v8791 = vperm.slane %v8783, %v8790
      %v8792 = vrot.slane %v8755, 4
      %v8793 = vsel %vm309, %v8792, %v8743
      %v8794 = vrot.slane %v8743, 4
      %v8795 = vsel %vm309, %v8755, %v8794
      %v8797 = vunpack.c.l.s4 1934713408
      %v8798 = vunpack.c.0.s8 %v8797
      %v8799 = vperm.slane %v8793, %v8798
      %v8801 = vunpack.c.l.s4 1934713408
      %v8802 = vunpack.c.0.s8 %v8801
      %v8803 = vperm.slane %v8795, %v8802
      %v8804 = vrot.slane %v8787, 4
      %v8805 = vsel %vm309, %v8804, %v8763
      %v8806 = vrot.slane %v8763, 4
      %v8807 = vsel %vm309, %v8787, %v8806
      %v8808 = vrot.slane %v8791, 4
      %v8809 = vsel %vm309, %v8808, %v8767
      %v8810 = vrot.slane %v8767, 4
      %v8811 = vsel %vm309, %v8791, %v8810
      %v8812 = vrot.slane %v8799, 4
      %v8813 = vsel %vm309, %v8812, %v8775
      %v8814 = vrot.slane %v8775, 4
      %v8815 = vsel %vm309, %v8799, %v8814
      %v8816 = vrot.slane %v8803, 4
      %v8817 = vsel %vm309, %v8816, %v8779
      %v8818 = vrot.slane %v8779, 4
      %v8819 = vsel %vm309, %v8803, %v8818
      %v8820 = vrot.slane %v8671, 4
      %v8821 = vsel %vm309, %v8820, %v8663
      %v8822 = vrot.slane %v8663, 4
      %v8823 = vsel %vm309, %v8671, %v8822
      %v8825 = vunpack.c.l.s4 1983009808
      %v8826 = vunpack.c.0.s8 %v8825
      %v8827 = vperm.slane %v8821, %v8826
      %v8829 = vunpack.c.l.s4 1983009808
      %v8830 = vunpack.c.0.s8 %v8829
      %v8831 = vperm.slane %v8823, %v8830
      %v8832 = vrot.slane %v8675, 4
      %v8833 = vsel %vm309, %v8832, %v8667
      %v8834 = vrot.slane %v8667, 4
      %v8835 = vsel %vm309, %v8675, %v8834
      %v8837 = vunpack.c.l.s4 1983009808
      %v8838 = vunpack.c.0.s8 %v8837
      %v8839 = vperm.slane %v8833, %v8838
      %v8841 = vunpack.c.l.s4 1983009808
      %v8842 = vunpack.c.0.s8 %v8841
      %v8843 = vperm.slane %v8835, %v8842
      %v8844 = vrot.slane %v8687, 4
      %v8845 = vsel %vm309, %v8844, %v8679
      %v8846 = vrot.slane %v8679, 4
      %v8847 = vsel %vm309, %v8687, %v8846
      %v8849 = vunpack.c.l.s4 1983009808
      %v8850 = vunpack.c.0.s8 %v8849
      %v8851 = vperm.slane %v8845, %v8850
      %v8853 = vunpack.c.l.s4 1983009808
      %v8854 = vunpack.c.0.s8 %v8853
      %v8855 = vperm.slane %v8847, %v8854
      %v8856 = vrot.slane %v8691, 4
      %v8857 = vsel %vm309, %v8856, %v8683
      %v8858 = vrot.slane %v8683, 4
      %v8859 = vsel %vm309, %v8691, %v8858
      %v8861 = vunpack.c.l.s4 1983009808
      %v8862 = vunpack.c.0.s8 %v8861
      %v8863 = vperm.slane %v8857, %v8862
      %v8865 = vunpack.c.l.s4 1983009808
      %v8866 = vunpack.c.0.s8 %v8865
      %v8867 = vperm.slane %v8859, %v8866
      %v8868 = vrot.slane %v8839, 4
      %v8869 = vsel %vm309, %v8868, %v8827
      %v8870 = vrot.slane %v8827, 4
      %v8871 = vsel %vm309, %v8839, %v8870
      %v8873 = vunpack.c.l.s4 1934713408
      %v8874 = vunpack.c.0.s8 %v8873
      %v8875 = vperm.slane %v8869, %v8874
      %v8877 = vunpack.c.l.s4 1934713408
      %v8878 = vunpack.c.0.s8 %v8877
      %v8879 = vperm.slane %v8871, %v8878
      %v8880 = vrot.slane %v8843, 4
      %v8881 = vsel %vm309, %v8880, %v8831
      %v8882 = vrot.slane %v8831, 4
      %v8883 = vsel %vm309, %v8843, %v8882
      %v8885 = vunpack.c.l.s4 1934713408
      %v8886 = vunpack.c.0.s8 %v8885
      %v8887 = vperm.slane %v8881, %v8886
      %v8889 = vunpack.c.l.s4 1934713408
      %v8890 = vunpack.c.0.s8 %v8889
      %v8891 = vperm.slane %v8883, %v8890
      %v8892 = vrot.slane %v8863, 4
      %v8893 = vsel %vm309, %v8892, %v8851
      %v8894 = vrot.slane %v8851, 4
      %v8895 = vsel %vm309, %v8863, %v8894
      %v8897 = vunpack.c.l.s4 1934713408
      %v8898 = vunpack.c.0.s8 %v8897
      %v8899 = vperm.slane %v8893, %v8898
      %v8901 = vunpack.c.l.s4 1934713408
      %v8902 = vunpack.c.0.s8 %v8901
      %v8903 = vperm.slane %v8895, %v8902
      %v8904 = vrot.slane %v8867, 4
      %v8905 = vsel %vm309, %v8904, %v8855
      %v8906 = vrot.slane %v8855, 4
      %v8907 = vsel %vm309, %v8867, %v8906
      %v8909 = vunpack.c.l.s4 1934713408
      %v8910 = vunpack.c.0.s8 %v8909
      %v8911 = vperm.slane %v8905, %v8910
      %v8913 = vunpack.c.l.s4 1934713408
      %v8914 = vunpack.c.0.s8 %v8913
      %v8915 = vperm.slane %v8907, %v8914
      %v8916 = vrot.slane %v8899, 4
      %v8917 = vsel %vm309, %v8916, %v8875
      %v8918 = vrot.slane %v8875, 4
      %v8919 = vsel %vm309, %v8899, %v8918
      %v8920 = vrot.slane %v8903, 4
      %v8921 = vsel %vm309, %v8920, %v8879
      %v8922 = vrot.slane %v8879, 4
      %v8923 = vsel %vm309, %v8903, %v8922
      %v8924 = vrot.slane %v8911, 4
      %v8925 = vsel %vm309, %v8924, %v8887
      %v8926 = vrot.slane %v8887, 4
      %v8927 = vsel %vm309, %v8911, %v8926
      %v8928 = vrot.slane %v8915, 4
      %v8929 = vsel %vm309, %v8928, %v8891
      %v8930 = vrot.slane %v8891, 4
      %v8931 = vsel %vm309, %v8915, %v8930
      %8933 = vrot.lane.b32.xlu0 %v8807, 16
      %v8934 = vpop.permute.xlu0 %8933
      %8937 = vrot.lane.b32.xlu0 %v8809, 32
      %v8938 = vpop.permute.xlu0 %8937
      %8941 = vrot.lane.b32.xlu0 %v8811, 48
      %v8942 = vpop.permute.xlu0 %8941
      %8945 = vrot.lane.b32.xlu0 %v8813, 64
      %v8946 = vpop.permute.xlu0 %8945
      %8949 = vrot.lane.b32.xlu0 %v8815, 80
      %v8950 = vpop.permute.xlu0 %8949
      %8953 = vrot.lane.b32.xlu0 %v8817, 96
      %v8954 = vpop.permute.xlu0 %8953
      %8957 = vrot.lane.b32.xlu0 %v8819, 112
      %v8958 = vpop.permute.xlu0 %8957
      %8961 = vrot.lane.b32.xlu0 %v8919, 16
      %v8962 = vpop.permute.xlu0 %8961
      %8965 = vrot.lane.b32.xlu0 %v8921, 32
      %v8966 = vpop.permute.xlu0 %8965
      %8969 = vrot.lane.b32.xlu0 %v8923, 48
      %v8970 = vpop.permute.xlu0 %8969
      %8973 = vrot.lane.b32.xlu0 %v8925, 64
      %v8974 = vpop.permute.xlu0 %8973
      %8977 = vrot.lane.b32.xlu0 %v8927, 80
      %v8978 = vpop.permute.xlu0 %8977
      %8981 = vrot.lane.b32.xlu0 %v8929, 96
      %v8982 = vpop.permute.xlu0 %8981
      %8985 = vrot.lane.b32.xlu0 %v8931, 112
      %v8986 = vpop.permute.xlu0 %8985
      %v8988 = vsel %vm589, %v8805, %v8934
      %v8989 = vsel %vm591, %v8988, %v8938
      %v8990 = vsel %vm593, %v8989, %v8942
      %v8991 = vsel %vm595, %v8990, %v8946
      %v8992 = vsel %vm597, %v8991, %v8950
      %v8993 = vsel %vm599, %v8992, %v8954
      %v8994 = vsel %vm601, %v8993, %v8958
      %v8995 = vsel %vm589, %v8917, %v8962
      %v8996 = vsel %vm591, %v8995, %v8966
      %v8997 = vsel %vm593, %v8996, %v8970
      %v8998 = vsel %vm595, %v8997, %v8974
      %v8999 = vsel %vm597, %v8998, %v8978
      %v9000 = vsel %vm599, %v8999, %v8982
      %v9001 = vsel %vm601, %v9000, %v8986
      %9002 = vst [vmem:[#allocation3 + $0x170] sm:$0xff] %v8994
      %9003 = vst [vmem:[#allocation3 + $0x178] sm:$0xff] %v9001
      %v9004 = vld [vmem:[#allocation2 + $0x4] sm:$0xff]
      %v9005 = vld [vmem:[#allocation2 + $0xc] sm:$0xff]
      %v9006 = vld [vmem:[#allocation2 + $0x1c] sm:$0xff]
      %v9007 = vld [vmem:[#allocation2 + $0x24] sm:$0xff]
      %v9008 = vld [vmem:[#allocation2 + $0x34] sm:$0xff]
      %v9009 = vld [vmem:[#allocation2 + $0x3c] sm:$0xff]
      %v9010 = vld [vmem:[#allocation2 + $0x4c] sm:$0xff]
      %v9011 = vld [vmem:[#allocation2 + $0x54] sm:$0xff]
      %v9012 = vld [vmem:[#allocation2 + $0x64] sm:$0xff]
      %v9013 = vld [vmem:[#allocation2 + $0x6c] sm:$0xff]
      %v9014 = vld [vmem:[#allocation2 + $0x7c] sm:$0xff]
      %v9015 = vld [vmem:[#allocation2 + $0x84] sm:$0xff]
      %v9016 = vld [vmem:[#allocation2 + $0x94] sm:$0xff]
      %v9017 = vld [vmem:[#allocation2 + $0x9c] sm:$0xff]
      %v9018 = vld [vmem:[#allocation2 + $0xac] sm:$0xff]
      %v9019 = vld [vmem:[#allocation2 + $0xb4] sm:$0xff]
      %9036 = vrot.lane.b32.xlu0 %v9004, 124
      %v9037 = vpop.permute.xlu0 %9036
      %9038 = vrot.lane.b32.xlu0 %v9005, 124
      %v9039 = vpop.permute.xlu0 %9038
      %9040 = vrot.lane.b32.xlu0 %v9006, 124
      %v9041 = vpop.permute.xlu0 %9040
      %9042 = vrot.lane.b32.xlu0 %v9007, 124
      %v9043 = vpop.permute.xlu0 %9042
      %9044 = vrot.lane.b32.xlu0 %v9008, 124
      %v9045 = vpop.permute.xlu0 %9044
      %9046 = vrot.lane.b32.xlu0 %v9009, 124
      %v9047 = vpop.permute.xlu0 %9046
      %9048 = vrot.lane.b32.xlu0 %v9010, 124
      %v9049 = vpop.permute.xlu0 %9048
      %9050 = vrot.lane.b32.xlu0 %v9011, 124
      %v9051 = vpop.permute.xlu0 %9050
      %9052 = vrot.lane.b32.xlu0 %v9012, 124
      %v9053 = vpop.permute.xlu0 %9052
      %9054 = vrot.lane.b32.xlu0 %v9013, 124
      %v9055 = vpop.permute.xlu0 %9054
      %9056 = vrot.lane.b32.xlu0 %v9014, 124
      %v9057 = vpop.permute.xlu0 %9056
      %9058 = vrot.lane.b32.xlu0 %v9015, 124
      %v9059 = vpop.permute.xlu0 %9058
      %9060 = vrot.lane.b32.xlu0 %v9016, 124
      %v9061 = vpop.permute.xlu0 %9060
      %9062 = vrot.lane.b32.xlu0 %v9017, 124
      %v9063 = vpop.permute.xlu0 %9062
      %9064 = vrot.lane.b32.xlu0 %v9018, 124
      %v9065 = vpop.permute.xlu0 %9064
      %9066 = vrot.lane.b32.xlu0 %v9019, 124
      %v9067 = vpop.permute.xlu0 %9066
      %v9084 = vrot.slane %v9045, 4
      %v9085 = vsel %vm309, %v9084, %v9037
      %v9086 = vrot.slane %v9037, 4
      %v9087 = vsel %vm309, %v9045, %v9086
      %v9089 = vunpack.c.l.s4 1983009808
      %v9090 = vunpack.c.0.s8 %v9089
      %v9091 = vperm.slane %v9085, %v9090
      %v9093 = vunpack.c.l.s4 1983009808
      %v9094 = vunpack.c.0.s8 %v9093
      %v9095 = vperm.slane %v9087, %v9094
      %v9096 = vrot.slane %v9049, 4
      %v9097 = vsel %vm309, %v9096, %v9041
      %v9098 = vrot.slane %v9041, 4
      %v9099 = vsel %vm309, %v9049, %v9098
      %v9101 = vunpack.c.l.s4 1983009808
      %v9102 = vunpack.c.0.s8 %v9101
      %v9103 = vperm.slane %v9097, %v9102
      %v9105 = vunpack.c.l.s4 1983009808
      %v9106 = vunpack.c.0.s8 %v9105
      %v9107 = vperm.slane %v9099, %v9106
      %v9108 = vrot.slane %v9061, 4
      %v9109 = vsel %vm309, %v9108, %v9053
      %v9110 = vrot.slane %v9053, 4
      %v9111 = vsel %vm309, %v9061, %v9110
      %v9113 = vunpack.c.l.s4 1983009808
      %v9114 = vunpack.c.0.s8 %v9113
      %v9115 = vperm.slane %v9109, %v9114
      %v9117 = vunpack.c.l.s4 1983009808
      %v9118 = vunpack.c.0.s8 %v9117
      %v9119 = vperm.slane %v9111, %v9118
      %v9120 = vrot.slane %v9065, 4
      %v9121 = vsel %vm309, %v9120, %v9057
      %v9122 = vrot.slane %v9057, 4
      %v9123 = vsel %vm309, %v9065, %v9122
      %v9125 = vunpack.c.l.s4 1983009808
      %v9126 = vunpack.c.0.s8 %v9125
      %v9127 = vperm.slane %v9121, %v9126
      %v9129 = vunpack.c.l.s4 1983009808
      %v9130 = vunpack.c.0.s8 %v9129
      %v9131 = vperm.slane %v9123, %v9130
      %v9132 = vrot.slane %v9103, 4
      %v9133 = vsel %vm309, %v9132, %v9091
      %v9134 = vrot.slane %v9091, 4
      %v9135 = vsel %vm309, %v9103, %v9134
      %v9137 = vunpack.c.l.s4 1934713408
      %v9138 = vunpack.c.0.s8 %v9137
      %v9139 = vperm.slane %v9133, %v9138
      %v9141 = vunpack.c.l.s4 1934713408
      %v9142 = vunpack.c.0.s8 %v9141
      %v9143 = vperm.slane %v9135, %v9142
      %v9144 = vrot.slane %v9107, 4
      %v9145 = vsel %vm309, %v9144, %v9095
      %v9146 = vrot.slane %v9095, 4
      %v9147 = vsel %vm309, %v9107, %v9146
      %v9149 = vunpack.c.l.s4 1934713408
      %v9150 = vunpack.c.0.s8 %v9149
      %v9151 = vperm.slane %v9145, %v9150
      %v9153 = vunpack.c.l.s4 1934713408
      %v9154 = vunpack.c.0.s8 %v9153
      %v9155 = vperm.slane %v9147, %v9154
      %v9156 = vrot.slane %v9127, 4
      %v9157 = vsel %vm309, %v9156, %v9115
      %v9158 = vrot.slane %v9115, 4
      %v9159 = vsel %vm309, %v9127, %v9158
      %v9161 = vunpack.c.l.s4 1934713408
      %v9162 = vunpack.c.0.s8 %v9161
      %v9163 = vperm.slane %v9157, %v9162
      %v9165 = vunpack.c.l.s4 1934713408
      %v9166 = vunpack.c.0.s8 %v9165
      %v9167 = vperm.slane %v9159, %v9166
      %v9168 = vrot.slane %v9131, 4
      %v9169 = vsel %vm309, %v9168, %v9119
      %v9170 = vrot.slane %v9119, 4
      %v9171 = vsel %vm309, %v9131, %v9170
      %v9173 = vunpack.c.l.s4 1934713408
      %v9174 = vunpack.c.0.s8 %v9173
      %v9175 = vperm.slane %v9169, %v9174
      %v9177 = vunpack.c.l.s4 1934713408
      %v9178 = vunpack.c.0.s8 %v9177
      %v9179 = vperm.slane %v9171, %v9178
      %v9180 = vrot.slane %v9163, 4
      %v9181 = vsel %vm309, %v9180, %v9139
      %v9182 = vrot.slane %v9139, 4
      %v9183 = vsel %vm309, %v9163, %v9182
      %v9184 = vrot.slane %v9167, 4
      %v9185 = vsel %vm309, %v9184, %v9143
      %v9186 = vrot.slane %v9143, 4
      %v9187 = vsel %vm309, %v9167, %v9186
      %v9188 = vrot.slane %v9175, 4
      %v9189 = vsel %vm309, %v9188, %v9151
      %v9190 = vrot.slane %v9151, 4
      %v9191 = vsel %vm309, %v9175, %v9190
      %v9192 = vrot.slane %v9179, 4
      %v9193 = vsel %vm309, %v9192, %v9155
      %v9194 = vrot.slane %v9155, 4
      %v9195 = vsel %vm309, %v9179, %v9194
      %v9196 = vrot.slane %v9047, 4
      %v9197 = vsel %vm309, %v9196, %v9039
      %v9198 = vrot.slane %v9039, 4
      %v9199 = vsel %vm309, %v9047, %v9198
      %v9201 = vunpack.c.l.s4 1983009808
      %v9202 = vunpack.c.0.s8 %v9201
      %v9203 = vperm.slane %v9197, %v9202
      %v9205 = vunpack.c.l.s4 1983009808
      %v9206 = vunpack.c.0.s8 %v9205
      %v9207 = vperm.slane %v9199, %v9206
      %v9208 = vrot.slane %v9051, 4
      %v9209 = vsel %vm309, %v9208, %v9043
      %v9210 = vrot.slane %v9043, 4
      %v9211 = vsel %vm309, %v9051, %v9210
      %v9213 = vunpack.c.l.s4 1983009808
      %v9214 = vunpack.c.0.s8 %v9213
      %v9215 = vperm.slane %v9209, %v9214
      %v9217 = vunpack.c.l.s4 1983009808
      %v9218 = vunpack.c.0.s8 %v9217
      %v9219 = vperm.slane %v9211, %v9218
      %v9220 = vrot.slane %v9063, 4
      %v9221 = vsel %vm309, %v9220, %v9055
      %v9222 = vrot.slane %v9055, 4
      %v9223 = vsel %vm309, %v9063, %v9222
      %v9225 = vunpack.c.l.s4 1983009808
      %v9226 = vunpack.c.0.s8 %v9225
      %v9227 = vperm.slane %v9221, %v9226
      %v9229 = vunpack.c.l.s4 1983009808
      %v9230 = vunpack.c.0.s8 %v9229
      %v9231 = vperm.slane %v9223, %v9230
      %v9232 = vrot.slane %v9067, 4
      %v9233 = vsel %vm309, %v9232, %v9059
      %v9234 = vrot.slane %v9059, 4
      %v9235 = vsel %vm309, %v9067, %v9234
      %v9237 = vunpack.c.l.s4 1983009808
      %v9238 = vunpack.c.0.s8 %v9237
      %v9239 = vperm.slane %v9233, %v9238
      %v9241 = vunpack.c.l.s4 1983009808
      %v9242 = vunpack.c.0.s8 %v9241
      %v9243 = vperm.slane %v9235, %v9242
      %v9244 = vrot.slane %v9215, 4
      %v9245 = vsel %vm309, %v9244, %v9203
      %v9246 = vrot.slane %v9203, 4
      %v9247 = vsel %vm309, %v9215, %v9246
      %v9249 = vunpack.c.l.s4 1934713408
      %v9250 = vunpack.c.0.s8 %v9249
      %v9251 = vperm.slane %v9245, %v9250
      %v9253 = vunpack.c.l.s4 1934713408
      %v9254 = vunpack.c.0.s8 %v9253
      %v9255 = vperm.slane %v9247, %v9254
      %v9256 = vrot.slane %v9219, 4
      %v9257 = vsel %vm309, %v9256, %v9207
      %v9258 = vrot.slane %v9207, 4
      %v9259 = vsel %vm309, %v9219, %v9258
      %v9261 = vunpack.c.l.s4 1934713408
      %v9262 = vunpack.c.0.s8 %v9261
      %v9263 = vperm.slane %v9257, %v9262
      %v9265 = vunpack.c.l.s4 1934713408
      %v9266 = vunpack.c.0.s8 %v9265
      %v9267 = vperm.slane %v9259, %v9266
      %v9268 = vrot.slane %v9239, 4
      %v9269 = vsel %vm309, %v9268, %v9227
      %v9270 = vrot.slane %v9227, 4
      %v9271 = vsel %vm309, %v9239, %v9270
      %v9273 = vunpack.c.l.s4 1934713408
      %v9274 = vunpack.c.0.s8 %v9273
      %v9275 = vperm.slane %v9269, %v9274
      %v9277 = vunpack.c.l.s4 1934713408
      %v9278 = vunpack.c.0.s8 %v9277
      %v9279 = vperm.slane %v9271, %v9278
      %v9280 = vrot.slane %v9243, 4
      %v9281 = vsel %vm309, %v9280, %v9231
      %v9282 = vrot.slane %v9231, 4
      %v9283 = vsel %vm309, %v9243, %v9282
      %v9285 = vunpack.c.l.s4 1934713408
      %v9286 = vunpack.c.0.s8 %v9285
      %v9287 = vperm.slane %v9281, %v9286
      %v9289 = vunpack.c.l.s4 1934713408
      %v9290 = vunpack.c.0.s8 %v9289
      %v9291 = vperm.slane %v9283, %v9290
      %v9292 = vrot.slane %v9275, 4
      %v9293 = vsel %vm309, %v9292, %v9251
      %v9294 = vrot.slane %v9251, 4
      %v9295 = vsel %vm309, %v9275, %v9294
      %v9296 = vrot.slane %v9279, 4
      %v9297 = vsel %vm309, %v9296, %v9255
      %v9298 = vrot.slane %v9255, 4
      %v9299 = vsel %vm309, %v9279, %v9298
      %v9300 = vrot.slane %v9287, 4
      %v9301 = vsel %vm309, %v9300, %v9263
      %v9302 = vrot.slane %v9263, 4
      %v9303 = vsel %vm309, %v9287, %v9302
      %v9304 = vrot.slane %v9291, 4
      %v9305 = vsel %vm309, %v9304, %v9267
      %v9306 = vrot.slane %v9267, 4
      %v9307 = vsel %vm309, %v9291, %v9306
      %9309 = vrot.lane.b32.xlu0 %v9183, 16
      %v9310 = vpop.permute.xlu0 %9309
      %9313 = vrot.lane.b32.xlu0 %v9185, 32
      %v9314 = vpop.permute.xlu0 %9313
      %9317 = vrot.lane.b32.xlu0 %v9187, 48
      %v9318 = vpop.permute.xlu0 %9317
      %9321 = vrot.lane.b32.xlu0 %v9189, 64
      %v9322 = vpop.permute.xlu0 %9321
      %9325 = vrot.lane.b32.xlu0 %v9191, 80
      %v9326 = vpop.permute.xlu0 %9325
      %9329 = vrot.lane.b32.xlu0 %v9193, 96
      %v9330 = vpop.permute.xlu0 %9329
      %9333 = vrot.lane.b32.xlu0 %v9195, 112
      %v9334 = vpop.permute.xlu0 %9333
      %9337 = vrot.lane.b32.xlu0 %v9295, 16
      %v9338 = vpop.permute.xlu0 %9337
      %9341 = vrot.lane.b32.xlu0 %v9297, 32
      %v9342 = vpop.permute.xlu0 %9341
      %9345 = vrot.lane.b32.xlu0 %v9299, 48
      %v9346 = vpop.permute.xlu0 %9345
      %9349 = vrot.lane.b32.xlu0 %v9301, 64
      %v9350 = vpop.permute.xlu0 %9349
      %9353 = vrot.lane.b32.xlu0 %v9303, 80
      %v9354 = vpop.permute.xlu0 %9353
      %9357 = vrot.lane.b32.xlu0 %v9305, 96
      %v9358 = vpop.permute.xlu0 %9357
      %9361 = vrot.lane.b32.xlu0 %v9307, 112
      %v9362 = vpop.permute.xlu0 %9361
      %v9364 = vsel %vm589, %v9181, %v9310
      %v9365 = vsel %vm591, %v9364, %v9314
      %v9366 = vsel %vm593, %v9365, %v9318
      %v9367 = vsel %vm595, %v9366, %v9322
      %v9368 = vsel %vm597, %v9367, %v9326
      %v9369 = vsel %vm599, %v9368, %v9330
      %v9370 = vsel %vm601, %v9369, %v9334
      %v9371 = vsel %vm589, %v9293, %v9338
      %v9372 = vsel %vm591, %v9371, %v9342
      %v9373 = vsel %vm593, %v9372, %v9346
      %v9374 = vsel %vm595, %v9373, %v9350
      %v9375 = vsel %vm597, %v9374, %v9354
      %v9376 = vsel %vm599, %v9375, %v9358
      %v9377 = vsel %vm601, %v9376, %v9362
      %9378 = vst [vmem:[#allocation3 + $0x180] sm:$0xff] %v9370
      %9379 = vst [vmem:[#allocation3 + $0x188] sm:$0xff] %v9377
      %v9380 = vld [vmem:[%s1] sm:$0xff]
      %v9381 = vld [vmem:[%s1 + $0x8] sm:$0xff]
      %v9382 = vld [vmem:[#allocation3] sm:$0xff]
      %v9383 = vld [vmem:[#allocation3 + $0x8] sm:$0xff]
      %v9384 = vld [vmem:[#allocation3 + $0x10] sm:$0xff]
      %v9385 = vld [vmem:[#allocation3 + $0x18] sm:$0xff]
      %v9386 = vld [vmem:[#allocation3 + $0x20] sm:$0xff]
      %v9387 = vld [vmem:[#allocation3 + $0x28] sm:$0xff]
      %v9388 = vld [vmem:[#allocation3 + $0x30] sm:$0xff]
      %v9389 = vld [vmem:[#allocation3 + $0x38] sm:$0xff]
      %v9390 = vld [vmem:[#allocation3 + $0x40] sm:$0xff]
      %v9391 = vld [vmem:[#allocation3 + $0x48] sm:$0xff]
      %v9392 = vld [vmem:[#allocation3 + $0x50] sm:$0xff]
      %v9393 = vld [vmem:[#allocation3 + $0x58] sm:$0xff]
      %v9394 = vld [vmem:[#allocation3 + $0x60] sm:$0xff]
      %v9395 = vld [vmem:[#allocation3 + $0x68] sm:$0xff]
      %v9396 = vld [vmem:[#allocation3 + $0x70] sm:$0xff]
      %v9397 = vld [vmem:[#allocation3 + $0x78] sm:$0xff]
      %v9398 = vld [vmem:[#allocation3 + $0x80] sm:$0xff]
      %v9399 = vld [vmem:[#allocation3 + $0x88] sm:$0xff]
      %v9400 = vld [vmem:[#allocation3 + $0x90] sm:$0xff]
      %v9401 = vld [vmem:[#allocation3 + $0x98] sm:$0xff]
      %v9402 = vld [vmem:[#allocation3 + $0xa0] sm:$0xff]
      %v9403 = vld [vmem:[#allocation3 + $0xa8] sm:$0xff]
      %v9404 = vld [vmem:[#allocation3 + $0xb0] sm:$0xff]
      %v9405 = vld [vmem:[#allocation3 + $0xb8] sm:$0xff]
      %v9406 = vld [vmem:[#allocation3 + $0xc0] sm:$0xff]
      %v9407 = vld [vmem:[#allocation3 + $0xc8] sm:$0xff]
      %v9408 = vld [vmem:[#allocation3 + $0xd0] sm:$0xff]
      %v9409 = vld [vmem:[#allocation3 + $0xd8] sm:$0xff]
      %v9410 = vld [vmem:[#allocation3 + $0xe0] sm:$0xff]
      %v9411 = vld [vmem:[#allocation3 + $0xe8] sm:$0xff]
      %v9412 = vld [vmem:[#allocation3 + $0xf0] sm:$0xff]
      %v9413 = vld [vmem:[#allocation3 + $0xf8] sm:$0xff]
      %v9414 = vld [vmem:[#allocation3 + $0x100] sm:$0xff]
      %v9415 = vld [vmem:[#allocation3 + $0x108] sm:$0xff]
      %v9416 = vld [vmem:[#allocation3 + $0x110] sm:$0xff]
      %v9417 = vld [vmem:[#allocation3 + $0x118] sm:$0xff]
      %v9418 = vld [vmem:[#allocation3 + $0x120] sm:$0xff]
      %v9419 = vld [vmem:[#allocation3 + $0x128] sm:$0xff]
      %v9420 = vld [vmem:[#allocation3 + $0x130] sm:$0xff]
      %v9421 = vld [vmem:[#allocation3 + $0x138] sm:$0xff]
      %v9422 = vld [vmem:[#allocation3 + $0x140] sm:$0xff]
      %v9423 = vld [vmem:[#allocation3 + $0x148] sm:$0xff]
      %v9424 = vld [vmem:[#allocation3 + $0x150] sm:$0xff]
      %v9425 = vld [vmem:[#allocation3 + $0x158] sm:$0xff]
      %v9426 = vld [vmem:[#allocation3 + $0x160] sm:$0xff]
      %v9427 = vld [vmem:[#allocation3 + $0x168] sm:$0xff]
      %v9428 = vld [vmem:[#allocation3 + $0x170] sm:$0xff]
      %v9429 = vld [vmem:[#allocation3 + $0x178] sm:$0xff]
      %v9430 = vld [vmem:[#allocation3 + $0x180] sm:$0xff]
      %v9431 = vld [vmem:[#allocation3 + $0x188] sm:$0xff]
      %vm9432 = vcmask 588800
      %v9434 = vsel %vm9432, %v9381, 0
      %9436 = vmatpush.msra.mxu0 %v9412
      %9437 = vmatpush.msra.mxu0 %v9410
      %9438 = vmatpush.msra.mxu0 %v9408
      %9439 = vmatpush.msra.mxu0 %v9406
      %9440 = vmatpush.msra.mxu0 %v9404
      %9441 = vmatpush.msra.mxu0 %v9402
      %9442 = vmatpush.msra.mxu0 %v9400
      %9443 = vmatpush.msra.mxu0 %v9398
      %9444 = vmatpush.msra.mxu0 %v9396
      %9445 = vmatpush.msra.mxu0 %v9394
      %9446 = vmatpush.msra.mxu0 %v9392
      %9447 = vmatpush.msra.mxu0 %v9390
      %9448 = vmatpush.msra.mxu0 %v9388
      %9449 = vmatpush.msra.mxu0 %v9386
      %9450 = vmatpush.msra.mxu0 %v9384
      %9451 = vmatpush.msra.mxu0 %v9382
      %9452 = vmatmul.f32.gmra.mxu0 %v9380
      %v9453 = vpop.f32.mrf.mxu0
      %v9454 = vadd.f32 0.0, %v9453
      %9455 = vdwg.mxu0
      %9456 = vmatpush.msra.mxu0 0.0
      %9457 = vmatpush.msra.mxu0 0.0
      %9458 = vmatpush.msra.mxu0 0.0
      %9459 = vmatpush.msra.mxu0 0.0
      %9460 = vmatpush.msra.mxu0 0.0
      %9461 = vmatpush.msra.mxu0 0.0
      %9462 = vmatpush.msra.mxu0 0.0
      %9463 = vmatpush.msra.mxu0 %v9430
      %9464 = vmatpush.msra.mxu0 %v9428
      %9465 = vmatpush.msra.mxu0 %v9426
      %9466 = vmatpush.msra.mxu0 %v9424
      %9467 = vmatpush.msra.mxu0 %v9422
      %9468 = vmatpush.msra.mxu0 %v9420
      %9469 = vmatpush.msra.mxu0 %v9418
      %9470 = vmatpush.msra.mxu0 %v9416
      %9471 = vmatpush.msra.mxu0 %v9414
      %9472 = vmatmul.f32.gmra.mxu0 %v9434
      %v9473 = vpop.f32.mrf.mxu0
      %v9474 = vadd.f32 %v9454, %v9473
      %9475 = vdwg.mxu0
      %9476 = vmatpush.msra.mxu0 %v9413
      %9477 = vmatpush.msra.mxu0 %v9411
      %9478 = vmatpush.msra.mxu0 %v9409
      %9479 = vmatpush.msra.mxu0 %v9407
      %9480 = vmatpush.msra.mxu0 %v9405
      %9481 = vmatpush.msra.mxu0 %v9403
      %9482 = vmatpush.msra.mxu0 %v9401
      %9483 = vmatpush.msra.mxu0 %v9399
      %9484 = vmatpush.msra.mxu0 %v9397
      %9485 = vmatpush.msra.mxu0 %v9395
      %9486 = vmatpush.msra.mxu0 %v9393
      %9487 = vmatpush.msra.mxu0 %v9391
      %9488 = vmatpush.msra.mxu0 %v9389
      %9489 = vmatpush.msra.mxu0 %v9387
      %9490 = vmatpush.msra.mxu0 %v9385
      %9491 = vmatpush.msra.mxu0 %v9383
      %9492 = vmatmul.f32.gmra.mxu0 %v9380
      %v9493 = vpop.f32.mrf.mxu0
      %v9494 = vadd.f32 0.0, %v9493
      %9495 = vdwg.mxu0
      %9496 = vmatpush.msra.mxu0 0.0
      %9497 = vmatpush.msra.mxu0 0.0
      %9498 = vmatpush.msra.mxu0 0.0
      %9499 = vmatpush.msra.mxu0 0.0
      %9500 = vmatpush.msra.mxu0 0.0
      %9501 = vmatpush.msra.mxu0 0.0
      %9502 = vmatpush.msra.mxu0 0.0
      %9503 = vmatpush.msra.mxu0 %v9431
      %9504 = vmatpush.msra.mxu0 %v9429
      %9505 = vmatpush.msra.mxu0 %v9427
      %9506 = vmatpush.msra.mxu0 %v9425
      %9507 = vmatpush.msra.mxu0 %v9423
      %9508 = vmatpush.msra.mxu0 %v9421
      %9509 = vmatpush.msra.mxu0 %v9419
      %9510 = vmatpush.msra.mxu0 %v9417
      %9511 = vmatpush.msra.mxu0 %v9415
      %9512 = vmatmul.f32.gmra.mxu0 %v9434
      %v9513 = vpop.f32.mrf.mxu0
      %v9514 = vadd.f32 %v9494, %v9513
      %9515 = vdwg.mxu0
      %9516 = vst [vmem:[%s143] sm:$0xff] %v9474
      %9517 = vst [vmem:[%s143 + $0x8] sm:$0xff] %v9514
      %p9518 = scmp.lt.s32.totalorder %s13, 1
      %s9519 = scalar_select %p9518, %s13, 1
      %s9520 = smul.addr %s9519, 2
      %s9521 = smul.addr %s9520, 8
      %s9522 = scalar_lea.vmem %s2, %s9521
      // Predicated region
      $region29: #{pyconv2_forward.1} parent=27 // pred_check
        %p9523 = pneg %p78
      $region30: #{pyconv2_forward.1} parent=27 // pred_check_branch
        %9525 = sbr.rel (%p9523) target = $region32
      $region31: #{pyconv2_forward.1} parent=27 // pred_region
        _
      $region32: #{pyconv2_forward.1} parent=27 // pred_fallthru
        _
    $region28: #{pyconv2_forward.1} parent=5 // pred_fallthru
      _
    %p9526 = scmp.le.s32.totalorder 2, %s8
    // Predicated region
    $region33: #{pyconv2_forward.1} parent=5 // pred_check
      %p9527 = pneg %p9526
    $region34: #{pyconv2_forward.1} parent=5 // pred_check_branch
      %9529 = sbr.rel (%p9527) target = $region36
    $region35: #{pyconv2_forward.1} parent=5 // pred_region
      %s9530 = ssub.s32 %s8, 2
      // Predicated region
      $region37: #{pyconv2_forward.1} parent=35 // pred_check
        %p9531 = pneg %p84
      $region38: #{pyconv2_forward.1} parent=35 // pred_check_branch
        %9533 = sbr.rel (%p9531) target = $region40
      $region39: #{pyconv2_forward.1} parent=35 // pred_region
        %p9534 = scmp.lt.s32.totalorder %s14, 1
        %s9535 = scalar_select %p9534, %s14, 1
        %s9536 = smul.addr %s9535, 2
        %s9537 = smul.addr %s9536, 8
        %s9538 = scalar_lea.vmem %s2, %s9537
      $region40: #{pyconv2_forward.1} parent=35 // pred_fallthru
        _
    $region36: #{pyconv2_forward.1} parent=5 // pred_fallthru
      _
  $region6: #{pyconv2_forward.1} parent=0 // loop_footer
    %s12 = sadd.s32 1, %s8
  $region7: #{pyconv2_forward.1} parent=0 // loop_footer_branch
    %7 = sbr.rel target = $region3
  $region8: #{pyconv2_forward.1} parent=0 // loop_exit
    _

</llo_original>
